<compile_context>
chip_gen: v7x
topology: tpu7x:2x2x1
jax: 0.10.0
libtpu: 0.0.40
codegen_flags: <defaults>
</compile_context>

<pallas_src>
import functools

import jax
import jax.numpy as jnp
from jax.experimental import pallas as pl
from jax.experimental.pallas import tpu as pltpu


# ----------------------------------------------------------------------------
# small helpers
# ----------------------------------------------------------------------------
def _cparams(*sem):
    return pltpu.CompilerParams(dimension_semantics=sem,
                                vmem_limit_bytes=64 * 1024 * 1024)


def _full(a):
    """BlockSpec covering the whole (small, replicated) array every grid step."""
    zeros = (0,) * a.ndim
    return pl.BlockSpec(a.shape, lambda b, z=zeros: z)


def _edge_masks(S, W):
    """bf16 0/1 masks that zero the wrapped column reads of the flat 3x3 conv.

    Row 0: mask for kw==0 taps (left image edge), row 1: for kw==2 (right edge).
    """
    col = jnp.arange(S, dtype=jnp.int32) % W
    return jnp.stack([(col != 0), (col != W - 1)]).astype(jnp.bfloat16)


def _conv3x3_flat(src, w_ref, bias, ml, mr, W, S):
    """3x3 conv, stride 1, pad 1, on a row-major flattened image.

    src:   (ci, S + 2*W + 2) bf16 value; image lives at lane offset W+1,
           zeros everywhere else (row padding + shift guards).
    w_ref: (9, co, ci) bf16 ref, tap index kh*3 + kw.
    bias:  (co, 1) f32.   ml / mr: (1, S) bf16 column-edge masks.
    Returns (co, S) f32.
    """
    co = w_ref.shape[1]
    acc = jnp.zeros((co, S), jnp.float32)
    for kh in range(3):
        for kw in range(3):
            patch = src[:, kh * W + kw: kh * W + kw + S]
            if kw == 0:
                patch = patch * ml
            elif kw == 2:
                patch = patch * mr
            acc = acc + jnp.dot(w_ref[kh * 3 + kw], patch,
                                preferred_element_type=jnp.float32)
    return acc + bias


# ----------------------------------------------------------------------------
# kernel 1: fused frequency branch (everything except the FFTs)
# ----------------------------------------------------------------------------
def _freq_kernel(amp_ref, phc_ref, magx_ref, phax_ref, mask_ref,
                 wpre_ref, bpre_ref, wsft_ref, bsft_ref, wpost_ref, bpost_ref,
                 re_ref, im_ref, fs_ref, *, Wr):
    nc = amp_ref.shape[1]
    Sf = amp_ref.shape[2]

    def mm(w, x):
        return jnp.dot(w, x, preferred_element_type=jnp.float32)

    # transamp / transpha / processmag / processpha (all 1x1 convs).
    y_amp = mm(wpre_ref[0], amp_ref[0]) + bpre_ref[0]
    y_pha = mm(wpre_ref[1], phc_ref[0]) + bpre_ref[1]
    m = mm(wpre_ref[2], magx_ref[0]) + bpre_ref[2]
    m = jnp.where(m >= 0.0, m, 0.1 * m)                      # LeakyReLU(0.1)
    mag1 = mm(wpre_ref[3], m.astype(jnp.bfloat16)) + bpre_ref[3]
    q = mm(wpre_ref[4], phax_ref[0]) + bpre_ref[4]
    q = jnp.where(q >= 0.0, q, 0.1 * q)
    pha1 = mm(wpre_ref[5], q.astype(jnp.bfloat16)) + bpre_ref[5]

    # SFT convmul + convadd: one 3x3 conv (output channels [mul | add]) on y_amp
    # via the flat guard-padded scratch.
    ml = mask_ref[0:1, :]
    mr = mask_ref[1:2, :]
    fs_ref[...] = jnp.zeros_like(fs_ref)
    fs_ref[:, Wr + 1:Wr + 1 + Sf] = y_amp.astype(jnp.bfloat16)
    acc = _conv3x3_flat(fs_ref[...], wsft_ref, bsft_ref[...], ml, mr, Wr, Sf)
    mul = acc[:nc]
    add = acc[nc:]

    # SFT fuse conv + phase cat conv + recomposition.
    mod = mul * mag1 + add
    mag = (mm(wpost_ref[0], mag1.astype(jnp.bfloat16))
           + mm(wpost_ref[1], mod.astype(jnp.bfloat16)) + bpost_ref[0])
    pha = (mm(wpost_ref[2], y_pha.astype(jnp.bfloat16))
           + mm(wpost_ref[3], pha1.astype(jnp.bfloat16)) + bpost_ref[1])
    re_ref[0] = mag * jnp.cos(pha)
    im_ref[0] = mag * jnp.sin(pha)


def freq_branch(amp, phc, magx, phax, p, *, Wr):
    B, nc, Sf = amp.shape
    masks = _edge_masks(Sf, Wr)
    img = pl.BlockSpec((1, nc, Sf), lambda b: (b, 0, 0))
    return pl.pallas_call(
        functools.partial(_freq_kernel, Wr=Wr),
        out_shape=(jax.ShapeDtypeStruct((B, nc, Sf), jnp.float32),
                   jax.ShapeDtypeStruct((B, nc, Sf), jnp.float32)),
        grid=(B,),
        in_specs=[img, img, img, img, _full(masks),
                  _full(p["fpre_w"]), _full(p["fpre_b"]),
                  _full(p["sft_w"]), _full(p["sft_b"]),
                  _full(p["fpost_w"]), _full(p["fpost_b"])],
        out_specs=(img, img),
        scratch_shapes=[pltpu.VMEM((nc, Sf + 2 * Wr + 2), jnp.bfloat16)],
        compiler_params=_cparams("parallel"),
    )(amp, phc, magx, phax, masks,
      p["fpre_w"], p["fpre_b"], p["sft_w"], p["sft_b"],
      p["fpost_w"], p["fpost_b"])


# ----------------------------------------------------------------------------
# kernel 2: fused HinResBlock + final cat conv + residual
# ----------------------------------------------------------------------------
def _spatial_kernel(xfp_ref, xres_ref, xfs_ref, mask_ref,
                    w1_ref, b1_ref, g_ref, bt_ref, w2_ref, b2_ref,
                    wcat_ref, bcat_ref, o_ref, fs_ref, *, W, half):
    S = xres_ref.shape[2]
    ml = mask_ref[0:1, :]
    mr = mask_ref[1:2, :]

    # conv_1 (3x3) + LeakyReLU(0.2)
    a1 = _conv3x3_flat(xfp_ref[0], w1_ref, b1_ref[...], ml, mr, W, S)
    a1 = jnp.where(a1 >= 0.0, a1, 0.2 * a1)

    # Half-channel InstanceNorm2d(affine=True, eps=1e-5) on the first `half`
    # channels (channels are on the sublane axis, spatial on lanes).
    mean = jnp.mean(a1, axis=1, keepdims=True)
    cen = a1 - mean
    var = jnp.mean(cen * cen, axis=1, keepdims=True)
    normed = cen * jax.lax.rsqrt(var + 1e-5) * g_ref[...] + bt_ref[...]
    row = jax.lax.broadcasted_iota(jnp.int32, a1.shape, 0)
    resi = jnp.where(row < half, normed, a1)

    # conv_2 (3x3) + LeakyReLU(0.2), fed from an in-VMEM flat padded scratch.
    fs_ref[...] = jnp.zeros_like(fs_ref)
    fs_ref[:, W + 1:W + 1 + S] = resi.astype(jnp.bfloat16)
    a2 = _conv3x3_flat(fs_ref[...], w2_ref, b2_ref[...], ml, mr, W, S)
    a2 = jnp.where(a2 >= 0.0, a2, 0.2 * a2)

    x = xres_ref[0]                      # original x (f32 residual)
    x_f = x + a2                         # HinResBlock output
    out = (jnp.dot(wcat_ref[0], x_f.astype(jnp.bfloat16),
                   preferred_element_type=jnp.float32)
           + jnp.dot(wcat_ref[1], xfs_ref[0],
                     preferred_element_type=jnp.float32)
           + bcat_ref[...] + x)          # cat conv + bias + xori
    o_ref[0] = out


def spatial_cat(xfp, x_flat, xfs_flat, p, *, W):
    B, nc, S = x_flat.shape
    masks = _edge_masks(S, W)
    img = pl.BlockSpec((1, nc, S), lambda b: (b, 0, 0))
    pad_spec = pl.BlockSpec((1, nc, S + 2 * W + 2), lambda b: (b, 0, 0))
    return pl.pallas_call(
        functools.partial(_spatial_kernel, W=W, half=nc // 2),
        out_shape=jax.ShapeDtypeStruct((B, nc, S), jnp.float32),
        grid=(B,),
        in_specs=[pad_spec, img, img, _full(masks),
                  _full(p["hin1_w"]), _full(p["hin1_b"]),
                  _full(p["hin_g"]), _full(p["hin_bt"]),
                  _full(p["hin2_w"]), _full(p["hin2_b"]),
                  _full(p["cat_w"]), _full(p["cat_b"])],
        out_specs=img,
        scratch_shapes=[pltpu.VMEM((nc, S + 2 * W + 2), jnp.bfloat16)],
        compiler_params=_cparams("parallel"),
    )(xfp, x_flat, xfs_flat, masks,
      p["hin1_w"], p["hin1_b"], p["hin_g"], p["hin_bt"],
      p["hin2_w"], p["hin2_b"], p["cat_w"], p["cat_b"])


# ----------------------------------------------------------------------------
# kernel 3: conv_down (4x4, stride 2, pad 1, no bias)
# ----------------------------------------------------------------------------
def _down_kernel(p_ref, w_ref, o_ref):
    o_ref[0] = jnp.dot(w_ref[...], p_ref[0], preferred_element_type=jnp.float32)


def conv_down(cf, w_mat):
    # TODO(synk): the strided 16-tap im2col stays in JAX (runs once per forward);
    # could be moved in-kernel with strided halo loads if it shows in a trace.
    B, nc, H, W = cf.shape
    Ho, Wo = H // 2, W // 2
    So = Ho * Wo
    xp = jnp.pad(cf, ((0, 0), (0, 0), (1, 1), (1, 1))).astype(jnp.bfloat16)
    cols = [xp[:, :, kh:kh + 2 * Ho:2, kw:kw + 2 * Wo:2]
            for kh in range(4) for kw in range(4)]
    patches = jnp.concatenate(cols, axis=1).reshape(B, 16 * nc, So)
    out = pl.pallas_call(
        _down_kernel,
        out_shape=jax.ShapeDtypeStruct((B, 2 * nc, So), jnp.float32),
        grid=(B,),
        in_specs=[pl.BlockSpec((1, 16 * nc, So), lambda b: (b, 0, 0)),
                  _full(w_mat)],
        out_specs=pl.BlockSpec((1, 2 * nc, So), lambda b: (b, 0, 0)),
        compiler_params=_cparams("parallel"),
    )(patches, w_mat)
    return out.reshape(B, 2 * nc, Ho, Wo)


# ----------------------------------------------------------------------------
# CAB forward (NCHW in / NCHW out, like the PyTorch module)
# ----------------------------------------------------------------------------
def cab_forward(x, color_feature, p):
    x = x.astype(jnp.float32)
    cf = color_feature.astype(jnp.float32)
    B, nc, H, W = x.shape
    Wr = W // 2 + 1
    Sf = H * Wr
    S = H * W

    # TODO(synk): rfft2 / irfft2 and complex abs/angle stay in plain JAX --
    # complex dtypes are not representable inside Pallas TPU kernels.
    x_freq = jnp.fft.rfft2(x, axes=(2, 3))
    cf_freq = jnp.fft.rfft2(cf, axes=(2, 3))

    amp = jnp.abs(cf_freq).astype(jnp.bfloat16).reshape(B, nc, Sf)
    phc = jnp.angle(cf_freq).astype(jnp.bfloat16).reshape(B, nc, Sf)
    magx = jnp.abs(x_freq).astype(jnp.bfloat16).reshape(B, nc, Sf)
    phax = jnp.angle(x_freq).astype(jnp.bfloat16).reshape(B, nc, Sf)

    real, imag = freq_branch(amp, phc, magx, phax, p, Wr=Wr)
    x_freq_new = jax.lax.complex(real.reshape(B, nc, H, Wr),
                                 imag.reshape(B, nc, H, Wr))
    xfs = jnp.fft.irfft2(x_freq_new, s=(H, W), axes=(2, 3))

    # Spatial branch + final cat conv + residual in one kernel.
    x_flat = x.reshape(B, nc, S)
    xfp = jnp.pad(x_flat, ((0, 0), (0, 0), (W + 1, W + 1))).astype(jnp.bfloat16)
    out = spatial_cat(xfp, x_flat, xfs.astype(jnp.bfloat16).reshape(B, nc, S),
                      p, W=W)
    out = out.reshape(B, nc, H, W)

    down = conv_down(cf, p["down_w"])
    return out, down


# ----------------------------------------------------------------------------
# parameter init (torch layouts) and packing into kernel-ready form
# ----------------------------------------------------------------------------
def init_params(key, nc):
    shapes = {
        "hin_conv1_w": (nc, nc, 3, 3), "hin_conv1_b": (nc,),
        "hin_conv2_w": (nc, nc, 3, 3), "hin_conv2_b": (nc,),
        "hin_norm_g": (nc // 2,), "hin_norm_b": (nc // 2,),
        "fre_pm1_w": (nc, nc, 1, 1), "fre_pm1_b": (nc,),
        "fre_pm2_w": (nc, nc, 1, 1), "fre_pm2_b": (nc,),
        "fre_pp1_w": (nc, nc, 1, 1), "fre_pp1_b": (nc,),
        "fre_pp2_w": (nc, nc, 1, 1), "fre_pp2_b": (nc,),
        "sft_mul_w": (nc, nc, 3, 3), "sft_mul_b": (nc,),
        "sft_add_w": (nc, nc, 3, 3), "sft_add_b": (nc,),
        "sft_fuse_w": (nc, 2 * nc, 1, 1), "sft_fuse_b": (nc,),
        "fre_cat_w": (nc, 2 * nc, 1, 1), "fre_cat_b": (nc,),
        "cab_cat_w": (nc, 2 * nc, 1, 1), "cab_cat_b": (nc,),
        "transamp_w": (nc, nc, 1, 1), "transamp_b": (nc,),
        "transpha_w": (nc, nc, 1, 1), "transpha_b": (nc,),
        "down_w": (2 * nc, nc, 4, 4),
    }
    params = {}
    keys = jax.random.split(key, len(shapes))
    for k, (name, shape) in zip(keys, sorted(shapes.items())):
        params[name] = 0.1 * jax.random.normal(k, shape, dtype=jnp.float32)
    params["hin_norm_g"] = jnp.ones((nc // 2,), jnp.float32)
    params["hin_norm_b"] = jnp.zeros((nc // 2,), jnp.float32)
    return params


def prepare_params(p):
    """Repack torch-layout params into stacked channels-first kernel weights."""
    nc = p["hin_conv1_b"].shape[0]
    bf = lambda a: a.astype(jnp.bfloat16)
    f32 = lambda a: a.astype(jnp.float32)

    def w1x1(w):  # (co, ci, 1, 1) -> (co, ci)
        return w.reshape(w.shape[0], w.shape[1])

    def w3x3(w):  # (co, ci, 3, 3) -> (9, co, ci), tap index kh*3 + kw
        return jnp.transpose(w, (2, 3, 0, 1)).reshape(9, w.shape[0], w.shape[1])

    q = {}
    # HinResBlock
    q["hin1_w"] = bf(w3x3(p["hin_conv1_w"]))
    q["hin1_b"] = f32(p["hin_conv1_b"].reshape(nc, 1))
    q["hin2_w"] = bf(w3x3(p["hin_conv2_w"]))
    q["hin2_b"] = f32(p["hin_conv2_b"].reshape(nc, 1))
    g = jnp.concatenate([p["hin_norm_g"], jnp.ones((nc - nc // 2,), jnp.float32)])
    bt = jnp.concatenate([p["hin_norm_b"], jnp.zeros((nc - nc // 2,), jnp.float32)])
    q["hin_g"] = f32(g.reshape(nc, 1))
    q["hin_bt"] = f32(bt.reshape(nc, 1))
    # frequency pointwise pre: [transamp, transpha, pm1, pm2, pp1, pp2]
    q["fpre_w"] = bf(jnp.stack([w1x1(p["transamp_w"]), w1x1(p["transpha_w"]),
                                w1x1(p["fre_pm1_w"]), w1x1(p["fre_pm2_w"]),
                                w1x1(p["fre_pp1_w"]), w1x1(p["fre_pp2_w"])]))
    q["fpre_b"] = f32(jnp.stack([p["transamp_b"], p["transpha_b"],
                                 p["fre_pm1_b"], p["fre_pm2_b"],
                                 p["fre_pp1_b"], p["fre_pp2_b"]]).reshape(6, nc, 1))
    # SFT 3x3: convmul + convadd stacked along output channels
    q["sft_w"] = bf(jnp.concatenate([w3x3(p["sft_mul_w"]),
                                     w3x3(p["sft_add_w"])], axis=1))  # (9,2nc,nc)
    q["sft_b"] = f32(jnp.concatenate([p["sft_mul_b"],
                                      p["sft_add_b"]]).reshape(2 * nc, 1))
    # frequency pointwise post: [fuse|mag1, fuse|mod, cat|y_pha, cat|pha1]
    wf = w1x1(p["sft_fuse_w"])   # (nc, 2nc), input cat([mag1, mod])
    wc = w1x1(p["fre_cat_w"])    # (nc, 2nc), input cat([y_phase, pha1])
    q["fpost_w"] = bf(jnp.stack([wf[:, :nc], wf[:, nc:], wc[:, :nc], wc[:, nc:]]))
    q["fpost_b"] = f32(jnp.stack([p["sft_fuse_b"],
                                  p["fre_cat_b"]]).reshape(2, nc, 1))
    # CAB cat conv (+ residual in-kernel)
    wcab = w1x1(p["cab_cat_w"])  # (nc, 2nc), input cat([x_f, x_freq_spatial])
    q["cat_w"] = bf(jnp.stack([wcab[:, :nc], wcab[:, nc:]]))
    q["cat_b"] = f32(p["cab_cat_b"].reshape(nc, 1))
    # conv_down 4x4 stride 2: (2nc, nc, 4, 4) -> (2nc, 16*nc), col = (kh*4+kw)*nc+ci
    q["down_w"] = bf(jnp.transpose(p["down_w"], (0, 2, 3, 1)).reshape(2 * nc,
                                                                      16 * nc))
    return q


if __name__ == "__main__":
    B, nc, H, W = 2, 4, 16, 16

    root = jax.random.PRNGKey(0)
    kp, kx, kc = jax.random.split(root, 3)
    params = prepare_params(init_params(kp, nc))

    x = jax.random.normal(kx, (B, nc, H, W), dtype=jnp.float32)          # NCHW
    color_feature = jax.random.normal(kc, (B, nc, H, W), dtype=jnp.float32)

    fwd = jax.jit(cab_forward)
    out, down = fwd(x, color_feature, params)
    jax.block_until_ready((out, down))

    assert out.shape == (B, nc, H, W)
    assert down.shape == (B, 2 * nc, H // 2, W // 2)
    assert out.dtype == jnp.float32 and down.dtype == jnp.float32
    assert bool(jnp.all(jnp.isfinite(out))) and bool(jnp.all(jnp.isfinite(down)))
    print("KERNEL_OK")
</pallas_src>

<mosaic_0001>
module attributes {stable_mosaic.version = 11 : i64} {
  func.func @_down_kernel(%arg0: i32, %arg1: memref<1x64x64xbf16, #tpu.memory_space<vmem>>, %arg2: memref<8x64xbf16, #tpu.memory_space<vmem>>, %arg3: memref<1x8x64xf32, #tpu.memory_space<vmem>>) attributes {dimension_semantics = [#tpu.dimension_semantics<parallel>], iteration_bounds = array<i64: 2>, scalar_prefetch = 0 : i64, scratch_operands = 0 : i64, tpu.core_type = #tpu.core_type<tc>, window_params = [{transform_indices = @transform_0, window_bounds = array<i64: 1, 64, 64>}, {pipeline_mode = #tpu.pipeline_mode<synchronous>, transform_indices = @transform_1, window_bounds = array<i64: 8, 64>}, {transform_indices = @transform_2, window_bounds = array<i64: 1, 8, 64>}]} {
    %c0 = arith.constant 0 : index
    %c0_0 = arith.constant 0 : index
    %0 = vector.load %arg2[%c0, %c0_0] : memref<8x64xbf16, #tpu.memory_space<vmem>>, vector<8x64xbf16>
    %c0_1 = arith.constant 0 : index
    %c0_2 = arith.constant 0 : index
    %c0_3 = arith.constant 0 : index
    %1 = vector.load %arg1[%c0_1, %c0_2, %c0_3] : memref<1x64x64xbf16, #tpu.memory_space<vmem>>, vector<1x64x64xbf16>
    %2 = vector.shape_cast %1 : vector<1x64x64xbf16> to vector<64x64xbf16>
    %cst = arith.constant dense<0.000000e+00> : vector<8x64xf32>
    %3 = tpu.matmul %0, %2, %cst {dimension_numbers = #tpu.dot_dimension_numbers<[1], [0], [0], [1], [0, 0, 1, 1], [], []>} : vector<8x64xbf16>, vector<64x64xbf16>, vector<8x64xf32> -> vector<8x64xf32>
    %c0_4 = arith.constant 0 : index
    %c0_5 = arith.constant 0 : index
    %c0_6 = arith.constant 0 : index
    %4 = vector.load %arg3[%c0_4, %c0_5, %c0_6] : memref<1x8x64xf32, #tpu.memory_space<vmem>>, vector<1x8x64xf32>
    %5 = vector.shape_cast %4 : vector<1x8x64xf32> to vector<8x64xf32>
    %6 = vector.shape_cast %3 : vector<8x64xf32> to vector<1x8x64xf32>
    tpu.vector_store %arg3[%c0_4, %c0_5, %c0_6], %6 {strides = array<i32>} : memref<1x8x64xf32, #tpu.memory_space<vmem>>, vector<1x8x64xf32>,
    return
  }
  func.func @transform_0(%arg0: i32) -> (i32, i32, i32) {
    %c0_i32 = arith.constant 0 : i32
    %c0_i32_0 = arith.constant 0 : i32
    %c0_i32_1 = arith.constant 0 : i32
    return %arg0, %c0_i32, %c0_i32_0 : i32, i32, i32
  }
  func.func @transform_1(%arg0: i32) -> (i32, i32) {
    %c0_i32 = arith.constant 0 : i32
    %c0_i32_0 = arith.constant 0 : i32
    %c0_i32_1 = arith.constant 0 : i32
    return %c0_i32, %c0_i32_0 : i32, i32
  }
  func.func @transform_2(%arg0: i32) -> (i32, i32, i32) {
    %c0_i32 = arith.constant 0 : i32
    %c0_i32_0 = arith.constant 0 : i32
    %c0_i32_1 = arith.constant 0 : i32
    return %arg0, %c0_i32, %c0_i32_0 : i32, i32, i32
  }
}

module attributes {stable_mosaic.version = 11 : i64} {
  func.func @_freq_kernel(%arg0: i32, %arg1: memref<1x4x144xbf16, #tpu.memory_space<vmem>>, %arg2: memref<1x4x144xbf16, #tpu.memory_space<vmem>>, %arg3: memref<1x4x144xbf16, #tpu.memory_space<vmem>>, %arg4: memref<1x4x144xbf16, #tpu.memory_space<vmem>>, %arg5: memref<2x144xbf16, #tpu.memory_space<vmem>>, %arg6: memref<6x4x4xbf16, #tpu.memory_space<vmem>>, %arg7: memref<6x4x1xf32, #tpu.memory_space<vmem>>, %arg8: memref<9x8x4xbf16, #tpu.memory_space<vmem>>, %arg9: memref<8x1xf32, #tpu.memory_space<vmem>>, %arg10: memref<4x4x4xbf16, #tpu.memory_space<vmem>>, %arg11: memref<2x4x1xf32, #tpu.memory_space<vmem>>, %arg12: memref<1x4x144xf32, #tpu.memory_space<vmem>>, %arg13: memref<1x4x144xf32, #tpu.memory_space<vmem>>, %arg14: memref<4x164xbf16, #tpu.memory_space<vmem>>) attributes {dimension_semantics = [#tpu.dimension_semantics<parallel>], iteration_bounds = array<i64: 2>, scalar_prefetch = 0 : i64, scratch_operands = 1 : i64, tpu.core_type = #tpu.core_type<tc>, window_params = [{transform_indices = @transform_0, window_bounds = array<i64: 1, 4, 144>}, {transform_indices = @transform_1, window_bounds = array<i64: 1, 4, 144>}, {transform_indices = @transform_2, window_bounds = array<i64: 1, 4, 144>}, {transform_indices = @transform_3, window_bounds = array<i64: 1, 4, 144>}, {pipeline_mode = #tpu.pipeline_mode<synchronous>, transform_indices = @transform_4, window_bounds = array<i64: 2, 144>}, {pipeline_mode = #tpu.pipeline_mode<synchronous>, transform_indices = @transform_5, window_bounds = array<i64: 6, 4, 4>}, {pipeline_mode = #tpu.pipeline_mode<synchronous>, transform_indices = @transform_6, window_bounds = array<i64: 6, 4, 1>}, {pipeline_mode = #tpu.pipeline_mode<synchronous>, transform_indices = @transform_7, window_bounds = array<i64: 9, 8, 4>}, {pipeline_mode = #tpu.pipeline_mode<synchronous>, transform_indices = @transform_8, window_bounds = array<i64: 8, 1>}, {pipeline_mode = #tpu.pipeline_mode<synchronous>, transform_indices = @transform_9, window_bounds = array<i64: 4, 4, 4>}, {pipeline_mode = #tpu.pipeline_mode<synchronous>, transform_indices = @transform_10, window_bounds = array<i64: 2, 4, 1>}, {transform_indices = @transform_11, window_bounds = array<i64: 1, 4, 144>}, {transform_indices = @transform_12, window_bounds = array<i64: 1, 4, 144>}]} {
    %c0 = arith.constant 0 : index
    %c0_0 = arith.constant 0 : index
    %c0_1 = arith.constant 0 : index
    %0 = vector.load %arg6[%c0, %c0_0, %c0_1] : memref<6x4x4xbf16, #tpu.memory_space<vmem>>, vector<1x4x4xbf16>
    %1 = vector.shape_cast %0 : vector<1x4x4xbf16> to vector<4x4xbf16>
    %c0_2 = arith.constant 0 : index
    %c0_3 = arith.constant 0 : index
    %c0_4 = arith.constant 0 : index
    %2 = vector.load %arg1[%c0_2, %c0_3, %c0_4] : memref<1x4x144xbf16, #tpu.memory_space<vmem>>, vector<1x4x144xbf16>
    %3 = vector.shape_cast %2 : vector<1x4x144xbf16> to vector<4x144xbf16>
    %cst = arith.constant dense<0.000000e+00> : vector<4x144xf32>
    %4 = tpu.matmul %1, %3, %cst {dimension_numbers = #tpu.dot_dimension_numbers<[1], [0], [0], [1], [0, 0, 1, 1], [], []>} : vector<4x4xbf16>, vector<4x144xbf16>, vector<4x144xf32> -> vector<4x144xf32>
    %c0_5 = arith.constant 0 : index
    %c0_6 = arith.constant 0 : index
    %c0_7 = arith.constant 0 : index
    %5 = vector.load %arg7[%c0_5, %c0_6, %c0_7] : memref<6x4x1xf32, #tpu.memory_space<vmem>>, vector<1x4x1xf32>
    %6 = vector.shape_cast %5 : vector<1x4x1xf32> to vector<4x1xf32>
    %7 = vector.broadcast %6 : vector<4x1xf32> to vector<4x144xf32>
    %8 = arith.addf %4, %7 : vector<4x144xf32>
    %c1 = arith.constant 1 : index
    %c0_8 = arith.constant 0 : index
    %c0_9 = arith.constant 0 : index
    %9 = vector.load %arg6[%c1, %c0_8, %c0_9] : memref<6x4x4xbf16, #tpu.memory_space<vmem>>, vector<1x4x4xbf16>
    %10 = vector.shape_cast %9 : vector<1x4x4xbf16> to vector<4x4xbf16>
    %c0_10 = arith.constant 0 : index
    %c0_11 = arith.constant 0 : index
    %c0_12 = arith.constant 0 : index
    %11 = vector.load %arg2[%c0_10, %c0_11, %c0_12] : memref<1x4x144xbf16, #tpu.memory_space<vmem>>, vector<1x4x144xbf16>
    %12 = vector.shape_cast %11 : vector<1x4x144xbf16> to vector<4x144xbf16>
    %cst_13 = arith.constant dense<0.000000e+00> : vector<4x144xf32>
    %13 = tpu.matmul %10, %12, %cst_13 {dimension_numbers = #tpu.dot_dimension_numbers<[1], [0], [0], [1], [0, 0, 1, 1], [], []>} : vector<4x4xbf16>, vector<4x144xbf16>, vector<4x144xf32> -> vector<4x144xf32>
    %c1_14 = arith.constant 1 : index
    %c0_15 = arith.constant 0 : index
    %c0_16 = arith.constant 0 : index
    %14 = vector.load %arg7[%c1_14, %c0_15, %c0_16] : memref<6x4x1xf32, #tpu.memory_space<vmem>>, vector<1x4x1xf32>
    %15 = vector.shape_cast %14 : vector<1x4x1xf32> to vector<4x1xf32>
    %16 = vector.broadcast %15 : vector<4x1xf32> to vector<4x144xf32>
    %17 = arith.addf %13, %16 : vector<4x144xf32>
    %c2 = arith.constant 2 : index
    %c0_17 = arith.constant 0 : index
    %c0_18 = arith.constant 0 : index
    %18 = vector.load %arg6[%c2, %c0_17, %c0_18] : memref<6x4x4xbf16, #tpu.memory_space<vmem>>, vector<1x4x4xbf16>
    %19 = vector.shape_cast %18 : vector<1x4x4xbf16> to vector<4x4xbf16>
    %c0_19 = arith.constant 0 : index
    %c0_20 = arith.constant 0 : index
    %c0_21 = arith.constant 0 : index
    %20 = vector.load %arg3[%c0_19, %c0_20, %c0_21] : memref<1x4x144xbf16, #tpu.memory_space<vmem>>, vector<1x4x144xbf16>
    %21 = vector.shape_cast %20 : vector<1x4x144xbf16> to vector<4x144xbf16>
    %cst_22 = arith.constant dense<0.000000e+00> : vector<4x144xf32>
    %22 = tpu.matmul %19, %21, %cst_22 {dimension_numbers = #tpu.dot_dimension_numbers<[1], [0], [0], [1], [0, 0, 1, 1], [], []>} : vector<4x4xbf16>, vector<4x144xbf16>, vector<4x144xf32> -> vector<4x144xf32>
    %c2_23 = arith.constant 2 : index
    %c0_24 = arith.constant 0 : index
    %c0_25 = arith.constant 0 : index
    %23 = vector.load %arg7[%c2_23, %c0_24, %c0_25] : memref<6x4x1xf32, #tpu.memory_space<vmem>>, vector<1x4x1xf32>
    %24 = vector.shape_cast %23 : vector<1x4x1xf32> to vector<4x1xf32>
    %25 = vector.broadcast %24 : vector<4x1xf32> to vector<4x144xf32>
    %26 = arith.addf %22, %25 : vector<4x144xf32>
    %cst_26 = arith.constant 0.000000e+00 : f32
    %27 = vector.broadcast %cst_26 : f32 to vector<4x144xf32>
    %28 = arith.cmpf oge, %26, %27 : vector<4x144xf32>
    %cst_27 = arith.constant 1.000000e-01 : f32
    %29 = vector.broadcast %cst_27 : f32 to vector<4x144xf32>
    %30 = arith.mulf %29, %26 : vector<4x144xf32>
    %31 = arith.select %28, %26, %30 : vector<4x144xi1>, vector<4x144xf32>
    %c3 = arith.constant 3 : index
    %c0_28 = arith.constant 0 : index
    %c0_29 = arith.constant 0 : index
    %32 = vector.load %arg6[%c3, %c0_28, %c0_29] : memref<6x4x4xbf16, #tpu.memory_space<vmem>>, vector<1x4x4xbf16>
    %33 = vector.shape_cast %32 : vector<1x4x4xbf16> to vector<4x4xbf16>
    %34 = arith.truncf %31 : vector<4x144xf32> to vector<4x144xbf16>
    %cst_30 = arith.constant dense<0.000000e+00> : vector<4x144xf32>
    %35 = tpu.matmul %33, %34, %cst_30 {dimension_numbers = #tpu.dot_dimension_numbers<[1], [0], [0], [1], [0, 0, 1, 1], [], []>} : vector<4x4xbf16>, vector<4x144xbf16>, vector<4x144xf32> -> vector<4x144xf32>
    %c3_31 = arith.constant 3 : index
    %c0_32 = arith.constant 0 : index
    %c0_33 = arith.constant 0 : index
    %36 = vector.load %arg7[%c3_31, %c0_32, %c0_33] : memref<6x4x1xf32, #tpu.memory_space<vmem>>, vector<1x4x1xf32>
    %37 = vector.shape_cast %36 : vector<1x4x1xf32> to vector<4x1xf32>
    %38 = vector.broadcast %37 : vector<4x1xf32> to vector<4x144xf32>
    %39 = arith.addf %35, %38 : vector<4x144xf32>
    %c4 = arith.constant 4 : index
    %c0_34 = arith.constant 0 : index
    %c0_35 = arith.constant 0 : index
    %40 = vector.load %arg6[%c4, %c0_34, %c0_35] : memref<6x4x4xbf16, #tpu.memory_space<vmem>>, vector<1x4x4xbf16>
    %41 = vector.shape_cast %40 : vector<1x4x4xbf16> to vector<4x4xbf16>
    %c0_36 = arith.constant 0 : index
    %c0_37 = arith.constant 0 : index
    %c0_38 = arith.constant 0 : index
    %42 = vector.load %arg4[%c0_36, %c0_37, %c0_38] : memref<1x4x144xbf16, #tpu.memory_space<vmem>>, vector<1x4x144xbf16>
    %43 = vector.shape_cast %42 : vector<1x4x144xbf16> to vector<4x144xbf16>
    %cst_39 = arith.constant dense<0.000000e+00> : vector<4x144xf32>
    %44 = tpu.matmul %41, %43, %cst_39 {dimension_numbers = #tpu.dot_dimension_numbers<[1], [0], [0], [1], [0, 0, 1, 1], [], []>} : vector<4x4xbf16>, vector<4x144xbf16>, vector<4x144xf32> -> vector<4x144xf32>
    %c4_40 = arith.constant 4 : index
    %c0_41 = arith.constant 0 : index
    %c0_42 = arith.constant 0 : index
    %45 = vector.load %arg7[%c4_40, %c0_41, %c0_42] : memref<6x4x1xf32, #tpu.memory_space<vmem>>, vector<1x4x1xf32>
    %46 = vector.shape_cast %45 : vector<1x4x1xf32> to vector<4x1xf32>
    %47 = vector.broadcast %46 : vector<4x1xf32> to vector<4x144xf32>
    %48 = arith.addf %44, %47 : vector<4x144xf32>
    %cst_43 = arith.constant 0.000000e+00 : f32
    %49 = vector.broadcast %cst_43 : f32 to vector<4x144xf32>
    %50 = arith.cmpf oge, %48, %49 : vector<4x144xf32>
    %cst_44 = arith.constant 1.000000e-01 : f32
    %51 = vector.broadcast %cst_44 : f32 to vector<4x144xf32>
    %52 = arith.mulf %51, %48 : vector<4x144xf32>
    %53 = arith.select %50, %48, %52 : vector<4x144xi1>, vector<4x144xf32>
    %c5 = arith.constant 5 : index
    %c0_45 = arith.constant 0 : index
    %c0_46 = arith.constant 0 : index
    %54 = vector.load %arg6[%c5, %c0_45, %c0_46] : memref<6x4x4xbf16, #tpu.memory_space<vmem>>, vector<1x4x4xbf16>
    %55 = vector.shape_cast %54 : vector<1x4x4xbf16> to vector<4x4xbf16>
    %56 = arith.truncf %53 : vector<4x144xf32> to vector<4x144xbf16>
    %cst_47 = arith.constant dense<0.000000e+00> : vector<4x144xf32>
    %57 = tpu.matmul %55, %56, %cst_47 {dimension_numbers = #tpu.dot_dimension_numbers<[1], [0], [0], [1], [0, 0, 1, 1], [], []>} : vector<4x4xbf16>, vector<4x144xbf16>, vector<4x144xf32> -> vector<4x144xf32>
    %c5_48 = arith.constant 5 : index
    %c0_49 = arith.constant 0 : index
    %c0_50 = arith.constant 0 : index
    %58 = vector.load %arg7[%c5_48, %c0_49, %c0_50] : memref<6x4x1xf32, #tpu.memory_space<vmem>>, vector<1x4x1xf32>
    %59 = vector.shape_cast %58 : vector<1x4x1xf32> to vector<4x1xf32>
    %60 = vector.broadcast %59 : vector<4x1xf32> to vector<4x144xf32>
    %61 = arith.addf %57, %60 : vector<4x144xf32>
    %c0_51 = arith.constant 0 : index
    %c0_52 = arith.constant 0 : index
    %62 = vector.load %arg5[%c0_51, %c0_52] : memref<2x144xbf16, #tpu.memory_space<vmem>>, vector<1x144xbf16>
    %c1_53 = arith.constant 1 : index
    %c0_54 = arith.constant 0 : index
    %63 = vector.load %arg5[%c1_53, %c0_54] : memref<2x144xbf16, #tpu.memory_space<vmem>>, vector<1x144xbf16>
    %cst_55 = arith.constant 0.000000e+00 : bf16
    %64 = vector.broadcast %cst_55 : bf16 to vector<4x164xbf16>
    %c0_56 = arith.constant 0 : index
    %c0_57 = arith.constant 0 : index
    %65 = vector.load %arg14[%c0_56, %c0_57] : memref<4x164xbf16, #tpu.memory_space<vmem>>, vector<4x164xbf16>
    tpu.vector_store %arg14[%c0_56, %c0_57], %64 {strides = array<i32>} : memref<4x164xbf16, #tpu.memory_space<vmem>>, vector<4x164xbf16>,
    %66 = arith.truncf %8 : vector<4x144xf32> to vector<4x144xbf16>
    %c0_58 = arith.constant 0 : index
    %c10 = arith.constant 10 : index
    %67 = vector.load %arg14[%c0_58, %c10] : memref<4x164xbf16, #tpu.memory_space<vmem>>, vector<4x144xbf16>
    tpu.vector_store %arg14[%c0_58, %c10], %66 {strides = array<i32>} : memref<4x164xbf16, #tpu.memory_space<vmem>>, vector<4x144xbf16>,
    %c0_59 = arith.constant 0 : index
    %c0_60 = arith.constant 0 : index
    %68 = vector.load %arg14[%c0_59, %c0_60] : memref<4x164xbf16, #tpu.memory_space<vmem>>, vector<4x164xbf16>
    %c0_61 = arith.constant 0 : index
    %c0_62 = arith.constant 0 : index
    %69 = vector.load %arg9[%c0_61, %c0_62] : memref<8x1xf32, #tpu.memory_space<vmem>>, vector<8x1xf32>
    %cst_63 = arith.constant 0.000000e+00 : f32
    %70 = vector.broadcast %cst_63 : f32 to vector<8x144xf32>
    %71 = vector.extract_strided_slice %68 {offsets = [0, 0], sizes = [4, 144], strides = [1, 1]} : vector<4x164xbf16> to vector<4x144xbf16>
    %72 = vector.broadcast %62 : vector<1x144xbf16> to vector<4x144xbf16>
    %73 = arith.mulf %71, %72 : vector<4x144xbf16>
    %c0_64 = arith.constant 0 : index
    %c0_65 = arith.constant 0 : index
    %c0_66 = arith.constant 0 : index
    %74 = vector.load %arg8[%c0_64, %c0_65, %c0_66] : memref<9x8x4xbf16, #tpu.memory_space<vmem>>, vector<1x8x4xbf16>
    %75 = vector.shape_cast %74 : vector<1x8x4xbf16> to vector<8x4xbf16>
    %cst_67 = arith.constant dense<0.000000e+00> : vector<8x144xf32>
    %76 = tpu.matmul %75, %73, %cst_67 {dimension_numbers = #tpu.dot_dimension_numbers<[1], [0], [0], [1], [0, 0, 1, 1], [], []>} : vector<8x4xbf16>, vector<4x144xbf16>, vector<8x144xf32> -> vector<8x144xf32>
    %77 = arith.addf %70, %76 : vector<8x144xf32>
    %78 = vector.extract_strided_slice %68 {offsets = [0, 1], sizes = [4, 144], strides = [1, 1]} : vector<4x164xbf16> to vector<4x144xbf16>
    %c1_68 = arith.constant 1 : index
    %c0_69 = arith.constant 0 : index
    %c0_70 = arith.constant 0 : index
    %79 = vector.load %arg8[%c1_68, %c0_69, %c0_70] : memref<9x8x4xbf16, #tpu.memory_space<vmem>>, vector<1x8x4xbf16>
    %80 = vector.shape_cast %79 : vector<1x8x4xbf16> to vector<8x4xbf16>
    %cst_71 = arith.constant dense<0.000000e+00> : vector<8x144xf32>
    %81 = tpu.matmul %80, %78, %cst_71 {dimension_numbers = #tpu.dot_dimension_numbers<[1], [0], [0], [1], [0, 0, 1, 1], [], []>} : vector<8x4xbf16>, vector<4x144xbf16>, vector<8x144xf32> -> vector<8x144xf32>
    %82 = arith.addf %77, %81 : vector<8x144xf32>
    %83 = vector.extract_strided_slice %68 {offsets = [0, 2], sizes = [4, 144], strides = [1, 1]} : vector<4x164xbf16> to vector<4x144xbf16>
    %84 = vector.broadcast %63 : vector<1x144xbf16> to vector<4x144xbf16>
    %85 = arith.mulf %83, %84 : vector<4x144xbf16>
    %c2_72 = arith.constant 2 : index
    %c0_73 = arith.constant 0 : index
    %c0_74 = arith.constant 0 : index
    %86 = vector.load %arg8[%c2_72, %c0_73, %c0_74] : memref<9x8x4xbf16, #tpu.memory_space<vmem>>, vector<1x8x4xbf16>
    %87 = vector.shape_cast %86 : vector<1x8x4xbf16> to vector<8x4xbf16>
    %cst_75 = arith.constant dense<0.000000e+00> : vector<8x144xf32>
    %88 = tpu.matmul %87, %85, %cst_75 {dimension_numbers = #tpu.dot_dimension_numbers<[1], [0], [0], [1], [0, 0, 1, 1], [], []>} : vector<8x4xbf16>, vector<4x144xbf16>, vector<8x144xf32> -> vector<8x144xf32>
    %89 = arith.addf %82, %88 : vector<8x144xf32>
    %90 = vector.extract_strided_slice %68 {offsets = [0, 9], sizes = [4, 144], strides = [1, 1]} : vector<4x164xbf16> to vector<4x144xbf16>
    %91 = vector.broadcast %62 : vector<1x144xbf16> to vector<4x144xbf16>
    %92 = arith.mulf %90, %91 : vector<4x144xbf16>
    %c3_76 = arith.constant 3 : index
    %c0_77 = arith.constant 0 : index
    %c0_78 = arith.constant 0 : index
    %93 = vector.load %arg8[%c3_76, %c0_77, %c0_78] : memref<9x8x4xbf16, #tpu.memory_space<vmem>>, vector<1x8x4xbf16>
    %94 = vector.shape_cast %93 : vector<1x8x4xbf16> to vector<8x4xbf16>
    %cst_79 = arith.constant dense<0.000000e+00> : vector<8x144xf32>
    %95 = tpu.matmul %94, %92, %cst_79 {dimension_numbers = #tpu.dot_dimension_numbers<[1], [0], [0], [1], [0, 0, 1, 1], [], []>} : vector<8x4xbf16>, vector<4x144xbf16>, vector<8x144xf32> -> vector<8x144xf32>
    %96 = arith.addf %89, %95 : vector<8x144xf32>
    %97 = vector.extract_strided_slice %68 {offsets = [0, 10], sizes = [4, 144], strides = [1, 1]} : vector<4x164xbf16> to vector<4x144xbf16>
    %c4_80 = arith.constant 4 : index
    %c0_81 = arith.constant 0 : index
    %c0_82 = arith.constant 0 : index
    %98 = vector.load %arg8[%c4_80, %c0_81, %c0_82] : memref<9x8x4xbf16, #tpu.memory_space<vmem>>, vector<1x8x4xbf16>
    %99 = vector.shape_cast %98 : vector<1x8x4xbf16> to vector<8x4xbf16>
    %cst_83 = arith.constant dense<0.000000e+00> : vector<8x144xf32>
    %100 = tpu.matmul %99, %97, %cst_83 {dimension_numbers = #tpu.dot_dimension_numbers<[1], [0], [0], [1], [0, 0, 1, 1], [], []>} : vector<8x4xbf16>, vector<4x144xbf16>, vector<8x144xf32> -> vector<8x144xf32>
    %101 = arith.addf %96, %100 : vector<8x144xf32>
    %102 = vector.extract_strided_slice %68 {offsets = [0, 11], sizes = [4, 144], strides = [1, 1]} : vector<4x164xbf16> to vector<4x144xbf16>
    %103 = vector.broadcast %63 : vector<1x144xbf16> to vector<4x144xbf16>
    %104 = arith.mulf %102, %103 : vector<4x144xbf16>
    %c5_84 = arith.constant 5 : index
    %c0_85 = arith.constant 0 : index
    %c0_86 = arith.constant 0 : index
    %105 = vector.load %arg8[%c5_84, %c0_85, %c0_86] : memref<9x8x4xbf16, #tpu.memory_space<vmem>>, vector<1x8x4xbf16>
    %106 = vector.shape_cast %105 : vector<1x8x4xbf16> to vector<8x4xbf16>
    %cst_87 = arith.constant dense<0.000000e+00> : vector<8x144xf32>
    %107 = tpu.matmul %106, %104, %cst_87 {dimension_numbers = #tpu.dot_dimension_numbers<[1], [0], [0], [1], [0, 0, 1, 1], [], []>} : vector<8x4xbf16>, vector<4x144xbf16>, vector<8x144xf32> -> vector<8x144xf32>
    %108 = arith.addf %101, %107 : vector<8x144xf32>
    %109 = vector.extract_strided_slice %68 {offsets = [0, 18], sizes = [4, 144], strides = [1, 1]} : vector<4x164xbf16> to vector<4x144xbf16>
    %110 = vector.broadcast %62 : vector<1x144xbf16> to vector<4x144xbf16>
    %111 = arith.mulf %109, %110 : vector<4x144xbf16>
    %c6 = arith.constant 6 : index
    %c0_88 = arith.constant 0 : index
    %c0_89 = arith.constant 0 : index
    %112 = vector.load %arg8[%c6, %c0_88, %c0_89] : memref<9x8x4xbf16, #tpu.memory_space<vmem>>, vector<1x8x4xbf16>
    %113 = vector.shape_cast %112 : vector<1x8x4xbf16> to vector<8x4xbf16>
    %cst_90 = arith.constant dense<0.000000e+00> : vector<8x144xf32>
    %114 = tpu.matmul %113, %111, %cst_90 {dimension_numbers = #tpu.dot_dimension_numbers<[1], [0], [0], [1], [0, 0, 1, 1], [], []>} : vector<8x4xbf16>, vector<4x144xbf16>, vector<8x144xf32> -> vector<8x144xf32>
    %115 = arith.addf %108, %114 : vector<8x144xf32>
    %116 = vector.extract_strided_slice %68 {offsets = [0, 19], sizes = [4, 144], strides = [1, 1]} : vector<4x164xbf16> to vector<4x144xbf16>
    %c7 = arith.constant 7 : index
    %c0_91 = arith.constant 0 : index
    %c0_92 = arith.constant 0 : index
    %117 = vector.load %arg8[%c7, %c0_91, %c0_92] : memref<9x8x4xbf16, #tpu.memory_space<vmem>>, vector<1x8x4xbf16>
    %118 = vector.shape_cast %117 : vector<1x8x4xbf16> to vector<8x4xbf16>
    %cst_93 = arith.constant dense<0.000000e+00> : vector<8x144xf32>
    %119 = tpu.matmul %118, %116, %cst_93 {dimension_numbers = #tpu.dot_dimension_numbers<[1], [0], [0], [1], [0, 0, 1, 1], [], []>} : vector<8x4xbf16>, vector<4x144xbf16>, vector<8x144xf32> -> vector<8x144xf32>
    %120 = arith.addf %115, %119 : vector<8x144xf32>
    %121 = vector.extract_strided_slice %68 {offsets = [0, 20], sizes = [4, 144], strides = [1, 1]} : vector<4x164xbf16> to vector<4x144xbf16>
    %122 = vector.broadcast %63 : vector<1x144xbf16> to vector<4x144xbf16>
    %123 = arith.mulf %121, %122 : vector<4x144xbf16>
    %c8 = arith.constant 8 : index
    %c0_94 = arith.constant 0 : index
    %c0_95 = arith.constant 0 : index
    %124 = vector.load %arg8[%c8, %c0_94, %c0_95] : memref<9x8x4xbf16, #tpu.memory_space<vmem>>, vector<1x8x4xbf16>
    %125 = vector.shape_cast %124 : vector<1x8x4xbf16> to vector<8x4xbf16>
    %cst_96 = arith.constant dense<0.000000e+00> : vector<8x144xf32>
    %126 = tpu.matmul %125, %123, %cst_96 {dimension_numbers = #tpu.dot_dimension_numbers<[1], [0], [0], [1], [0, 0, 1, 1], [], []>} : vector<8x4xbf16>, vector<4x144xbf16>, vector<8x144xf32> -> vector<8x144xf32>
    %127 = arith.addf %120, %126 : vector<8x144xf32>
    %128 = vector.broadcast %69 : vector<8x1xf32> to vector<8x144xf32>
    %129 = arith.addf %127, %128 : vector<8x144xf32>
    %130 = vector.extract_strided_slice %129 {offsets = [0, 0], sizes = [4, 144], strides = [1, 1]} : vector<8x144xf32> to vector<4x144xf32>
    %131 = vector.extract_strided_slice %129 {offsets = [4, 0], sizes = [4, 144], strides = [1, 1]} : vector<8x144xf32> to vector<4x144xf32>
    %132 = arith.mulf %130, %39 : vector<4x144xf32>
    %133 = arith.addf %132, %131 : vector<4x144xf32>
    %c0_97 = arith.constant 0 : index
    %c0_98 = arith.constant 0 : index
    %c0_99 = arith.constant 0 : index
    %134 = vector.load %arg10[%c0_97, %c0_98, %c0_99] : memref<4x4x4xbf16, #tpu.memory_space<vmem>>, vector<1x4x4xbf16>
    %135 = vector.shape_cast %134 : vector<1x4x4xbf16> to vector<4x4xbf16>
    %136 = arith.truncf %39 : vector<4x144xf32> to vector<4x144xbf16>
    %cst_100 = arith.constant dense<0.000000e+00> : vector<4x144xf32>
    %137 = tpu.matmul %135, %136, %cst_100 {dimension_numbers = #tpu.dot_dimension_numbers<[1], [0], [0], [1], [0, 0, 1, 1], [], []>} : vector<4x4xbf16>, vector<4x144xbf16>, vector<4x144xf32> -> vector<4x144xf32>
    %c1_101 = arith.constant 1 : index
    %c0_102 = arith.constant 0 : index
    %c0_103 = arith.constant 0 : index
    %138 = vector.load %arg10[%c1_101, %c0_102, %c0_103] : memref<4x4x4xbf16, #tpu.memory_space<vmem>>, vector<1x4x4xbf16>
    %139 = vector.shape_cast %138 : vector<1x4x4xbf16> to vector<4x4xbf16>
    %140 = arith.truncf %133 : vector<4x144xf32> to vector<4x144xbf16>
    %cst_104 = arith.constant dense<0.000000e+00> : vector<4x144xf32>
    %141 = tpu.matmul %139, %140, %cst_104 {dimension_numbers = #tpu.dot_dimension_numbers<[1], [0], [0], [1], [0, 0, 1, 1], [], []>} : vector<4x4xbf16>, vector<4x144xbf16>, vector<4x144xf32> -> vector<4x144xf32>
    %142 = arith.addf %137, %141 : vector<4x144xf32>
    %c0_105 = arith.constant 0 : index
    %c0_106 = arith.constant 0 : index
    %c0_107 = arith.constant 0 : index
    %143 = vector.load %arg11[%c0_105, %c0_106, %c0_107] : memref<2x4x1xf32, #tpu.memory_space<vmem>>, vector<1x4x1xf32>
    %144 = vector.shape_cast %143 : vector<1x4x1xf32> to vector<4x1xf32>
    %145 = vector.broadcast %144 : vector<4x1xf32> to vector<4x144xf32>
    %146 = arith.addf %142, %145 : vector<4x144xf32>
    %c2_108 = arith.constant 2 : index
    %c0_109 = arith.constant 0 : index
    %c0_110 = arith.constant 0 : index
    %147 = vector.load %arg10[%c2_108, %c0_109, %c0_110] : memref<4x4x4xbf16, #tpu.memory_space<vmem>>, vector<1x4x4xbf16>
    %148 = vector.shape_cast %147 : vector<1x4x4xbf16> to vector<4x4xbf16>
    %149 = arith.truncf %17 : vector<4x144xf32> to vector<4x144xbf16>
    %cst_111 = arith.constant dense<0.000000e+00> : vector<4x144xf32>
    %150 = tpu.matmul %148, %149, %cst_111 {dimension_numbers = #tpu.dot_dimension_numbers<[1], [0], [0], [1], [0, 0, 1, 1], [], []>} : vector<4x4xbf16>, vector<4x144xbf16>, vector<4x144xf32> -> vector<4x144xf32>
    %c3_112 = arith.constant 3 : index
    %c0_113 = arith.constant 0 : index
    %c0_114 = arith.constant 0 : index
    %151 = vector.load %arg10[%c3_112, %c0_113, %c0_114] : memref<4x4x4xbf16, #tpu.memory_space<vmem>>, vector<1x4x4xbf16>
    %152 = vector.shape_cast %151 : vector<1x4x4xbf16> to vector<4x4xbf16>
    %153 = arith.truncf %61 : vector<4x144xf32> to vector<4x144xbf16>
    %cst_115 = arith.constant dense<0.000000e+00> : vector<4x144xf32>
    %154 = tpu.matmul %152, %153, %cst_115 {dimension_numbers = #tpu.dot_dimension_numbers<[1], [0], [0], [1], [0, 0, 1, 1], [], []>} : vector<4x4xbf16>, vector<4x144xbf16>, vector<4x144xf32> -> vector<4x144xf32>
    %155 = arith.addf %150, %154 : vector<4x144xf32>
    %c1_116 = arith.constant 1 : index
    %c0_117 = arith.constant 0 : index
    %c0_118 = arith.constant 0 : index
    %156 = vector.load %arg11[%c1_116, %c0_117, %c0_118] : memref<2x4x1xf32, #tpu.memory_space<vmem>>, vector<1x4x1xf32>
    %157 = vector.shape_cast %156 : vector<1x4x1xf32> to vector<4x1xf32>
    %158 = vector.broadcast %157 : vector<4x1xf32> to vector<4x144xf32>
    %159 = arith.addf %155, %158 : vector<4x144xf32>
    %160 = math.cos %159 : vector<4x144xf32>
    %161 = arith.mulf %146, %160 : vector<4x144xf32>
    %c0_119 = arith.constant 0 : index
    %c0_120 = arith.constant 0 : index
    %c0_121 = arith.constant 0 : index
    %162 = vector.load %arg12[%c0_119, %c0_120, %c0_121] : memref<1x4x144xf32, #tpu.memory_space<vmem>>, vector<1x4x144xf32>
    %163 = vector.shape_cast %162 : vector<1x4x144xf32> to vector<4x144xf32>
    %164 = vector.shape_cast %161 : vector<4x144xf32> to vector<1x4x144xf32>
    tpu.vector_store %arg12[%c0_119, %c0_120, %c0_121], %164 {strides = array<i32>} : memref<1x4x144xf32, #tpu.memory_space<vmem>>, vector<1x4x144xf32>,
    %165 = math.sin %159 : vector<4x144xf32>
    %166 = arith.mulf %146, %165 : vector<4x144xf32>
    %c0_122 = arith.constant 0 : index
    %c0_123 = arith.constant 0 : index
    %c0_124 = arith.constant 0 : index
    %167 = vector.load %arg13[%c0_122, %c0_123, %c0_124] : memref<1x4x144xf32, #tpu.memory_space<vmem>>, vector<1x4x144xf32>
    %168 = vector.shape_cast %167 : vector<1x4x144xf32> to vector<4x144xf32>
    %169 = vector.shape_cast %166 : vector<4x144xf32> to vector<1x4x144xf32>
    tpu.vector_store %arg13[%c0_122, %c0_123, %c0_124], %169 {strides = array<i32>} : memref<1x4x144xf32, #tpu.memory_space<vmem>>, vector<1x4x144xf32>,
    return
  }
  func.func @transform_0(%arg0: i32) -> (i32, i32, i32) {
    %c0_i32 = arith.constant 0 : i32
    %c0_i32_0 = arith.constant 0 : i32
    %c0_i32_1 = arith.constant 0 : i32
    return %arg0, %c0_i32, %c0_i32_0 : i32, i32, i32
  }
  func.func @transform_1(%arg0: i32) -> (i32, i32, i32) {
    %c0_i32 = arith.constant 0 : i32
    %c0_i32_0 = arith.constant 0 : i32
    %c0_i32_1 = arith.constant 0 : i32
    return %arg0, %c0_i32, %c0_i32_0 : i32, i32, i32
  }
  func.func @transform_2(%arg0: i32) -> (i32, i32, i32) {
    %c0_i32 = arith.constant 0 : i32
    %c0_i32_0 = arith.constant 0 : i32
    %c0_i32_1 = arith.constant 0 : i32
    return %arg0, %c0_i32, %c0_i32_0 : i32, i32, i32
  }
  func.func @transform_3(%arg0: i32) -> (i32, i32, i32) {
    %c0_i32 = arith.constant 0 : i32
    %c0_i32_0 = arith.constant 0 : i32
    %c0_i32_1 = arith.constant 0 : i32
    return %arg0, %c0_i32, %c0_i32_0 : i32, i32, i32
  }
  func.func @transform_4(%arg0: i32) -> (i32, i32) {
    %c0_i32 = arith.constant 0 : i32
    %c0_i32_0 = arith.constant 0 : i32
    %c0_i32_1 = arith.constant 0 : i32
    return %c0_i32, %c0_i32_0 : i32, i32
  }
  func.func @transform_5(%arg0: i32) -> (i32, i32, i32) {
    %c0_i32 = arith.constant 0 : i32
    %c0_i32_0 = arith.constant 0 : i32
    %c0_i32_1 = arith.constant 0 : i32
    %c0_i32_2 = arith.constant 0 : i32
    return %c0_i32, %c0_i32_0, %c0_i32_1 : i32, i32, i32
  }
  func.func @transform_6(%arg0: i32) -> (i32, i32, i32) {
    %c0_i32 = arith.constant 0 : i32
    %c0_i32_0 = arith.constant 0 : i32
    %c0_i32_1 = arith.constant 0 : i32
    %c0_i32_2 = arith.constant 0 : i32
    return %c0_i32, %c0_i32_0, %c0_i32_1 : i32, i32, i32
  }
  func.func @transform_7(%arg0: i32) -> (i32, i32, i32) {
    %c0_i32 = arith.constant 0 : i32
    %c0_i32_0 = arith.constant 0 : i32
    %c0_i32_1 = arith.constant 0 : i32
    %c0_i32_2 = arith.constant 0 : i32
    return %c0_i32, %c0_i32_0, %c0_i32_1 : i32, i32, i32
  }
  func.func @transform_8(%arg0: i32) -> (i32, i32) {
    %c0_i32 = arith.constant 0 : i32
    %c0_i32_0 = arith.constant 0 : i32
    %c0_i32_1 = arith.constant 0 : i32
    return %c0_i32, %c0_i32_0 : i32, i32
  }
  func.func @transform_9(%arg0: i32) -> (i32, i32, i32) {
    %c0_i32 = arith.constant 0 : i32
    %c0_i32_0 = arith.constant 0 : i32
    %c0_i32_1 = arith.constant 0 : i32
    %c0_i32_2 = arith.constant 0 : i32
    return %c0_i32, %c0_i32_0, %c0_i32_1 : i32, i32, i32
  }
  func.func @transform_10(%arg0: i32) -> (i32, i32, i32) {
    %c0_i32 = arith.constant 0 : i32
    %c0_i32_0 = arith.constant 0 : i32
    %c0_i32_1 = arith.constant 0 : i32
    %c0_i32_2 = arith.constant 0 : i32
    return %c0_i32, %c0_i32_0, %c0_i32_1 : i32, i32, i32
  }
  func.func @transform_11(%arg0: i32) -> (i32, i32, i32) {
    %c0_i32 = arith.constant 0 : i32
    %c0_i32_0 = arith.constant 0 : i32
    %c0_i32_1 = arith.constant 0 : i32
    return %arg0, %c0_i32, %c0_i32_0 : i32, i32, i32
  }
  func.func @transform_12(%arg0: i32) -> (i32, i32, i32) {
    %c0_i32 = arith.constant 0 : i32
    %c0_i32_0 = arith.constant 0 : i32
    %c0_i32_1 = arith.constant 0 : i32
    return %arg0, %c0_i32, %c0_i32_0 : i32, i32, i32
  }
}

module attributes {stable_mosaic.version = 11 : i64} {
  func.func @_spatial_kernel(%arg0: i32, %arg1: memref<1x4x290xbf16, #tpu.memory_space<vmem>>, %arg2: memref<1x4x256xf32, #tpu.memory_space<vmem>>, %arg3: memref<1x4x256xbf16, #tpu.memory_space<vmem>>, %arg4: memref<2x256xbf16, #tpu.memory_space<vmem>>, %arg5: memref<9x4x4xbf16, #tpu.memory_space<vmem>>, %arg6: memref<4x1xf32, #tpu.memory_space<vmem>>, %arg7: memref<4x1xf32, #tpu.memory_space<vmem>>, %arg8: memref<4x1xf32, #tpu.memory_space<vmem>>, %arg9: memref<9x4x4xbf16, #tpu.memory_space<vmem>>, %arg10: memref<4x1xf32, #tpu.memory_space<vmem>>, %arg11: memref<2x4x4xbf16, #tpu.memory_space<vmem>>, %arg12: memref<4x1xf32, #tpu.memory_space<vmem>>, %arg13: memref<1x4x256xf32, #tpu.memory_space<vmem>>, %arg14: memref<4x290xbf16, #tpu.memory_space<vmem>>) attributes {dimension_semantics = [#tpu.dimension_semantics<parallel>], iteration_bounds = array<i64: 2>, scalar_prefetch = 0 : i64, scratch_operands = 1 : i64, tpu.core_type = #tpu.core_type<tc>, window_params = [{transform_indices = @transform_0, window_bounds = array<i64: 1, 4, 290>}, {transform_indices = @transform_1, window_bounds = array<i64: 1, 4, 256>}, {transform_indices = @transform_2, window_bounds = array<i64: 1, 4, 256>}, {pipeline_mode = #tpu.pipeline_mode<synchronous>, transform_indices = @transform_3, window_bounds = array<i64: 2, 256>}, {pipeline_mode = #tpu.pipeline_mode<synchronous>, transform_indices = @transform_4, window_bounds = array<i64: 9, 4, 4>}, {pipeline_mode = #tpu.pipeline_mode<synchronous>, transform_indices = @transform_5, window_bounds = array<i64: 4, 1>}, {pipeline_mode = #tpu.pipeline_mode<synchronous>, transform_indices = @transform_6, window_bounds = array<i64: 4, 1>}, {pipeline_mode = #tpu.pipeline_mode<synchronous>, transform_indices = @transform_7, window_bounds = array<i64: 4, 1>}, {pipeline_mode = #tpu.pipeline_mode<synchronous>, transform_indices = @transform_8, window_bounds = array<i64: 9, 4, 4>}, {pipeline_mode = #tpu.pipeline_mode<synchronous>, transform_indices = @transform_9, window_bounds = array<i64: 4, 1>}, {pipeline_mode = #tpu.pipeline_mode<synchronous>, transform_indices = @transform_10, window_bounds = array<i64: 2, 4, 4>}, {pipeline_mode = #tpu.pipeline_mode<synchronous>, transform_indices = @transform_11, window_bounds = array<i64: 4, 1>}, {transform_indices = @transform_12, window_bounds = array<i64: 1, 4, 256>}]} {
    %c0 = arith.constant 0 : index
    %c0_0 = arith.constant 0 : index
    %0 = vector.load %arg4[%c0, %c0_0] : memref<2x256xbf16, #tpu.memory_space<vmem>>, vector<1x256xbf16>
    %c1 = arith.constant 1 : index
    %c0_1 = arith.constant 0 : index
    %1 = vector.load %arg4[%c1, %c0_1] : memref<2x256xbf16, #tpu.memory_space<vmem>>, vector<1x256xbf16>
    %c0_2 = arith.constant 0 : index
    %c0_3 = arith.constant 0 : index
    %c0_4 = arith.constant 0 : index
    %2 = vector.load %arg1[%c0_2, %c0_3, %c0_4] : memref<1x4x290xbf16, #tpu.memory_space<vmem>>, vector<1x4x290xbf16>
    %3 = vector.shape_cast %2 : vector<1x4x290xbf16> to vector<4x290xbf16>
    %c0_5 = arith.constant 0 : index
    %c0_6 = arith.constant 0 : index
    %4 = vector.load %arg6[%c0_5, %c0_6] : memref<4x1xf32, #tpu.memory_space<vmem>>, vector<4x1xf32>
    %cst = arith.constant 0.000000e+00 : f32
    %5 = vector.broadcast %cst : f32 to vector<4x256xf32>
    %6 = vector.extract_strided_slice %3 {offsets = [0, 0], sizes = [4, 256], strides = [1, 1]} : vector<4x290xbf16> to vector<4x256xbf16>
    %7 = vector.broadcast %0 : vector<1x256xbf16> to vector<4x256xbf16>
    %8 = arith.mulf %6, %7 : vector<4x256xbf16>
    %c0_7 = arith.constant 0 : index
    %c0_8 = arith.constant 0 : index
    %c0_9 = arith.constant 0 : index
    %9 = vector.load %arg5[%c0_7, %c0_8, %c0_9] : memref<9x4x4xbf16, #tpu.memory_space<vmem>>, vector<1x4x4xbf16>
    %10 = vector.shape_cast %9 : vector<1x4x4xbf16> to vector<4x4xbf16>
    %cst_10 = arith.constant dense<0.000000e+00> : vector<4x256xf32>
    %11 = tpu.matmul %10, %8, %cst_10 {dimension_numbers = #tpu.dot_dimension_numbers<[1], [0], [0], [1], [0, 0, 1, 1], [], []>} : vector<4x4xbf16>, vector<4x256xbf16>, vector<4x256xf32> -> vector<4x256xf32>
    %12 = arith.addf %5, %11 : vector<4x256xf32>
    %13 = vector.extract_strided_slice %3 {offsets = [0, 1], sizes = [4, 256], strides = [1, 1]} : vector<4x290xbf16> to vector<4x256xbf16>
    %c1_11 = arith.constant 1 : index
    %c0_12 = arith.constant 0 : index
    %c0_13 = arith.constant 0 : index
    %14 = vector.load %arg5[%c1_11, %c0_12, %c0_13] : memref<9x4x4xbf16, #tpu.memory_space<vmem>>, vector<1x4x4xbf16>
    %15 = vector.shape_cast %14 : vector<1x4x4xbf16> to vector<4x4xbf16>
    %cst_14 = arith.constant dense<0.000000e+00> : vector<4x256xf32>
    %16 = tpu.matmul %15, %13, %cst_14 {dimension_numbers = #tpu.dot_dimension_numbers<[1], [0], [0], [1], [0, 0, 1, 1], [], []>} : vector<4x4xbf16>, vector<4x256xbf16>, vector<4x256xf32> -> vector<4x256xf32>
    %17 = arith.addf %12, %16 : vector<4x256xf32>
    %18 = vector.extract_strided_slice %3 {offsets = [0, 2], sizes = [4, 256], strides = [1, 1]} : vector<4x290xbf16> to vector<4x256xbf16>
    %19 = vector.broadcast %1 : vector<1x256xbf16> to vector<4x256xbf16>
    %20 = arith.mulf %18, %19 : vector<4x256xbf16>
    %c2 = arith.constant 2 : index
    %c0_15 = arith.constant 0 : index
    %c0_16 = arith.constant 0 : index
    %21 = vector.load %arg5[%c2, %c0_15, %c0_16] : memref<9x4x4xbf16, #tpu.memory_space<vmem>>, vector<1x4x4xbf16>
    %22 = vector.shape_cast %21 : vector<1x4x4xbf16> to vector<4x4xbf16>
    %cst_17 = arith.constant dense<0.000000e+00> : vector<4x256xf32>
    %23 = tpu.matmul %22, %20, %cst_17 {dimension_numbers = #tpu.dot_dimension_numbers<[1], [0], [0], [1], [0, 0, 1, 1], [], []>} : vector<4x4xbf16>, vector<4x256xbf16>, vector<4x256xf32> -> vector<4x256xf32>
    %24 = arith.addf %17, %23 : vector<4x256xf32>
    %25 = vector.extract_strided_slice %3 {offsets = [0, 16], sizes = [4, 256], strides = [1, 1]} : vector<4x290xbf16> to vector<4x256xbf16>
    %26 = vector.broadcast %0 : vector<1x256xbf16> to vector<4x256xbf16>
    %27 = arith.mulf %25, %26 : vector<4x256xbf16>
    %c3 = arith.constant 3 : index
    %c0_18 = arith.constant 0 : index
    %c0_19 = arith.constant 0 : index
    %28 = vector.load %arg5[%c3, %c0_18, %c0_19] : memref<9x4x4xbf16, #tpu.memory_space<vmem>>, vector<1x4x4xbf16>
    %29 = vector.shape_cast %28 : vector<1x4x4xbf16> to vector<4x4xbf16>
    %cst_20 = arith.constant dense<0.000000e+00> : vector<4x256xf32>
    %30 = tpu.matmul %29, %27, %cst_20 {dimension_numbers = #tpu.dot_dimension_numbers<[1], [0], [0], [1], [0, 0, 1, 1], [], []>} : vector<4x4xbf16>, vector<4x256xbf16>, vector<4x256xf32> -> vector<4x256xf32>
    %31 = arith.addf %24, %30 : vector<4x256xf32>
    %32 = vector.extract_strided_slice %3 {offsets = [0, 17], sizes = [4, 256], strides = [1, 1]} : vector<4x290xbf16> to vector<4x256xbf16>
    %c4 = arith.constant 4 : index
    %c0_21 = arith.constant 0 : index
    %c0_22 = arith.constant 0 : index
    %33 = vector.load %arg5[%c4, %c0_21, %c0_22] : memref<9x4x4xbf16, #tpu.memory_space<vmem>>, vector<1x4x4xbf16>
    %34 = vector.shape_cast %33 : vector<1x4x4xbf16> to vector<4x4xbf16>
    %cst_23 = arith.constant dense<0.000000e+00> : vector<4x256xf32>
    %35 = tpu.matmul %34, %32, %cst_23 {dimension_numbers = #tpu.dot_dimension_numbers<[1], [0], [0], [1], [0, 0, 1, 1], [], []>} : vector<4x4xbf16>, vector<4x256xbf16>, vector<4x256xf32> -> vector<4x256xf32>
    %36 = arith.addf %31, %35 : vector<4x256xf32>
    %37 = vector.extract_strided_slice %3 {offsets = [0, 18], sizes = [4, 256], strides = [1, 1]} : vector<4x290xbf16> to vector<4x256xbf16>
    %38 = vector.broadcast %1 : vector<1x256xbf16> to vector<4x256xbf16>
    %39 = arith.mulf %37, %38 : vector<4x256xbf16>
    %c5 = arith.constant 5 : index
    %c0_24 = arith.constant 0 : index
    %c0_25 = arith.constant 0 : index
    %40 = vector.load %arg5[%c5, %c0_24, %c0_25] : memref<9x4x4xbf16, #tpu.memory_space<vmem>>, vector<1x4x4xbf16>
    %41 = vector.shape_cast %40 : vector<1x4x4xbf16> to vector<4x4xbf16>
    %cst_26 = arith.constant dense<0.000000e+00> : vector<4x256xf32>
    %42 = tpu.matmul %41, %39, %cst_26 {dimension_numbers = #tpu.dot_dimension_numbers<[1], [0], [0], [1], [0, 0, 1, 1], [], []>} : vector<4x4xbf16>, vector<4x256xbf16>, vector<4x256xf32> -> vector<4x256xf32>
    %43 = arith.addf %36, %42 : vector<4x256xf32>
    %44 = vector.extract_strided_slice %3 {offsets = [0, 32], sizes = [4, 256], strides = [1, 1]} : vector<4x290xbf16> to vector<4x256xbf16>
    %45 = vector.broadcast %0 : vector<1x256xbf16> to vector<4x256xbf16>
    %46 = arith.mulf %44, %45 : vector<4x256xbf16>
    %c6 = arith.constant 6 : index
    %c0_27 = arith.constant 0 : index
    %c0_28 = arith.constant 0 : index
    %47 = vector.load %arg5[%c6, %c0_27, %c0_28] : memref<9x4x4xbf16, #tpu.memory_space<vmem>>, vector<1x4x4xbf16>
    %48 = vector.shape_cast %47 : vector<1x4x4xbf16> to vector<4x4xbf16>
    %cst_29 = arith.constant dense<0.000000e+00> : vector<4x256xf32>
    %49 = tpu.matmul %48, %46, %cst_29 {dimension_numbers = #tpu.dot_dimension_numbers<[1], [0], [0], [1], [0, 0, 1, 1], [], []>} : vector<4x4xbf16>, vector<4x256xbf16>, vector<4x256xf32> -> vector<4x256xf32>
    %50 = arith.addf %43, %49 : vector<4x256xf32>
    %51 = vector.extract_strided_slice %3 {offsets = [0, 33], sizes = [4, 256], strides = [1, 1]} : vector<4x290xbf16> to vector<4x256xbf16>
    %c7 = arith.constant 7 : index
    %c0_30 = arith.constant 0 : index
    %c0_31 = arith.constant 0 : index
    %52 = vector.load %arg5[%c7, %c0_30, %c0_31] : memref<9x4x4xbf16, #tpu.memory_space<vmem>>, vector<1x4x4xbf16>
    %53 = vector.shape_cast %52 : vector<1x4x4xbf16> to vector<4x4xbf16>
    %cst_32 = arith.constant dense<0.000000e+00> : vector<4x256xf32>
    %54 = tpu.matmul %53, %51, %cst_32 {dimension_numbers = #tpu.dot_dimension_numbers<[1], [0], [0], [1], [0, 0, 1, 1], [], []>} : vector<4x4xbf16>, vector<4x256xbf16>, vector<4x256xf32> -> vector<4x256xf32>
    %55 = arith.addf %50, %54 : vector<4x256xf32>
    %56 = vector.extract_strided_slice %3 {offsets = [0, 34], sizes = [4, 256], strides = [1, 1]} : vector<4x290xbf16> to vector<4x256xbf16>
    %57 = vector.broadcast %1 : vector<1x256xbf16> to vector<4x256xbf16>
    %58 = arith.mulf %56, %57 : vector<4x256xbf16>
    %c8 = arith.constant 8 : index
    %c0_33 = arith.constant 0 : index
    %c0_34 = arith.constant 0 : index
    %59 = vector.load %arg5[%c8, %c0_33, %c0_34] : memref<9x4x4xbf16, #tpu.memory_space<vmem>>, vector<1x4x4xbf16>
    %60 = vector.shape_cast %59 : vector<1x4x4xbf16> to vector<4x4xbf16>
    %cst_35 = arith.constant dense<0.000000e+00> : vector<4x256xf32>
    %61 = tpu.matmul %60, %58, %cst_35 {dimension_numbers = #tpu.dot_dimension_numbers<[1], [0], [0], [1], [0, 0, 1, 1], [], []>} : vector<4x4xbf16>, vector<4x256xbf16>, vector<4x256xf32> -> vector<4x256xf32>
    %62 = arith.addf %55, %61 : vector<4x256xf32>
    %63 = vector.broadcast %4 : vector<4x1xf32> to vector<4x256xf32>
    %64 = arith.addf %62, %63 : vector<4x256xf32>
    %cst_36 = arith.constant 0.000000e+00 : f32
    %65 = vector.broadcast %cst_36 : f32 to vector<4x256xf32>
    %66 = arith.cmpf oge, %64, %65 : vector<4x256xf32>
    %cst_37 = arith.constant 2.000000e-01 : f32
    %67 = vector.broadcast %cst_37 : f32 to vector<4x256xf32>
    %68 = arith.mulf %67, %64 : vector<4x256xf32>
    %69 = arith.select %66, %64, %68 : vector<4x256xi1>, vector<4x256xf32>
    %cst_38 = arith.constant dense<0.000000e+00> : vector<4xf32>
    %70 = vector.multi_reduction <add>, %69, %cst_38 [1] : vector<4x256xf32> to vector<4xf32>
    %71 = vector.shape_cast %70 : vector<4xf32> to vector<4x1xf32>
    %cst_39 = arith.constant 2.560000e+02 : f32
    %72 = vector.broadcast %cst_39 : f32 to vector<4x1xf32>
    %73 = arith.divf %71, %72 : vector<4x1xf32>
    %74 = vector.broadcast %73 : vector<4x1xf32> to vector<4x256xf32>
    %75 = arith.subf %69, %74 : vector<4x256xf32>
    %76 = arith.mulf %75, %75 : vector<4x256xf32>
    %cst_40 = arith.constant dense<0.000000e+00> : vector<4xf32>
    %77 = vector.multi_reduction <add>, %76, %cst_40 [1] : vector<4x256xf32> to vector<4xf32>
    %78 = vector.shape_cast %77 : vector<4xf32> to vector<4x1xf32>
    %cst_41 = arith.constant 2.560000e+02 : f32
    %79 = vector.broadcast %cst_41 : f32 to vector<4x1xf32>
    %80 = arith.divf %78, %79 : vector<4x1xf32>
    %cst_42 = arith.constant 9.99999974E-6 : f32
    %81 = vector.broadcast %cst_42 : f32 to vector<4x1xf32>
    %82 = arith.addf %80, %81 : vector<4x1xf32>
    %83 = math.rsqrt %82 : vector<4x1xf32>
    %84 = vector.broadcast %83 : vector<4x1xf32> to vector<4x256xf32>
    %85 = arith.mulf %75, %84 : vector<4x256xf32>
    %c0_43 = arith.constant 0 : index
    %c0_44 = arith.constant 0 : index
    %86 = vector.load %arg7[%c0_43, %c0_44] : memref<4x1xf32, #tpu.memory_space<vmem>>, vector<4x1xf32>
    %87 = vector.broadcast %86 : vector<4x1xf32> to vector<4x256xf32>
    %88 = arith.mulf %85, %87 : vector<4x256xf32>
    %c0_45 = arith.constant 0 : index
    %c0_46 = arith.constant 0 : index
    %89 = vector.load %arg8[%c0_45, %c0_46] : memref<4x1xf32, #tpu.memory_space<vmem>>, vector<4x1xf32>
    %90 = vector.broadcast %89 : vector<4x1xf32> to vector<4x256xf32>
    %91 = arith.addf %88, %90 : vector<4x256xf32>
    %92 = tpu.iota {dimensions = array<i32: 0>} : vector<4x256xi32>
    %c2_i32 = arith.constant 2 : i32
    %93 = vector.broadcast %c2_i32 : i32 to vector<4x256xi32>
    %94 = arith.cmpi slt, %92, %93 : vector<4x256xi32>
    %95 = arith.select %94, %91, %69 : vector<4x256xi1>, vector<4x256xf32>
    %cst_47 = arith.constant 0.000000e+00 : bf16
    %96 = vector.broadcast %cst_47 : bf16 to vector<4x290xbf16>
    %c0_48 = arith.constant 0 : index
    %c0_49 = arith.constant 0 : index
    %97 = vector.load %arg14[%c0_48, %c0_49] : memref<4x290xbf16, #tpu.memory_space<vmem>>, vector<4x290xbf16>
    tpu.vector_store %arg14[%c0_48, %c0_49], %96 {strides = array<i32>} : memref<4x290xbf16, #tpu.memory_space<vmem>>, vector<4x290xbf16>,
    %98 = arith.truncf %95 : vector<4x256xf32> to vector<4x256xbf16>
    %c0_50 = arith.constant 0 : index
    %c17 = arith.constant 17 : index
    %99 = vector.load %arg14[%c0_50, %c17] : memref<4x290xbf16, #tpu.memory_space<vmem>>, vector<4x256xbf16>
    tpu.vector_store %arg14[%c0_50, %c17], %98 {strides = array<i32>} : memref<4x290xbf16, #tpu.memory_space<vmem>>, vector<4x256xbf16>,
    %c0_51 = arith.constant 0 : index
    %c0_52 = arith.constant 0 : index
    %100 = vector.load %arg14[%c0_51, %c0_52] : memref<4x290xbf16, #tpu.memory_space<vmem>>, vector<4x290xbf16>
    %c0_53 = arith.constant 0 : index
    %c0_54 = arith.constant 0 : index
    %101 = vector.load %arg10[%c0_53, %c0_54] : memref<4x1xf32, #tpu.memory_space<vmem>>, vector<4x1xf32>
    %cst_55 = arith.constant 0.000000e+00 : f32
    %102 = vector.broadcast %cst_55 : f32 to vector<4x256xf32>
    %103 = vector.extract_strided_slice %100 {offsets = [0, 0], sizes = [4, 256], strides = [1, 1]} : vector<4x290xbf16> to vector<4x256xbf16>
    %104 = vector.broadcast %0 : vector<1x256xbf16> to vector<4x256xbf16>
    %105 = arith.mulf %103, %104 : vector<4x256xbf16>
    %c0_56 = arith.constant 0 : index
    %c0_57 = arith.constant 0 : index
    %c0_58 = arith.constant 0 : index
    %106 = vector.load %arg9[%c0_56, %c0_57, %c0_58] : memref<9x4x4xbf16, #tpu.memory_space<vmem>>, vector<1x4x4xbf16>
    %107 = vector.shape_cast %106 : vector<1x4x4xbf16> to vector<4x4xbf16>
    %cst_59 = arith.constant dense<0.000000e+00> : vector<4x256xf32>
    %108 = tpu.matmul %107, %105, %cst_59 {dimension_numbers = #tpu.dot_dimension_numbers<[1], [0], [0], [1], [0, 0, 1, 1], [], []>} : vector<4x4xbf16>, vector<4x256xbf16>, vector<4x256xf32> -> vector<4x256xf32>
    %109 = arith.addf %102, %108 : vector<4x256xf32>
    %110 = vector.extract_strided_slice %100 {offsets = [0, 1], sizes = [4, 256], strides = [1, 1]} : vector<4x290xbf16> to vector<4x256xbf16>
    %c1_60 = arith.constant 1 : index
    %c0_61 = arith.constant 0 : index
    %c0_62 = arith.constant 0 : index
    %111 = vector.load %arg9[%c1_60, %c0_61, %c0_62] : memref<9x4x4xbf16, #tpu.memory_space<vmem>>, vector<1x4x4xbf16>
    %112 = vector.shape_cast %111 : vector<1x4x4xbf16> to vector<4x4xbf16>
    %cst_63 = arith.constant dense<0.000000e+00> : vector<4x256xf32>
    %113 = tpu.matmul %112, %110, %cst_63 {dimension_numbers = #tpu.dot_dimension_numbers<[1], [0], [0], [1], [0, 0, 1, 1], [], []>} : vector<4x4xbf16>, vector<4x256xbf16>, vector<4x256xf32> -> vector<4x256xf32>
    %114 = arith.addf %109, %113 : vector<4x256xf32>
    %115 = vector.extract_strided_slice %100 {offsets = [0, 2], sizes = [4, 256], strides = [1, 1]} : vector<4x290xbf16> to vector<4x256xbf16>
    %116 = vector.broadcast %1 : vector<1x256xbf16> to vector<4x256xbf16>
    %117 = arith.mulf %115, %116 : vector<4x256xbf16>
    %c2_64 = arith.constant 2 : index
    %c0_65 = arith.constant 0 : index
    %c0_66 = arith.constant 0 : index
    %118 = vector.load %arg9[%c2_64, %c0_65, %c0_66] : memref<9x4x4xbf16, #tpu.memory_space<vmem>>, vector<1x4x4xbf16>
    %119 = vector.shape_cast %118 : vector<1x4x4xbf16> to vector<4x4xbf16>
    %cst_67 = arith.constant dense<0.000000e+00> : vector<4x256xf32>
    %120 = tpu.matmul %119, %117, %cst_67 {dimension_numbers = #tpu.dot_dimension_numbers<[1], [0], [0], [1], [0, 0, 1, 1], [], []>} : vector<4x4xbf16>, vector<4x256xbf16>, vector<4x256xf32> -> vector<4x256xf32>
    %121 = arith.addf %114, %120 : vector<4x256xf32>
    %122 = vector.extract_strided_slice %100 {offsets = [0, 16], sizes = [4, 256], strides = [1, 1]} : vector<4x290xbf16> to vector<4x256xbf16>
    %123 = vector.broadcast %0 : vector<1x256xbf16> to vector<4x256xbf16>
    %124 = arith.mulf %122, %123 : vector<4x256xbf16>
    %c3_68 = arith.constant 3 : index
    %c0_69 = arith.constant 0 : index
    %c0_70 = arith.constant 0 : index
    %125 = vector.load %arg9[%c3_68, %c0_69, %c0_70] : memref<9x4x4xbf16, #tpu.memory_space<vmem>>, vector<1x4x4xbf16>
    %126 = vector.shape_cast %125 : vector<1x4x4xbf16> to vector<4x4xbf16>
    %cst_71 = arith.constant dense<0.000000e+00> : vector<4x256xf32>
    %127 = tpu.matmul %126, %124, %cst_71 {dimension_numbers = #tpu.dot_dimension_numbers<[1], [0], [0], [1], [0, 0, 1, 1], [], []>} : vector<4x4xbf16>, vector<4x256xbf16>, vector<4x256xf32> -> vector<4x256xf32>
    %128 = arith.addf %121, %127 : vector<4x256xf32>
    %129 = vector.extract_strided_slice %100 {offsets = [0, 17], sizes = [4, 256], strides = [1, 1]} : vector<4x290xbf16> to vector<4x256xbf16>
    %c4_72 = arith.constant 4 : index
    %c0_73 = arith.constant 0 : index
    %c0_74 = arith.constant 0 : index
    %130 = vector.load %arg9[%c4_72, %c0_73, %c0_74] : memref<9x4x4xbf16, #tpu.memory_space<vmem>>, vector<1x4x4xbf16>
    %131 = vector.shape_cast %130 : vector<1x4x4xbf16> to vector<4x4xbf16>
    %cst_75 = arith.constant dense<0.000000e+00> : vector<4x256xf32>
    %132 = tpu.matmul %131, %129, %cst_75 {dimension_numbers = #tpu.dot_dimension_numbers<[1], [0], [0], [1], [0, 0, 1, 1], [], []>} : vector<4x4xbf16>, vector<4x256xbf16>, vector<4x256xf32> -> vector<4x256xf32>
    %133 = arith.addf %128, %132 : vector<4x256xf32>
    %134 = vector.extract_strided_slice %100 {offsets = [0, 18], sizes = [4, 256], strides = [1, 1]} : vector<4x290xbf16> to vector<4x256xbf16>
    %135 = vector.broadcast %1 : vector<1x256xbf16> to vector<4x256xbf16>
    %136 = arith.mulf %134, %135 : vector<4x256xbf16>
    %c5_76 = arith.constant 5 : index
    %c0_77 = arith.constant 0 : index
    %c0_78 = arith.constant 0 : index
    %137 = vector.load %arg9[%c5_76, %c0_77, %c0_78] : memref<9x4x4xbf16, #tpu.memory_space<vmem>>, vector<1x4x4xbf16>
    %138 = vector.shape_cast %137 : vector<1x4x4xbf16> to vector<4x4xbf16>
    %cst_79 = arith.constant dense<0.000000e+00> : vector<4x256xf32>
    %139 = tpu.matmul %138, %136, %cst_79 {dimension_numbers = #tpu.dot_dimension_numbers<[1], [0], [0], [1], [0, 0, 1, 1], [], []>} : vector<4x4xbf16>, vector<4x256xbf16>, vector<4x256xf32> -> vector<4x256xf32>
    %140 = arith.addf %133, %139 : vector<4x256xf32>
    %141 = vector.extract_strided_slice %100 {offsets = [0, 32], sizes = [4, 256], strides = [1, 1]} : vector<4x290xbf16> to vector<4x256xbf16>
    %142 = vector.broadcast %0 : vector<1x256xbf16> to vector<4x256xbf16>
    %143 = arith.mulf %141, %142 : vector<4x256xbf16>
    %c6_80 = arith.constant 6 : index
    %c0_81 = arith.constant 0 : index
    %c0_82 = arith.constant 0 : index
    %144 = vector.load %arg9[%c6_80, %c0_81, %c0_82] : memref<9x4x4xbf16, #tpu.memory_space<vmem>>, vector<1x4x4xbf16>
    %145 = vector.shape_cast %144 : vector<1x4x4xbf16> to vector<4x4xbf16>
    %cst_83 = arith.constant dense<0.000000e+00> : vector<4x256xf32>
    %146 = tpu.matmul %145, %143, %cst_83 {dimension_numbers = #tpu.dot_dimension_numbers<[1], [0], [0], [1], [0, 0, 1, 1], [], []>} : vector<4x4xbf16>, vector<4x256xbf16>, vector<4x256xf32> -> vector<4x256xf32>
    %147 = arith.addf %140, %146 : vector<4x256xf32>
    %148 = vector.extract_strided_slice %100 {offsets = [0, 33], sizes = [4, 256], strides = [1, 1]} : vector<4x290xbf16> to vector<4x256xbf16>
    %c7_84 = arith.constant 7 : index
    %c0_85 = arith.constant 0 : index
    %c0_86 = arith.constant 0 : index
    %149 = vector.load %arg9[%c7_84, %c0_85, %c0_86] : memref<9x4x4xbf16, #tpu.memory_space<vmem>>, vector<1x4x4xbf16>
    %150 = vector.shape_cast %149 : vector<1x4x4xbf16> to vector<4x4xbf16>
    %cst_87 = arith.constant dense<0.000000e+00> : vector<4x256xf32>
    %151 = tpu.matmul %150, %148, %cst_87 {dimension_numbers = #tpu.dot_dimension_numbers<[1], [0], [0], [1], [0, 0, 1, 1], [], []>} : vector<4x4xbf16>, vector<4x256xbf16>, vector<4x256xf32> -> vector<4x256xf32>
    %152 = arith.addf %147, %151 : vector<4x256xf32>
    %153 = vector.extract_strided_slice %100 {offsets = [0, 34], sizes = [4, 256], strides = [1, 1]} : vector<4x290xbf16> to vector<4x256xbf16>
    %154 = vector.broadcast %1 : vector<1x256xbf16> to vector<4x256xbf16>
    %155 = arith.mulf %153, %154 : vector<4x256xbf16>
    %c8_88 = arith.constant 8 : index
    %c0_89 = arith.constant 0 : index
    %c0_90 = arith.constant 0 : index
    %156 = vector.load %arg9[%c8_88, %c0_89, %c0_90] : memref<9x4x4xbf16, #tpu.memory_space<vmem>>, vector<1x4x4xbf16>
    %157 = vector.shape_cast %156 : vector<1x4x4xbf16> to vector<4x4xbf16>
    %cst_91 = arith.constant dense<0.000000e+00> : vector<4x256xf32>
    %158 = tpu.matmul %157, %155, %cst_91 {dimension_numbers = #tpu.dot_dimension_numbers<[1], [0], [0], [1], [0, 0, 1, 1], [], []>} : vector<4x4xbf16>, vector<4x256xbf16>, vector<4x256xf32> -> vector<4x256xf32>
    %159 = arith.addf %152, %158 : vector<4x256xf32>
    %160 = vector.broadcast %101 : vector<4x1xf32> to vector<4x256xf32>
    %161 = arith.addf %159, %160 : vector<4x256xf32>
    %cst_92 = arith.constant 0.000000e+00 : f32
    %162 = vector.broadcast %cst_92 : f32 to vector<4x256xf32>
    %163 = arith.cmpf oge, %161, %162 : vector<4x256xf32>
    %cst_93 = arith.constant 2.000000e-01 : f32
    %164 = vector.broadcast %cst_93 : f32 to vector<4x256xf32>
    %165 = arith.mulf %164, %161 : vector<4x256xf32>
    %166 = arith.select %163, %161, %165 : vector<4x256xi1>, vector<4x256xf32>
    %c0_94 = arith.constant 0 : index
    %c0_95 = arith.constant 0 : index
    %c0_96 = arith.constant 0 : index
    %167 = vector.load %arg2[%c0_94, %c0_95, %c0_96] : memref<1x4x256xf32, #tpu.memory_space<vmem>>, vector<1x4x256xf32>
    %168 = vector.shape_cast %167 : vector<1x4x256xf32> to vector<4x256xf32>
    %169 = arith.addf %168, %166 : vector<4x256xf32>
    %c0_97 = arith.constant 0 : index
    %c0_98 = arith.constant 0 : index
    %c0_99 = arith.constant 0 : index
    %170 = vector.load %arg11[%c0_97, %c0_98, %c0_99] : memref<2x4x4xbf16, #tpu.memory_space<vmem>>, vector<1x4x4xbf16>
    %171 = vector.shape_cast %170 : vector<1x4x4xbf16> to vector<4x4xbf16>
    %172 = arith.truncf %169 : vector<4x256xf32> to vector<4x256xbf16>
    %cst_100 = arith.constant dense<0.000000e+00> : vector<4x256xf32>
    %173 = tpu.matmul %171, %172, %cst_100 {dimension_numbers = #tpu.dot_dimension_numbers<[1], [0], [0], [1], [0, 0, 1, 1], [], []>} : vector<4x4xbf16>, vector<4x256xbf16>, vector<4x256xf32> -> vector<4x256xf32>
    %c1_101 = arith.constant 1 : index
    %c0_102 = arith.constant 0 : index
    %c0_103 = arith.constant 0 : index
    %174 = vector.load %arg11[%c1_101, %c0_102, %c0_103] : memref<2x4x4xbf16, #tpu.memory_space<vmem>>, vector<1x4x4xbf16>
    %175 = vector.shape_cast %174 : vector<1x4x4xbf16> to vector<4x4xbf16>
    %c0_104 = arith.constant 0 : index
    %c0_105 = arith.constant 0 : index
    %c0_106 = arith.constant 0 : index
    %176 = vector.load %arg3[%c0_104, %c0_105, %c0_106] : memref<1x4x256xbf16, #tpu.memory_space<vmem>>, vector<1x4x256xbf16>
    %177 = vector.shape_cast %176 : vector<1x4x256xbf16> to vector<4x256xbf16>
    %cst_107 = arith.constant dense<0.000000e+00> : vector<4x256xf32>
    %178 = tpu.matmul %175, %177, %cst_107 {dimension_numbers = #tpu.dot_dimension_numbers<[1], [0], [0], [1], [0, 0, 1, 1], [], []>} : vector<4x4xbf16>, vector<4x256xbf16>, vector<4x256xf32> -> vector<4x256xf32>
    %179 = arith.addf %173, %178 : vector<4x256xf32>
    %c0_108 = arith.constant 0 : index
    %c0_109 = arith.constant 0 : index
    %180 = vector.load %arg12[%c0_108, %c0_109] : memref<4x1xf32, #tpu.memory_space<vmem>>, vector<4x1xf32>
    %181 = vector.broadcast %180 : vector<4x1xf32> to vector<4x256xf32>
    %182 = arith.addf %179, %181 : vector<4x256xf32>
    %183 = arith.addf %182, %168 : vector<4x256xf32>
    %c0_110 = arith.constant 0 : index
    %c0_111 = arith.constant 0 : index
    %c0_112 = arith.constant 0 : index
    %184 = vector.load %arg13[%c0_110, %c0_111, %c0_112] : memref<1x4x256xf32, #tpu.memory_space<vmem>>, vector<1x4x256xf32>
    %185 = vector.shape_cast %184 : vector<1x4x256xf32> to vector<4x256xf32>
    %186 = vector.shape_cast %183 : vector<4x256xf32> to vector<1x4x256xf32>
    tpu.vector_store %arg13[%c0_110, %c0_111, %c0_112], %186 {strides = array<i32>} : memref<1x4x256xf32, #tpu.memory_space<vmem>>, vector<1x4x256xf32>,
    return
  }
  func.func @transform_0(%arg0: i32) -> (i32, i32, i32) {
    %c0_i32 = arith.constant 0 : i32
    %c0_i32_0 = arith.constant 0 : i32
    %c0_i32_1 = arith.constant 0 : i32
    return %arg0, %c0_i32, %c0_i32_0 : i32, i32, i32
  }
  func.func @transform_1(%arg0: i32) -> (i32, i32, i32) {
    %c0_i32 = arith.constant 0 : i32
    %c0_i32_0 = arith.constant 0 : i32
    %c0_i32_1 = arith.constant 0 : i32
    return %arg0, %c0_i32, %c0_i32_0 : i32, i32, i32
  }
  func.func @transform_2(%arg0: i32) -> (i32, i32, i32) {
    %c0_i32 = arith.constant 0 : i32
    %c0_i32_0 = arith.constant 0 : i32
    %c0_i32_1 = arith.constant 0 : i32
    return %arg0, %c0_i32, %c0_i32_0 : i32, i32, i32
  }
  func.func @transform_3(%arg0: i32) -> (i32, i32) {
    %c0_i32 = arith.constant 0 : i32
    %c0_i32_0 = arith.constant 0 : i32
    %c0_i32_1 = arith.constant 0 : i32
    return %c0_i32, %c0_i32_0 : i32, i32
  }
  func.func @transform_4(%arg0: i32) -> (i32, i32, i32) {
    %c0_i32 = arith.constant 0 : i32
    %c0_i32_0 = arith.constant 0 : i32
    %c0_i32_1 = arith.constant 0 : i32
    %c0_i32_2 = arith.constant 0 : i32
    return %c0_i32, %c0_i32_0, %c0_i32_1 : i32, i32, i32
  }
  func.func @transform_5(%arg0: i32) -> (i32, i32) {
    %c0_i32 = arith.constant 0 : i32
    %c0_i32_0 = arith.constant 0 : i32
    %c0_i32_1 = arith.constant 0 : i32
    return %c0_i32, %c0_i32_0 : i32, i32
  }
  func.func @transform_6(%arg0: i32) -> (i32, i32) {
    %c0_i32 = arith.constant 0 : i32
    %c0_i32_0 = arith.constant 0 : i32
    %c0_i32_1 = arith.constant 0 : i32
    return %c0_i32, %c0_i32_0 : i32, i32
  }
  func.func @transform_7(%arg0: i32) -> (i32, i32) {
    %c0_i32 = arith.constant 0 : i32
    %c0_i32_0 = arith.constant 0 : i32
    %c0_i32_1 = arith.constant 0 : i32
    return %c0_i32, %c0_i32_0 : i32, i32
  }
  func.func @transform_8(%arg0: i32) -> (i32, i32, i32) {
    %c0_i32 = arith.constant 0 : i32
    %c0_i32_0 = arith.constant 0 : i32
    %c0_i32_1 = arith.constant 0 : i32
    %c0_i32_2 = arith.constant 0 : i32
    return %c0_i32, %c0_i32_0, %c0_i32_1 : i32, i32, i32
  }
  func.func @transform_9(%arg0: i32) -> (i32, i32) {
    %c0_i32 = arith.constant 0 : i32
    %c0_i32_0 = arith.constant 0 : i32
    %c0_i32_1 = arith.constant 0 : i32
    return %c0_i32, %c0_i32_0 : i32, i32
  }
  func.func @transform_10(%arg0: i32) -> (i32, i32, i32) {
    %c0_i32 = arith.constant 0 : i32
    %c0_i32_0 = arith.constant 0 : i32
    %c0_i32_1 = arith.constant 0 : i32
    %c0_i32_2 = arith.constant 0 : i32
    return %c0_i32, %c0_i32_0, %c0_i32_1 : i32, i32, i32
  }
  func.func @transform_11(%arg0: i32) -> (i32, i32) {
    %c0_i32 = arith.constant 0 : i32
    %c0_i32_0 = arith.constant 0 : i32
    %c0_i32_1 = arith.constant 0 : i32
    return %c0_i32, %c0_i32_0 : i32, i32
  }
  func.func @transform_12(%arg0: i32) -> (i32, i32, i32) {
    %c0_i32 = arith.constant 0 : i32
    %c0_i32_0 = arith.constant 0 : i32
    %c0_i32_1 = arith.constant 0 : i32
    return %arg0, %c0_i32, %c0_i32_0 : i32, i32, i32
  }
}

</mosaic_0001>

<llo_original>
// kernel: cab_forward.5
$region0: #{cab_forward.5}
  #allocation0 [shape = 'u32[]', space=smem, size = 0x4, offset = 0x4, fixed_abs, tag = 'smem constant byte address 0x4 - core index']
  #allocation1 [shape = 'u32[144,128]{1,0:T(1,128)}', space=vmem, size = 0x12000, scoped, tag = 'internal scratch']
  %s0 = inlined_call_operand.hbm [shape: bf16[2,64,64], index: 0, kind: input, shape index: {}]
  %s1 = inlined_call_operand.hbm [shape: bf16[8,64], index: 1, kind: input, shape index: {}]
  %s2 = inlined_call_operand.hbm [shape: f32[2,8,64], index: 2, kind: output, shape index: {}]
  %s3 = sld [smem:[#allocation0]]
  $region49: #{cab_forward.5} parent=0
    _
  %s5 = ssub.s32 1, %s3
  %s6 = scalar_select 0, %s5, %s3
  $region1: #{cab_forward.5} parent=0
    #allocation2 [shape = 'u8[32768]{0}', space=vmem, size = 0x8000, scoped, tag = 'input window, operand 0']
    #allocation3 [shape = 's32[2]{0}', space=sflag, size = 0x8, scoped, tag = 'scoped memory for cab_forward.5']
    #allocation4 [shape = 's32[2]{0}', space=sflag, size = 0x8, scoped, tag = 'scoped memory for cab_forward.5']
    #allocation5 [shape = 'u8[2048]{0}', space=vmem, size = 0x800, scoped, tag = 'input window, operand 1, single buffered']
    #allocation6 [shape = 's32[1]{0}', space=sflag, size = 0x4, scoped, tag = 'scoped memory for cab_forward.5']
    #allocation7 [shape = 'u8[8192]{0}', space=vmem, size = 0x2000, scoped, tag = 'output window, operand 0']
    %7 = vsyncpa [#allocation3], 0
    %s8 = scalar_lea.sflag [#allocation3], 1
    %9 = vsyncpa %s8, 0
    %10 = vsyncpa [#allocation6], 0
    %11 = vsyncpa [#allocation4], 0
    %s12 = scalar_lea.sflag [#allocation4], 1
    %13 = vsyncpa %s12, 0
    loop: start=0, step=1, limit=4
    $region2: #{cab_forward.5} parent=1 // loop_pre_header
      _
    $region3: #{cab_forward.5} parent=1 // loop_header
      %s15 = sphi 0, %s19
      %p16 = scmp.ge.s32.totalorder %s15, 4
      %s25 = sphi 0, %s27
      %s28 = sphi 0, %s25
      %s29 = sphi 0, %s28
      %s45 = sphi 0, %s29
      %s49 = sphi 0, %s49
      %s51 = sphi 0, %s49
      %s52 = sphi 0, %s51
      %s66 = sphi 0, %s52
      %s72 = sphi 0, %s74
      %s75 = sphi 0, %s72
      %s76 = sphi 0, %s75
      %s92 = sphi 0, %s76
    $region4: #{cab_forward.5} parent=1 // loop_header_branch
      %18 = sbr.rel (%p16) target = $region8
    $region5: #{cab_forward.5} parent=1 // loop_body
      %s20 = ssub.s32 %s15, 1
      %s21 = ssub.s32 %s15, 2
      %s22 = sadd.s32 %s15, 1
      %s23 = ssub.s32 %s15, %s22
      %p24 = scmp.eq.s32.totalorder %s23, 0
      %s26 = sadd.s32 %s25, 1
      %s27 = scalar_select %p24, %s25, %s26
      %p30 = pneg %p24
      %p31 = scmp.eq.s32.totalorder %s15, 1
      %p32 = por %p30, %p31
      %p33 = scmp.ne.s32.totalorder %s25, %s28
      %p34 = scmp.eq.s32.totalorder %s15, 0
      %p35 = por %p33, %p34
      %p36 = scmp.ne.s32.totalorder %s25, %s28
      %p37 = scmp.eq.s32.totalorder %s20, 1
      %p38 = por %p36, %p37
      %p39 = scmp.ne.s32.totalorder %s28, %s29
      %p40 = scmp.eq.s32.totalorder %s20, 0
      %p41 = por %p39, %p40
      %p42 = scmp.ne.s32.totalorder %s28, %s29
      %p43 = scmp.eq.s32.totalorder %s21, 1
      %p44 = por %p42, %p43
      %p46 = scmp.ne.s32.totalorder %s29, %s45
      %p47 = scmp.eq.s32.totalorder %s21, 0
      %p48 = por %p46, %p47
      %s50 = sadd.s32 %s49, 1
      %p53 = scmp.eq.s32.totalorder %s15, 1
      %p54 = scmp.ne.s32.totalorder %s49, %s51
      %p55 = scmp.eq.s32.totalorder %s15, 0
      %p56 = por %p54, %p55
      %p57 = scmp.ne.s32.totalorder %s49, %s51
      %p58 = scmp.eq.s32.totalorder %s20, 1
      %p59 = por %p57, %p58
      %p60 = scmp.ne.s32.totalorder %s51, %s52
      %p61 = scmp.eq.s32.totalorder %s20, 0
      %p62 = por %p60, %p61
      %p63 = scmp.ne.s32.totalorder %s51, %s52
      %p64 = scmp.eq.s32.totalorder %s21, 1
      %p65 = por %p63, %p64
      %p67 = scmp.ne.s32.totalorder %s52, %s66
      %p68 = scmp.eq.s32.totalorder %s21, 0
      %p69 = por %p67, %p68
      %s70 = ssub.s32 %s15, %s22
      %p71 = scmp.eq.s32.totalorder %s70, 0
      %s73 = sadd.s32 %s72, 1
      %s74 = scalar_select %p71, %s72, %s73
      %p77 = pneg %p71
      %p78 = scmp.eq.s32.totalorder %s15, 1
      %p79 = por %p77, %p78
      %p80 = scmp.ne.s32.totalorder %s72, %s75
      %p81 = scmp.eq.s32.totalorder %s15, 0
      %p82 = por %p80, %p81
      %p83 = scmp.ne.s32.totalorder %s72, %s75
      %p84 = scmp.eq.s32.totalorder %s20, 1
      %p85 = por %p83, %p84
      %p86 = scmp.ne.s32.totalorder %s75, %s76
      %p87 = scmp.eq.s32.totalorder %s20, 0
      %p88 = por %p86, %p87
      %p89 = scmp.ne.s32.totalorder %s75, %s76
      %p90 = scmp.eq.s32.totalorder %s21, 1
      %p91 = por %p89, %p90
      %p93 = scmp.ne.s32.totalorder %s76, %s92
      %p94 = scmp.eq.s32.totalorder %s21, 0
      %p95 = por %p93, %p94
      %p96 = scmp.le.s32.totalorder 1, %s15
      %p97 = scmp.lt.s32.totalorder %s15, 3
      %p98 = pnand %p96, %p97
      %p99 = pneg %p98
      // Predicated region
      $region9: #{cab_forward.5} parent=5 // pred_check
        _
      $region10: #{cab_forward.5} parent=5 // pred_check_branch
        %101 = sbr.rel (%p98) target = $region12
      $region11: #{cab_forward.5} parent=5 // pred_region
        %s102 = ssub.s32 %s15, 1
        // Predicated region
        $region13: #{cab_forward.5} parent=11 // pred_check
          %p103 = pneg %p62
        $region14: #{cab_forward.5} parent=11 // pred_check_branch
          %105 = sbr.rel (%p103) target = $region16
        $region15: #{cab_forward.5} parent=11 // pred_region
          %s107 = ssub.s32 64, 64
          %108 = vsyncadd [#allocation6], %s107
          %s110 = sshll.u32 [#allocation5], 4
          %s111 = int_to_ptr.vmem [resolvable:$true] %s110
          %113 = dma.hbm_to_vmem [thread:$0]  %s1, 64, %s111, [#allocation6]
        $region16: #{cab_forward.5} parent=11 // pred_fallthru
          _
      $region12: #{cab_forward.5} parent=5 // pred_fallthru
        _
      %p114 = scmp.lt.s32.totalorder %s15, 2
      // Predicated region
      $region17: #{cab_forward.5} parent=5 // pred_check
        %p115 = pneg %p114
      $region18: #{cab_forward.5} parent=5 // pred_check_branch
        %117 = sbr.rel (%p115) target = $region20
      $region19: #{cab_forward.5} parent=5 // pred_region
        // Predicated region
        $region21: #{cab_forward.5} parent=19 // pred_check
          %p118 = pneg %p35
        $region22: #{cab_forward.5} parent=19 // pred_check_branch
          %120 = sbr.rel (%p118) target = $region24
        $region23: #{cab_forward.5} parent=19 // pred_region
          %s121 = sand.u32 %s25, 1
          %s122 = scalar_lea.sflag [#allocation3], %s121
          %s123 = sand.u32 %s25, 1
          %s124 = smul.addr %s123, 32
          %s125 = scalar_lea.vmem [#allocation2], %s124
          %s127 = ssub.s32 512, 512
          %128 = vsyncadd %s122, %s127
          %s129 = smul.addr %s15, 8
          %s130 = smul.addr %s129, 64
          %s131 = scalar_lea.hbm %s0, %s130
          %s132 = sshll.u32 %s125, 4
          %s133 = int_to_ptr.vmem [resolvable:$true] %s132
          %138 = dma.hbm_to_vmem [thread:$0]  %s131, 512, %s133, %s122, 64, 64, 4
        $region24: #{cab_forward.5} parent=19 // pred_fallthru
          _
      $region20: #{cab_forward.5} parent=5 // pred_fallthru
        _
      %p139 = scmp.le.s32.totalorder 1, %s15
      %p140 = scmp.lt.s32.totalorder %s15, 3
      %p141 = pnand %p139, %p140
      %p142 = pneg %p141
      // Predicated region
      $region25: #{cab_forward.5} parent=5 // pred_check
        _
      $region26: #{cab_forward.5} parent=5 // pred_check_branch
        %144 = sbr.rel (%p141) target = $region28
      $region27: #{cab_forward.5} parent=5 // pred_region
        %s145 = ssub.s32 %s15, 1
        %s146 = sand.u32 %s28, 1
        %s147 = scalar_lea.sflag [#allocation3], %s146
        %s148 = sand.u32 %s28, 1
        %s149 = smul.addr %s148, 32
        %s150 = scalar_lea.vmem [#allocation2], %s149
        // Predicated region
        $region29: #{cab_forward.5} parent=27 // pred_check
          %p151 = pneg %p41
        $region30: #{cab_forward.5} parent=27 // pred_check_branch
          %153 = sbr.rel (%p151) target = $region32
        $region31: #{cab_forward.5} parent=27 // pred_region
          %154 = dma.done %s147, 512
        $region32: #{cab_forward.5} parent=27 // pred_fallthru
          _
        // Predicated region
        $region33: #{cab_forward.5} parent=27 // pred_check
          %p155 = pneg %p62
        $region34: #{cab_forward.5} parent=27 // pred_check_branch
          %157 = sbr.rel (%p155) target = $region36
        $region35: #{cab_forward.5} parent=27 // pred_region
          %158 = dma.done [#allocation6], 64
        $region36: #{cab_forward.5} parent=27 // pred_fallthru
          _
        %s159 = sand.u32 %s28, 1
        %s160 = scalar_lea.sflag [#allocation3], %s159
        %s161 = sand.u32 %s28, 1
        %s162 = smul.addr %s161, 32
        %s163 = scalar_lea.vmem [#allocation2], %s162
        %p164 = pneg %p41
        %p165 = pneg %p38
        %p166 = pneg %p62
        %p167 = pneg %p59
        %p168 = pneg %p88
        %p169 = pneg %p85
        %s170 = sand.u32 %s75, 1
        %s171 = scalar_lea.sflag [#allocation4], %s170
        %s172 = sand.u32 %s75, 1
        %s173 = smul.addr %s172, 8
        %s174 = scalar_lea.vmem [#allocation7], %s173
        %v176 = vld [vmem:[#allocation5] sm:$0xf]
        %v177 = vld [vmem:[%s150] sm:$0xf]
        %v178 = vld [vmem:[%s150 + $0x4] sm:$0xf]
        %v179 = vld [vmem:[%s150 + $0x8] sm:$0xf]
        %v180 = vld [vmem:[%s150 + $0xc] sm:$0xf]
        %v181 = vld [vmem:[%s150 + $0x10] sm:$0xf]
        %v182 = vld [vmem:[%s150 + $0x14] sm:$0xf]
        %v183 = vld [vmem:[%s150 + $0x18] sm:$0xf]
        %v184 = vld [vmem:[%s150 + $0x1c] sm:$0xf]
        %v193 = vunpack.c.l.b16 %v177
        %v194 = vunpack.c.l.b16 %v178
        %v195 = vunpack.c.l.b16 %v179
        %v196 = vunpack.c.l.b16 %v180
        %v197 = vunpack.c.l.b16 %v181
        %v198 = vunpack.c.l.b16 %v182
        %v199 = vunpack.c.l.b16 %v183
        %v200 = vunpack.c.l.b16 %v184
        %v201 = vpack.c.b16 %v194, %v193
        %v202 = vpack.c.b16 %v196, %v195
        %v203 = vpack.c.b16 %v198, %v197
        %v204 = vpack.c.b16 %v200, %v199
        %vm209 = vcmask 523264
        %v211 = vsel %vm209, %v176, 0
        %213 = vmatprep.subr.bf16.mxu0 0
        %214 = vmatpush1.bf16.msra.mxu0 %v201
        %215 = vmatprep.subr.bf16.mxu0 0
        %216 = vmatpush1.bf16.msra.mxu0 %v202
        %217 = vmatprep.subr.bf16.mxu0 0
        %218 = vmatpush1.bf16.msra.mxu0 %v203
        %219 = vmatprep.subr.bf16.mxu0 0
        %220 = vmatpush1.bf16.msra.mxu0 %v204
        %221 = vmatprep.subr.bf16.mxu0 0
        %222 = vmatpush1.bf16.msra.mxu0 0
        %223 = vmatprep.subr.bf16.mxu0 0
        %224 = vmatpush1.bf16.msra.mxu0 0
        %225 = vmatprep.subr.bf16.mxu0 0
        %226 = vmatpush1.bf16.msra.mxu0 0
        %227 = vmatprep.subr.bf16.mxu0 0
        %228 = vmatpush1.bf16.msra.mxu0 0
        %229 = vmatprep.subr.bf16.mxu0 0
        %230 = vmatpush1.bf16.msra.mxu0 0
        %231 = vmatprep.subr.bf16.mxu0 0
        %232 = vmatpush1.bf16.msra.mxu0 0
        %233 = vmatprep.subr.bf16.mxu0 0
        %234 = vmatpush1.bf16.msra.mxu0 0
        %235 = vmatprep.subr.bf16.mxu0 0
        %236 = vmatpush1.bf16.msra.mxu0 0
        %237 = vmatprep.subr.bf16.mxu0 0
        %238 = vmatpush1.bf16.msra.mxu0 0
        %239 = vmatprep.subr.bf16.mxu0 0
        %240 = vmatpush1.bf16.msra.mxu0 0
        %241 = vmatprep.subr.bf16.mxu0 0
        %242 = vmatpush1.bf16.msra.mxu0 0
        %243 = vmatprep.subr.bf16.mxu0 0
        %244 = vmatpush1.bf16.msra.mxu0 0
        %245 = vmatprep.mubr.bf16.mxu0 0
        %246 = vmatmul.mubr.bf16.gmra.mrb[0].mxu0 %v211
        %v247 = vpop.f32.mrb[0].mxu0
        %v248 = vadd.f32 0.0, %v247
        %v249 = vpop.f32.mrb[0].mxu0
        %v250 = vpop.f32.mrb[0].mxu0
        %v251 = vpop.f32.mrb[0].mxu0
        %252 = vdwg.mxu0
        %253 = vst.msk [vmem:[%s174] sm:$0xff] %vm209, %v248
        %s254 = sand.u32 %s75, 1
        %s255 = scalar_lea.sflag [#allocation4], %s254
        %s256 = sand.u32 %s75, 1
        %s257 = smul.addr %s256, 8
        %s258 = scalar_lea.vmem [#allocation7], %s257
        // Predicated region
        $region37: #{cab_forward.5} parent=27 // pred_check
          %p259 = pneg %p85
        $region38: #{cab_forward.5} parent=27 // pred_check_branch
          %261 = sbr.rel (%p259) target = $region40
        $region39: #{cab_forward.5} parent=27 // pred_region
          %s263 = ssub.s32 128, 128
          %264 = vsyncadd %s255, %s263
          %s265 = smul.addr %s20, 128
          %s266 = scalar_lea.hbm %s2, %s265
          %s268 = sshll.u32 %s258, 4
          %s269 = int_to_ptr.vmem [resolvable:$true] %s268
          %271 = dma.vmem_to_hbm [thread:$0]  %s269, 128, %s266, %s255
        $region40: #{cab_forward.5} parent=27 // pred_fallthru
          _
      $region28: #{cab_forward.5} parent=5 // pred_fallthru
        _
      %p272 = scmp.le.s32.totalorder 2, %s15
      // Predicated region
      $region41: #{cab_forward.5} parent=5 // pred_check
        %p273 = pneg %p272
      $region42: #{cab_forward.5} parent=5 // pred_check_branch
        %275 = sbr.rel (%p273) target = $region44
      $region43: #{cab_forward.5} parent=5 // pred_region
        %s276 = ssub.s32 %s15, 2
        // Predicated region
        $region45: #{cab_forward.5} parent=43 // pred_check
          %p277 = pneg %p91
        $region46: #{cab_forward.5} parent=43 // pred_check_branch
          %279 = sbr.rel (%p277) target = $region48
        $region47: #{cab_forward.5} parent=43 // pred_region
          %s280 = sand.u32 %s76, 1
          %s281 = scalar_lea.sflag [#allocation4], %s280
          %s282 = sand.u32 %s76, 1
          %s283 = smul.addr %s282, 8
          %s284 = scalar_lea.vmem [#allocation7], %s283
          %285 = dma.done %s281, 128
        $region48: #{cab_forward.5} parent=43 // pred_fallthru
          _
      $region44: #{cab_forward.5} parent=5 // pred_fallthru
        _
    $region6: #{cab_forward.5} parent=1 // loop_footer
      %s19 = sadd.s32 1, %s15
    $region7: #{cab_forward.5} parent=1 // loop_footer_branch
      %14 = sbr.rel target = $region3
    $region8: #{cab_forward.5} parent=1 // loop_exit
      _
    %286 = vsyncpa [#allocation3], 1
    %s287 = scalar_lea.sflag [#allocation3], 1
    %288 = vsyncpa %s287, 1
    %289 = vsyncpa [#allocation6], 1
    %290 = vsyncpa [#allocation4], 1
    %s291 = scalar_lea.sflag [#allocation4], 1
    %292 = vsyncpa %s291, 1

// kernel: reverse.0
$region0: #{reverse.0}
  %s0 = inlined_call_operand.vmem [shape: f32[2,4,16,7], index: 0, kind: input, shape index: {}]
  %s1 = inlined_call_operand.vmem [shape: f32[2,4,16,7], index: 1, kind: output, shape index: {}]
  $region1: #{reverse.0} parent=0
    #allocation0 [shape = 'u8[65536]{0}', space=vmem, size = 0x10000, scoped, tag = 'operand span for operand 0']
    #allocation1 [shape = 'u8[32768]{0}', space=vmem, size = 0x8000, scoped, tag = 'operand span for operand 1']
    %s2 = scalar_lea.vmem [#allocation0], 8
    // Predicated region
    $region2: #{reverse.0} parent=1 // pred_check
      _
    $region3: #{reverse.0} parent=1 // pred_check_branch
      %4 = sbr.rel (0) target = $region5
    $region4: #{reverse.0} parent=1 // pred_region
      // Predicated region
      $region6: #{reverse.0} parent=4 // pred_check
        _
      $region7: #{reverse.0} parent=4 // pred_check_branch
        %6 = sbr.rel (0) target = $region9
      $region8: #{reverse.0} parent=4 // pred_region
        // Predicated region
        $region21: #{reverse.0} parent=8 // pred_check
          _
        $region22: #{reverse.0} parent=8 // pred_check_branch
          %35 = sbr.rel (0) target = $region24
        $region23: #{reverse.0} parent=8 // pred_region
          loop: start=0, step=1, limit=1
          $region25: #{reverse.0} parent=23 // loop_pre_header
            _
          $region26: #{reverse.0} parent=23 // loop_header
            %s37 = sphi 0, %s41
            %p38 = scmp.ge.s32.totalorder %s37, 1
            %s42 = sphi %s0, %s0
            %s43 = sphi %s2, %s2
          $region27: #{reverse.0} parent=23 // loop_header_branch
            %40 = sbr.rel (%p38) target = $region31
          $region28: #{reverse.0} parent=23 // loop_body
            %v44 = vld [vmem:[%s42] sm:$0xff]
            %45 = vst [vmem:[%s43] sm:$0xff] %v44
            %v46 = vld [vmem:[%s42 + $0x8] sm:$0xff]
            %47 = vst [vmem:[%s43 + $0x10] sm:$0xff] %v46
            %v48 = vld [vmem:[%s42 + $0x10] sm:$0xff]
            %49 = vst [vmem:[%s43 + $0x20] sm:$0xff] %v48
            %v50 = vld [vmem:[%s42 + $0x18] sm:$0xff]
            %51 = vst [vmem:[%s43 + $0x30] sm:$0xff] %v50
            %v52 = vld [vmem:[%s42 + $0x20] sm:$0xff]
            %53 = vst [vmem:[%s43 + $0x40] sm:$0xff] %v52
            %v54 = vld [vmem:[%s42 + $0x28] sm:$0xff]
            %55 = vst [vmem:[%s43 + $0x50] sm:$0xff] %v54
            %v56 = vld [vmem:[%s42 + $0x30] sm:$0xff]
            %57 = vst [vmem:[%s43 + $0x60] sm:$0xff] %v56
            %v58 = vld [vmem:[%s42 + $0x38] sm:$0xff]
            %59 = vst [vmem:[%s43 + $0x70] sm:$0xff] %v58
          $region29: #{reverse.0} parent=23 // loop_footer
            %s41 = sadd.s32 1, %s37
          $region30: #{reverse.0} parent=23 // loop_footer_branch
            %36 = sbr.rel target = $region26
          $region31: #{reverse.0} parent=23 // loop_exit
            _
        $region24: #{reverse.0} parent=8 // pred_fallthru
          _
        // Predicated region
        $region32: #{reverse.0} parent=8 // pred_check
          _
        $region33: #{reverse.0} parent=8 // pred_check_branch
          %61 = sbr.rel target = $region35
        $region34: #{reverse.0} parent=8 // pred_region
          _
        $region35: #{reverse.0} parent=8 // pred_fallthru
          _
      $region9: #{reverse.0} parent=4 // pred_fallthru
        _
      // Predicated region
      $region10: #{reverse.0} parent=4 // pred_check
        _
      $region11: #{reverse.0} parent=4 // pred_check_branch
        %8 = sbr.rel target = $region13
      $region12: #{reverse.0} parent=4 // pred_region
        loop: start=0, step=1, limit=1
        $region14: #{reverse.0} parent=12 // loop_pre_header
          _
        $region15: #{reverse.0} parent=12 // loop_header
          %s11 = sphi 0, %s15
          %p12 = scmp.ge.s32.totalorder %s11, 1
          %s16 = sphi %s0, %s0
          %s17 = sphi %s2, %s2
        $region16: #{reverse.0} parent=12 // loop_header_branch
          %14 = sbr.rel (%p12) target = $region20
        $region17: #{reverse.0} parent=12 // loop_body
          %v18 = vld [vmem:[%s16] sm:$0xff]
          %19 = vst [vmem:[%s17] sm:$0xff] %v18
          %v20 = vld [vmem:[%s16 + $0x8] sm:$0xff]
          %21 = vst [vmem:[%s17 + $0x10] sm:$0xff] %v20
          %v22 = vld [vmem:[%s16 + $0x10] sm:$0xff]
          %23 = vst [vmem:[%s17 + $0x20] sm:$0xff] %v22
          %v24 = vld [vmem:[%s16 + $0x18] sm:$0xff]
          %25 = vst [vmem:[%s17 + $0x30] sm:$0xff] %v24
          %v26 = vld [vmem:[%s16 + $0x20] sm:$0xff]
          %27 = vst [vmem:[%s17 + $0x40] sm:$0xff] %v26
          %v28 = vld [vmem:[%s16 + $0x28] sm:$0xff]
          %29 = vst [vmem:[%s17 + $0x50] sm:$0xff] %v28
          %v30 = vld [vmem:[%s16 + $0x30] sm:$0xff]
          %31 = vst [vmem:[%s17 + $0x60] sm:$0xff] %v30
          %v32 = vld [vmem:[%s16 + $0x38] sm:$0xff]
          %33 = vst [vmem:[%s17 + $0x70] sm:$0xff] %v32
        $region18: #{reverse.0} parent=12 // loop_footer
          %s15 = sadd.s32 1, %s11
        $region19: #{reverse.0} parent=12 // loop_footer_branch
          %10 = sbr.rel target = $region15
        $region20: #{reverse.0} parent=12 // loop_exit
          _
      $region13: #{reverse.0} parent=4 // pred_fallthru
        _
    $region5: #{reverse.0} parent=1 // pred_fallthru
      _
    %62 = vnop
    %s63 = scalar_lea.vmem [#allocation0], 7
    %v64 = vld [vmem:[%s63] ss:$-1 sm:$0xff]
    %v65 = vrot.slane %v64, 1
    %66 = vst [vmem:[#allocation1] sm:$0xff] %v65
    %s67 = scalar_lea.vmem [#allocation0], 8
    %s68 = scalar_lea.vmem %s67, 7 [#allocation0]
    %v69 = vld [vmem:[%s68] ss:$-1 sm:$0xff]
    %v70 = vrot.slane %v69, 1
    %v71 = vlaneseq
    %v72 = vshrl.u32 %v71, 7
    %vm73 = vcmp.lt.s32.totalorder %v72, 7
    %74 = vst.msk [vmem:[#allocation1] sm:$0xff] %vm73, %v70
    %s75 = scalar_lea.vmem [#allocation1], 8
    %s76 = scalar_lea.vmem [#allocation0], 16
    %s77 = scalar_lea.vmem %s76, 7 [#allocation0]
    %v78 = vld [vmem:[%s77] ss:$-1 sm:$0xff]
    %v79 = vrot.slane %v78, 1
    %80 = vst [vmem:[%s75] sm:$0xff] %v79
    %s81 = scalar_lea.vmem %s76, 8 [#allocation0]
    %s82 = scalar_lea.vmem %s81, 7 [#allocation0]
    %v83 = vld [vmem:[%s82] ss:$-1 sm:$0xff]
    %v84 = vrot.slane %v83, 1
    %v85 = vlaneseq
    %v86 = vshrl.u32 %v85, 7
    %vm87 = vcmp.lt.s32.totalorder %v86, 7
    %88 = vst.msk [vmem:[%s75] sm:$0xff] %vm87, %v84
    %s89 = scalar_lea.vmem [#allocation1], 16
    %s90 = scalar_lea.vmem [#allocation0], 32
    %s91 = scalar_lea.vmem %s90, 7 [#allocation0]
    %v92 = vld [vmem:[%s91] ss:$-1 sm:$0xff]
    %v93 = vrot.slane %v92, 1
    %94 = vst [vmem:[%s89] sm:$0xff] %v93
    %s95 = scalar_lea.vmem %s90, 8 [#allocation0]
    %s96 = scalar_lea.vmem %s95, 7 [#allocation0]
    %v97 = vld [vmem:[%s96] ss:$-1 sm:$0xff]
    %v98 = vrot.slane %v97, 1
    %v99 = vlaneseq
    %v100 = vshrl.u32 %v99, 7
    %vm101 = vcmp.lt.s32.totalorder %v100, 7
    %102 = vst.msk [vmem:[%s89] sm:$0xff] %vm101, %v98
    %s103 = scalar_lea.vmem [#allocation1], 24
    %s104 = scalar_lea.vmem [#allocation0], 48
    %s105 = scalar_lea.vmem %s104, 7 [#allocation0]
    %v106 = vld [vmem:[%s105] ss:$-1 sm:$0xff]
    %v107 = vrot.slane %v106, 1
    %108 = vst [vmem:[%s103] sm:$0xff] %v107
    %s109 = scalar_lea.vmem %s104, 8 [#allocation0]
    %s110 = scalar_lea.vmem %s109, 7 [#allocation0]
    %v111 = vld [vmem:[%s110] ss:$-1 sm:$0xff]
    %v112 = vrot.slane %v111, 1
    %v113 = vlaneseq
    %v114 = vshrl.u32 %v113, 7
    %vm115 = vcmp.lt.s32.totalorder %v114, 7
    %116 = vst.msk [vmem:[%s103] sm:$0xff] %vm115, %v112
    %s117 = scalar_lea.vmem [#allocation1], 32
    %s118 = scalar_lea.vmem [#allocation0], 64
    %s119 = scalar_lea.vmem %s118, 7 [#allocation0]
    %v120 = vld [vmem:[%s119] ss:$-1 sm:$0xff]
    %v121 = vrot.slane %v120, 1
    %122 = vst [vmem:[%s117] sm:$0xff] %v121
    %s123 = scalar_lea.vmem %s118, 8 [#allocation0]
    %s124 = scalar_lea.vmem %s123, 7 [#allocation0]
    %v125 = vld [vmem:[%s124] ss:$-1 sm:$0xff]
    %v126 = vrot.slane %v125, 1
    %v127 = vlaneseq
    %v128 = vshrl.u32 %v127, 7
    %vm129 = vcmp.lt.s32.totalorder %v128, 7
    %130 = vst.msk [vmem:[%s117] sm:$0xff] %vm129, %v126
    %s131 = scalar_lea.vmem [#allocation1], 40
    %s132 = scalar_lea.vmem [#allocation0], 80
    %s133 = scalar_lea.vmem %s132, 7 [#allocation0]
    %v134 = vld [vmem:[%s133] ss:$-1 sm:$0xff]
    %v135 = vrot.slane %v134, 1
    %136 = vst [vmem:[%s131] sm:$0xff] %v135
    %s137 = scalar_lea.vmem %s132, 8 [#allocation0]
    %s138 = scalar_lea.vmem %s137, 7 [#allocation0]
    %v139 = vld [vmem:[%s138] ss:$-1 sm:$0xff]
    %v140 = vrot.slane %v139, 1
    %v141 = vlaneseq
    %v142 = vshrl.u32 %v141, 7
    %vm143 = vcmp.lt.s32.totalorder %v142, 7
    %144 = vst.msk [vmem:[%s131] sm:$0xff] %vm143, %v140
    %s145 = scalar_lea.vmem [#allocation1], 48
    %s146 = scalar_lea.vmem [#allocation0], 96
    %s147 = scalar_lea.vmem %s146, 7 [#allocation0]
    %v148 = vld [vmem:[%s147] ss:$-1 sm:$0xff]
    %v149 = vrot.slane %v148, 1
    %150 = vst [vmem:[%s145] sm:$0xff] %v149
    %s151 = scalar_lea.vmem %s146, 8 [#allocation0]
    %s152 = scalar_lea.vmem %s151, 7 [#allocation0]
    %v153 = vld [vmem:[%s152] ss:$-1 sm:$0xff]
    %v154 = vrot.slane %v153, 1
    %v155 = vlaneseq
    %v156 = vshrl.u32 %v155, 7
    %vm157 = vcmp.lt.s32.totalorder %v156, 7
    %158 = vst.msk [vmem:[%s145] sm:$0xff] %vm157, %v154
    %s159 = scalar_lea.vmem [#allocation1], 56
    %s160 = scalar_lea.vmem [#allocation0], 112
    %s161 = scalar_lea.vmem %s160, 7 [#allocation0]
    %v162 = vld [vmem:[%s161] ss:$-1 sm:$0xff]
    %v163 = vrot.slane %v162, 1
    %164 = vst [vmem:[%s159] sm:$0xff] %v163
    %s165 = scalar_lea.vmem %s160, 8 [#allocation0]
    %s166 = scalar_lea.vmem %s165, 7 [#allocation0]
    %v167 = vld [vmem:[%s166] ss:$-1 sm:$0xff]
    %v168 = vrot.slane %v167, 1
    %v169 = vlaneseq
    %v170 = vshrl.u32 %v169, 7
    %vm171 = vcmp.lt.s32.totalorder %v170, 7
    %172 = vst.msk [vmem:[%s159] sm:$0xff] %vm171, %v168
    // Predicated region
    $region36: #{reverse.0} parent=1 // pred_check
      _
    $region37: #{reverse.0} parent=1 // pred_check_branch
      %174 = sbr.rel (0) target = $region39
    $region38: #{reverse.0} parent=1 // pred_region
      // Predicated region
      $region40: #{reverse.0} parent=38 // pred_check
        _
      $region41: #{reverse.0} parent=38 // pred_check_branch
        %176 = sbr.rel (0) target = $region43
      $region42: #{reverse.0} parent=38 // pred_region
        // Predicated region
        $region55: #{reverse.0} parent=42 // pred_check
          _
        $region56: #{reverse.0} parent=42 // pred_check_branch
          %205 = sbr.rel (0) target = $region58
        $region57: #{reverse.0} parent=42 // pred_region
          loop: start=0, step=1, limit=1
          $region59: #{reverse.0} parent=57 // loop_pre_header
            _
          $region60: #{reverse.0} parent=57 // loop_header
            %s207 = sphi 0, %s211
            %p208 = scmp.ge.s32.totalorder %s207, 1
            %s212 = sphi [#allocation1], [#allocation1]
            %s213 = sphi %s1, %s1
          $region61: #{reverse.0} parent=57 // loop_header_branch
            %210 = sbr.rel (%p208) target = $region65
          $region62: #{reverse.0} parent=57 // loop_body
            %v214 = vld [vmem:[%s212] sm:$0xff]
            %215 = vst [vmem:[%s213] sm:$0xff] %v214
            %v216 = vld [vmem:[%s212 + $0x8] sm:$0xff]
            %217 = vst [vmem:[%s213 + $0x8] sm:$0xff] %v216
            %v218 = vld [vmem:[%s212 + $0x10] sm:$0xff]
            %219 = vst [vmem:[%s213 + $0x10] sm:$0xff] %v218
            %v220 = vld [vmem:[%s212 + $0x18] sm:$0xff]
            %221 = vst [vmem:[%s213 + $0x18] sm:$0xff] %v220
            %v222 = vld [vmem:[%s212 + $0x20] sm:$0xff]
            %223 = vst [vmem:[%s213 + $0x20] sm:$0xff] %v222
            %v224 = vld [vmem:[%s212 + $0x28] sm:$0xff]
            %225 = vst [vmem:[%s213 + $0x28] sm:$0xff] %v224
            %v226 = vld [vmem:[%s212 + $0x30] sm:$0xff]
            %227 = vst [vmem:[%s213 + $0x30] sm:$0xff] %v226
            %v228 = vld [vmem:[%s212 + $0x38] sm:$0xff]
            %229 = vst [vmem:[%s213 + $0x38] sm:$0xff] %v228
          $region63: #{reverse.0} parent=57 // loop_footer
            %s211 = sadd.s32 1, %s207
          $region64: #{reverse.0} parent=57 // loop_footer_branch
            %206 = sbr.rel target = $region60
          $region65: #{reverse.0} parent=57 // loop_exit
            _
        $region58: #{reverse.0} parent=42 // pred_fallthru
          _
        // Predicated region
        $region66: #{reverse.0} parent=42 // pred_check
          _
        $region67: #{reverse.0} parent=42 // pred_check_branch
          %231 = sbr.rel target = $region69
        $region68: #{reverse.0} parent=42 // pred_region
          _
        $region69: #{reverse.0} parent=42 // pred_fallthru
          _
      $region43: #{reverse.0} parent=38 // pred_fallthru
        _
      // Predicated region
      $region44: #{reverse.0} parent=38 // pred_check
        _
      $region45: #{reverse.0} parent=38 // pred_check_branch
        %178 = sbr.rel target = $region47
      $region46: #{reverse.0} parent=38 // pred_region
        loop: start=0, step=1, limit=1
        $region48: #{reverse.0} parent=46 // loop_pre_header
          _
        $region49: #{reverse.0} parent=46 // loop_header
          %s181 = sphi 0, %s185
          %p182 = scmp.ge.s32.totalorder %s181, 1
          %s186 = sphi [#allocation1], [#allocation1]
          %s187 = sphi %s1, %s1
        $region50: #{reverse.0} parent=46 // loop_header_branch
          %184 = sbr.rel (%p182) target = $region54
        $region51: #{reverse.0} parent=46 // loop_body
          %v188 = vld [vmem:[%s186] sm:$0xff]
          %189 = vst [vmem:[%s187] sm:$0xff] %v188
          %v190 = vld [vmem:[%s186 + $0x8] sm:$0xff]
          %191 = vst [vmem:[%s187 + $0x8] sm:$0xff] %v190
          %v192 = vld [vmem:[%s186 + $0x10] sm:$0xff]
          %193 = vst [vmem:[%s187 + $0x10] sm:$0xff] %v192
          %v194 = vld [vmem:[%s186 + $0x18] sm:$0xff]
          %195 = vst [vmem:[%s187 + $0x18] sm:$0xff] %v194
          %v196 = vld [vmem:[%s186 + $0x20] sm:$0xff]
          %197 = vst [vmem:[%s187 + $0x20] sm:$0xff] %v196
          %v198 = vld [vmem:[%s186 + $0x28] sm:$0xff]
          %199 = vst [vmem:[%s187 + $0x28] sm:$0xff] %v198
          %v200 = vld [vmem:[%s186 + $0x30] sm:$0xff]
          %201 = vst [vmem:[%s187 + $0x30] sm:$0xff] %v200
          %v202 = vld [vmem:[%s186 + $0x38] sm:$0xff]
          %203 = vst [vmem:[%s187 + $0x38] sm:$0xff] %v202
        $region52: #{reverse.0} parent=46 // loop_footer
          %s185 = sadd.s32 1, %s181
        $region53: #{reverse.0} parent=46 // loop_footer_branch
          %180 = sbr.rel target = $region49
        $region54: #{reverse.0} parent=46 // loop_exit
          _
      $region47: #{reverse.0} parent=38 // pred_fallthru
        _
    $region39: #{reverse.0} parent=1 // pred_fallthru
      _
    %232 = vnop

// kernel: cab_forward.3
$region0: #{cab_forward.3}
  #allocation0 [shape = 'u32[]', space=smem, size = 0x4, offset = 0x4, fixed_abs, tag = 'smem constant byte address 0x4 - core index']
  #allocation1 [shape = 'u32[144,128]{1,0:T(1,128)}', space=vmem, size = 0x12000, scoped, tag = 'internal scratch']
  #allocation2 [shape = 'bf16[4,164]{1,0:T(4,128)(2,1)}', space=vmem, size = 0x800, scoped, tag = 'scratch operand']
  %s0 = inlined_call_operand.hbm [shape: bf16[2,4,144], index: 0, kind: input, shape index: {}]
  %s1 = inlined_call_operand.hbm [shape: bf16[2,4,144], index: 1, kind: input, shape index: {}]
  %s2 = inlined_call_operand.hbm [shape: bf16[2,4,144], index: 2, kind: input, shape index: {}]
  %s3 = inlined_call_operand.hbm [shape: bf16[2,4,144], index: 3, kind: input, shape index: {}]
  %s4 = inlined_call_operand.hbm [shape: bf16[2,144], index: 4, kind: input, shape index: {}]
  %s5 = inlined_call_operand.hbm [shape: bf16[6,4,4], index: 5, kind: input, shape index: {}]
  %s6 = inlined_call_operand.hbm [shape: f32[6,4,1], index: 6, kind: input, shape index: {}]
  %s7 = inlined_call_operand.hbm [shape: bf16[9,8,4], index: 7, kind: input, shape index: {}]
  %s8 = inlined_call_operand.hbm [shape: f32[8,1], index: 8, kind: input, shape index: {}]
  %s9 = inlined_call_operand.hbm [shape: bf16[4,4,4], index: 9, kind: input, shape index: {}]
  %s10 = inlined_call_operand.hbm [shape: f32[2,4,1], index: 10, kind: input, shape index: {}]
  %s11 = inlined_call_operand.hbm [shape: f32[2,4,144], index: 11, kind: output, shape index: {0}]
  %s12 = inlined_call_operand.hbm [shape: f32[2,4,144], index: 12, kind: output, shape index: {1}]
  %13 = xla_tuple %s11, %s12
  %s14 = sld [smem:[#allocation0]]
  $region129: #{cab_forward.3} parent=0
    _
  %s16 = ssub.s32 1, %s14
  %s17 = scalar_select 0, %s16, %s14
  $region1: #{cab_forward.3} parent=0
    #allocation3 [shape = 'u8[4096]{0}', space=vmem, size = 0x1000, scoped, tag = 'input window, operand 0']
    #allocation4 [shape = 's32[2]{0}', space=sflag, size = 0x8, scoped, tag = 'scoped memory for cab_forward.3']
    #allocation5 [shape = 's32[2]{0}', space=sflag, size = 0x8, scoped, tag = 'scoped memory for cab_forward.3']
    #allocation6 [shape = 'u8[4096]{0}', space=vmem, size = 0x1000, scoped, tag = 'input window, operand 1']
    #allocation7 [shape = 's32[2]{0}', space=sflag, size = 0x8, scoped, tag = 'scoped memory for cab_forward.3']
    #allocation8 [shape = 'u8[4096]{0}', space=vmem, size = 0x1000, scoped, tag = 'input window, operand 2']
    #allocation9 [shape = 'u8[4096]{0}', space=vmem, size = 0x1000, scoped, tag = 'input window, operand 3']
    #allocation10 [shape = 's32[2]{0}', space=sflag, size = 0x8, scoped, tag = 'scoped memory for cab_forward.3']
    #allocation11 [shape = 'u8[1024]{0}', space=vmem, size = 0x400, scoped, tag = 'input window, operand 4, single buffered']
    #allocation12 [shape = 'u8[6144]{0}', space=vmem, size = 0x1800, scoped, tag = 'input window, operand 5, single buffered']
    #allocation13 [shape = 's32[1]{0}', space=sflag, size = 0x4, scoped, tag = 'scoped memory for cab_forward.3']
    #allocation14 [shape = 'u8[12288]{0}', space=vmem, size = 0x3000, scoped, tag = 'input window, operand 6, single buffered']
    #allocation15 [shape = 'u8[18432]{0}', space=vmem, size = 0x4800, scoped, tag = 'input window, operand 7, single buffered']
    #allocation16 [shape = 's32[1]{0}', space=sflag, size = 0x4, scoped, tag = 'scoped memory for cab_forward.3']
    #allocation17 [shape = 'u8[4096]{0}', space=vmem, size = 0x1000, scoped, tag = 'input window, operand 8, single buffered']
    #allocation18 [shape = 'u8[4096]{0}', space=vmem, size = 0x1000, scoped, tag = 'input window, operand 9, single buffered']
    #allocation19 [shape = 's32[1]{0}', space=sflag, size = 0x4, scoped, tag = 'scoped memory for cab_forward.3']
    #allocation20 [shape = 'u8[4096]{0}', space=vmem, size = 0x1000, scoped, tag = 'input window, operand 10, single buffered']
    #allocation21 [shape = 'u8[8192]{0}', space=vmem, size = 0x2000, scoped, tag = 'output window, operand 0']
    #allocation22 [shape = 'u8[8192]{0}', space=vmem, size = 0x2000, scoped, tag = 'output window, operand 1']
    #allocation23 [shape = 's32[2]{0}', space=sflag, size = 0x8, scoped, tag = 'scoped memory for cab_forward.3']
    %18 = vsyncpa [#allocation4], 0
    %s19 = scalar_lea.sflag [#allocation4], 1
    %20 = vsyncpa %s19, 0
    %21 = vsyncpa [#allocation7], 0
    %s22 = scalar_lea.sflag [#allocation7], 1
    %23 = vsyncpa %s22, 0
    %24 = vsyncpa [#allocation10], 0
    %s25 = scalar_lea.sflag [#allocation10], 1
    %26 = vsyncpa %s25, 0
    %27 = vsyncpa [#allocation13], 0
    %28 = vsyncpa [#allocation16], 0
    %29 = vsyncpa [#allocation19], 0
    %30 = vsyncpa [#allocation5], 0
    %s31 = scalar_lea.sflag [#allocation5], 1
    %32 = vsyncpa %s31, 0
    %33 = vsyncpa [#allocation23], 0
    %s34 = scalar_lea.sflag [#allocation23], 1
    %35 = vsyncpa %s34, 0
    loop: start=0, step=1, limit=4
    $region2: #{cab_forward.3} parent=1 // loop_pre_header
      _
    $region3: #{cab_forward.3} parent=1 // loop_header
      %s37 = sphi 0, %s41
      %p38 = scmp.ge.s32.totalorder %s37, 4
      %s47 = sphi 0, %s49
      %s50 = sphi 0, %s47
      %s51 = sphi 0, %s50
      %s67 = sphi 0, %s51
      %s73 = sphi 0, %s75
      %s76 = sphi 0, %s73
      %s77 = sphi 0, %s76
      %s93 = sphi 0, %s77
      %s99 = sphi 0, %s101
      %s102 = sphi 0, %s99
      %s103 = sphi 0, %s102
      %s119 = sphi 0, %s103
      %s125 = sphi 0, %s127
      %s128 = sphi 0, %s125
      %s129 = sphi 0, %s128
      %s145 = sphi 0, %s129
      %s149 = sphi 0, %s149
      %s151 = sphi 0, %s149
      %s152 = sphi 0, %s151
      %s166 = sphi 0, %s152
      %s170 = sphi 0, %s170
      %s172 = sphi 0, %s170
      %s173 = sphi 0, %s172
      %s187 = sphi 0, %s173
      %s191 = sphi 0, %s191
      %s193 = sphi 0, %s191
      %s194 = sphi 0, %s193
      %s208 = sphi 0, %s194
      %s212 = sphi 0, %s212
      %s214 = sphi 0, %s212
      %s215 = sphi 0, %s214
      %s229 = sphi 0, %s215
      %s233 = sphi 0, %s233
      %s235 = sphi 0, %s233
      %s236 = sphi 0, %s235
      %s250 = sphi 0, %s236
      %s254 = sphi 0, %s254
      %s256 = sphi 0, %s254
      %s257 = sphi 0, %s256
      %s271 = sphi 0, %s257
      %s275 = sphi 0, %s275
      %s277 = sphi 0, %s275
      %s278 = sphi 0, %s277
      %s292 = sphi 0, %s278
      %s298 = sphi 0, %s300
      %s301 = sphi 0, %s298
      %s302 = sphi 0, %s301
      %s318 = sphi 0, %s302
      %s324 = sphi 0, %s326
      %s327 = sphi 0, %s324
      %s328 = sphi 0, %s327
      %s344 = sphi 0, %s328
    $region4: #{cab_forward.3} parent=1 // loop_header_branch
      %40 = sbr.rel (%p38) target = $region8
    $region5: #{cab_forward.3} parent=1 // loop_body
      %s42 = ssub.s32 %s37, 1
      %s43 = ssub.s32 %s37, 2
      %s44 = sadd.s32 %s37, 1
      %s45 = ssub.s32 %s37, %s44
      %p46 = scmp.eq.s32.totalorder %s45, 0
      %s48 = sadd.s32 %s47, 1
      %s49 = scalar_select %p46, %s47, %s48
      %p52 = pneg %p46
      %p53 = scmp.eq.s32.totalorder %s37, 1
      %p54 = por %p52, %p53
      %p55 = scmp.ne.s32.totalorder %s47, %s50
      %p56 = scmp.eq.s32.totalorder %s37, 0
      %p57 = por %p55, %p56
      %p58 = scmp.ne.s32.totalorder %s47, %s50
      %p59 = scmp.eq.s32.totalorder %s42, 1
      %p60 = por %p58, %p59
      %p61 = scmp.ne.s32.totalorder %s50, %s51
      %p62 = scmp.eq.s32.totalorder %s42, 0
      %p63 = por %p61, %p62
      %p64 = scmp.ne.s32.totalorder %s50, %s51
      %p65 = scmp.eq.s32.totalorder %s43, 1
      %p66 = por %p64, %p65
      %p68 = scmp.ne.s32.totalorder %s51, %s67
      %p69 = scmp.eq.s32.totalorder %s43, 0
      %p70 = por %p68, %p69
      %s71 = ssub.s32 %s37, %s44
      %p72 = scmp.eq.s32.totalorder %s71, 0
      %s74 = sadd.s32 %s73, 1
      %s75 = scalar_select %p72, %s73, %s74
      %p78 = pneg %p72
      %p79 = scmp.eq.s32.totalorder %s37, 1
      %p80 = por %p78, %p79
      %p81 = scmp.ne.s32.totalorder %s73, %s76
      %p82 = scmp.eq.s32.totalorder %s37, 0
      %p83 = por %p81, %p82
      %p84 = scmp.ne.s32.totalorder %s73, %s76
      %p85 = scmp.eq.s32.totalorder %s42, 1
      %p86 = por %p84, %p85
      %p87 = scmp.ne.s32.totalorder %s76, %s77
      %p88 = scmp.eq.s32.totalorder %s42, 0
      %p89 = por %p87, %p88
      %p90 = scmp.ne.s32.totalorder %s76, %s77
      %p91 = scmp.eq.s32.totalorder %s43, 1
      %p92 = por %p90, %p91
      %p94 = scmp.ne.s32.totalorder %s77, %s93
      %p95 = scmp.eq.s32.totalorder %s43, 0
      %p96 = por %p94, %p95
      %s97 = ssub.s32 %s37, %s44
      %p98 = scmp.eq.s32.totalorder %s97, 0
      %s100 = sadd.s32 %s99, 1
      %s101 = scalar_select %p98, %s99, %s100
      %p104 = pneg %p98
      %p105 = scmp.eq.s32.totalorder %s37, 1
      %p106 = por %p104, %p105
      %p107 = scmp.ne.s32.totalorder %s99, %s102
      %p108 = scmp.eq.s32.totalorder %s37, 0
      %p109 = por %p107, %p108
      %p110 = scmp.ne.s32.totalorder %s99, %s102
      %p111 = scmp.eq.s32.totalorder %s42, 1
      %p112 = por %p110, %p111
      %p113 = scmp.ne.s32.totalorder %s102, %s103
      %p114 = scmp.eq.s32.totalorder %s42, 0
      %p115 = por %p113, %p114
      %p116 = scmp.ne.s32.totalorder %s102, %s103
      %p117 = scmp.eq.s32.totalorder %s43, 1
      %p118 = por %p116, %p117
      %p120 = scmp.ne.s32.totalorder %s103, %s119
      %p121 = scmp.eq.s32.totalorder %s43, 0
      %p122 = por %p120, %p121
      %s123 = ssub.s32 %s37, %s44
      %p124 = scmp.eq.s32.totalorder %s123, 0
      %s126 = sadd.s32 %s125, 1
      %s127 = scalar_select %p124, %s125, %s126
      %p130 = pneg %p124
      %p131 = scmp.eq.s32.totalorder %s37, 1
      %p132 = por %p130, %p131
      %p133 = scmp.ne.s32.totalorder %s125, %s128
      %p134 = scmp.eq.s32.totalorder %s37, 0
      %p135 = por %p133, %p134
      %p136 = scmp.ne.s32.totalorder %s125, %s128
      %p137 = scmp.eq.s32.totalorder %s42, 1
      %p138 = por %p136, %p137
      %p139 = scmp.ne.s32.totalorder %s128, %s129
      %p140 = scmp.eq.s32.totalorder %s42, 0
      %p141 = por %p139, %p140
      %p142 = scmp.ne.s32.totalorder %s128, %s129
      %p143 = scmp.eq.s32.totalorder %s43, 1
      %p144 = por %p142, %p143
      %p146 = scmp.ne.s32.totalorder %s129, %s145
      %p147 = scmp.eq.s32.totalorder %s43, 0
      %p148 = por %p146, %p147
      %s150 = sadd.s32 %s149, 1
      %p153 = scmp.eq.s32.totalorder %s37, 1
      %p154 = scmp.ne.s32.totalorder %s149, %s151
      %p155 = scmp.eq.s32.totalorder %s37, 0
      %p156 = por %p154, %p155
      %p157 = scmp.ne.s32.totalorder %s149, %s151
      %p158 = scmp.eq.s32.totalorder %s42, 1
      %p159 = por %p157, %p158
      %p160 = scmp.ne.s32.totalorder %s151, %s152
      %p161 = scmp.eq.s32.totalorder %s42, 0
      %p162 = por %p160, %p161
      %p163 = scmp.ne.s32.totalorder %s151, %s152
      %p164 = scmp.eq.s32.totalorder %s43, 1
      %p165 = por %p163, %p164
      %p167 = scmp.ne.s32.totalorder %s152, %s166
      %p168 = scmp.eq.s32.totalorder %s43, 0
      %p169 = por %p167, %p168
      %s171 = sadd.s32 %s170, 1
      %p174 = scmp.eq.s32.totalorder %s37, 1
      %p175 = scmp.ne.s32.totalorder %s170, %s172
      %p176 = scmp.eq.s32.totalorder %s37, 0
      %p177 = por %p175, %p176
      %p178 = scmp.ne.s32.totalorder %s170, %s172
      %p179 = scmp.eq.s32.totalorder %s42, 1
      %p180 = por %p178, %p179
      %p181 = scmp.ne.s32.totalorder %s172, %s173
      %p182 = scmp.eq.s32.totalorder %s42, 0
      %p183 = por %p181, %p182
      %p184 = scmp.ne.s32.totalorder %s172, %s173
      %p185 = scmp.eq.s32.totalorder %s43, 1
      %p186 = por %p184, %p185
      %p188 = scmp.ne.s32.totalorder %s173, %s187
      %p189 = scmp.eq.s32.totalorder %s43, 0
      %p190 = por %p188, %p189
      %s192 = sadd.s32 %s191, 1
      %p195 = scmp.eq.s32.totalorder %s37, 1
      %p196 = scmp.ne.s32.totalorder %s191, %s193
      %p197 = scmp.eq.s32.totalorder %s37, 0
      %p198 = por %p196, %p197
      %p199 = scmp.ne.s32.totalorder %s191, %s193
      %p200 = scmp.eq.s32.totalorder %s42, 1
      %p201 = por %p199, %p200
      %p202 = scmp.ne.s32.totalorder %s193, %s194
      %p203 = scmp.eq.s32.totalorder %s42, 0
      %p204 = por %p202, %p203
      %p205 = scmp.ne.s32.totalorder %s193, %s194
      %p206 = scmp.eq.s32.totalorder %s43, 1
      %p207 = por %p205, %p206
      %p209 = scmp.ne.s32.totalorder %s194, %s208
      %p210 = scmp.eq.s32.totalorder %s43, 0
      %p211 = por %p209, %p210
      %s213 = sadd.s32 %s212, 1
      %p216 = scmp.eq.s32.totalorder %s37, 1
      %p217 = scmp.ne.s32.totalorder %s212, %s214
      %p218 = scmp.eq.s32.totalorder %s37, 0
      %p219 = por %p217, %p218
      %p220 = scmp.ne.s32.totalorder %s212, %s214
      %p221 = scmp.eq.s32.totalorder %s42, 1
      %p222 = por %p220, %p221
      %p223 = scmp.ne.s32.totalorder %s214, %s215
      %p224 = scmp.eq.s32.totalorder %s42, 0
      %p225 = por %p223, %p224
      %p226 = scmp.ne.s32.totalorder %s214, %s215
      %p227 = scmp.eq.s32.totalorder %s43, 1
      %p228 = por %p226, %p227
      %p230 = scmp.ne.s32.totalorder %s215, %s229
      %p231 = scmp.eq.s32.totalorder %s43, 0
      %p232 = por %p230, %p231
      %s234 = sadd.s32 %s233, 1
      %p237 = scmp.eq.s32.totalorder %s37, 1
      %p238 = scmp.ne.s32.totalorder %s233, %s235
      %p239 = scmp.eq.s32.totalorder %s37, 0
      %p240 = por %p238, %p239
      %p241 = scmp.ne.s32.totalorder %s233, %s235
      %p242 = scmp.eq.s32.totalorder %s42, 1
      %p243 = por %p241, %p242
      %p244 = scmp.ne.s32.totalorder %s235, %s236
      %p245 = scmp.eq.s32.totalorder %s42, 0
      %p246 = por %p244, %p245
      %p247 = scmp.ne.s32.totalorder %s235, %s236
      %p248 = scmp.eq.s32.totalorder %s43, 1
      %p249 = por %p247, %p248
      %p251 = scmp.ne.s32.totalorder %s236, %s250
      %p252 = scmp.eq.s32.totalorder %s43, 0
      %p253 = por %p251, %p252
      %s255 = sadd.s32 %s254, 1
      %p258 = scmp.eq.s32.totalorder %s37, 1
      %p259 = scmp.ne.s32.totalorder %s254, %s256
      %p260 = scmp.eq.s32.totalorder %s37, 0
      %p261 = por %p259, %p260
      %p262 = scmp.ne.s32.totalorder %s254, %s256
      %p263 = scmp.eq.s32.totalorder %s42, 1
      %p264 = por %p262, %p263
      %p265 = scmp.ne.s32.totalorder %s256, %s257
      %p266 = scmp.eq.s32.totalorder %s42, 0
      %p267 = por %p265, %p266
      %p268 = scmp.ne.s32.totalorder %s256, %s257
      %p269 = scmp.eq.s32.totalorder %s43, 1
      %p270 = por %p268, %p269
      %p272 = scmp.ne.s32.totalorder %s257, %s271
      %p273 = scmp.eq.s32.totalorder %s43, 0
      %p274 = por %p272, %p273
      %s276 = sadd.s32 %s275, 1
      %p279 = scmp.eq.s32.totalorder %s37, 1
      %p280 = scmp.ne.s32.totalorder %s275, %s277
      %p281 = scmp.eq.s32.totalorder %s37, 0
      %p282 = por %p280, %p281
      %p283 = scmp.ne.s32.totalorder %s275, %s277
      %p284 = scmp.eq.s32.totalorder %s42, 1
      %p285 = por %p283, %p284
      %p286 = scmp.ne.s32.totalorder %s277, %s278
      %p287 = scmp.eq.s32.totalorder %s42, 0
      %p288 = por %p286, %p287
      %p289 = scmp.ne.s32.totalorder %s277, %s278
      %p290 = scmp.eq.s32.totalorder %s43, 1
      %p291 = por %p289, %p290
      %p293 = scmp.ne.s32.totalorder %s278, %s292
      %p294 = scmp.eq.s32.totalorder %s43, 0
      %p295 = por %p293, %p294
      %s296 = ssub.s32 %s37, %s44
      %p297 = scmp.eq.s32.totalorder %s296, 0
      %s299 = sadd.s32 %s298, 1
      %s300 = scalar_select %p297, %s298, %s299
      %p303 = pneg %p297
      %p304 = scmp.eq.s32.totalorder %s37, 1
      %p305 = por %p303, %p304
      %p306 = scmp.ne.s32.totalorder %s298, %s301
      %p307 = scmp.eq.s32.totalorder %s37, 0
      %p308 = por %p306, %p307
      %p309 = scmp.ne.s32.totalorder %s298, %s301
      %p310 = scmp.eq.s32.totalorder %s42, 1
      %p311 = por %p309, %p310
      %p312 = scmp.ne.s32.totalorder %s301, %s302
      %p313 = scmp.eq.s32.totalorder %s42, 0
      %p314 = por %p312, %p313
      %p315 = scmp.ne.s32.totalorder %s301, %s302
      %p316 = scmp.eq.s32.totalorder %s43, 1
      %p317 = por %p315, %p316
      %p319 = scmp.ne.s32.totalorder %s302, %s318
      %p320 = scmp.eq.s32.totalorder %s43, 0
      %p321 = por %p319, %p320
      %s322 = ssub.s32 %s37, %s44
      %p323 = scmp.eq.s32.totalorder %s322, 0
      %s325 = sadd.s32 %s324, 1
      %s326 = scalar_select %p323, %s324, %s325
      %p329 = pneg %p323
      %p330 = scmp.eq.s32.totalorder %s37, 1
      %p331 = por %p329, %p330
      %p332 = scmp.ne.s32.totalorder %s324, %s327
      %p333 = scmp.eq.s32.totalorder %s37, 0
      %p334 = por %p332, %p333
      %p335 = scmp.ne.s32.totalorder %s324, %s327
      %p336 = scmp.eq.s32.totalorder %s42, 1
      %p337 = por %p335, %p336
      %p338 = scmp.ne.s32.totalorder %s327, %s328
      %p339 = scmp.eq.s32.totalorder %s42, 0
      %p340 = por %p338, %p339
      %p341 = scmp.ne.s32.totalorder %s327, %s328
      %p342 = scmp.eq.s32.totalorder %s43, 1
      %p343 = por %p341, %p342
      %p345 = scmp.ne.s32.totalorder %s328, %s344
      %p346 = scmp.eq.s32.totalorder %s43, 0
      %p347 = por %p345, %p346
      %p348 = scmp.le.s32.totalorder 1, %s37
      %p349 = scmp.lt.s32.totalorder %s37, 3
      %p350 = pnand %p348, %p349
      %p351 = pneg %p350
      // Predicated region
      $region9: #{cab_forward.3} parent=5 // pred_check
        _
      $region10: #{cab_forward.3} parent=5 // pred_check_branch
        %353 = sbr.rel (%p350) target = $region12
      $region11: #{cab_forward.3} parent=5 // pred_region
        %s354 = ssub.s32 %s37, 1
        // Predicated region
        $region13: #{cab_forward.3} parent=11 // pred_check
          %p355 = pneg %p162
        $region14: #{cab_forward.3} parent=11 // pred_check_branch
          %357 = sbr.rel (%p355) target = $region16
        $region15: #{cab_forward.3} parent=11 // pred_region
          %s359 = ssub.s32 32, 32
          %360 = vsyncadd [#allocation10], %s359
          %s362 = sshll.u32 [#allocation11], 4
          %s363 = int_to_ptr.vmem [resolvable:$true] %s362
          %365 = dma.hbm_to_vmem [thread:$0]  %s4, 32, %s363, [#allocation10]
        $region16: #{cab_forward.3} parent=11 // pred_fallthru
          _
        // Predicated region
        $region17: #{cab_forward.3} parent=11 // pred_check
          %p366 = pneg %p183
        $region18: #{cab_forward.3} parent=11 // pred_check_branch
          %368 = sbr.rel (%p366) target = $region20
        $region19: #{cab_forward.3} parent=11 // pred_region
          %s370 = ssub.s32 192, 192
          %371 = vsyncadd [#allocation13], %s370
          %s372 = sshll.u32 [#allocation12], 4
          %s373 = int_to_ptr.vmem [resolvable:$true] %s372
          %378 = dma.hbm_to_vmem [thread:$0]  %s5, 192, %s373, [#allocation13], 32, 32, 2
        $region20: #{cab_forward.3} parent=11 // pred_fallthru
          _
        // Predicated region
        $region21: #{cab_forward.3} parent=11 // pred_check
          %p379 = pneg %p204
        $region22: #{cab_forward.3} parent=11 // pred_check_branch
          %381 = sbr.rel (%p379) target = $region24
        $region23: #{cab_forward.3} parent=11 // pred_region
          %s383 = ssub.s32 384, 384
          %384 = vsyncadd [#allocation13], %s383
          %s385 = sshll.u32 [#allocation14], 4
          %s386 = int_to_ptr.vmem [resolvable:$true] %s385
          %391 = dma.hbm_to_vmem [thread:$0]  %s6, 384, %s386, [#allocation13], 64, 64, 4
        $region24: #{cab_forward.3} parent=11 // pred_fallthru
          _
        // Predicated region
        $region25: #{cab_forward.3} parent=11 // pred_check
          %p392 = pneg %p225
        $region26: #{cab_forward.3} parent=11 // pred_check_branch
          %394 = sbr.rel (%p392) target = $region28
        $region27: #{cab_forward.3} parent=11 // pred_region
          %s396 = ssub.s32 576, 576
          %397 = vsyncadd [#allocation16], %s396
          %s398 = sshll.u32 [#allocation15], 4
          %s399 = int_to_ptr.vmem [resolvable:$true] %s398
          %404 = dma.hbm_to_vmem [thread:$0]  %s7, 576, %s399, [#allocation16], 64, 64, 4
        $region28: #{cab_forward.3} parent=11 // pred_fallthru
          _
        // Predicated region
        $region29: #{cab_forward.3} parent=11 // pred_check
          %p405 = pneg %p246
        $region30: #{cab_forward.3} parent=11 // pred_check_branch
          %407 = sbr.rel (%p405) target = $region32
        $region31: #{cab_forward.3} parent=11 // pred_region
          %s409 = ssub.s32 128, 128
          %410 = vsyncadd [#allocation16], %s409
          %s412 = sshll.u32 [#allocation17], 4
          %s413 = int_to_ptr.vmem [resolvable:$true] %s412
          %415 = dma.hbm_to_vmem [thread:$0]  %s8, 128, %s413, [#allocation16]
        $region32: #{cab_forward.3} parent=11 // pred_fallthru
          _
        // Predicated region
        $region33: #{cab_forward.3} parent=11 // pred_check
          %p416 = pneg %p267
        $region34: #{cab_forward.3} parent=11 // pred_check_branch
          %418 = sbr.rel (%p416) target = $region36
        $region35: #{cab_forward.3} parent=11 // pred_region
          %s420 = ssub.s32 128, 128
          %421 = vsyncadd [#allocation19], %s420
          %s422 = sshll.u32 [#allocation18], 4
          %s423 = int_to_ptr.vmem [resolvable:$true] %s422
          %428 = dma.hbm_to_vmem [thread:$0]  %s9, 128, %s423, [#allocation19], 32, 32, 2
        $region36: #{cab_forward.3} parent=11 // pred_fallthru
          _
        // Predicated region
        $region37: #{cab_forward.3} parent=11 // pred_check
          %p429 = pneg %p288
        $region38: #{cab_forward.3} parent=11 // pred_check_branch
          %431 = sbr.rel (%p429) target = $region40
        $region39: #{cab_forward.3} parent=11 // pred_region
          %s433 = ssub.s32 128, 128
          %434 = vsyncadd [#allocation19], %s433
          %s435 = sshll.u32 [#allocation20], 4
          %s436 = int_to_ptr.vmem [resolvable:$true] %s435
          %441 = dma.hbm_to_vmem [thread:$0]  %s10, 128, %s436, [#allocation19], 64, 64, 4
        $region40: #{cab_forward.3} parent=11 // pred_fallthru
          _
      $region12: #{cab_forward.3} parent=5 // pred_fallthru
        _
      %p442 = scmp.lt.s32.totalorder %s37, 2
      // Predicated region
      $region41: #{cab_forward.3} parent=5 // pred_check
        %p443 = pneg %p442
      $region42: #{cab_forward.3} parent=5 // pred_check_branch
        %445 = sbr.rel (%p443) target = $region44
      $region43: #{cab_forward.3} parent=5 // pred_region
        // Predicated region
        $region45: #{cab_forward.3} parent=43 // pred_check
          %p446 = pneg %p57
        $region46: #{cab_forward.3} parent=43 // pred_check_branch
          %448 = sbr.rel (%p446) target = $region48
        $region47: #{cab_forward.3} parent=43 // pred_region
          %s449 = sand.u32 %s47, 1
          %s450 = scalar_lea.sflag [#allocation4], %s449
          %s451 = sand.u32 %s47, 1
          %s452 = smul.addr %s451, 4
          %s453 = scalar_lea.vmem [#allocation3], %s452
          %s455 = ssub.s32 64, 64
          %456 = vsyncadd %s450, %s455
          %s457 = smul.addr %s37, 2
          %s458 = smul.addr %s457, 32
          %s459 = scalar_lea.hbm %s0, %s458
          %s461 = sshll.u32 %s453, 4
          %s462 = int_to_ptr.vmem [resolvable:$true] %s461
          %464 = dma.hbm_to_vmem [thread:$0]  %s459, 64, %s462, %s450
        $region48: #{cab_forward.3} parent=43 // pred_fallthru
          _
        // Predicated region
        $region49: #{cab_forward.3} parent=43 // pred_check
          %p465 = pneg %p83
        $region50: #{cab_forward.3} parent=43 // pred_check_branch
          %467 = sbr.rel (%p465) target = $region52
        $region51: #{cab_forward.3} parent=43 // pred_region
          %s468 = sand.u32 %s37, 1
          %s469 = scalar_lea.sflag [#allocation7], %s468
          %s470 = sand.u32 %s73, 1
          %s471 = smul.addr %s470, 4
          %s472 = scalar_lea.vmem [#allocation6], %s471
          %s474 = ssub.s32 64, 64
          %475 = vsyncadd %s469, %s474
          %s476 = smul.addr %s37, 2
          %s477 = smul.addr %s476, 32
          %s478 = scalar_lea.hbm %s1, %s477
          %s480 = sshll.u32 %s472, 4
          %s481 = int_to_ptr.vmem [resolvable:$true] %s480
          %483 = dma.hbm_to_vmem [thread:$0]  %s478, 64, %s481, %s469
        $region52: #{cab_forward.3} parent=43 // pred_fallthru
          _
        // Predicated region
        $region53: #{cab_forward.3} parent=43 // pred_check
          %p484 = pneg %p109
        $region54: #{cab_forward.3} parent=43 // pred_check_branch
          %486 = sbr.rel (%p484) target = $region56
        $region55: #{cab_forward.3} parent=43 // pred_region
          %s487 = sand.u32 %s37, 1
          %s488 = scalar_lea.sflag [#allocation7], %s487
          %s489 = sand.u32 %s99, 1
          %s490 = smul.addr %s489, 4
          %s491 = scalar_lea.vmem [#allocation8], %s490
          %s493 = ssub.s32 64, 64
          %494 = vsyncadd %s488, %s493
          %s495 = smul.addr %s37, 2
          %s496 = smul.addr %s495, 32
          %s497 = scalar_lea.hbm %s2, %s496
          %s499 = sshll.u32 %s491, 4
          %s500 = int_to_ptr.vmem [resolvable:$true] %s499
          %502 = dma.hbm_to_vmem [thread:$0]  %s497, 64, %s500, %s488
        $region56: #{cab_forward.3} parent=43 // pred_fallthru
          _
        // Predicated region
        $region57: #{cab_forward.3} parent=43 // pred_check
          %p503 = pneg %p135
        $region58: #{cab_forward.3} parent=43 // pred_check_branch
          %505 = sbr.rel (%p503) target = $region60
        $region59: #{cab_forward.3} parent=43 // pred_region
          %s506 = sand.u32 %s37, 1
          %s507 = scalar_lea.sflag [#allocation10], %s506
          %s508 = sand.u32 %s125, 1
          %s509 = smul.addr %s508, 4
          %s510 = scalar_lea.vmem [#allocation9], %s509
          %s512 = ssub.s32 64, 64
          %513 = vsyncadd %s507, %s512
          %s514 = smul.addr %s37, 2
          %s515 = smul.addr %s514, 32
          %s516 = scalar_lea.hbm %s3, %s515
          %s518 = sshll.u32 %s510, 4
          %s519 = int_to_ptr.vmem [resolvable:$true] %s518
          %521 = dma.hbm_to_vmem [thread:$0]  %s516, 64, %s519, %s507
        $region60: #{cab_forward.3} parent=43 // pred_fallthru
          _
      $region44: #{cab_forward.3} parent=5 // pred_fallthru
        _
      %p522 = scmp.le.s32.totalorder 1, %s37
      %p523 = scmp.lt.s32.totalorder %s37, 3
      %p524 = pnand %p522, %p523
      %p525 = pneg %p524
      // Predicated region
      $region61: #{cab_forward.3} parent=5 // pred_check
        _
      $region62: #{cab_forward.3} parent=5 // pred_check_branch
        %527 = sbr.rel (%p524) target = $region64
      $region63: #{cab_forward.3} parent=5 // pred_region
        %s528 = ssub.s32 %s37, 1
        %s529 = sand.u32 %s50, 1
        %s530 = scalar_lea.sflag [#allocation4], %s529
        %s531 = sand.u32 %s50, 1
        %s532 = smul.addr %s531, 4
        %s533 = scalar_lea.vmem [#allocation3], %s532
        // Predicated region
        $region65: #{cab_forward.3} parent=63 // pred_check
          %p534 = pneg %p63
        $region66: #{cab_forward.3} parent=63 // pred_check_branch
          %536 = sbr.rel (%p534) target = $region68
        $region67: #{cab_forward.3} parent=63 // pred_region
          %537 = dma.done %s530, 64
        $region68: #{cab_forward.3} parent=63 // pred_fallthru
          _
        %s538 = sand.u32 %s42, 1
        %s539 = scalar_lea.sflag [#allocation7], %s538
        %s540 = sand.u32 %s76, 1
        %s541 = smul.addr %s540, 4
        %s542 = scalar_lea.vmem [#allocation6], %s541
        // Predicated region
        $region69: #{cab_forward.3} parent=63 // pred_check
          %p543 = pneg %p89
        $region70: #{cab_forward.3} parent=63 // pred_check_branch
          %545 = sbr.rel (%p543) target = $region72
        $region71: #{cab_forward.3} parent=63 // pred_region
          %546 = dma.done %s539, 64
        $region72: #{cab_forward.3} parent=63 // pred_fallthru
          _
        %s547 = sand.u32 %s42, 1
        %s548 = scalar_lea.sflag [#allocation7], %s547
        %s549 = sand.u32 %s102, 1
        %s550 = smul.addr %s549, 4
        %s551 = scalar_lea.vmem [#allocation8], %s550
        // Predicated region
        $region73: #{cab_forward.3} parent=63 // pred_check
          %p552 = pneg %p115
        $region74: #{cab_forward.3} parent=63 // pred_check_branch
          %554 = sbr.rel (%p552) target = $region76
        $region75: #{cab_forward.3} parent=63 // pred_region
          %555 = dma.done %s548, 64
        $region76: #{cab_forward.3} parent=63 // pred_fallthru
          _
        %s556 = sand.u32 %s42, 1
        %s557 = scalar_lea.sflag [#allocation10], %s556
        %s558 = sand.u32 %s128, 1
        %s559 = smul.addr %s558, 4
        %s560 = scalar_lea.vmem [#allocation9], %s559
        // Predicated region
        $region77: #{cab_forward.3} parent=63 // pred_check
          %p561 = pneg %p141
        $region78: #{cab_forward.3} parent=63 // pred_check_branch
          %563 = sbr.rel (%p561) target = $region80
        $region79: #{cab_forward.3} parent=63 // pred_region
          %564 = dma.done %s557, 64
        $region80: #{cab_forward.3} parent=63 // pred_fallthru
          _
        // Predicated region
        $region81: #{cab_forward.3} parent=63 // pred_check
          %p565 = pneg %p162
        $region82: #{cab_forward.3} parent=63 // pred_check_branch
          %567 = sbr.rel (%p565) target = $region84
        $region83: #{cab_forward.3} parent=63 // pred_region
          %568 = dma.done [#allocation10], 32
        $region84: #{cab_forward.3} parent=63 // pred_fallthru
          _
        // Predicated region
        $region85: #{cab_forward.3} parent=63 // pred_check
          %p569 = pneg %p183
        $region86: #{cab_forward.3} parent=63 // pred_check_branch
          %571 = sbr.rel (%p569) target = $region88
        $region87: #{cab_forward.3} parent=63 // pred_region
          %572 = dma.done [#allocation13], 192
        $region88: #{cab_forward.3} parent=63 // pred_fallthru
          _
        // Predicated region
        $region89: #{cab_forward.3} parent=63 // pred_check
          %p573 = pneg %p204
        $region90: #{cab_forward.3} parent=63 // pred_check_branch
          %575 = sbr.rel (%p573) target = $region92
        $region91: #{cab_forward.3} parent=63 // pred_region
          %576 = dma.done [#allocation13], 384
        $region92: #{cab_forward.3} parent=63 // pred_fallthru
          _
        // Predicated region
        $region93: #{cab_forward.3} parent=63 // pred_check
          %p577 = pneg %p225
        $region94: #{cab_forward.3} parent=63 // pred_check_branch
          %579 = sbr.rel (%p577) target = $region96
        $region95: #{cab_forward.3} parent=63 // pred_region
          %580 = dma.done [#allocation16], 576
        $region96: #{cab_forward.3} parent=63 // pred_fallthru
          _
        // Predicated region
        $region97: #{cab_forward.3} parent=63 // pred_check
          %p581 = pneg %p246
        $region98: #{cab_forward.3} parent=63 // pred_check_branch
          %583 = sbr.rel (%p581) target = $region100
        $region99: #{cab_forward.3} parent=63 // pred_region
          %584 = dma.done [#allocation16], 128
        $region100: #{cab_forward.3} parent=63 // pred_fallthru
          _
        // Predicated region
        $region101: #{cab_forward.3} parent=63 // pred_check
          %p585 = pneg %p267
        $region102: #{cab_forward.3} parent=63 // pred_check_branch
          %587 = sbr.rel (%p585) target = $region104
        $region103: #{cab_forward.3} parent=63 // pred_region
          %588 = dma.done [#allocation19], 128
        $region104: #{cab_forward.3} parent=63 // pred_fallthru
          _
        // Predicated region
        $region105: #{cab_forward.3} parent=63 // pred_check
          %p589 = pneg %p288
        $region106: #{cab_forward.3} parent=63 // pred_check_branch
          %591 = sbr.rel (%p589) target = $region108
        $region107: #{cab_forward.3} parent=63 // pred_region
          %592 = dma.done [#allocation19], 128
        $region108: #{cab_forward.3} parent=63 // pred_fallthru
          _
        %s593 = sand.u32 %s50, 1
        %s594 = scalar_lea.sflag [#allocation4], %s593
        %s595 = sand.u32 %s50, 1
        %s596 = smul.addr %s595, 4
        %s597 = scalar_lea.vmem [#allocation3], %s596
        %p598 = pneg %p63
        %p599 = pneg %p60
        %s600 = sand.u32 %s42, 1
        %s601 = scalar_lea.sflag [#allocation7], %s600
        %s602 = sand.u32 %s76, 1
        %s603 = smul.addr %s602, 4
        %s604 = scalar_lea.vmem [#allocation6], %s603
        %p605 = pneg %p89
        %p606 = pneg %p86
        %s607 = sand.u32 %s42, 1
        %s608 = scalar_lea.sflag [#allocation7], %s607
        %s609 = sand.u32 %s102, 1
        %s610 = smul.addr %s609, 4
        %s611 = scalar_lea.vmem [#allocation8], %s610
        %p612 = pneg %p115
        %p613 = pneg %p112
        %s614 = sand.u32 %s42, 1
        %s615 = scalar_lea.sflag [#allocation10], %s614
        %s616 = sand.u32 %s128, 1
        %s617 = smul.addr %s616, 4
        %s618 = scalar_lea.vmem [#allocation9], %s617
        %p619 = pneg %p141
        %p620 = pneg %p138
        %p621 = pneg %p162
        %p622 = pneg %p159
        %p623 = pneg %p183
        %p624 = pneg %p180
        %p625 = pneg %p204
        %p626 = pneg %p201
        %p627 = pneg %p225
        %p628 = pneg %p222
        %p629 = pneg %p246
        %p630 = pneg %p243
        %p631 = pneg %p267
        %p632 = pneg %p264
        %p633 = pneg %p288
        %p634 = pneg %p285
        %p635 = pneg %p314
        %p636 = pneg %p311
        %s637 = sand.u32 %s301, 1
        %s638 = scalar_lea.sflag [#allocation5], %s637
        %s639 = sand.u32 %s301, 1
        %s640 = smul.addr %s639, 8
        %s641 = scalar_lea.vmem [#allocation21], %s640
        %p642 = pneg %p340
        %p643 = pneg %p337
        %s644 = sand.u32 %s327, 1
        %s645 = scalar_lea.sflag [#allocation23], %s644
        %s646 = sand.u32 %s327, 1
        %s647 = smul.addr %s646, 8
        %s648 = scalar_lea.vmem [#allocation22], %s647
        %v650 = vld [vmem:[#allocation12] sm:$0x3]
        %v651 = vld [vmem:[%s533] sm:$0xf]
        %v652 = vld [vmem:[#allocation14] sm:$0xf]
        %654 = vset.pattern.permute.xlu0 0
        %655 = vperm.xlu0 %654, %v652
        %v656 = vpop.permute.xlu0 %655
        %v660 = vunpack.c.l.s4 1983009808
        %v661 = vunpack.c.0.s8 %v660
        %v662 = vlaneseq
        %v663 = vshrl.u32 %v662, 7
        %v664 = vsub.s32 %v661, %v663
        %v665 = vrot.slane %v651, %v664
        %v666 = vcombine.high %v665, %v665
        %vm667 = vcmask 31744
        %v669 = vsel %vm667, %v650, 0
        %vm671 = vcmask 1041408
        %v673 = vsel %vm671, %v665, 0
        %v676 = vsel %vm671, %v666, 0
        %678 = vmatprep.subr.bf16.mxu0 %v676
        %679 = vmatpush1.bf16.msra.mxu0 %v673
        %680 = vmatprep.subr.bf16.mxu0 0
        %681 = vmatpush1.bf16.msra.mxu0 0
        %682 = vmatprep.subr.bf16.mxu0 0
        %683 = vmatpush1.bf16.msra.mxu0 0
        %684 = vmatprep.subr.bf16.mxu0 0
        %685 = vmatpush1.bf16.msra.mxu0 0
        %686 = vmatprep.subr.bf16.mxu0 0
        %687 = vmatpush1.bf16.msra.mxu0 0
        %688 = vmatprep.subr.bf16.mxu0 0
        %689 = vmatpush1.bf16.msra.mxu0 0
        %690 = vmatprep.subr.bf16.mxu0 0
        %691 = vmatpush1.bf16.msra.mxu0 0
        %692 = vmatprep.subr.bf16.mxu0 0
        %693 = vmatpush1.bf16.msra.mxu0 0
        %694 = vmatprep.subr.bf16.mxu0 0
        %695 = vmatpush1.bf16.msra.mxu0 0
        %696 = vmatprep.subr.bf16.mxu0 0
        %697 = vmatpush1.bf16.msra.mxu0 0
        %698 = vmatprep.subr.bf16.mxu0 0
        %699 = vmatpush1.bf16.msra.mxu0 0
        %700 = vmatprep.subr.bf16.mxu0 0
        %701 = vmatpush1.bf16.msra.mxu0 0
        %702 = vmatprep.subr.bf16.mxu0 0
        %703 = vmatpush1.bf16.msra.mxu0 0
        %704 = vmatprep.subr.bf16.mxu0 0
        %705 = vmatpush1.bf16.msra.mxu0 0
        %706 = vmatprep.subr.bf16.mxu0 0
        %707 = vmatpush1.bf16.msra.mxu0 0
        %708 = vmatprep.subr.bf16.mxu0 0
        %709 = vmatpush1.bf16.msra.mxu0 0
        %710 = vmatprep.mubr.bf16.mxu0 0
        %711 = vmatmul.mubr.bf16.gmra.mrb[0].mxu0 %v669
        %v712 = vpop.f32.mrb[0].mxu0
        %v713 = vadd.f32 %v656, %v712
        %v714 = vpop.f32.mrb[0].mxu0
        %v715 = vadd.f32 %v656, %v714
        %v716 = vpop.f32.mrb[0].mxu0
        %v717 = vpop.f32.mrb[0].mxu0
        %718 = vdwg.mxu0
        %s719 = scalar_lea.vmem [#allocation12], 2
        %v720 = vld [vmem:[%s719] sm:$0x3]
        %v721 = vld [vmem:[%s542] sm:$0xf]
        %s722 = scalar_lea.vmem [#allocation14], 4
        %v723 = vld [vmem:[%s722] sm:$0xf]
        %725 = vset.pattern.permute.xlu0 0
        %726 = vperm.xlu0 %725, %v723
        %v727 = vpop.permute.xlu0 %726
        %v731 = vunpack.c.l.s4 1983009808
        %v732 = vunpack.c.0.s8 %v731
        %v733 = vlaneseq
        %v734 = vshrl.u32 %v733, 7
        %v735 = vsub.s32 %v732, %v734
        %v736 = vrot.slane %v721, %v735
        %v737 = vcombine.high %v736, %v736
        %v739 = vsel %vm667, %v720, 0
        %v742 = vsel %vm671, %v736, 0
        %v745 = vsel %vm671, %v737, 0
        %747 = vmatprep.subr.bf16.mxu0 %v745
        %748 = vmatpush1.bf16.msra.mxu0 %v742
        %749 = vmatprep.subr.bf16.mxu0 0
        %750 = vmatpush1.bf16.msra.mxu0 0
        %751 = vmatprep.subr.bf16.mxu0 0
        %752 = vmatpush1.bf16.msra.mxu0 0
        %753 = vmatprep.subr.bf16.mxu0 0
        %754 = vmatpush1.bf16.msra.mxu0 0
        %755 = vmatprep.subr.bf16.mxu0 0
        %756 = vmatpush1.bf16.msra.mxu0 0
        %757 = vmatprep.subr.bf16.mxu0 0
        %758 = vmatpush1.bf16.msra.mxu0 0
        %759 = vmatprep.subr.bf16.mxu0 0
        %760 = vmatpush1.bf16.msra.mxu0 0
        %761 = vmatprep.subr.bf16.mxu0 0
        %762 = vmatpush1.bf16.msra.mxu0 0
        %763 = vmatprep.subr.bf16.mxu0 0
        %764 = vmatpush1.bf16.msra.mxu0 0
        %765 = vmatprep.subr.bf16.mxu0 0
        %766 = vmatpush1.bf16.msra.mxu0 0
        %767 = vmatprep.subr.bf16.mxu0 0
        %768 = vmatpush1.bf16.msra.mxu0 0
        %769 = vmatprep.subr.bf16.mxu0 0
        %770 = vmatpush1.bf16.msra.mxu0 0
        %771 = vmatprep.subr.bf16.mxu0 0
        %772 = vmatpush1.bf16.msra.mxu0 0
        %773 = vmatprep.subr.bf16.mxu0 0
        %774 = vmatpush1.bf16.msra.mxu0 0
        %775 = vmatprep.subr.bf16.mxu0 0
        %776 = vmatpush1.bf16.msra.mxu0 0
        %777 = vmatprep.subr.bf16.mxu0 0
        %778 = vmatpush1.bf16.msra.mxu0 0
        %779 = vmatprep.mubr.bf16.mxu0 0
        %780 = vmatmul.mubr.bf16.gmra.mrb[0].mxu0 %v739
        %v781 = vpop.f32.mrb[0].mxu0
        %v782 = vadd.f32 %v727, %v781
        %v783 = vpop.f32.mrb[0].mxu0
        %v784 = vadd.f32 %v727, %v783
        %v785 = vpop.f32.mrb[0].mxu0
        %v786 = vpop.f32.mrb[0].mxu0
        %787 = vdwg.mxu0
        %s788 = scalar_lea.vmem [#allocation12], 4
        %v789 = vld [vmem:[%s788] sm:$0x3]
        %v790 = vld [vmem:[%s551] sm:$0xf]
        %s791 = scalar_lea.vmem [#allocation14], 8
        %v792 = vld [vmem:[%s791] sm:$0xf]
        %794 = vset.pattern.permute.xlu0 0
        %795 = vperm.xlu0 %794, %v792
        %v796 = vpop.permute.xlu0 %795
        %v800 = vunpack.c.l.s4 1983009808
        %v801 = vunpack.c.0.s8 %v800
        %v802 = vlaneseq
        %v803 = vshrl.u32 %v802, 7
        %v804 = vsub.s32 %v801, %v803
        %v805 = vrot.slane %v790, %v804
        %v806 = vcombine.high %v805, %v805
        %v808 = vsel %vm667, %v789, 0
        %v811 = vsel %vm671, %v805, 0
        %v814 = vsel %vm671, %v806, 0
        %816 = vmatprep.subr.bf16.mxu0 %v814
        %817 = vmatpush1.bf16.msra.mxu0 %v811
        %818 = vmatprep.subr.bf16.mxu0 0
        %819 = vmatpush1.bf16.msra.mxu0 0
        %820 = vmatprep.subr.bf16.mxu0 0
        %821 = vmatpush1.bf16.msra.mxu0 0
        %822 = vmatprep.subr.bf16.mxu0 0
        %823 = vmatpush1.bf16.msra.mxu0 0
        %824 = vmatprep.subr.bf16.mxu0 0
        %825 = vmatpush1.bf16.msra.mxu0 0
        %826 = vmatprep.subr.bf16.mxu0 0
        %827 = vmatpush1.bf16.msra.mxu0 0
        %828 = vmatprep.subr.bf16.mxu0 0
        %829 = vmatpush1.bf16.msra.mxu0 0
        %830 = vmatprep.subr.bf16.mxu0 0
        %831 = vmatpush1.bf16.msra.mxu0 0
        %832 = vmatprep.subr.bf16.mxu0 0
        %833 = vmatpush1.bf16.msra.mxu0 0
        %834 = vmatprep.subr.bf16.mxu0 0
        %835 = vmatpush1.bf16.msra.mxu0 0
        %836 = vmatprep.subr.bf16.mxu0 0
        %837 = vmatpush1.bf16.msra.mxu0 0
        %838 = vmatprep.subr.bf16.mxu0 0
        %839 = vmatpush1.bf16.msra.mxu0 0
        %840 = vmatprep.subr.bf16.mxu0 0
        %841 = vmatpush1.bf16.msra.mxu0 0
        %842 = vmatprep.subr.bf16.mxu0 0
        %843 = vmatpush1.bf16.msra.mxu0 0
        %844 = vmatprep.subr.bf16.mxu0 0
        %845 = vmatpush1.bf16.msra.mxu0 0
        %846 = vmatprep.subr.bf16.mxu0 0
        %847 = vmatpush1.bf16.msra.mxu0 0
        %848 = vmatprep.mubr.bf16.mxu0 0
        %849 = vmatmul.mubr.bf16.gmra.mrb[0].mxu0 %v808
        %v850 = vpop.f32.mrb[0].mxu0
        %v851 = vadd.f32 %v796, %v850
        %v852 = vpop.f32.mrb[0].mxu0
        %v853 = vadd.f32 %v796, %v852
        %v854 = vpop.f32.mrb[0].mxu0
        %v855 = vpop.f32.mrb[0].mxu0
        %856 = vdwg.mxu0
        %vm857 = vcmp.ge.f32.partialorder %v851, 0.0
        %vm858 = vcmp.ge.f32.partialorder %v853, 0.0
        %v859 = vmul.f32 %v851, 0.1
        %v860 = vmul.f32 %v853, 0.1
        %v861 = vsel %vm857, %v851, %v859
        %v862 = vsel %vm858, %v853, %v860
        %s863 = scalar_lea.vmem [#allocation12], 6
        %v864 = vld [vmem:[%s863] sm:$0x3]
        %v865 = vpack.c.bf16 %v861, %v861
        %v866 = vpack.c.bf16 %v862, %v862
        %s867 = scalar_lea.vmem [#allocation14], 12
        %v868 = vld [vmem:[%s867] sm:$0xf]
        %870 = vset.pattern.permute.xlu0 0
        %871 = vperm.xlu0 %870, %v868
        %v872 = vpop.permute.xlu0 %871
        %v875 = vsel %vm667, %v864, 0
        %v878 = vsel %vm671, %v865, 0
        %v881 = vsel %vm671, %v866, 0
        %883 = vmatprep.subr.bf16.mxu0 %v881
        %884 = vmatpush1.bf16.msra.mxu0 %v878
        %885 = vmatprep.subr.bf16.mxu0 0
        %886 = vmatpush1.bf16.msra.mxu0 0
        %887 = vmatprep.subr.bf16.mxu0 0
        %888 = vmatpush1.bf16.msra.mxu0 0
        %889 = vmatprep.subr.bf16.mxu0 0
        %890 = vmatpush1.bf16.msra.mxu0 0
        %891 = vmatprep.subr.bf16.mxu0 0
        %892 = vmatpush1.bf16.msra.mxu0 0
        %893 = vmatprep.subr.bf16.mxu0 0
        %894 = vmatpush1.bf16.msra.mxu0 0
        %895 = vmatprep.subr.bf16.mxu0 0
        %896 = vmatpush1.bf16.msra.mxu0 0
        %897 = vmatprep.subr.bf16.mxu0 0
        %898 = vmatpush1.bf16.msra.mxu0 0
        %899 = vmatprep.subr.bf16.mxu0 0
        %900 = vmatpush1.bf16.msra.mxu0 0
        %901 = vmatprep.subr.bf16.mxu0 0
        %902 = vmatpush1.bf16.msra.mxu0 0
        %903 = vmatprep.subr.bf16.mxu0 0
        %904 = vmatpush1.bf16.msra.mxu0 0
        %905 = vmatprep.subr.bf16.mxu0 0
        %906 = vmatpush1.bf16.msra.mxu0 0
        %907 = vmatprep.subr.bf16.mxu0 0
        %908 = vmatpush1.bf16.msra.mxu0 0
        %909 = vmatprep.subr.bf16.mxu0 0
        %910 = vmatpush1.bf16.msra.mxu0 0
        %911 = vmatprep.subr.bf16.mxu0 0
        %912 = vmatpush1.bf16.msra.mxu0 0
        %913 = vmatprep.subr.bf16.mxu0 0
        %914 = vmatpush1.bf16.msra.mxu0 0
        %915 = vmatprep.mubr.bf16.mxu0 0
        %916 = vmatmul.mubr.bf16.gmra.mrb[0].mxu0 %v875
        %v917 = vpop.f32.mrb[0].mxu0
        %v918 = vadd.f32 %v872, %v917
        %v919 = vpop.f32.mrb[0].mxu0
        %v920 = vadd.f32 %v872, %v919
        %v921 = vpop.f32.mrb[0].mxu0
        %v922 = vpop.f32.mrb[0].mxu0
        %923 = vdwg.mxu0
        %s924 = scalar_lea.vmem [#allocation12], 8
        %v925 = vld [vmem:[%s924] sm:$0x3]
        %v926 = vld [vmem:[%s560] sm:$0xf]
        %s927 = scalar_lea.vmem [#allocation14], 16
        %v928 = vld [vmem:[%s927] sm:$0xf]
        %930 = vset.pattern.permute.xlu0 0
        %931 = vperm.xlu0 %930, %v928
        %v932 = vpop.permute.xlu0 %931
        %v936 = vunpack.c.l.s4 1983009808
        %v937 = vunpack.c.0.s8 %v936
        %v938 = vlaneseq
        %v939 = vshrl.u32 %v938, 7
        %v940 = vsub.s32 %v937, %v939
        %v941 = vrot.slane %v926, %v940
        %v942 = vcombine.high %v941, %v941
        %v944 = vsel %vm667, %v925, 0
        %v947 = vsel %vm671, %v941, 0
        %v950 = vsel %vm671, %v942, 0
        %952 = vmatprep.subr.bf16.mxu0 %v950
        %953 = vmatpush1.bf16.msra.mxu0 %v947
        %954 = vmatprep.subr.bf16.mxu0 0
        %955 = vmatpush1.bf16.msra.mxu0 0
        %956 = vmatprep.subr.bf16.mxu0 0
        %957 = vmatpush1.bf16.msra.mxu0 0
        %958 = vmatprep.subr.bf16.mxu0 0
        %959 = vmatpush1.bf16.msra.mxu0 0
        %960 = vmatprep.subr.bf16.mxu0 0
        %961 = vmatpush1.bf16.msra.mxu0 0
        %962 = vmatprep.subr.bf16.mxu0 0
        %963 = vmatpush1.bf16.msra.mxu0 0
        %964 = vmatprep.subr.bf16.mxu0 0
        %965 = vmatpush1.bf16.msra.mxu0 0
        %966 = vmatprep.subr.bf16.mxu0 0
        %967 = vmatpush1.bf16.msra.mxu0 0
        %968 = vmatprep.subr.bf16.mxu0 0
        %969 = vmatpush1.bf16.msra.mxu0 0
        %970 = vmatprep.subr.bf16.mxu0 0
        %971 = vmatpush1.bf16.msra.mxu0 0
        %972 = vmatprep.subr.bf16.mxu0 0
        %973 = vmatpush1.bf16.msra.mxu0 0
        %974 = vmatprep.subr.bf16.mxu0 0
        %975 = vmatpush1.bf16.msra.mxu0 0
        %976 = vmatprep.subr.bf16.mxu0 0
        %977 = vmatpush1.bf16.msra.mxu0 0
        %978 = vmatprep.subr.bf16.mxu0 0
        %979 = vmatpush1.bf16.msra.mxu0 0
        %980 = vmatprep.subr.bf16.mxu0 0
        %981 = vmatpush1.bf16.msra.mxu0 0
        %982 = vmatprep.subr.bf16.mxu0 0
        %983 = vmatpush1.bf16.msra.mxu0 0
        %984 = vmatprep.mubr.bf16.mxu0 0
        %985 = vmatmul.mubr.bf16.gmra.mrb[0].mxu0 %v944
        %v986 = vpop.f32.mrb[0].mxu0
        %v987 = vadd.f32 %v932, %v986
        %v988 = vpop.f32.mrb[0].mxu0
        %v989 = vadd.f32 %v932, %v988
        %v990 = vpop.f32.mrb[0].mxu0
        %v991 = vpop.f32.mrb[0].mxu0
        %992 = vdwg.mxu0
        %vm993 = vcmp.ge.f32.partialorder %v987, 0.0
        %vm994 = vcmp.ge.f32.partialorder %v989, 0.0
        %v995 = vmul.f32 %v987, 0.1
        %v996 = vmul.f32 %v989, 0.1
        %v997 = vsel %vm993, %v987, %v995
        %v998 = vsel %vm994, %v989, %v996
        %s999 = scalar_lea.vmem [#allocation12], 10
        %v1000 = vld [vmem:[%s999] sm:$0x3]
        %v1001 = vpack.c.bf16 %v997, %v997
        %v1002 = vpack.c.bf16 %v998, %v998
        %s1003 = scalar_lea.vmem [#allocation14], 20
        %v1004 = vld [vmem:[%s1003] sm:$0xf]
        %1006 = vset.pattern.permute.xlu0 0
        %1007 = vperm.xlu0 %1006, %v1004
        %v1008 = vpop.permute.xlu0 %1007
        %v1011 = vsel %vm667, %v1000, 0
        %v1014 = vsel %vm671, %v1001, 0
        %v1017 = vsel %vm671, %v1002, 0
        %1019 = vmatprep.subr.bf16.mxu0 %v1017
        %1020 = vmatpush1.bf16.msra.mxu0 %v1014
        %1021 = vmatprep.subr.bf16.mxu0 0
        %1022 = vmatpush1.bf16.msra.mxu0 0
        %1023 = vmatprep.subr.bf16.mxu0 0
        %1024 = vmatpush1.bf16.msra.mxu0 0
        %1025 = vmatprep.subr.bf16.mxu0 0
        %1026 = vmatpush1.bf16.msra.mxu0 0
        %1027 = vmatprep.subr.bf16.mxu0 0
        %1028 = vmatpush1.bf16.msra.mxu0 0
        %1029 = vmatprep.subr.bf16.mxu0 0
        %1030 = vmatpush1.bf16.msra.mxu0 0
        %1031 = vmatprep.subr.bf16.mxu0 0
        %1032 = vmatpush1.bf16.msra.mxu0 0
        %1033 = vmatprep.subr.bf16.mxu0 0
        %1034 = vmatpush1.bf16.msra.mxu0 0
        %1035 = vmatprep.subr.bf16.mxu0 0
        %1036 = vmatpush1.bf16.msra.mxu0 0
        %1037 = vmatprep.subr.bf16.mxu0 0
        %1038 = vmatpush1.bf16.msra.mxu0 0
        %1039 = vmatprep.subr.bf16.mxu0 0
        %1040 = vmatpush1.bf16.msra.mxu0 0
        %1041 = vmatprep.subr.bf16.mxu0 0
        %1042 = vmatpush1.bf16.msra.mxu0 0
        %1043 = vmatprep.subr.bf16.mxu0 0
        %1044 = vmatpush1.bf16.msra.mxu0 0
        %1045 = vmatprep.subr.bf16.mxu0 0
        %1046 = vmatpush1.bf16.msra.mxu0 0
        %1047 = vmatprep.subr.bf16.mxu0 0
        %1048 = vmatpush1.bf16.msra.mxu0 0
        %1049 = vmatprep.subr.bf16.mxu0 0
        %1050 = vmatpush1.bf16.msra.mxu0 0
        %1051 = vmatprep.mubr.bf16.mxu0 0
        %1052 = vmatmul.mubr.bf16.gmra.mrb[0].mxu0 %v1011
        %v1053 = vpop.f32.mrb[0].mxu0
        %v1054 = vadd.f32 %v1008, %v1053
        %v1055 = vpop.f32.mrb[0].mxu0
        %v1056 = vadd.f32 %v1008, %v1055
        %v1057 = vpop.f32.mrb[0].mxu0
        %v1058 = vpop.f32.mrb[0].mxu0
        %1059 = vdwg.mxu0
        %v1060 = vld [vmem:[#allocation11] sm:$0x3]
        %vm1061 = vcmask 289794
        %vm1062 = vmor %vm1061, %vm671
        %1063 = vst.msk [vmem:[#allocation2] sm:$0xf] %vm1062, 0
        %v1064 = vpack.c.bf16 %v713, %v713
        %v1065 = vpack.c.bf16 %v715, %v715
        %v1068 = vcombine.low %v1064, %v1065
        %v1070 = vunpack.c.l.s4 1983009808
        %v1071 = vunpack.c.0.s8 %v1070
        %v1072 = vlaneseq
        %v1073 = vshrl.u32 %v1072, 7
        %v1074 = vsub.s32 %v1071, %v1073
        %v1075 = vrot.slane %v1068, %v1074
        %1076 = vrot.lane.b32.xlu0 %v1075, 10
        %v1077 = vpop.permute.xlu0 %1076
        %v1078 = vrot.slane %v1077, 6
        %vm1079 = vcmask 80896
        %v1080 = vsel %vm1079, %v1078, %v1077
        %vm1082 = vcmask 1041488
        %vm1083 = vcmask 207874
        %vm1084 = vmor %vm1083, %vm1082
        %1085 = vst.msk [vmem:[#allocation2] sm:$0xf] %vm1084, %v1080
        %v1086 = vld [vmem:[#allocation2] sm:$0xf]
        %v1087 = vld [vmem:[#allocation17] sm:$0xff]
        %v1090 = vunpack.c.l.s4 1966171168
        %v1091 = vunpack.c.0.s8 %v1090
        %v1092 = vlaneseq
        %v1093 = vshrl.u32 %v1092, 7
        %v1094 = vsub.s32 %v1091, %v1093
        %v1095 = vrot.slane %v1060, %v1094
        %v1096 = vcombine.high %v1095, %v1095
        %v1098 = vunpack.c.l.s4 1966171168
        %v1099 = vunpack.c.0.s8 %v1098
        %v1100 = vlaneseq
        %v1101 = vshrl.u32 %v1100, 7
        %v1102 = vsub.s32 %v1099, %v1101
        %v1103 = vrot.slane %v1095, %v1102
        %v1105 = vunpack.c.l.s4 1966171168
        %v1106 = vunpack.c.0.s8 %v1105
        %v1107 = vlaneseq
        %v1108 = vshrl.u32 %v1107, 7
        %v1109 = vsub.s32 %v1106, %v1108
        %v1110 = vrot.slane %v1096, %v1109
        %v1112 = vpack.i.b16 %v1103, %v1103
        %v1114 = vlaneseq
        %v1115 = vshrl.u32 %v1114, 7
        %v1116 = vsub.s32 0, %v1115
        %v1117 = vrot.slane %v1112, %v1116
        %v1119 = vpack.i.b16 %v1110, %v1110
        %v1121 = vlaneseq
        %v1122 = vshrl.u32 %v1121, 7
        %v1123 = vsub.s32 0, %v1122
        %v1124 = vrot.slane %v1119, %v1123
        %v1127 = vcombine.low %v1117, %v1124
        %v1129 = vunpack.c.l.s4 1983009808
        %v1130 = vunpack.c.0.s8 %v1129
        %v1131 = vlaneseq
        %v1132 = vshrl.u32 %v1131, 7
        %v1133 = vsub.s32 %v1130, %v1132
        %v1134 = vrot.slane %v1127, %v1133
        %v1136 = vmul.bf16 %v1086, %v1134
        %v1137 = vld [vmem:[#allocation15] sm:$0xf]
        %s1138 = scalar_lea.vmem [#allocation15], 4
        %v1139 = vld [vmem:[%s1138] sm:$0xf]
        %v1142 = vunpack.c.l.s4 1983009808
        %v1143 = vunpack.c.0.s8 %v1142
        %v1144 = vlaneseq
        %v1145 = vshrl.u32 %v1144, 7
        %v1146 = vsub.s32 %v1143, %v1145
        %v1147 = vrot.slane %v1086, %v1146
        %v1148 = vcombine.high %v1147, %v1147
        %1149 = vrot.lane.b32.xlu0 %v1147, 127
        %v1150 = vpop.permute.xlu0 %1149
        %1151 = vrot.lane.b32.xlu0 %v1148, 127
        %v1152 = vpop.permute.xlu0 %1151
        %vm1153 = vcmask 1039360
        %v1154 = vsel %vm1153, %v1150, %v1152
        %v1156 = vsel %vm667, %v1139, 0
        %v1159 = vsel %vm671, %v1154, 0
        %v1162 = vsel %vm671, %v1152, 0
        %1164 = vmatprep.subr.bf16.mxu0 %v1162
        %1165 = vmatpush1.bf16.msra.mxu0 %v1159
        %1166 = vmatprep.subr.bf16.mxu0 0
        %1167 = vmatpush1.bf16.msra.mxu0 0
        %1168 = vmatprep.subr.bf16.mxu0 0
        %1169 = vmatpush1.bf16.msra.mxu0 0
        %1170 = vmatprep.subr.bf16.mxu0 0
        %1171 = vmatpush1.bf16.msra.mxu0 0
        %1172 = vmatprep.subr.bf16.mxu0 0
        %1173 = vmatpush1.bf16.msra.mxu0 0
        %1174 = vmatprep.subr.bf16.mxu0 0
        %1175 = vmatpush1.bf16.msra.mxu0 0
        %1176 = vmatprep.subr.bf16.mxu0 0
        %1177 = vmatpush1.bf16.msra.mxu0 0
        %1178 = vmatprep.subr.bf16.mxu0 0
        %1179 = vmatpush1.bf16.msra.mxu0 0
        %1180 = vmatprep.subr.bf16.mxu0 0
        %1181 = vmatpush1.bf16.msra.mxu0 0
        %1182 = vmatprep.subr.bf16.mxu0 0
        %1183 = vmatpush1.bf16.msra.mxu0 0
        %1184 = vmatprep.subr.bf16.mxu0 0
        %1185 = vmatpush1.bf16.msra.mxu0 0
        %1186 = vmatprep.subr.bf16.mxu0 0
        %1187 = vmatpush1.bf16.msra.mxu0 0
        %1188 = vmatprep.subr.bf16.mxu0 0
        %1189 = vmatpush1.bf16.msra.mxu0 0
        %1190 = vmatprep.subr.bf16.mxu0 0
        %1191 = vmatpush1.bf16.msra.mxu0 0
        %1192 = vmatprep.subr.bf16.mxu0 0
        %1193 = vmatpush1.bf16.msra.mxu0 0
        %1194 = vmatprep.subr.bf16.mxu0 0
        %1195 = vmatpush1.bf16.msra.mxu0 0
        %1196 = vmatprep.mubr.bf16.mxu0 0
        %1197 = vmatmul.mubr.bf16.gmra.mrb[0].mxu0 %v1156
        %v1198 = vpop.f32.mrb[0].mxu0
        %v1199 = vadd.f32 0.0, %v1198
        %v1200 = vpop.f32.mrb[0].mxu0
        %v1201 = vadd.f32 0.0, %v1200
        %v1202 = vpop.f32.mrb[0].mxu0
        %v1203 = vpop.f32.mrb[0].mxu0
        %1204 = vdwg.mxu0
        %v1207 = vunpack.c.l.s4 1983009808
        %v1208 = vunpack.c.0.s8 %v1207
        %v1209 = vlaneseq
        %v1210 = vshrl.u32 %v1209, 7
        %v1211 = vsub.s32 %v1208, %v1210
        %v1212 = vrot.slane %v1136, %v1211
        %v1213 = vcombine.high %v1212, %v1212
        %v1215 = vsel %vm667, %v1137, 0
        %v1218 = vsel %vm671, %v1212, 0
        %v1221 = vsel %vm671, %v1213, 0
        %1223 = vmatprep.subr.bf16.mxu0 %v1221
        %1224 = vmatpush1.bf16.msra.mxu0 %v1218
        %1225 = vmatprep.subr.bf16.mxu0 0
        %1226 = vmatpush1.bf16.msra.mxu0 0
        %1227 = vmatprep.subr.bf16.mxu0 0
        %1228 = vmatpush1.bf16.msra.mxu0 0
        %1229 = vmatprep.subr.bf16.mxu0 0
        %1230 = vmatpush1.bf16.msra.mxu0 0
        %1231 = vmatprep.subr.bf16.mxu0 0
        %1232 = vmatpush1.bf16.msra.mxu0 0
        %1233 = vmatprep.subr.bf16.mxu0 0
        %1234 = vmatpush1.bf16.msra.mxu0 0
        %1235 = vmatprep.subr.bf16.mxu0 0
        %1236 = vmatpush1.bf16.msra.mxu0 0
        %1237 = vmatprep.subr.bf16.mxu0 0
        %1238 = vmatpush1.bf16.msra.mxu0 0
        %1239 = vmatprep.subr.bf16.mxu0 0
        %1240 = vmatpush1.bf16.msra.mxu0 0
        %1241 = vmatprep.subr.bf16.mxu0 0
        %1242 = vmatpush1.bf16.msra.mxu0 0
        %1243 = vmatprep.subr.bf16.mxu0 0
        %1244 = vmatpush1.bf16.msra.mxu0 0
        %1245 = vmatprep.subr.bf16.mxu0 0
        %1246 = vmatpush1.bf16.msra.mxu0 0
        %1247 = vmatprep.subr.bf16.mxu0 0
        %1248 = vmatpush1.bf16.msra.mxu0 0
        %1249 = vmatprep.subr.bf16.mxu0 0
        %1250 = vmatpush1.bf16.msra.mxu0 0
        %1251 = vmatprep.subr.bf16.mxu0 0
        %1252 = vmatpush1.bf16.msra.mxu0 0
        %1253 = vmatprep.subr.bf16.mxu0 0
        %1254 = vmatpush1.bf16.msra.mxu0 0
        %1255 = vmatprep.mubr.bf16.mxu0 0
        %1256 = vmatmul.mubr.bf16.gmra.mrb[0].mxu0 %v1215
        %v1257 = vpop.f32.mrb[0].mxu0
        %v1258 = vadd.f32 %v1199, %v1257
        %v1259 = vpop.f32.mrb[0].mxu0
        %v1260 = vadd.f32 %v1201, %v1259
        %v1261 = vpop.f32.mrb[0].mxu0
        %v1262 = vpop.f32.mrb[0].mxu0
        %1263 = vdwg.mxu0
        %v1264 = vshrl.u32 %v1103, 16
        %v1265 = vpack.i.b16 %v1264, %v1264
        %v1267 = vlaneseq
        %v1268 = vshrl.u32 %v1267, 7
        %v1269 = vsub.s32 0, %v1268
        %v1270 = vrot.slane %v1265, %v1269
        %v1271 = vshrl.u32 %v1110, 16
        %v1272 = vpack.i.b16 %v1271, %v1271
        %v1274 = vlaneseq
        %v1275 = vshrl.u32 %v1274, 7
        %v1276 = vsub.s32 0, %v1275
        %v1277 = vrot.slane %v1272, %v1276
        %v1280 = vcombine.low %v1270, %v1277
        %v1282 = vunpack.c.l.s4 1983009808
        %v1283 = vunpack.c.0.s8 %v1282
        %v1284 = vlaneseq
        %v1285 = vshrl.u32 %v1284, 7
        %v1286 = vsub.s32 %v1283, %v1285
        %v1287 = vrot.slane %v1280, %v1286
        %1288 = vrot.lane.b32.xlu0 %v1287, 2
        %v1289 = vpop.permute.xlu0 %1288
        %v1290 = vrot.slane %v1289, 6
        %vm1291 = vcmask 15360
        %v1292 = vsel %vm1291, %v1290, %v1289
        %v1294 = vmul.bf16 %v1086, %v1292
        %s1295 = scalar_lea.vmem [#allocation15], 8
        %v1296 = vld [vmem:[%s1295] sm:$0xf]
        %v1299 = vunpack.c.l.s4 1983009808
        %v1300 = vunpack.c.0.s8 %v1299
        %v1301 = vlaneseq
        %v1302 = vshrl.u32 %v1301, 7
        %v1303 = vsub.s32 %v1300, %v1302
        %v1304 = vrot.slane %v1294, %v1303
        %v1305 = vcombine.high %v1304, %v1304
        %1306 = vrot.lane.b32.xlu0 %v1304, 126
        %v1307 = vpop.permute.xlu0 %1306
        %1308 = vrot.lane.b32.xlu0 %v1305, 126
        %v1309 = vpop.permute.xlu0 %1308
        %vm1310 = vcmask 1031168
        %v1311 = vsel %vm1310, %v1307, %v1309
        %v1313 = vsel %vm667, %v1296, 0
        %v1316 = vsel %vm671, %v1311, 0
        %v1319 = vsel %vm671, %v1309, 0
        %1321 = vmatprep.subr.bf16.mxu0 %v1319
        %1322 = vmatpush1.bf16.msra.mxu0 %v1316
        %1323 = vmatprep.subr.bf16.mxu0 0
        %1324 = vmatpush1.bf16.msra.mxu0 0
        %1325 = vmatprep.subr.bf16.mxu0 0
        %1326 = vmatpush1.bf16.msra.mxu0 0
        %1327 = vmatprep.subr.bf16.mxu0 0
        %1328 = vmatpush1.bf16.msra.mxu0 0
        %1329 = vmatprep.subr.bf16.mxu0 0
        %1330 = vmatpush1.bf16.msra.mxu0 0
        %1331 = vmatprep.subr.bf16.mxu0 0
        %1332 = vmatpush1.bf16.msra.mxu0 0
        %1333 = vmatprep.subr.bf16.mxu0 0
        %1334 = vmatpush1.bf16.msra.mxu0 0
        %1335 = vmatprep.subr.bf16.mxu0 0
        %1336 = vmatpush1.bf16.msra.mxu0 0
        %1337 = vmatprep.subr.bf16.mxu0 0
        %1338 = vmatpush1.bf16.msra.mxu0 0
        %1339 = vmatprep.subr.bf16.mxu0 0
        %1340 = vmatpush1.bf16.msra.mxu0 0
        %1341 = vmatprep.subr.bf16.mxu0 0
        %1342 = vmatpush1.bf16.msra.mxu0 0
        %1343 = vmatprep.subr.bf16.mxu0 0
        %1344 = vmatpush1.bf16.msra.mxu0 0
        %1345 = vmatprep.subr.bf16.mxu0 0
        %1346 = vmatpush1.bf16.msra.mxu0 0
        %1347 = vmatprep.subr.bf16.mxu0 0
        %1348 = vmatpush1.bf16.msra.mxu0 0
        %1349 = vmatprep.subr.bf16.mxu0 0
        %1350 = vmatpush1.bf16.msra.mxu0 0
        %1351 = vmatprep.subr.bf16.mxu0 0
        %1352 = vmatpush1.bf16.msra.mxu0 0
        %1353 = vmatprep.mubr.bf16.mxu0 0
        %1354 = vmatmul.mubr.bf16.gmra.mrb[0].mxu0 %v1313
        %v1355 = vpop.f32.mrb[0].mxu0
        %v1356 = vadd.f32 0.0, %v1355
        %v1357 = vpop.f32.mrb[0].mxu0
        %v1358 = vadd.f32 0.0, %v1357
        %v1359 = vpop.f32.mrb[0].mxu0
        %v1360 = vpop.f32.mrb[0].mxu0
        %1361 = vdwg.mxu0
        %v1362 = vadd.f32 %v1258, %v1356
        %v1363 = vadd.f32 %v1260, %v1358
        %1364 = vrot.lane.b32.xlu0 %v1134, 9
        %v1365 = vpop.permute.xlu0 %1364
        %v1366 = vrot.slane %v1365, 6
        %vm1367 = vcmask 72704
        %v1368 = vsel %vm1367, %v1366, %v1365
        %v1370 = vmul.bf16 %v1086, %v1368
        %s1371 = scalar_lea.vmem [#allocation15], 12
        %v1372 = vld [vmem:[%s1371] sm:$0xf]
        %v1375 = vunpack.c.l.s4 1983009808
        %v1376 = vunpack.c.0.s8 %v1375
        %v1377 = vlaneseq
        %v1378 = vshrl.u32 %v1377, 7
        %v1379 = vsub.s32 %v1376, %v1378
        %v1380 = vrot.slane %v1370, %v1379
        %v1381 = vcombine.high %v1380, %v1380
        %1382 = vrot.lane.b32.xlu0 %v1380, 119
        %v1383 = vpop.permute.xlu0 %1382
        %1384 = vrot.lane.b32.xlu0 %v1381, 119
        %v1385 = vpop.permute.xlu0 %1384
        %vm1386 = vcmask 973824
        %v1387 = vsel %vm1386, %v1383, %v1385
        %v1389 = vsel %vm667, %v1372, 0
        %v1392 = vsel %vm671, %v1387, 0
        %v1395 = vsel %vm671, %v1385, 0
        %1397 = vmatprep.subr.bf16.mxu0 %v1395
        %1398 = vmatpush1.bf16.msra.mxu0 %v1392
        %1399 = vmatprep.subr.bf16.mxu0 0
        %1400 = vmatpush1.bf16.msra.mxu0 0
        %1401 = vmatprep.subr.bf16.mxu0 0
        %1402 = vmatpush1.bf16.msra.mxu0 0
        %1403 = vmatprep.subr.bf16.mxu0 0
        %1404 = vmatpush1.bf16.msra.mxu0 0
        %1405 = vmatprep.subr.bf16.mxu0 0
        %1406 = vmatpush1.bf16.msra.mxu0 0
        %1407 = vmatprep.subr.bf16.mxu0 0
        %1408 = vmatpush1.bf16.msra.mxu0 0
        %1409 = vmatprep.subr.bf16.mxu0 0
        %1410 = vmatpush1.bf16.msra.mxu0 0
        %1411 = vmatprep.subr.bf16.mxu0 0
        %1412 = vmatpush1.bf16.msra.mxu0 0
        %1413 = vmatprep.subr.bf16.mxu0 0
        %1414 = vmatpush1.bf16.msra.mxu0 0
        %1415 = vmatprep.subr.bf16.mxu0 0
        %1416 = vmatpush1.bf16.msra.mxu0 0
        %1417 = vmatprep.subr.bf16.mxu0 0
        %1418 = vmatpush1.bf16.msra.mxu0 0
        %1419 = vmatprep.subr.bf16.mxu0 0
        %1420 = vmatpush1.bf16.msra.mxu0 0
        %1421 = vmatprep.subr.bf16.mxu0 0
        %1422 = vmatpush1.bf16.msra.mxu0 0
        %1423 = vmatprep.subr.bf16.mxu0 0
        %1424 = vmatpush1.bf16.msra.mxu0 0
        %1425 = vmatprep.subr.bf16.mxu0 0
        %1426 = vmatpush1.bf16.msra.mxu0 0
        %1427 = vmatprep.subr.bf16.mxu0 0
        %1428 = vmatpush1.bf16.msra.mxu0 0
        %1429 = vmatprep.mubr.bf16.mxu0 0
        %1430 = vmatmul.mubr.bf16.gmra.mrb[0].mxu0 %v1389
        %v1431 = vpop.f32.mrb[0].mxu0
        %v1432 = vadd.f32 0.0, %v1431
        %v1433 = vpop.f32.mrb[0].mxu0
        %v1434 = vadd.f32 0.0, %v1433
        %v1435 = vpop.f32.mrb[0].mxu0
        %v1436 = vpop.f32.mrb[0].mxu0
        %1437 = vdwg.mxu0
        %v1438 = vadd.f32 %v1362, %v1432
        %v1439 = vadd.f32 %v1363, %v1434
        %s1440 = scalar_lea.vmem [#allocation15], 16
        %v1441 = vld [vmem:[%s1440] sm:$0xf]
        %1442 = vrot.lane.b32.xlu0 %v1147, 118
        %v1443 = vpop.permute.xlu0 %1442
        %1444 = vrot.lane.b32.xlu0 %v1148, 118
        %v1445 = vpop.permute.xlu0 %1444
        %vm1446 = vcmask 965632
        %v1447 = vsel %vm1446, %v1443, %v1445
        %v1449 = vsel %vm667, %v1441, 0
        %v1452 = vsel %vm671, %v1447, 0
        %v1455 = vsel %vm671, %v1445, 0
        %1457 = vmatprep.subr.bf16.mxu0 %v1455
        %1458 = vmatpush1.bf16.msra.mxu0 %v1452
        %1459 = vmatprep.subr.bf16.mxu0 0
        %1460 = vmatpush1.bf16.msra.mxu0 0
        %1461 = vmatprep.subr.bf16.mxu0 0
        %1462 = vmatpush1.bf16.msra.mxu0 0
        %1463 = vmatprep.subr.bf16.mxu0 0
        %1464 = vmatpush1.bf16.msra.mxu0 0
        %1465 = vmatprep.subr.bf16.mxu0 0
        %1466 = vmatpush1.bf16.msra.mxu0 0
        %1467 = vmatprep.subr.bf16.mxu0 0
        %1468 = vmatpush1.bf16.msra.mxu0 0
        %1469 = vmatprep.subr.bf16.mxu0 0
        %1470 = vmatpush1.bf16.msra.mxu0 0
        %1471 = vmatprep.subr.bf16.mxu0 0
        %1472 = vmatpush1.bf16.msra.mxu0 0
        %1473 = vmatprep.subr.bf16.mxu0 0
        %1474 = vmatpush1.bf16.msra.mxu0 0
        %1475 = vmatprep.subr.bf16.mxu0 0
        %1476 = vmatpush1.bf16.msra.mxu0 0
        %1477 = vmatprep.subr.bf16.mxu0 0
        %1478 = vmatpush1.bf16.msra.mxu0 0
        %1479 = vmatprep.subr.bf16.mxu0 0
        %1480 = vmatpush1.bf16.msra.mxu0 0
        %1481 = vmatprep.subr.bf16.mxu0 0
        %1482 = vmatpush1.bf16.msra.mxu0 0
        %1483 = vmatprep.subr.bf16.mxu0 0
        %1484 = vmatpush1.bf16.msra.mxu0 0
        %1485 = vmatprep.subr.bf16.mxu0 0
        %1486 = vmatpush1.bf16.msra.mxu0 0
        %1487 = vmatprep.subr.bf16.mxu0 0
        %1488 = vmatpush1.bf16.msra.mxu0 0
        %1489 = vmatprep.mubr.bf16.mxu0 0
        %1490 = vmatmul.mubr.bf16.gmra.mrb[0].mxu0 %v1449
        %v1491 = vpop.f32.mrb[0].mxu0
        %v1492 = vadd.f32 0.0, %v1491
        %v1493 = vpop.f32.mrb[0].mxu0
        %v1494 = vadd.f32 0.0, %v1493
        %v1495 = vpop.f32.mrb[0].mxu0
        %v1496 = vpop.f32.mrb[0].mxu0
        %1497 = vdwg.mxu0
        %v1498 = vadd.f32 %v1438, %v1492
        %v1499 = vadd.f32 %v1439, %v1494
        %1500 = vrot.lane.b32.xlu0 %v1287, 11
        %v1501 = vpop.permute.xlu0 %1500
        %v1502 = vrot.slane %v1501, 6
        %vm1503 = vcmask 89088
        %v1504 = vsel %vm1503, %v1502, %v1501
        %v1506 = vmul.bf16 %v1086, %v1504
        %s1507 = scalar_lea.vmem [#allocation15], 20
        %v1508 = vld [vmem:[%s1507] sm:$0xf]
        %v1511 = vunpack.c.l.s4 1983009808
        %v1512 = vunpack.c.0.s8 %v1511
        %v1513 = vlaneseq
        %v1514 = vshrl.u32 %v1513, 7
        %v1515 = vsub.s32 %v1512, %v1514
        %v1516 = vrot.slane %v1506, %v1515
        %v1517 = vcombine.high %v1516, %v1516
        %1518 = vrot.lane.b32.xlu0 %v1516, 117
        %v1519 = vpop.permute.xlu0 %1518
        %1520 = vrot.lane.b32.xlu0 %v1517, 117
        %v1521 = vpop.permute.xlu0 %1520
        %vm1522 = vcmask 957440
        %v1523 = vsel %vm1522, %v1519, %v1521
        %v1525 = vsel %vm667, %v1508, 0
        %v1528 = vsel %vm671, %v1523, 0
        %v1531 = vsel %vm671, %v1521, 0
        %1533 = vmatprep.subr.bf16.mxu0 %v1531
        %1534 = vmatpush1.bf16.msra.mxu0 %v1528
        %1535 = vmatprep.subr.bf16.mxu0 0
        %1536 = vmatpush1.bf16.msra.mxu0 0
        %1537 = vmatprep.subr.bf16.mxu0 0
        %1538 = vmatpush1.bf16.msra.mxu0 0
        %1539 = vmatprep.subr.bf16.mxu0 0
        %1540 = vmatpush1.bf16.msra.mxu0 0
        %1541 = vmatprep.subr.bf16.mxu0 0
        %1542 = vmatpush1.bf16.msra.mxu0 0
        %1543 = vmatprep.subr.bf16.mxu0 0
        %1544 = vmatpush1.bf16.msra.mxu0 0
        %1545 = vmatprep.subr.bf16.mxu0 0
        %1546 = vmatpush1.bf16.msra.mxu0 0
        %1547 = vmatprep.subr.bf16.mxu0 0
        %1548 = vmatpush1.bf16.msra.mxu0 0
        %1549 = vmatprep.subr.bf16.mxu0 0
        %1550 = vmatpush1.bf16.msra.mxu0 0
        %1551 = vmatprep.subr.bf16.mxu0 0
        %1552 = vmatpush1.bf16.msra.mxu0 0
        %1553 = vmatprep.subr.bf16.mxu0 0
        %1554 = vmatpush1.bf16.msra.mxu0 0
        %1555 = vmatprep.subr.bf16.mxu0 0
        %1556 = vmatpush1.bf16.msra.mxu0 0
        %1557 = vmatprep.subr.bf16.mxu0 0
        %1558 = vmatpush1.bf16.msra.mxu0 0
        %1559 = vmatprep.subr.bf16.mxu0 0
        %1560 = vmatpush1.bf16.msra.mxu0 0
        %1561 = vmatprep.subr.bf16.mxu0 0
        %1562 = vmatpush1.bf16.msra.mxu0 0
        %1563 = vmatprep.subr.bf16.mxu0 0
        %1564 = vmatpush1.bf16.msra.mxu0 0
        %1565 = vmatprep.mubr.bf16.mxu0 0
        %1566 = vmatmul.mubr.bf16.gmra.mrb[0].mxu0 %v1525
        %v1567 = vpop.f32.mrb[0].mxu0
        %v1568 = vadd.f32 0.0, %v1567
        %v1569 = vpop.f32.mrb[0].mxu0
        %v1570 = vadd.f32 0.0, %v1569
        %v1571 = vpop.f32.mrb[0].mxu0
        %v1572 = vpop.f32.mrb[0].mxu0
        %1573 = vdwg.mxu0
        %v1574 = vadd.f32 %v1498, %v1568
        %v1575 = vadd.f32 %v1499, %v1570
        %1576 = vrot.lane.b32.xlu0 %v1134, 18
        %v1577 = vpop.permute.xlu0 %1576
        %v1578 = vrot.slane %v1577, 6
        %vm1579 = vcmask 146432
        %v1580 = vsel %vm1579, %v1578, %v1577
        %v1582 = vmul.bf16 %v1086, %v1580
        %s1583 = scalar_lea.vmem [#allocation15], 24
        %v1584 = vld [vmem:[%s1583] sm:$0xf]
        %v1587 = vunpack.c.l.s4 1983009808
        %v1588 = vunpack.c.0.s8 %v1587
        %v1589 = vlaneseq
        %v1590 = vshrl.u32 %v1589, 7
        %v1591 = vsub.s32 %v1588, %v1590
        %v1592 = vrot.slane %v1582, %v1591
        %v1593 = vcombine.high %v1592, %v1592
        %1594 = vrot.lane.b32.xlu0 %v1592, 110
        %v1595 = vpop.permute.xlu0 %1594
        %1596 = vrot.lane.b32.xlu0 %v1593, 110
        %v1597 = vpop.permute.xlu0 %1596
        %vm1598 = vcmask 900096
        %v1599 = vsel %vm1598, %v1595, %v1597
        %v1601 = vsel %vm667, %v1584, 0
        %v1604 = vsel %vm671, %v1599, 0
        %v1607 = vsel %vm671, %v1597, 0
        %1609 = vmatprep.subr.bf16.mxu0 %v1607
        %1610 = vmatpush1.bf16.msra.mxu0 %v1604
        %1611 = vmatprep.subr.bf16.mxu0 0
        %1612 = vmatpush1.bf16.msra.mxu0 0
        %1613 = vmatprep.subr.bf16.mxu0 0
        %1614 = vmatpush1.bf16.msra.mxu0 0
        %1615 = vmatprep.subr.bf16.mxu0 0
        %1616 = vmatpush1.bf16.msra.mxu0 0
        %1617 = vmatprep.subr.bf16.mxu0 0
        %1618 = vmatpush1.bf16.msra.mxu0 0
        %1619 = vmatprep.subr.bf16.mxu0 0
        %1620 = vmatpush1.bf16.msra.mxu0 0
        %1621 = vmatprep.subr.bf16.mxu0 0
        %1622 = vmatpush1.bf16.msra.mxu0 0
        %1623 = vmatprep.subr.bf16.mxu0 0
        %1624 = vmatpush1.bf16.msra.mxu0 0
        %1625 = vmatprep.subr.bf16.mxu0 0
        %1626 = vmatpush1.bf16.msra.mxu0 0
        %1627 = vmatprep.subr.bf16.mxu0 0
        %1628 = vmatpush1.bf16.msra.mxu0 0
        %1629 = vmatprep.subr.bf16.mxu0 0
        %1630 = vmatpush1.bf16.msra.mxu0 0
        %1631 = vmatprep.subr.bf16.mxu0 0
        %1632 = vmatpush1.bf16.msra.mxu0 0
        %1633 = vmatprep.subr.bf16.mxu0 0
        %1634 = vmatpush1.bf16.msra.mxu0 0
        %1635 = vmatprep.subr.bf16.mxu0 0
        %1636 = vmatpush1.bf16.msra.mxu0 0
        %1637 = vmatprep.subr.bf16.mxu0 0
        %1638 = vmatpush1.bf16.msra.mxu0 0
        %1639 = vmatprep.subr.bf16.mxu0 0
        %1640 = vmatpush1.bf16.msra.mxu0 0
        %1641 = vmatprep.mubr.bf16.mxu0 0
        %1642 = vmatmul.mubr.bf16.gmra.mrb[0].mxu0 %v1601
        %v1643 = vpop.f32.mrb[0].mxu0
        %v1644 = vadd.f32 0.0, %v1643
        %v1645 = vpop.f32.mrb[0].mxu0
        %v1646 = vadd.f32 0.0, %v1645
        %v1647 = vpop.f32.mrb[0].mxu0
        %v1648 = vpop.f32.mrb[0].mxu0
        %1649 = vdwg.mxu0
        %v1650 = vadd.f32 %v1574, %v1644
        %v1651 = vadd.f32 %v1575, %v1646
        %s1652 = scalar_lea.vmem [#allocation15], 28
        %v1653 = vld [vmem:[%s1652] sm:$0xf]
        %1654 = vrot.lane.b32.xlu0 %v1147, 109
        %v1655 = vpop.permute.xlu0 %1654
        %1656 = vrot.lane.b32.xlu0 %v1148, 109
        %v1657 = vpop.permute.xlu0 %1656
        %vm1658 = vcmask 891904
        %v1659 = vsel %vm1658, %v1655, %v1657
        %v1661 = vsel %vm667, %v1653, 0
        %v1664 = vsel %vm671, %v1659, 0
        %v1667 = vsel %vm671, %v1657, 0
        %1669 = vmatprep.subr.bf16.mxu0 %v1667
        %1670 = vmatpush1.bf16.msra.mxu0 %v1664
        %1671 = vmatprep.subr.bf16.mxu0 0
        %1672 = vmatpush1.bf16.msra.mxu0 0
        %1673 = vmatprep.subr.bf16.mxu0 0
        %1674 = vmatpush1.bf16.msra.mxu0 0
        %1675 = vmatprep.subr.bf16.mxu0 0
        %1676 = vmatpush1.bf16.msra.mxu0 0
        %1677 = vmatprep.subr.bf16.mxu0 0
        %1678 = vmatpush1.bf16.msra.mxu0 0
        %1679 = vmatprep.subr.bf16.mxu0 0
        %1680 = vmatpush1.bf16.msra.mxu0 0
        %1681 = vmatprep.subr.bf16.mxu0 0
        %1682 = vmatpush1.bf16.msra.mxu0 0
        %1683 = vmatprep.subr.bf16.mxu0 0
        %1684 = vmatpush1.bf16.msra.mxu0 0
        %1685 = vmatprep.subr.bf16.mxu0 0
        %1686 = vmatpush1.bf16.msra.mxu0 0
        %1687 = vmatprep.subr.bf16.mxu0 0
        %1688 = vmatpush1.bf16.msra.mxu0 0
        %1689 = vmatprep.subr.bf16.mxu0 0
        %1690 = vmatpush1.bf16.msra.mxu0 0
        %1691 = vmatprep.subr.bf16.mxu0 0
        %1692 = vmatpush1.bf16.msra.mxu0 0
        %1693 = vmatprep.subr.bf16.mxu0 0
        %1694 = vmatpush1.bf16.msra.mxu0 0
        %1695 = vmatprep.subr.bf16.mxu0 0
        %1696 = vmatpush1.bf16.msra.mxu0 0
        %1697 = vmatprep.subr.bf16.mxu0 0
        %1698 = vmatpush1.bf16.msra.mxu0 0
        %1699 = vmatprep.subr.bf16.mxu0 0
        %1700 = vmatpush1.bf16.msra.mxu0 0
        %1701 = vmatprep.mubr.bf16.mxu0 0
        %1702 = vmatmul.mubr.bf16.gmra.mrb[0].mxu0 %v1661
        %v1703 = vpop.f32.mrb[0].mxu0
        %v1704 = vadd.f32 0.0, %v1703
        %v1705 = vpop.f32.mrb[0].mxu0
        %v1706 = vadd.f32 0.0, %v1705
        %v1707 = vpop.f32.mrb[0].mxu0
        %v1708 = vpop.f32.mrb[0].mxu0
        %1709 = vdwg.mxu0
        %v1710 = vadd.f32 %v1650, %v1704
        %v1711 = vadd.f32 %v1651, %v1706
        %1712 = vrot.lane.b32.xlu0 %v1287, 20
        %v1713 = vpop.permute.xlu0 %1712
        %v1714 = vrot.slane %v1713, 6
        %vm1715 = vcmask 162816
        %v1716 = vsel %vm1715, %v1714, %v1713
        %v1718 = vmul.bf16 %v1086, %v1716
        %s1719 = scalar_lea.vmem [#allocation15], 32
        %v1720 = vld [vmem:[%s1719] sm:$0xf]
        %v1723 = vunpack.c.l.s4 1983009808
        %v1724 = vunpack.c.0.s8 %v1723
        %v1725 = vlaneseq
        %v1726 = vshrl.u32 %v1725, 7
        %v1727 = vsub.s32 %v1724, %v1726
        %v1728 = vrot.slane %v1718, %v1727
        %v1729 = vcombine.high %v1728, %v1728
        %1730 = vrot.lane.b32.xlu0 %v1728, 108
        %v1731 = vpop.permute.xlu0 %1730
        %1732 = vrot.lane.b32.xlu0 %v1729, 108
        %v1733 = vpop.permute.xlu0 %1732
        %vm1734 = vcmask 883712
        %v1735 = vsel %vm1734, %v1731, %v1733
        %v1737 = vsel %vm667, %v1720, 0
        %v1740 = vsel %vm671, %v1735, 0
        %v1743 = vsel %vm671, %v1733, 0
        %1745 = vmatprep.subr.bf16.mxu0 %v1743
        %1746 = vmatpush1.bf16.msra.mxu0 %v1740
        %1747 = vmatprep.subr.bf16.mxu0 0
        %1748 = vmatpush1.bf16.msra.mxu0 0
        %1749 = vmatprep.subr.bf16.mxu0 0
        %1750 = vmatpush1.bf16.msra.mxu0 0
        %1751 = vmatprep.subr.bf16.mxu0 0
        %1752 = vmatpush1.bf16.msra.mxu0 0
        %1753 = vmatprep.subr.bf16.mxu0 0
        %1754 = vmatpush1.bf16.msra.mxu0 0
        %1755 = vmatprep.subr.bf16.mxu0 0
        %1756 = vmatpush1.bf16.msra.mxu0 0
        %1757 = vmatprep.subr.bf16.mxu0 0
        %1758 = vmatpush1.bf16.msra.mxu0 0
        %1759 = vmatprep.subr.bf16.mxu0 0
        %1760 = vmatpush1.bf16.msra.mxu0 0
        %1761 = vmatprep.subr.bf16.mxu0 0
        %1762 = vmatpush1.bf16.msra.mxu0 0
        %1763 = vmatprep.subr.bf16.mxu0 0
        %1764 = vmatpush1.bf16.msra.mxu0 0
        %1765 = vmatprep.subr.bf16.mxu0 0
        %1766 = vmatpush1.bf16.msra.mxu0 0
        %1767 = vmatprep.subr.bf16.mxu0 0
        %1768 = vmatpush1.bf16.msra.mxu0 0
        %1769 = vmatprep.subr.bf16.mxu0 0
        %1770 = vmatpush1.bf16.msra.mxu0 0
        %1771 = vmatprep.subr.bf16.mxu0 0
        %1772 = vmatpush1.bf16.msra.mxu0 0
        %1773 = vmatprep.subr.bf16.mxu0 0
        %1774 = vmatpush1.bf16.msra.mxu0 0
        %1775 = vmatprep.subr.bf16.mxu0 0
        %1776 = vmatpush1.bf16.msra.mxu0 0
        %1777 = vmatprep.mubr.bf16.mxu0 0
        %1778 = vmatmul.mubr.bf16.gmra.mrb[0].mxu0 %v1737
        %v1779 = vpop.f32.mrb[0].mxu0
        %v1780 = vadd.f32 0.0, %v1779
        %v1781 = vpop.f32.mrb[0].mxu0
        %v1782 = vadd.f32 0.0, %v1781
        %v1783 = vpop.f32.mrb[0].mxu0
        %v1784 = vpop.f32.mrb[0].mxu0
        %1785 = vdwg.mxu0
        %v1786 = vadd.f32 %v1710, %v1780
        %v1787 = vadd.f32 %v1711, %v1782
        %1789 = vset.pattern.permute.xlu0 0
        %1790 = vperm.xlu0 %1789, %v1087
        %v1791 = vpop.permute.xlu0 %1790
        %v1793 = vadd.f32 %v1786, %v1791
        %v1794 = vadd.f32 %v1787, %v1791
        %v1795 = vmul.f32 %v1793, %v918
        %v1796 = vmul.f32 %v1794, %v920
        %v1799 = vrot.slane %v1793, 4
        %v1800 = vrot.slane %v1794, 4
        %v1803 = vadd.f32 %v1795, %v1799
        %v1804 = vadd.f32 %v1796, %v1800
        %v1805 = vld [vmem:[#allocation18] sm:$0x3]
        %v1806 = vpack.c.bf16 %v918, %v918
        %v1807 = vpack.c.bf16 %v920, %v920
        %s1808 = scalar_lea.vmem [#allocation18], 2
        %v1809 = vld [vmem:[%s1808] sm:$0x3]
        %v1810 = vpack.c.bf16 %v1803, %v1803
        %v1811 = vpack.c.bf16 %v1804, %v1804
        %v1813 = vsel %vm667, %v1809, 0
        %v1816 = vsel %vm671, %v1810, 0
        %v1819 = vsel %vm671, %v1811, 0
        %1821 = vmatprep.subr.bf16.mxu0 %v1819
        %1822 = vmatpush1.bf16.msra.mxu0 %v1816
        %1823 = vmatprep.subr.bf16.mxu0 0
        %1824 = vmatpush1.bf16.msra.mxu0 0
        %1825 = vmatprep.subr.bf16.mxu0 0
        %1826 = vmatpush1.bf16.msra.mxu0 0
        %1827 = vmatprep.subr.bf16.mxu0 0
        %1828 = vmatpush1.bf16.msra.mxu0 0
        %1829 = vmatprep.subr.bf16.mxu0 0
        %1830 = vmatpush1.bf16.msra.mxu0 0
        %1831 = vmatprep.subr.bf16.mxu0 0
        %1832 = vmatpush1.bf16.msra.mxu0 0
        %1833 = vmatprep.subr.bf16.mxu0 0
        %1834 = vmatpush1.bf16.msra.mxu0 0
        %1835 = vmatprep.subr.bf16.mxu0 0
        %1836 = vmatpush1.bf16.msra.mxu0 0
        %1837 = vmatprep.subr.bf16.mxu0 0
        %1838 = vmatpush1.bf16.msra.mxu0 0
        %1839 = vmatprep.subr.bf16.mxu0 0
        %1840 = vmatpush1.bf16.msra.mxu0 0
        %1841 = vmatprep.subr.bf16.mxu0 0
        %1842 = vmatpush1.bf16.msra.mxu0 0
        %1843 = vmatprep.subr.bf16.mxu0 0
        %1844 = vmatpush1.bf16.msra.mxu0 0
        %1845 = vmatprep.subr.bf16.mxu0 0
        %1846 = vmatpush1.bf16.msra.mxu0 0
        %1847 = vmatprep.subr.bf16.mxu0 0
        %1848 = vmatpush1.bf16.msra.mxu0 0
        %1849 = vmatprep.subr.bf16.mxu0 0
        %1850 = vmatpush1.bf16.msra.mxu0 0
        %1851 = vmatprep.subr.bf16.mxu0 0
        %1852 = vmatpush1.bf16.msra.mxu0 0
        %1853 = vmatprep.mubr.bf16.mxu0 0
        %1854 = vmatmul.mubr.bf16.gmra.mrb[0].mxu0 %v1813
        %v1855 = vpop.f32.mrb[0].mxu0
        %v1856 = vadd.f32 0.0, %v1855
        %v1857 = vpop.f32.mrb[0].mxu0
        %v1858 = vadd.f32 0.0, %v1857
        %v1859 = vpop.f32.mrb[0].mxu0
        %v1860 = vpop.f32.mrb[0].mxu0
        %1861 = vdwg.mxu0
        %v1863 = vsel %vm667, %v1805, 0
        %v1866 = vsel %vm671, %v1806, 0
        %v1869 = vsel %vm671, %v1807, 0
        %1871 = vmatprep.subr.bf16.mxu0 %v1869
        %1872 = vmatpush1.bf16.msra.mxu0 %v1866
        %1873 = vmatprep.subr.bf16.mxu0 0
        %1874 = vmatpush1.bf16.msra.mxu0 0
        %1875 = vmatprep.subr.bf16.mxu0 0
        %1876 = vmatpush1.bf16.msra.mxu0 0
        %1877 = vmatprep.subr.bf16.mxu0 0
        %1878 = vmatpush1.bf16.msra.mxu0 0
        %1879 = vmatprep.subr.bf16.mxu0 0
        %1880 = vmatpush1.bf16.msra.mxu0 0
        %1881 = vmatprep.subr.bf16.mxu0 0
        %1882 = vmatpush1.bf16.msra.mxu0 0
        %1883 = vmatprep.subr.bf16.mxu0 0
        %1884 = vmatpush1.bf16.msra.mxu0 0
        %1885 = vmatprep.subr.bf16.mxu0 0
        %1886 = vmatpush1.bf16.msra.mxu0 0
        %1887 = vmatprep.subr.bf16.mxu0 0
        %1888 = vmatpush1.bf16.msra.mxu0 0
        %1889 = vmatprep.subr.bf16.mxu0 0
        %1890 = vmatpush1.bf16.msra.mxu0 0
        %1891 = vmatprep.subr.bf16.mxu0 0
        %1892 = vmatpush1.bf16.msra.mxu0 0
        %1893 = vmatprep.subr.bf16.mxu0 0
        %1894 = vmatpush1.bf16.msra.mxu0 0
        %1895 = vmatprep.subr.bf16.mxu0 0
        %1896 = vmatpush1.bf16.msra.mxu0 0
        %1897 = vmatprep.subr.bf16.mxu0 0
        %1898 = vmatpush1.bf16.msra.mxu0 0
        %1899 = vmatprep.subr.bf16.mxu0 0
        %1900 = vmatpush1.bf16.msra.mxu0 0
        %1901 = vmatprep.subr.bf16.mxu0 0
        %1902 = vmatpush1.bf16.msra.mxu0 0
        %1903 = vmatprep.mubr.bf16.mxu0 0
        %1904 = vmatmul.mubr.bf16.gmra.mrb[0].mxu0 %v1863
        %v1905 = vpop.f32.mrb[0].mxu0
        %v1906 = vadd.f32 %v1856, %v1905
        %v1907 = vpop.f32.mrb[0].mxu0
        %v1908 = vadd.f32 %v1858, %v1907
        %v1909 = vpop.f32.mrb[0].mxu0
        %v1910 = vpop.f32.mrb[0].mxu0
        %1911 = vdwg.mxu0
        %v1912 = vld [vmem:[#allocation20] sm:$0xf]
        %1914 = vset.pattern.permute.xlu0 0
        %1915 = vperm.xlu0 %1914, %v1912
        %v1916 = vpop.permute.xlu0 %1915
        %v1918 = vadd.f32 %v1906, %v1916
        %v1919 = vadd.f32 %v1908, %v1916
        %s1920 = scalar_lea.vmem [#allocation18], 4
        %v1921 = vld [vmem:[%s1920] sm:$0x3]
        %v1922 = vpack.c.bf16 %v782, %v782
        %v1923 = vpack.c.bf16 %v784, %v784
        %s1924 = scalar_lea.vmem [#allocation18], 6
        %v1925 = vld [vmem:[%s1924] sm:$0x3]
        %v1926 = vpack.c.bf16 %v1054, %v1054
        %v1927 = vpack.c.bf16 %v1056, %v1056
        %v1929 = vsel %vm667, %v1925, 0
        %v1932 = vsel %vm671, %v1926, 0
        %v1935 = vsel %vm671, %v1927, 0
        %1937 = vmatprep.subr.bf16.mxu0 %v1935
        %1938 = vmatpush1.bf16.msra.mxu0 %v1932
        %1939 = vmatprep.subr.bf16.mxu0 0
        %1940 = vmatpush1.bf16.msra.mxu0 0
        %1941 = vmatprep.subr.bf16.mxu0 0
        %1942 = vmatpush1.bf16.msra.mxu0 0
        %1943 = vmatprep.subr.bf16.mxu0 0
        %1944 = vmatpush1.bf16.msra.mxu0 0
        %1945 = vmatprep.subr.bf16.mxu0 0
        %1946 = vmatpush1.bf16.msra.mxu0 0
        %1947 = vmatprep.subr.bf16.mxu0 0
        %1948 = vmatpush1.bf16.msra.mxu0 0
        %1949 = vmatprep.subr.bf16.mxu0 0
        %1950 = vmatpush1.bf16.msra.mxu0 0
        %1951 = vmatprep.subr.bf16.mxu0 0
        %1952 = vmatpush1.bf16.msra.mxu0 0
        %1953 = vmatprep.subr.bf16.mxu0 0
        %1954 = vmatpush1.bf16.msra.mxu0 0
        %1955 = vmatprep.subr.bf16.mxu0 0
        %1956 = vmatpush1.bf16.msra.mxu0 0
        %1957 = vmatprep.subr.bf16.mxu0 0
        %1958 = vmatpush1.bf16.msra.mxu0 0
        %1959 = vmatprep.subr.bf16.mxu0 0
        %1960 = vmatpush1.bf16.msra.mxu0 0
        %1961 = vmatprep.subr.bf16.mxu0 0
        %1962 = vmatpush1.bf16.msra.mxu0 0
        %1963 = vmatprep.subr.bf16.mxu0 0
        %1964 = vmatpush1.bf16.msra.mxu0 0
        %1965 = vmatprep.subr.bf16.mxu0 0
        %1966 = vmatpush1.bf16.msra.mxu0 0
        %1967 = vmatprep.subr.bf16.mxu0 0
        %1968 = vmatpush1.bf16.msra.mxu0 0
        %1969 = vmatprep.mubr.bf16.mxu0 0
        %1970 = vmatmul.mubr.bf16.gmra.mrb[0].mxu0 %v1929
        %v1971 = vpop.f32.mrb[0].mxu0
        %v1972 = vadd.f32 0.0, %v1971
        %v1973 = vpop.f32.mrb[0].mxu0
        %v1974 = vadd.f32 0.0, %v1973
        %v1975 = vpop.f32.mrb[0].mxu0
        %v1976 = vpop.f32.mrb[0].mxu0
        %1977 = vdwg.mxu0
        %v1979 = vsel %vm667, %v1921, 0
        %v1982 = vsel %vm671, %v1922, 0
        %v1985 = vsel %vm671, %v1923, 0
        %1987 = vmatprep.subr.bf16.mxu0 %v1985
        %1988 = vmatpush1.bf16.msra.mxu0 %v1982
        %1989 = vmatprep.subr.bf16.mxu0 0
        %1990 = vmatpush1.bf16.msra.mxu0 0
        %1991 = vmatprep.subr.bf16.mxu0 0
        %1992 = vmatpush1.bf16.msra.mxu0 0
        %1993 = vmatprep.subr.bf16.mxu0 0
        %1994 = vmatpush1.bf16.msra.mxu0 0
        %1995 = vmatprep.subr.bf16.mxu0 0
        %1996 = vmatpush1.bf16.msra.mxu0 0
        %1997 = vmatprep.subr.bf16.mxu0 0
        %1998 = vmatpush1.bf16.msra.mxu0 0
        %1999 = vmatprep.subr.bf16.mxu0 0
        %2000 = vmatpush1.bf16.msra.mxu0 0
        %2001 = vmatprep.subr.bf16.mxu0 0
        %2002 = vmatpush1.bf16.msra.mxu0 0
        %2003 = vmatprep.subr.bf16.mxu0 0
        %2004 = vmatpush1.bf16.msra.mxu0 0
        %2005 = vmatprep.subr.bf16.mxu0 0
        %2006 = vmatpush1.bf16.msra.mxu0 0
        %2007 = vmatprep.subr.bf16.mxu0 0
        %2008 = vmatpush1.bf16.msra.mxu0 0
        %2009 = vmatprep.subr.bf16.mxu0 0
        %2010 = vmatpush1.bf16.msra.mxu0 0
        %2011 = vmatprep.subr.bf16.mxu0 0
        %2012 = vmatpush1.bf16.msra.mxu0 0
        %2013 = vmatprep.subr.bf16.mxu0 0
        %2014 = vmatpush1.bf16.msra.mxu0 0
        %2015 = vmatprep.subr.bf16.mxu0 0
        %2016 = vmatpush1.bf16.msra.mxu0 0
        %2017 = vmatprep.subr.bf16.mxu0 0
        %2018 = vmatpush1.bf16.msra.mxu0 0
        %2019 = vmatprep.mubr.bf16.mxu0 0
        %2020 = vmatmul.mubr.bf16.gmra.mrb[0].mxu0 %v1979
        %v2021 = vpop.f32.mrb[0].mxu0
        %v2022 = vadd.f32 %v1972, %v2021
        %v2023 = vpop.f32.mrb[0].mxu0
        %v2024 = vadd.f32 %v1974, %v2023
        %v2025 = vpop.f32.mrb[0].mxu0
        %v2026 = vpop.f32.mrb[0].mxu0
        %2027 = vdwg.mxu0
        %s2028 = scalar_lea.vmem [#allocation20], 4
        %v2029 = vld [vmem:[%s2028] sm:$0xf]
        %2031 = vset.pattern.permute.xlu0 0
        %2032 = vperm.xlu0 %2031, %v2029
        %v2033 = vpop.permute.xlu0 %2032
        %v2035 = vadd.f32 %v2022, %v2033
        %v2036 = vadd.f32 %v2024, %v2033
        %v2037 = vand.u32 2147483647, %v2035
        %vm2038 = vcmp.le.f32.partialorder %v2037, 0.7853982
        %vm2039 = vcmp.lt.s32.totalorder %v2035, 0
        %v2040 = vand.u32 %v2035, 2139095040
        %v2041 = vshrl.u32 %v2040, 23
        %v2042 = vsub.s32 %v2041, 127
        %v2043 = vand.u32 2147483647, %v2035
        %v2044 = vand.u32 %v2043, 8388607
        %v2045 = vor.u32 %v2044, 8388608
        %v2046 = vsub.s32 0, %v2045
        %v2047 = vadd.s32 %v2042, 1
        %vm2048 = vcmp.gt.s32.totalorder %v2047, 0
        %v2049 = vsel %vm2048, %v2047, 0
        %v2050 = vshrl.u32 %v2049, 5
        %v2051 = vand.u32 %v2049, 31
        %v2052 = vsub.s32 32, %v2051
        %v2053 = vshrl.u32 683565275, %v2052
        %v2054 = vshll.u32 683565275, %v2051
        %v2055 = vshrl.u32 2475754826, %v2052
        %v2056 = vor.u32 %v2054, %v2055
        %v2057 = vshll.u32 2475754826, %v2051
        %v2058 = vshrl.u32 2131351028, %v2052
        %v2059 = vor.u32 %v2057, %v2058
        %v2060 = vshll.u32 2131351028, %v2051
        %v2061 = vshrl.u32 2102212464, %v2052
        %v2062 = vor.u32 %v2060, %v2061
        %v2063 = vshll.u32 2102212464, %v2051
        %v2064 = vshrl.u32 920167782, %v2052
        %v2065 = vor.u32 %v2063, %v2064
        %v2066 = vshll.u32 920167782, %v2051
        %v2067 = vshrl.u32 1326507024, %v2052
        %v2068 = vor.u32 %v2066, %v2067
        %vm2069 = vcmp.lt.s32.totalorder %v2050, 1
        %vm2070 = vcmp.lt.s32.totalorder %v2050, 2
        %vm2071 = vcmp.lt.s32.totalorder %v2050, 3
        %vm2072 = vcmp.lt.s32.totalorder %v2050, 4
        %v2073 = vsel %vm2069, %v2053, %v2056
        %v2074 = vsel %vm2072, %v2062, 2102212464
        %v2075 = vsel %vm2071, %v2059, %v2074
        %v2076 = vsel %vm2070, %v2073, %v2075
        %v2077 = vsel %vm2069, %v2056, %v2059
        %v2078 = vsel %vm2072, %v2065, 920167782
        %v2079 = vsel %vm2071, %v2062, %v2078
        %v2080 = vsel %vm2070, %v2077, %v2079
        %v2081 = vsel %vm2069, %v2059, %v2062
        %v2082 = vsel %vm2072, %v2068, 1326507024
        %v2083 = vsel %vm2071, %v2065, %v2082
        %v2084 = vsel %vm2070, %v2081, %v2083
        %v2085 = vshll.u32 %v2045, 8
        %v2086 = vmul.u32.u64.compose %v2085, %v2084
        %v2087 = vextract.low.u32 %v2086
        %v2088 = vextract.high.u32 %v2086
        %v2089 = vmul.u32.u64.compose %v2085, %v2080
        %v2090 = vextract.low.u32 %v2089
        %v2091 = vextract.high.u32 %v2089
        %v2092 = vmul.u32 %v2085, %v2076
        %v2093 = vadd.s32 %v2088, %v2090
        %vm2094 = vc.u32 %v2088, %v2090
        %v2095 = vadd.s32 %v2091, 1
        %v2096 = vsel %vm2094, %v2095, %v2091
        %v2097 = vadd.s32 %v2092, %v2096
        %v2098 = vadd.s32 %v2097, 536870912
        %v2099 = vshrl.u32 %v2098, 30
        %v2100 = vshll.u32 %v2099, 30
        %v2101 = vsub.s32 %v2097, %v2100
        %vm2102 = vcmp.lt.s32.totalorder %v2101, 0
        %v2103 = vsub.s32 0, %v2101
        %v2104 = vsel %vm2102, %v2103, %v2101
        %v2105 = vclz %v2104
        %v2106 = vsub.s32 %v2105, 2
        %vm2107 = vcmp.gt.s32.totalorder 0, %v2106
        %v2108 = vsel %vm2107, 0, %v2106
        %v2109 = vsub.s32 32, %v2108
        %v2110 = vshll.u32 %v2101, %v2108
        %v2111 = vshrl.u32 %v2093, %v2109
        %v2112 = vor.u32 %v2110, %v2111
        %v2113 = vsub.s32 4294967266, %v2108
        %v2114 = vadd.s32 %v2113, 127
        %v2115 = vshll.u32 %v2114, 23
        %v2116 = vor.u32 4788187, %v2115
        %v2117 = vand.u32 2147483647, %v2116
        %v2119 = vcvt.s32.f32 %v2112
        %v2120 = vmul.f32 %v2119, %v2117
        %v2121 = vxor.u32 %v2120, 2147483648
        %v2122 = vsel %vm2039, %v2121, %v2120
        %v2123 = vsub.s32 4, %v2099
        %v2124 = vsel %vm2039, %v2123, %v2099
        %v2125 = vsel %vm2038, %v2035, %v2122
        %v2126 = vsel %vm2038, 0, %v2124
        %v2127 = vcosq.f32.pop %v2125
        %v2128 = vsinq.f32.pop %v2125
        %vm2129 = vweird.f32 %v2035
        %v2130 = vand.u32 %v2126, 3
        %vm2131 = vcmp.lt.s32.totalorder %v2130, 2
        %vm2132 = vcmp.eq.s32.totalorder %v2130, 0
        %v2133 = vxor.u32 %v2128, 2147483648
        %v2134 = vsel %vm2132, %v2127, %v2133
        %vm2135 = vcmp.eq.s32.totalorder %v2130, 2
        %v2136 = vxor.u32 %v2127, 2147483648
        %v2137 = vsel %vm2135, %v2136, %v2128
        %v2138 = vsel %vm2131, %v2134, %v2137
        %v2139 = vsel %vm2129, nan, %v2138
        %v2140 = vand.u32 2147483647, %v2036
        %vm2141 = vcmp.le.f32.partialorder %v2140, 0.7853982
        %vm2142 = vcmp.lt.s32.totalorder %v2036, 0
        %v2143 = vand.u32 %v2036, 2139095040
        %v2144 = vshrl.u32 %v2143, 23
        %v2145 = vsub.s32 %v2144, 127
        %v2146 = vand.u32 2147483647, %v2036
        %v2147 = vand.u32 %v2146, 8388607
        %v2148 = vor.u32 %v2147, 8388608
        %v2149 = vsub.s32 0, %v2148
        %v2150 = vadd.s32 %v2145, 1
        %vm2151 = vcmp.gt.s32.totalorder %v2150, 0
        %v2152 = vsel %vm2151, %v2150, 0
        %v2153 = vshrl.u32 %v2152, 5
        %v2154 = vand.u32 %v2152, 31
        %v2155 = vsub.s32 32, %v2154
        %v2156 = vshrl.u32 683565275, %v2155
        %v2157 = vshll.u32 683565275, %v2154
        %v2158 = vshrl.u32 2475754826, %v2155
        %v2159 = vor.u32 %v2157, %v2158
        %v2160 = vshll.u32 2475754826, %v2154
        %v2161 = vshrl.u32 2131351028, %v2155
        %v2162 = vor.u32 %v2160, %v2161
        %v2163 = vshll.u32 2131351028, %v2154
        %v2164 = vshrl.u32 2102212464, %v2155
        %v2165 = vor.u32 %v2163, %v2164
        %v2166 = vshll.u32 2102212464, %v2154
        %v2167 = vshrl.u32 920167782, %v2155
        %v2168 = vor.u32 %v2166, %v2167
        %v2169 = vshll.u32 920167782, %v2154
        %v2170 = vshrl.u32 1326507024, %v2155
        %v2171 = vor.u32 %v2169, %v2170
        %vm2172 = vcmp.lt.s32.totalorder %v2153, 1
        %vm2173 = vcmp.lt.s32.totalorder %v2153, 2
        %vm2174 = vcmp.lt.s32.totalorder %v2153, 3
        %vm2175 = vcmp.lt.s32.totalorder %v2153, 4
        %v2176 = vsel %vm2172, %v2156, %v2159
        %v2177 = vsel %vm2175, %v2165, 2102212464
        %v2178 = vsel %vm2174, %v2162, %v2177
        %v2179 = vsel %vm2173, %v2176, %v2178
        %v2180 = vsel %vm2172, %v2159, %v2162
        %v2181 = vsel %vm2175, %v2168, 920167782
        %v2182 = vsel %vm2174, %v2165, %v2181
        %v2183 = vsel %vm2173, %v2180, %v2182
        %v2184 = vsel %vm2172, %v2162, %v2165
        %v2185 = vsel %vm2175, %v2171, 1326507024
        %v2186 = vsel %vm2174, %v2168, %v2185
        %v2187 = vsel %vm2173, %v2184, %v2186
        %v2188 = vshll.u32 %v2148, 8
        %v2189 = vmul.u32.u64.compose %v2188, %v2187
        %v2190 = vextract.low.u32 %v2189
        %v2191 = vextract.high.u32 %v2189
        %v2192 = vmul.u32.u64.compose %v2188, %v2183
        %v2193 = vextract.low.u32 %v2192
        %v2194 = vextract.high.u32 %v2192
        %v2195 = vmul.u32 %v2188, %v2179
        %v2196 = vadd.s32 %v2191, %v2193
        %vm2197 = vc.u32 %v2191, %v2193
        %v2198 = vadd.s32 %v2194, 1
        %v2199 = vsel %vm2197, %v2198, %v2194
        %v2200 = vadd.s32 %v2195, %v2199
        %v2201 = vadd.s32 %v2200, 536870912
        %v2202 = vshrl.u32 %v2201, 30
        %v2203 = vshll.u32 %v2202, 30
        %v2204 = vsub.s32 %v2200, %v2203
        %vm2205 = vcmp.lt.s32.totalorder %v2204, 0
        %v2206 = vsub.s32 0, %v2204
        %v2207 = vsel %vm2205, %v2206, %v2204
        %v2208 = vclz %v2207
        %v2209 = vsub.s32 %v2208, 2
        %vm2210 = vcmp.gt.s32.totalorder 0, %v2209
        %v2211 = vsel %vm2210, 0, %v2209
        %v2212 = vsub.s32 32, %v2211
        %v2213 = vshll.u32 %v2204, %v2211
        %v2214 = vshrl.u32 %v2196, %v2212
        %v2215 = vor.u32 %v2213, %v2214
        %v2216 = vsub.s32 4294967266, %v2211
        %v2217 = vadd.s32 %v2216, 127
        %v2218 = vshll.u32 %v2217, 23
        %v2219 = vor.u32 4788187, %v2218
        %v2220 = vand.u32 2147483647, %v2219
        %v2222 = vcvt.s32.f32 %v2215
        %v2223 = vmul.f32 %v2222, %v2220
        %v2224 = vxor.u32 %v2223, 2147483648
        %v2225 = vsel %vm2142, %v2224, %v2223
        %v2226 = vsub.s32 4, %v2202
        %v2227 = vsel %vm2142, %v2226, %v2202
        %v2228 = vsel %vm2141, %v2036, %v2225
        %v2229 = vsel %vm2141, 0, %v2227
        %v2230 = vcosq.f32.pop %v2228
        %v2231 = vsinq.f32.pop %v2228
        %vm2232 = vweird.f32 %v2036
        %v2233 = vand.u32 %v2229, 3
        %vm2234 = vcmp.lt.s32.totalorder %v2233, 2
        %vm2235 = vcmp.eq.s32.totalorder %v2233, 0
        %v2236 = vxor.u32 %v2231, 2147483648
        %v2237 = vsel %vm2235, %v2230, %v2236
        %vm2238 = vcmp.eq.s32.totalorder %v2233, 2
        %v2239 = vxor.u32 %v2230, 2147483648
        %v2240 = vsel %vm2238, %v2239, %v2231
        %v2241 = vsel %vm2234, %v2237, %v2240
        %v2242 = vsel %vm2232, nan, %v2241
        %v2243 = vmul.f32 %v1918, %v2139
        %v2244 = vmul.f32 %v1919, %v2242
        %v2247 = vcombine.low %v2243, %v2244
        %vm2249 = vcmask 1043456
        %vm2250 = vcmask 130052
        %vm2251 = vmor %vm2250, %vm2249
        %2252 = vst.msk [vmem:[%s641] sm:$0xff] %vm2251, %v2247
        %v2253 = vand.u32 2147483647, %v2035
        %vm2254 = vcmp.le.f32.partialorder %v2253, 0.7853982
        %vm2255 = vcmp.lt.s32.totalorder %v2035, 0
        %v2256 = vand.u32 %v2035, 2139095040
        %v2257 = vshrl.u32 %v2256, 23
        %v2258 = vsub.s32 %v2257, 127
        %v2259 = vand.u32 2147483647, %v2035
        %v2260 = vand.u32 %v2259, 8388607
        %v2261 = vor.u32 %v2260, 8388608
        %v2262 = vsub.s32 0, %v2261
        %v2263 = vadd.s32 %v2258, 1
        %vm2264 = vcmp.gt.s32.totalorder %v2263, 0
        %v2265 = vsel %vm2264, %v2263, 0
        %v2266 = vshrl.u32 %v2265, 5
        %v2267 = vand.u32 %v2265, 31
        %v2268 = vsub.s32 32, %v2267
        %v2269 = vshrl.u32 683565275, %v2268
        %v2270 = vshll.u32 683565275, %v2267
        %v2271 = vshrl.u32 2475754826, %v2268
        %v2272 = vor.u32 %v2270, %v2271
        %v2273 = vshll.u32 2475754826, %v2267
        %v2274 = vshrl.u32 2131351028, %v2268
        %v2275 = vor.u32 %v2273, %v2274
        %v2276 = vshll.u32 2131351028, %v2267
        %v2277 = vshrl.u32 2102212464, %v2268
        %v2278 = vor.u32 %v2276, %v2277
        %v2279 = vshll.u32 2102212464, %v2267
        %v2280 = vshrl.u32 920167782, %v2268
        %v2281 = vor.u32 %v2279, %v2280
        %v2282 = vshll.u32 920167782, %v2267
        %v2283 = vshrl.u32 1326507024, %v2268
        %v2284 = vor.u32 %v2282, %v2283
        %vm2285 = vcmp.lt.s32.totalorder %v2266, 1
        %vm2286 = vcmp.lt.s32.totalorder %v2266, 2
        %vm2287 = vcmp.lt.s32.totalorder %v2266, 3
        %vm2288 = vcmp.lt.s32.totalorder %v2266, 4
        %v2289 = vsel %vm2285, %v2269, %v2272
        %v2290 = vsel %vm2288, %v2278, 2102212464
        %v2291 = vsel %vm2287, %v2275, %v2290
        %v2292 = vsel %vm2286, %v2289, %v2291
        %v2293 = vsel %vm2285, %v2272, %v2275
        %v2294 = vsel %vm2288, %v2281, 920167782
        %v2295 = vsel %vm2287, %v2278, %v2294
        %v2296 = vsel %vm2286, %v2293, %v2295
        %v2297 = vsel %vm2285, %v2275, %v2278
        %v2298 = vsel %vm2288, %v2284, 1326507024
        %v2299 = vsel %vm2287, %v2281, %v2298
        %v2300 = vsel %vm2286, %v2297, %v2299
        %v2301 = vshll.u32 %v2261, 8
        %v2302 = vmul.u32.u64.compose %v2301, %v2300
        %v2303 = vextract.low.u32 %v2302
        %v2304 = vextract.high.u32 %v2302
        %v2305 = vmul.u32.u64.compose %v2301, %v2296
        %v2306 = vextract.low.u32 %v2305
        %v2307 = vextract.high.u32 %v2305
        %v2308 = vmul.u32 %v2301, %v2292
        %v2309 = vadd.s32 %v2304, %v2306
        %vm2310 = vc.u32 %v2304, %v2306
        %v2311 = vadd.s32 %v2307, 1
        %v2312 = vsel %vm2310, %v2311, %v2307
        %v2313 = vadd.s32 %v2308, %v2312
        %v2314 = vadd.s32 %v2313, 536870912
        %v2315 = vshrl.u32 %v2314, 30
        %v2316 = vshll.u32 %v2315, 30
        %v2317 = vsub.s32 %v2313, %v2316
        %vm2318 = vcmp.lt.s32.totalorder %v2317, 0
        %v2319 = vsub.s32 0, %v2317
        %v2320 = vsel %vm2318, %v2319, %v2317
        %v2321 = vclz %v2320
        %v2322 = vsub.s32 %v2321, 2
        %vm2323 = vcmp.gt.s32.totalorder 0, %v2322
        %v2324 = vsel %vm2323, 0, %v2322
        %v2325 = vsub.s32 32, %v2324
        %v2326 = vshll.u32 %v2317, %v2324
        %v2327 = vshrl.u32 %v2309, %v2325
        %v2328 = vor.u32 %v2326, %v2327
        %v2329 = vsub.s32 4294967266, %v2324
        %v2330 = vadd.s32 %v2329, 127
        %v2331 = vshll.u32 %v2330, 23
        %v2332 = vor.u32 4788187, %v2331
        %v2333 = vand.u32 2147483647, %v2332
        %v2335 = vcvt.s32.f32 %v2328
        %v2336 = vmul.f32 %v2335, %v2333
        %v2337 = vxor.u32 %v2336, 2147483648
        %v2338 = vsel %vm2255, %v2337, %v2336
        %v2339 = vsub.s32 4, %v2315
        %v2340 = vsel %vm2255, %v2339, %v2315
        %v2341 = vsel %vm2254, %v2035, %v2338
        %v2342 = vsel %vm2254, 0, %v2340
        %v2343 = vcosq.f32.pop %v2341
        %v2344 = vsinq.f32.pop %v2341
        %vm2345 = vweird.f32 %v2035
        %v2346 = vadd.s32 %v2342, 3
        %v2347 = vand.u32 %v2346, 3
        %vm2348 = vcmp.lt.s32.totalorder %v2347, 2
        %vm2349 = vcmp.eq.s32.totalorder %v2347, 0
        %v2350 = vxor.u32 %v2344, 2147483648
        %v2351 = vsel %vm2349, %v2343, %v2350
        %vm2352 = vcmp.eq.s32.totalorder %v2347, 2
        %v2353 = vxor.u32 %v2343, 2147483648
        %v2354 = vsel %vm2352, %v2353, %v2344
        %v2355 = vsel %vm2348, %v2351, %v2354
        %v2356 = vsel %vm2345, nan, %v2355
        %v2357 = vand.u32 2147483647, %v2036
        %vm2358 = vcmp.le.f32.partialorder %v2357, 0.7853982
        %vm2359 = vcmp.lt.s32.totalorder %v2036, 0
        %v2360 = vand.u32 %v2036, 2139095040
        %v2361 = vshrl.u32 %v2360, 23
        %v2362 = vsub.s32 %v2361, 127
        %v2363 = vand.u32 2147483647, %v2036
        %v2364 = vand.u32 %v2363, 8388607
        %v2365 = vor.u32 %v2364, 8388608
        %v2366 = vsub.s32 0, %v2365
        %v2367 = vadd.s32 %v2362, 1
        %vm2368 = vcmp.gt.s32.totalorder %v2367, 0
        %v2369 = vsel %vm2368, %v2367, 0
        %v2370 = vshrl.u32 %v2369, 5
        %v2371 = vand.u32 %v2369, 31
        %v2372 = vsub.s32 32, %v2371
        %v2373 = vshrl.u32 683565275, %v2372
        %v2374 = vshll.u32 683565275, %v2371
        %v2375 = vshrl.u32 2475754826, %v2372
        %v2376 = vor.u32 %v2374, %v2375
        %v2377 = vshll.u32 2475754826, %v2371
        %v2378 = vshrl.u32 2131351028, %v2372
        %v2379 = vor.u32 %v2377, %v2378
        %v2380 = vshll.u32 2131351028, %v2371
        %v2381 = vshrl.u32 2102212464, %v2372
        %v2382 = vor.u32 %v2380, %v2381
        %v2383 = vshll.u32 2102212464, %v2371
        %v2384 = vshrl.u32 920167782, %v2372
        %v2385 = vor.u32 %v2383, %v2384
        %v2386 = vshll.u32 920167782, %v2371
        %v2387 = vshrl.u32 1326507024, %v2372
        %v2388 = vor.u32 %v2386, %v2387
        %vm2389 = vcmp.lt.s32.totalorder %v2370, 1
        %vm2390 = vcmp.lt.s32.totalorder %v2370, 2
        %vm2391 = vcmp.lt.s32.totalorder %v2370, 3
        %vm2392 = vcmp.lt.s32.totalorder %v2370, 4
        %v2393 = vsel %vm2389, %v2373, %v2376
        %v2394 = vsel %vm2392, %v2382, 2102212464
        %v2395 = vsel %vm2391, %v2379, %v2394
        %v2396 = vsel %vm2390, %v2393, %v2395
        %v2397 = vsel %vm2389, %v2376, %v2379
        %v2398 = vsel %vm2392, %v2385, 920167782
        %v2399 = vsel %vm2391, %v2382, %v2398
        %v2400 = vsel %vm2390, %v2397, %v2399
        %v2401 = vsel %vm2389, %v2379, %v2382
        %v2402 = vsel %vm2392, %v2388, 1326507024
        %v2403 = vsel %vm2391, %v2385, %v2402
        %v2404 = vsel %vm2390, %v2401, %v2403
        %v2405 = vshll.u32 %v2365, 8
        %v2406 = vmul.u32.u64.compose %v2405, %v2404
        %v2407 = vextract.low.u32 %v2406
        %v2408 = vextract.high.u32 %v2406
        %v2409 = vmul.u32.u64.compose %v2405, %v2400
        %v2410 = vextract.low.u32 %v2409
        %v2411 = vextract.high.u32 %v2409
        %v2412 = vmul.u32 %v2405, %v2396
        %v2413 = vadd.s32 %v2408, %v2410
        %vm2414 = vc.u32 %v2408, %v2410
        %v2415 = vadd.s32 %v2411, 1
        %v2416 = vsel %vm2414, %v2415, %v2411
        %v2417 = vadd.s32 %v2412, %v2416
        %v2418 = vadd.s32 %v2417, 536870912
        %v2419 = vshrl.u32 %v2418, 30
        %v2420 = vshll.u32 %v2419, 30
        %v2421 = vsub.s32 %v2417, %v2420
        %vm2422 = vcmp.lt.s32.totalorder %v2421, 0
        %v2423 = vsub.s32 0, %v2421
        %v2424 = vsel %vm2422, %v2423, %v2421
        %v2425 = vclz %v2424
        %v2426 = vsub.s32 %v2425, 2
        %vm2427 = vcmp.gt.s32.totalorder 0, %v2426
        %v2428 = vsel %vm2427, 0, %v2426
        %v2429 = vsub.s32 32, %v2428
        %v2430 = vshll.u32 %v2421, %v2428
        %v2431 = vshrl.u32 %v2413, %v2429
        %v2432 = vor.u32 %v2430, %v2431
        %v2433 = vsub.s32 4294967266, %v2428
        %v2434 = vadd.s32 %v2433, 127
        %v2435 = vshll.u32 %v2434, 23
        %v2436 = vor.u32 4788187, %v2435
        %v2437 = vand.u32 2147483647, %v2436
        %v2439 = vcvt.s32.f32 %v2432
        %v2440 = vmul.f32 %v2439, %v2437
        %v2441 = vxor.u32 %v2440, 2147483648
        %v2442 = vsel %vm2359, %v2441, %v2440
        %v2443 = vsub.s32 4, %v2419
        %v2444 = vsel %vm2359, %v2443, %v2419
        %v2445 = vsel %vm2358, %v2036, %v2442
        %v2446 = vsel %vm2358, 0, %v2444
        %v2447 = vcosq.f32.pop %v2445
        %v2448 = vsinq.f32.pop %v2445
        %vm2449 = vweird.f32 %v2036
        %v2450 = vadd.s32 %v2446, 3
        %v2451 = vand.u32 %v2450, 3
        %vm2452 = vcmp.lt.s32.totalorder %v2451, 2
        %vm2453 = vcmp.eq.s32.totalorder %v2451, 0
        %v2454 = vxor.u32 %v2448, 2147483648
        %v2455 = vsel %vm2453, %v2447, %v2454
        %vm2456 = vcmp.eq.s32.totalorder %v2451, 2
        %v2457 = vxor.u32 %v2447, 2147483648
        %v2458 = vsel %vm2456, %v2457, %v2448
        %v2459 = vsel %vm2452, %v2455, %v2458
        %v2460 = vsel %vm2449, nan, %v2459
        %v2461 = vmul.f32 %v1918, %v2356
        %v2462 = vmul.f32 %v1919, %v2460
        %v2465 = vcombine.low %v2461, %v2462
        %2467 = vst.msk [vmem:[%s648] sm:$0xff] %vm2251, %v2465
        %s2468 = sand.u32 %s301, 1
        %s2469 = scalar_lea.sflag [#allocation5], %s2468
        %s2470 = sand.u32 %s301, 1
        %s2471 = smul.addr %s2470, 8
        %s2472 = scalar_lea.vmem [#allocation21], %s2471
        %s2473 = sand.u32 %s327, 1
        %s2474 = scalar_lea.sflag [#allocation23], %s2473
        %s2475 = sand.u32 %s327, 1
        %s2476 = smul.addr %s2475, 8
        %s2477 = scalar_lea.vmem [#allocation22], %s2476
        // Predicated region
        $region109: #{cab_forward.3} parent=63 // pred_check
          %p2478 = pneg %p311
        $region110: #{cab_forward.3} parent=63 // pred_check_branch
          %2480 = sbr.rel (%p2478) target = $region112
        $region111: #{cab_forward.3} parent=63 // pred_region
          %s2482 = ssub.s32 128, 128
          %2483 = vsyncadd %s2469, %s2482
          %s2484 = smul.addr %s42, 2
          %s2485 = smul.addr %s2484, 64
          %s2486 = scalar_lea.hbm %s11, %s2485
          %s2488 = sshll.u32 %s2472, 4
          %s2489 = int_to_ptr.vmem [resolvable:$true] %s2488
          %2491 = dma.vmem_to_hbm [thread:$0]  %s2489, 128, %s2486, %s2469
        $region112: #{cab_forward.3} parent=63 // pred_fallthru
          _
        // Predicated region
        $region113: #{cab_forward.3} parent=63 // pred_check
          %p2492 = pneg %p337
        $region114: #{cab_forward.3} parent=63 // pred_check_branch
          %2494 = sbr.rel (%p2492) target = $region116
        $region115: #{cab_forward.3} parent=63 // pred_region
          %s2496 = ssub.s32 128, 128
          %2497 = vsyncadd %s2474, %s2496
          %s2498 = smul.addr %s42, 2
          %s2499 = smul.addr %s2498, 64
          %s2500 = scalar_lea.hbm %s12, %s2499
          %s2502 = sshll.u32 %s2477, 4
          %s2503 = int_to_ptr.vmem [resolvable:$true] %s2502
          %2505 = dma.vmem_to_hbm [thread:$0]  %s2503, 128, %s2500, %s2474
        $region116: #{cab_forward.3} parent=63 // pred_fallthru
          _
      $region64: #{cab_forward.3} parent=5 // pred_fallthru
        _
      %p2506 = scmp.le.s32.totalorder 2, %s37
      // Predicated region
      $region117: #{cab_forward.3} parent=5 // pred_check
        %p2507 = pneg %p2506
      $region118: #{cab_forward.3} parent=5 // pred_check_branch
        %2509 = sbr.rel (%p2507) target = $region120
      $region119: #{cab_forward.3} parent=5 // pred_region
        %s2510 = ssub.s32 %s37, 2
        // Predicated region
        $region121: #{cab_forward.3} parent=119 // pred_check
          %p2511 = pneg %p317
        $region122: #{cab_forward.3} parent=119 // pred_check_branch
          %2513 = sbr.rel (%p2511) target = $region124
        $region123: #{cab_forward.3} parent=119 // pred_region
          %s2514 = sand.u32 %s302, 1
          %s2515 = scalar_lea.sflag [#allocation5], %s2514
          %s2516 = sand.u32 %s302, 1
          %s2517 = smul.addr %s2516, 8
          %s2518 = scalar_lea.vmem [#allocation21], %s2517
          %2519 = dma.done %s2515, 128
        $region124: #{cab_forward.3} parent=119 // pred_fallthru
          _
        // Predicated region
        $region125: #{cab_forward.3} parent=119 // pred_check
          %p2520 = pneg %p343
        $region126: #{cab_forward.3} parent=119 // pred_check_branch
          %2522 = sbr.rel (%p2520) target = $region128
        $region127: #{cab_forward.3} parent=119 // pred_region
          %s2523 = sand.u32 %s328, 1
          %s2524 = scalar_lea.sflag [#allocation23], %s2523
          %s2525 = sand.u32 %s328, 1
          %s2526 = smul.addr %s2525, 8
          %s2527 = scalar_lea.vmem [#allocation22], %s2526
          %2528 = dma.done %s2524, 128
        $region128: #{cab_forward.3} parent=119 // pred_fallthru
          _
      $region120: #{cab_forward.3} parent=5 // pred_fallthru
        _
    $region6: #{cab_forward.3} parent=1 // loop_footer
      %s41 = sadd.s32 1, %s37
    $region7: #{cab_forward.3} parent=1 // loop_footer_branch
      %36 = sbr.rel target = $region3
    $region8: #{cab_forward.3} parent=1 // loop_exit
      _
    %2529 = vsyncpa [#allocation4], 1
    %s2530 = scalar_lea.sflag [#allocation4], 1
    %2531 = vsyncpa %s2530, 1
    %2532 = vsyncpa [#allocation7], 1
    %s2533 = scalar_lea.sflag [#allocation7], 1
    %2534 = vsyncpa %s2533, 1
    %2535 = vsyncpa [#allocation10], 1
    %s2536 = scalar_lea.sflag [#allocation10], 1
    %2537 = vsyncpa %s2536, 1
    %2538 = vsyncpa [#allocation13], 1
    %2539 = vsyncpa [#allocation16], 1
    %2540 = vsyncpa [#allocation19], 1
    %2541 = vsyncpa [#allocation5], 1
    %s2542 = scalar_lea.sflag [#allocation5], 1
    %2543 = vsyncpa %s2542, 1
    %2544 = vsyncpa [#allocation23], 1
    %s2545 = scalar_lea.sflag [#allocation23], 1
    %2546 = vsyncpa %s2545, 1

// kernel: cab_forward.4
$region0: #{cab_forward.4}
  #allocation0 [shape = 'u32[]', space=smem, size = 0x4, offset = 0x4, fixed_abs, tag = 'smem constant byte address 0x4 - core index']
  #allocation1 [shape = 'u32[144,128]{1,0:T(1,128)}', space=vmem, size = 0x12000, scoped, tag = 'internal scratch']
  #allocation2 [shape = 'bf16[4,290]{1,0:T(4,128)(2,1)}', space=vmem, size = 0xc00, scoped, tag = 'scratch operand']
  %s0 = inlined_call_operand.hbm [shape: bf16[2,4,290], index: 0, kind: input, shape index: {}]
  %s1 = inlined_call_operand.hbm [shape: f32[2,4,256], index: 1, kind: input, shape index: {}]
  %s2 = inlined_call_operand.hbm [shape: bf16[2,4,256], index: 2, kind: input, shape index: {}]
  %s3 = inlined_call_operand.hbm [shape: bf16[2,256], index: 3, kind: input, shape index: {}]
  %s4 = inlined_call_operand.hbm [shape: bf16[9,4,4], index: 4, kind: input, shape index: {}]
  %s5 = inlined_call_operand.hbm [shape: f32[4,1], index: 5, kind: input, shape index: {}]
  %s6 = inlined_call_operand.hbm [shape: f32[4,1], index: 6, kind: input, shape index: {}]
  %s7 = inlined_call_operand.hbm [shape: f32[4,1], index: 7, kind: input, shape index: {}]
  %s8 = inlined_call_operand.hbm [shape: bf16[9,4,4], index: 8, kind: input, shape index: {}]
  %s9 = inlined_call_operand.hbm [shape: f32[4,1], index: 9, kind: input, shape index: {}]
  %s10 = inlined_call_operand.hbm [shape: bf16[2,4,4], index: 10, kind: input, shape index: {}]
  %s11 = inlined_call_operand.hbm [shape: f32[4,1], index: 11, kind: input, shape index: {}]
  %s12 = inlined_call_operand.hbm [shape: f32[2,4,256], index: 12, kind: output, shape index: {}]
  %s13 = sld [smem:[#allocation0]]
  $region129: #{cab_forward.4} parent=0
    _
  %s15 = ssub.s32 1, %s13
  %s16 = scalar_select 0, %s15, %s13
  $region1: #{cab_forward.4} parent=0
    #allocation3 [shape = 'u8[6144]{0}', space=vmem, size = 0x1800, scoped, tag = 'input window, operand 0']
    #allocation4 [shape = 's32[2]{0}', space=sflag, size = 0x8, scoped, tag = 'scoped memory for cab_forward.4']
    #allocation5 [shape = 's32[2]{0}', space=sflag, size = 0x8, scoped, tag = 'scoped memory for cab_forward.4']
    #allocation6 [shape = 'u8[8192]{0}', space=vmem, size = 0x2000, scoped, tag = 'input window, operand 1']
    #allocation7 [shape = 's32[2]{0}', space=sflag, size = 0x8, scoped, tag = 'scoped memory for cab_forward.4']
    #allocation8 [shape = 'u8[4096]{0}', space=vmem, size = 0x1000, scoped, tag = 'input window, operand 2']
    #allocation9 [shape = 'u8[1024]{0}', space=vmem, size = 0x400, scoped, tag = 'input window, operand 3, single buffered']
    #allocation10 [shape = 's32[1]{0}', space=sflag, size = 0x4, scoped, tag = 'scoped memory for cab_forward.4']
    #allocation11 [shape = 'u8[9216]{0}', space=vmem, size = 0x2400, scoped, tag = 'input window, operand 4, single buffered']
    #allocation12 [shape = 'u8[2048]{0}', space=vmem, size = 0x800, scoped, tag = 'input window, operand 5, single buffered']
    #allocation13 [shape = 's32[1]{0}', space=sflag, size = 0x4, scoped, tag = 'scoped memory for cab_forward.4']
    #allocation14 [shape = 'u8[2048]{0}', space=vmem, size = 0x800, scoped, tag = 'input window, operand 6, single buffered']
    #allocation15 [shape = 'u8[2048]{0}', space=vmem, size = 0x800, scoped, tag = 'input window, operand 7, single buffered']
    #allocation16 [shape = 's32[1]{0}', space=sflag, size = 0x4, scoped, tag = 'scoped memory for cab_forward.4']
    #allocation17 [shape = 'u8[9216]{0}', space=vmem, size = 0x2400, scoped, tag = 'input window, operand 8, single buffered']
    #allocation18 [shape = 'u8[2048]{0}', space=vmem, size = 0x800, scoped, tag = 'input window, operand 9, single buffered']
    #allocation19 [shape = 's32[1]{0}', space=sflag, size = 0x4, scoped, tag = 'scoped memory for cab_forward.4']
    #allocation20 [shape = 'u8[2048]{0}', space=vmem, size = 0x800, scoped, tag = 'input window, operand 10, single buffered']
    #allocation21 [shape = 'u8[2048]{0}', space=vmem, size = 0x800, scoped, tag = 'input window, operand 11, single buffered']
    #allocation22 [shape = 's32[1]{0}', space=sflag, size = 0x4, scoped, tag = 'scoped memory for cab_forward.4']
    #allocation23 [shape = 'u8[8192]{0}', space=vmem, size = 0x2000, scoped, tag = 'output window, operand 0']
    %17 = vsyncpa [#allocation4], 0
    %s18 = scalar_lea.sflag [#allocation4], 1
    %19 = vsyncpa %s18, 0
    %20 = vsyncpa [#allocation7], 0
    %s21 = scalar_lea.sflag [#allocation7], 1
    %22 = vsyncpa %s21, 0
    %23 = vsyncpa [#allocation10], 0
    %24 = vsyncpa [#allocation13], 0
    %25 = vsyncpa [#allocation16], 0
    %26 = vsyncpa [#allocation19], 0
    %27 = vsyncpa [#allocation22], 0
    %28 = vsyncpa [#allocation5], 0
    %s29 = scalar_lea.sflag [#allocation5], 1
    %30 = vsyncpa %s29, 0
    loop: start=0, step=1, limit=4
    $region2: #{cab_forward.4} parent=1 // loop_pre_header
      _
    $region3: #{cab_forward.4} parent=1 // loop_header
      %s32 = sphi 0, %s36
      %p33 = scmp.ge.s32.totalorder %s32, 4
      %s42 = sphi 0, %s44
      %s45 = sphi 0, %s42
      %s46 = sphi 0, %s45
      %s62 = sphi 0, %s46
      %s68 = sphi 0, %s70
      %s71 = sphi 0, %s68
      %s72 = sphi 0, %s71
      %s88 = sphi 0, %s72
      %s94 = sphi 0, %s96
      %s97 = sphi 0, %s94
      %s98 = sphi 0, %s97
      %s114 = sphi 0, %s98
      %s118 = sphi 0, %s118
      %s120 = sphi 0, %s118
      %s121 = sphi 0, %s120
      %s135 = sphi 0, %s121
      %s139 = sphi 0, %s139
      %s141 = sphi 0, %s139
      %s142 = sphi 0, %s141
      %s156 = sphi 0, %s142
      %s160 = sphi 0, %s160
      %s162 = sphi 0, %s160
      %s163 = sphi 0, %s162
      %s177 = sphi 0, %s163
      %s181 = sphi 0, %s181
      %s183 = sphi 0, %s181
      %s184 = sphi 0, %s183
      %s198 = sphi 0, %s184
      %s202 = sphi 0, %s202
      %s204 = sphi 0, %s202
      %s205 = sphi 0, %s204
      %s219 = sphi 0, %s205
      %s223 = sphi 0, %s223
      %s225 = sphi 0, %s223
      %s226 = sphi 0, %s225
      %s240 = sphi 0, %s226
      %s244 = sphi 0, %s244
      %s246 = sphi 0, %s244
      %s247 = sphi 0, %s246
      %s261 = sphi 0, %s247
      %s265 = sphi 0, %s265
      %s267 = sphi 0, %s265
      %s268 = sphi 0, %s267
      %s282 = sphi 0, %s268
      %s286 = sphi 0, %s286
      %s288 = sphi 0, %s286
      %s289 = sphi 0, %s288
      %s303 = sphi 0, %s289
      %s309 = sphi 0, %s311
      %s312 = sphi 0, %s309
      %s313 = sphi 0, %s312
      %s329 = sphi 0, %s313
    $region4: #{cab_forward.4} parent=1 // loop_header_branch
      %35 = sbr.rel (%p33) target = $region8
    $region5: #{cab_forward.4} parent=1 // loop_body
      %s37 = ssub.s32 %s32, 1
      %s38 = ssub.s32 %s32, 2
      %s39 = sadd.s32 %s32, 1
      %s40 = ssub.s32 %s32, %s39
      %p41 = scmp.eq.s32.totalorder %s40, 0
      %s43 = sadd.s32 %s42, 1
      %s44 = scalar_select %p41, %s42, %s43
      %p47 = pneg %p41
      %p48 = scmp.eq.s32.totalorder %s32, 1
      %p49 = por %p47, %p48
      %p50 = scmp.ne.s32.totalorder %s42, %s45
      %p51 = scmp.eq.s32.totalorder %s32, 0
      %p52 = por %p50, %p51
      %p53 = scmp.ne.s32.totalorder %s42, %s45
      %p54 = scmp.eq.s32.totalorder %s37, 1
      %p55 = por %p53, %p54
      %p56 = scmp.ne.s32.totalorder %s45, %s46
      %p57 = scmp.eq.s32.totalorder %s37, 0
      %p58 = por %p56, %p57
      %p59 = scmp.ne.s32.totalorder %s45, %s46
      %p60 = scmp.eq.s32.totalorder %s38, 1
      %p61 = por %p59, %p60
      %p63 = scmp.ne.s32.totalorder %s46, %s62
      %p64 = scmp.eq.s32.totalorder %s38, 0
      %p65 = por %p63, %p64
      %s66 = ssub.s32 %s32, %s39
      %p67 = scmp.eq.s32.totalorder %s66, 0
      %s69 = sadd.s32 %s68, 1
      %s70 = scalar_select %p67, %s68, %s69
      %p73 = pneg %p67
      %p74 = scmp.eq.s32.totalorder %s32, 1
      %p75 = por %p73, %p74
      %p76 = scmp.ne.s32.totalorder %s68, %s71
      %p77 = scmp.eq.s32.totalorder %s32, 0
      %p78 = por %p76, %p77
      %p79 = scmp.ne.s32.totalorder %s68, %s71
      %p80 = scmp.eq.s32.totalorder %s37, 1
      %p81 = por %p79, %p80
      %p82 = scmp.ne.s32.totalorder %s71, %s72
      %p83 = scmp.eq.s32.totalorder %s37, 0
      %p84 = por %p82, %p83
      %p85 = scmp.ne.s32.totalorder %s71, %s72
      %p86 = scmp.eq.s32.totalorder %s38, 1
      %p87 = por %p85, %p86
      %p89 = scmp.ne.s32.totalorder %s72, %s88
      %p90 = scmp.eq.s32.totalorder %s38, 0
      %p91 = por %p89, %p90
      %s92 = ssub.s32 %s32, %s39
      %p93 = scmp.eq.s32.totalorder %s92, 0
      %s95 = sadd.s32 %s94, 1
      %s96 = scalar_select %p93, %s94, %s95
      %p99 = pneg %p93
      %p100 = scmp.eq.s32.totalorder %s32, 1
      %p101 = por %p99, %p100
      %p102 = scmp.ne.s32.totalorder %s94, %s97
      %p103 = scmp.eq.s32.totalorder %s32, 0
      %p104 = por %p102, %p103
      %p105 = scmp.ne.s32.totalorder %s94, %s97
      %p106 = scmp.eq.s32.totalorder %s37, 1
      %p107 = por %p105, %p106
      %p108 = scmp.ne.s32.totalorder %s97, %s98
      %p109 = scmp.eq.s32.totalorder %s37, 0
      %p110 = por %p108, %p109
      %p111 = scmp.ne.s32.totalorder %s97, %s98
      %p112 = scmp.eq.s32.totalorder %s38, 1
      %p113 = por %p111, %p112
      %p115 = scmp.ne.s32.totalorder %s98, %s114
      %p116 = scmp.eq.s32.totalorder %s38, 0
      %p117 = por %p115, %p116
      %s119 = sadd.s32 %s118, 1
      %p122 = scmp.eq.s32.totalorder %s32, 1
      %p123 = scmp.ne.s32.totalorder %s118, %s120
      %p124 = scmp.eq.s32.totalorder %s32, 0
      %p125 = por %p123, %p124
      %p126 = scmp.ne.s32.totalorder %s118, %s120
      %p127 = scmp.eq.s32.totalorder %s37, 1
      %p128 = por %p126, %p127
      %p129 = scmp.ne.s32.totalorder %s120, %s121
      %p130 = scmp.eq.s32.totalorder %s37, 0
      %p131 = por %p129, %p130
      %p132 = scmp.ne.s32.totalorder %s120, %s121
      %p133 = scmp.eq.s32.totalorder %s38, 1
      %p134 = por %p132, %p133
      %p136 = scmp.ne.s32.totalorder %s121, %s135
      %p137 = scmp.eq.s32.totalorder %s38, 0
      %p138 = por %p136, %p137
      %s140 = sadd.s32 %s139, 1
      %p143 = scmp.eq.s32.totalorder %s32, 1
      %p144 = scmp.ne.s32.totalorder %s139, %s141
      %p145 = scmp.eq.s32.totalorder %s32, 0
      %p146 = por %p144, %p145
      %p147 = scmp.ne.s32.totalorder %s139, %s141
      %p148 = scmp.eq.s32.totalorder %s37, 1
      %p149 = por %p147, %p148
      %p150 = scmp.ne.s32.totalorder %s141, %s142
      %p151 = scmp.eq.s32.totalorder %s37, 0
      %p152 = por %p150, %p151
      %p153 = scmp.ne.s32.totalorder %s141, %s142
      %p154 = scmp.eq.s32.totalorder %s38, 1
      %p155 = por %p153, %p154
      %p157 = scmp.ne.s32.totalorder %s142, %s156
      %p158 = scmp.eq.s32.totalorder %s38, 0
      %p159 = por %p157, %p158
      %s161 = sadd.s32 %s160, 1
      %p164 = scmp.eq.s32.totalorder %s32, 1
      %p165 = scmp.ne.s32.totalorder %s160, %s162
      %p166 = scmp.eq.s32.totalorder %s32, 0
      %p167 = por %p165, %p166
      %p168 = scmp.ne.s32.totalorder %s160, %s162
      %p169 = scmp.eq.s32.totalorder %s37, 1
      %p170 = por %p168, %p169
      %p171 = scmp.ne.s32.totalorder %s162, %s163
      %p172 = scmp.eq.s32.totalorder %s37, 0
      %p173 = por %p171, %p172
      %p174 = scmp.ne.s32.totalorder %s162, %s163
      %p175 = scmp.eq.s32.totalorder %s38, 1
      %p176 = por %p174, %p175
      %p178 = scmp.ne.s32.totalorder %s163, %s177
      %p179 = scmp.eq.s32.totalorder %s38, 0
      %p180 = por %p178, %p179
      %s182 = sadd.s32 %s181, 1
      %p185 = scmp.eq.s32.totalorder %s32, 1
      %p186 = scmp.ne.s32.totalorder %s181, %s183
      %p187 = scmp.eq.s32.totalorder %s32, 0
      %p188 = por %p186, %p187
      %p189 = scmp.ne.s32.totalorder %s181, %s183
      %p190 = scmp.eq.s32.totalorder %s37, 1
      %p191 = por %p189, %p190
      %p192 = scmp.ne.s32.totalorder %s183, %s184
      %p193 = scmp.eq.s32.totalorder %s37, 0
      %p194 = por %p192, %p193
      %p195 = scmp.ne.s32.totalorder %s183, %s184
      %p196 = scmp.eq.s32.totalorder %s38, 1
      %p197 = por %p195, %p196
      %p199 = scmp.ne.s32.totalorder %s184, %s198
      %p200 = scmp.eq.s32.totalorder %s38, 0
      %p201 = por %p199, %p200
      %s203 = sadd.s32 %s202, 1
      %p206 = scmp.eq.s32.totalorder %s32, 1
      %p207 = scmp.ne.s32.totalorder %s202, %s204
      %p208 = scmp.eq.s32.totalorder %s32, 0
      %p209 = por %p207, %p208
      %p210 = scmp.ne.s32.totalorder %s202, %s204
      %p211 = scmp.eq.s32.totalorder %s37, 1
      %p212 = por %p210, %p211
      %p213 = scmp.ne.s32.totalorder %s204, %s205
      %p214 = scmp.eq.s32.totalorder %s37, 0
      %p215 = por %p213, %p214
      %p216 = scmp.ne.s32.totalorder %s204, %s205
      %p217 = scmp.eq.s32.totalorder %s38, 1
      %p218 = por %p216, %p217
      %p220 = scmp.ne.s32.totalorder %s205, %s219
      %p221 = scmp.eq.s32.totalorder %s38, 0
      %p222 = por %p220, %p221
      %s224 = sadd.s32 %s223, 1
      %p227 = scmp.eq.s32.totalorder %s32, 1
      %p228 = scmp.ne.s32.totalorder %s223, %s225
      %p229 = scmp.eq.s32.totalorder %s32, 0
      %p230 = por %p228, %p229
      %p231 = scmp.ne.s32.totalorder %s223, %s225
      %p232 = scmp.eq.s32.totalorder %s37, 1
      %p233 = por %p231, %p232
      %p234 = scmp.ne.s32.totalorder %s225, %s226
      %p235 = scmp.eq.s32.totalorder %s37, 0
      %p236 = por %p234, %p235
      %p237 = scmp.ne.s32.totalorder %s225, %s226
      %p238 = scmp.eq.s32.totalorder %s38, 1
      %p239 = por %p237, %p238
      %p241 = scmp.ne.s32.totalorder %s226, %s240
      %p242 = scmp.eq.s32.totalorder %s38, 0
      %p243 = por %p241, %p242
      %s245 = sadd.s32 %s244, 1
      %p248 = scmp.eq.s32.totalorder %s32, 1
      %p249 = scmp.ne.s32.totalorder %s244, %s246
      %p250 = scmp.eq.s32.totalorder %s32, 0
      %p251 = por %p249, %p250
      %p252 = scmp.ne.s32.totalorder %s244, %s246
      %p253 = scmp.eq.s32.totalorder %s37, 1
      %p254 = por %p252, %p253
      %p255 = scmp.ne.s32.totalorder %s246, %s247
      %p256 = scmp.eq.s32.totalorder %s37, 0
      %p257 = por %p255, %p256
      %p258 = scmp.ne.s32.totalorder %s246, %s247
      %p259 = scmp.eq.s32.totalorder %s38, 1
      %p260 = por %p258, %p259
      %p262 = scmp.ne.s32.totalorder %s247, %s261
      %p263 = scmp.eq.s32.totalorder %s38, 0
      %p264 = por %p262, %p263
      %s266 = sadd.s32 %s265, 1
      %p269 = scmp.eq.s32.totalorder %s32, 1
      %p270 = scmp.ne.s32.totalorder %s265, %s267
      %p271 = scmp.eq.s32.totalorder %s32, 0
      %p272 = por %p270, %p271
      %p273 = scmp.ne.s32.totalorder %s265, %s267
      %p274 = scmp.eq.s32.totalorder %s37, 1
      %p275 = por %p273, %p274
      %p276 = scmp.ne.s32.totalorder %s267, %s268
      %p277 = scmp.eq.s32.totalorder %s37, 0
      %p278 = por %p276, %p277
      %p279 = scmp.ne.s32.totalorder %s267, %s268
      %p280 = scmp.eq.s32.totalorder %s38, 1
      %p281 = por %p279, %p280
      %p283 = scmp.ne.s32.totalorder %s268, %s282
      %p284 = scmp.eq.s32.totalorder %s38, 0
      %p285 = por %p283, %p284
      %s287 = sadd.s32 %s286, 1
      %p290 = scmp.eq.s32.totalorder %s32, 1
      %p291 = scmp.ne.s32.totalorder %s286, %s288
      %p292 = scmp.eq.s32.totalorder %s32, 0
      %p293 = por %p291, %p292
      %p294 = scmp.ne.s32.totalorder %s286, %s288
      %p295 = scmp.eq.s32.totalorder %s37, 1
      %p296 = por %p294, %p295
      %p297 = scmp.ne.s32.totalorder %s288, %s289
      %p298 = scmp.eq.s32.totalorder %s37, 0
      %p299 = por %p297, %p298
      %p300 = scmp.ne.s32.totalorder %s288, %s289
      %p301 = scmp.eq.s32.totalorder %s38, 1
      %p302 = por %p300, %p301
      %p304 = scmp.ne.s32.totalorder %s289, %s303
      %p305 = scmp.eq.s32.totalorder %s38, 0
      %p306 = por %p304, %p305
      %s307 = ssub.s32 %s32, %s39
      %p308 = scmp.eq.s32.totalorder %s307, 0
      %s310 = sadd.s32 %s309, 1
      %s311 = scalar_select %p308, %s309, %s310
      %p314 = pneg %p308
      %p315 = scmp.eq.s32.totalorder %s32, 1
      %p316 = por %p314, %p315
      %p317 = scmp.ne.s32.totalorder %s309, %s312
      %p318 = scmp.eq.s32.totalorder %s32, 0
      %p319 = por %p317, %p318
      %p320 = scmp.ne.s32.totalorder %s309, %s312
      %p321 = scmp.eq.s32.totalorder %s37, 1
      %p322 = por %p320, %p321
      %p323 = scmp.ne.s32.totalorder %s312, %s313
      %p324 = scmp.eq.s32.totalorder %s37, 0
      %p325 = por %p323, %p324
      %p326 = scmp.ne.s32.totalorder %s312, %s313
      %p327 = scmp.eq.s32.totalorder %s38, 1
      %p328 = por %p326, %p327
      %p330 = scmp.ne.s32.totalorder %s313, %s329
      %p331 = scmp.eq.s32.totalorder %s38, 0
      %p332 = por %p330, %p331
      %p333 = scmp.le.s32.totalorder 1, %s32
      %p334 = scmp.lt.s32.totalorder %s32, 3
      %p335 = pnand %p333, %p334
      %p336 = pneg %p335
      // Predicated region
      $region9: #{cab_forward.4} parent=5 // pred_check
        _
      $region10: #{cab_forward.4} parent=5 // pred_check_branch
        %338 = sbr.rel (%p335) target = $region12
      $region11: #{cab_forward.4} parent=5 // pred_region
        %s339 = ssub.s32 %s32, 1
        // Predicated region
        $region13: #{cab_forward.4} parent=11 // pred_check
          %p340 = pneg %p131
        $region14: #{cab_forward.4} parent=11 // pred_check_branch
          %342 = sbr.rel (%p340) target = $region16
        $region15: #{cab_forward.4} parent=11 // pred_region
          %s344 = ssub.s32 32, 32
          %345 = vsyncadd [#allocation10], %s344
          %s347 = sshll.u32 [#allocation9], 4
          %s348 = int_to_ptr.vmem [resolvable:$true] %s347
          %350 = dma.hbm_to_vmem [thread:$0]  %s3, 32, %s348, [#allocation10]
        $region16: #{cab_forward.4} parent=11 // pred_fallthru
          _
        // Predicated region
        $region17: #{cab_forward.4} parent=11 // pred_check
          %p351 = pneg %p152
        $region18: #{cab_forward.4} parent=11 // pred_check_branch
          %353 = sbr.rel (%p351) target = $region20
        $region19: #{cab_forward.4} parent=11 // pred_region
          %s355 = ssub.s32 288, 288
          %356 = vsyncadd [#allocation10], %s355
          %s357 = sshll.u32 [#allocation11], 4
          %s358 = int_to_ptr.vmem [resolvable:$true] %s357
          %363 = dma.hbm_to_vmem [thread:$0]  %s4, 288, %s358, [#allocation10], 32, 32, 2
        $region20: #{cab_forward.4} parent=11 // pred_fallthru
          _
        // Predicated region
        $region21: #{cab_forward.4} parent=11 // pred_check
          %p364 = pneg %p173
        $region22: #{cab_forward.4} parent=11 // pred_check_branch
          %366 = sbr.rel (%p364) target = $region24
        $region23: #{cab_forward.4} parent=11 // pred_region
          %s368 = ssub.s32 64, 64
          %369 = vsyncadd [#allocation13], %s368
          %s371 = sshll.u32 [#allocation12], 4
          %s372 = int_to_ptr.vmem [resolvable:$true] %s371
          %374 = dma.hbm_to_vmem [thread:$0]  %s5, 64, %s372, [#allocation13]
        $region24: #{cab_forward.4} parent=11 // pred_fallthru
          _
        // Predicated region
        $region25: #{cab_forward.4} parent=11 // pred_check
          %p375 = pneg %p194
        $region26: #{cab_forward.4} parent=11 // pred_check_branch
          %377 = sbr.rel (%p375) target = $region28
        $region27: #{cab_forward.4} parent=11 // pred_region
          %s379 = ssub.s32 64, 64
          %380 = vsyncadd [#allocation13], %s379
          %s382 = sshll.u32 [#allocation14], 4
          %s383 = int_to_ptr.vmem [resolvable:$true] %s382
          %385 = dma.hbm_to_vmem [thread:$0]  %s6, 64, %s383, [#allocation13]
        $region28: #{cab_forward.4} parent=11 // pred_fallthru
          _
        // Predicated region
        $region29: #{cab_forward.4} parent=11 // pred_check
          %p386 = pneg %p215
        $region30: #{cab_forward.4} parent=11 // pred_check_branch
          %388 = sbr.rel (%p386) target = $region32
        $region31: #{cab_forward.4} parent=11 // pred_region
          %s390 = ssub.s32 64, 64
          %391 = vsyncadd [#allocation16], %s390
          %s393 = sshll.u32 [#allocation15], 4
          %s394 = int_to_ptr.vmem [resolvable:$true] %s393
          %396 = dma.hbm_to_vmem [thread:$0]  %s7, 64, %s394, [#allocation16]
        $region32: #{cab_forward.4} parent=11 // pred_fallthru
          _
        // Predicated region
        $region33: #{cab_forward.4} parent=11 // pred_check
          %p397 = pneg %p236
        $region34: #{cab_forward.4} parent=11 // pred_check_branch
          %399 = sbr.rel (%p397) target = $region36
        $region35: #{cab_forward.4} parent=11 // pred_region
          %s401 = ssub.s32 288, 288
          %402 = vsyncadd [#allocation16], %s401
          %s403 = sshll.u32 [#allocation17], 4
          %s404 = int_to_ptr.vmem [resolvable:$true] %s403
          %409 = dma.hbm_to_vmem [thread:$0]  %s8, 288, %s404, [#allocation16], 32, 32, 2
        $region36: #{cab_forward.4} parent=11 // pred_fallthru
          _
        // Predicated region
        $region37: #{cab_forward.4} parent=11 // pred_check
          %p410 = pneg %p257
        $region38: #{cab_forward.4} parent=11 // pred_check_branch
          %412 = sbr.rel (%p410) target = $region40
        $region39: #{cab_forward.4} parent=11 // pred_region
          %s414 = ssub.s32 64, 64
          %415 = vsyncadd [#allocation19], %s414
          %s417 = sshll.u32 [#allocation18], 4
          %s418 = int_to_ptr.vmem [resolvable:$true] %s417
          %420 = dma.hbm_to_vmem [thread:$0]  %s9, 64, %s418, [#allocation19]
        $region40: #{cab_forward.4} parent=11 // pred_fallthru
          _
        // Predicated region
        $region41: #{cab_forward.4} parent=11 // pred_check
          %p421 = pneg %p278
        $region42: #{cab_forward.4} parent=11 // pred_check_branch
          %423 = sbr.rel (%p421) target = $region44
        $region43: #{cab_forward.4} parent=11 // pred_region
          %s425 = ssub.s32 64, 64
          %426 = vsyncadd [#allocation19], %s425
          %s427 = sshll.u32 [#allocation20], 4
          %s428 = int_to_ptr.vmem [resolvable:$true] %s427
          %433 = dma.hbm_to_vmem [thread:$0]  %s10, 64, %s428, [#allocation19], 32, 32, 2
        $region44: #{cab_forward.4} parent=11 // pred_fallthru
          _
        // Predicated region
        $region45: #{cab_forward.4} parent=11 // pred_check
          %p434 = pneg %p299
        $region46: #{cab_forward.4} parent=11 // pred_check_branch
          %436 = sbr.rel (%p434) target = $region48
        $region47: #{cab_forward.4} parent=11 // pred_region
          %s438 = ssub.s32 64, 64
          %439 = vsyncadd [#allocation22], %s438
          %s441 = sshll.u32 [#allocation21], 4
          %s442 = int_to_ptr.vmem [resolvable:$true] %s441
          %444 = dma.hbm_to_vmem [thread:$0]  %s11, 64, %s442, [#allocation22]
        $region48: #{cab_forward.4} parent=11 // pred_fallthru
          _
      $region12: #{cab_forward.4} parent=5 // pred_fallthru
        _
      %p445 = scmp.lt.s32.totalorder %s32, 2
      // Predicated region
      $region49: #{cab_forward.4} parent=5 // pred_check
        %p446 = pneg %p445
      $region50: #{cab_forward.4} parent=5 // pred_check_branch
        %448 = sbr.rel (%p446) target = $region52
      $region51: #{cab_forward.4} parent=5 // pred_region
        // Predicated region
        $region53: #{cab_forward.4} parent=51 // pred_check
          %p449 = pneg %p52
        $region54: #{cab_forward.4} parent=51 // pred_check_branch
          %451 = sbr.rel (%p449) target = $region56
        $region55: #{cab_forward.4} parent=51 // pred_region
          %s452 = sand.u32 %s42, 1
          %s453 = scalar_lea.sflag [#allocation4], %s452
          %s454 = sand.u32 %s42, 1
          %s455 = smul.addr %s454, 6
          %s456 = scalar_lea.vmem [#allocation3], %s455
          %s458 = ssub.s32 96, 96
          %459 = vsyncadd %s453, %s458
          %s460 = smul.addr %s32, 3
          %s461 = smul.addr %s460, 32
          %s462 = scalar_lea.hbm %s0, %s461
          %s464 = sshll.u32 %s456, 4
          %s465 = int_to_ptr.vmem [resolvable:$true] %s464
          %467 = dma.hbm_to_vmem [thread:$0]  %s462, 96, %s465, %s453
        $region56: #{cab_forward.4} parent=51 // pred_fallthru
          _
        // Predicated region
        $region57: #{cab_forward.4} parent=51 // pred_check
          %p468 = pneg %p78
        $region58: #{cab_forward.4} parent=51 // pred_check_branch
          %470 = sbr.rel (%p468) target = $region60
        $region59: #{cab_forward.4} parent=51 // pred_region
          %s471 = sand.u32 %s32, 1
          %s472 = scalar_lea.sflag [#allocation7], %s471
          %s473 = sand.u32 %s68, 1
          %s474 = smul.addr %s473, 8
          %s475 = scalar_lea.vmem [#allocation6], %s474
          %s477 = ssub.s32 128, 128
          %478 = vsyncadd %s472, %s477
          %s479 = smul.addr %s32, 2
          %s480 = smul.addr %s479, 64
          %s481 = scalar_lea.hbm %s1, %s480
          %s483 = sshll.u32 %s475, 4
          %s484 = int_to_ptr.vmem [resolvable:$true] %s483
          %486 = dma.hbm_to_vmem [thread:$0]  %s481, 128, %s484, %s472
        $region60: #{cab_forward.4} parent=51 // pred_fallthru
          _
        // Predicated region
        $region61: #{cab_forward.4} parent=51 // pred_check
          %p487 = pneg %p104
        $region62: #{cab_forward.4} parent=51 // pred_check_branch
          %489 = sbr.rel (%p487) target = $region64
        $region63: #{cab_forward.4} parent=51 // pred_region
          %s490 = sand.u32 %s32, 1
          %s491 = scalar_lea.sflag [#allocation7], %s490
          %s492 = sand.u32 %s94, 1
          %s493 = smul.addr %s492, 4
          %s494 = scalar_lea.vmem [#allocation8], %s493
          %s496 = ssub.s32 64, 64
          %497 = vsyncadd %s491, %s496
          %s498 = smul.addr %s32, 2
          %s499 = smul.addr %s498, 32
          %s500 = scalar_lea.hbm %s2, %s499
          %s502 = sshll.u32 %s494, 4
          %s503 = int_to_ptr.vmem [resolvable:$true] %s502
          %505 = dma.hbm_to_vmem [thread:$0]  %s500, 64, %s503, %s491
        $region64: #{cab_forward.4} parent=51 // pred_fallthru
          _
      $region52: #{cab_forward.4} parent=5 // pred_fallthru
        _
      %p506 = scmp.le.s32.totalorder 1, %s32
      %p507 = scmp.lt.s32.totalorder %s32, 3
      %p508 = pnand %p506, %p507
      %p509 = pneg %p508
      // Predicated region
      $region65: #{cab_forward.4} parent=5 // pred_check
        _
      $region66: #{cab_forward.4} parent=5 // pred_check_branch
        %511 = sbr.rel (%p508) target = $region68
      $region67: #{cab_forward.4} parent=5 // pred_region
        %s512 = ssub.s32 %s32, 1
        %s513 = sand.u32 %s45, 1
        %s514 = scalar_lea.sflag [#allocation4], %s513
        %s515 = sand.u32 %s45, 1
        %s516 = smul.addr %s515, 6
        %s517 = scalar_lea.vmem [#allocation3], %s516
        // Predicated region
        $region69: #{cab_forward.4} parent=67 // pred_check
          %p518 = pneg %p58
        $region70: #{cab_forward.4} parent=67 // pred_check_branch
          %520 = sbr.rel (%p518) target = $region72
        $region71: #{cab_forward.4} parent=67 // pred_region
          %521 = dma.done %s514, 96
        $region72: #{cab_forward.4} parent=67 // pred_fallthru
          _
        %s522 = sand.u32 %s37, 1
        %s523 = scalar_lea.sflag [#allocation7], %s522
        %s524 = sand.u32 %s71, 1
        %s525 = smul.addr %s524, 8
        %s526 = scalar_lea.vmem [#allocation6], %s525
        // Predicated region
        $region73: #{cab_forward.4} parent=67 // pred_check
          %p527 = pneg %p84
        $region74: #{cab_forward.4} parent=67 // pred_check_branch
          %529 = sbr.rel (%p527) target = $region76
        $region75: #{cab_forward.4} parent=67 // pred_region
          %530 = dma.done %s523, 128
        $region76: #{cab_forward.4} parent=67 // pred_fallthru
          _
        %s531 = sand.u32 %s37, 1
        %s532 = scalar_lea.sflag [#allocation7], %s531
        %s533 = sand.u32 %s97, 1
        %s534 = smul.addr %s533, 4
        %s535 = scalar_lea.vmem [#allocation8], %s534
        // Predicated region
        $region77: #{cab_forward.4} parent=67 // pred_check
          %p536 = pneg %p110
        $region78: #{cab_forward.4} parent=67 // pred_check_branch
          %538 = sbr.rel (%p536) target = $region80
        $region79: #{cab_forward.4} parent=67 // pred_region
          %539 = dma.done %s532, 64
        $region80: #{cab_forward.4} parent=67 // pred_fallthru
          _
        // Predicated region
        $region81: #{cab_forward.4} parent=67 // pred_check
          %p540 = pneg %p131
        $region82: #{cab_forward.4} parent=67 // pred_check_branch
          %542 = sbr.rel (%p540) target = $region84
        $region83: #{cab_forward.4} parent=67 // pred_region
          %543 = dma.done [#allocation10], 32
        $region84: #{cab_forward.4} parent=67 // pred_fallthru
          _
        // Predicated region
        $region85: #{cab_forward.4} parent=67 // pred_check
          %p544 = pneg %p152
        $region86: #{cab_forward.4} parent=67 // pred_check_branch
          %546 = sbr.rel (%p544) target = $region88
        $region87: #{cab_forward.4} parent=67 // pred_region
          %547 = dma.done [#allocation10], 288
        $region88: #{cab_forward.4} parent=67 // pred_fallthru
          _
        // Predicated region
        $region89: #{cab_forward.4} parent=67 // pred_check
          %p548 = pneg %p173
        $region90: #{cab_forward.4} parent=67 // pred_check_branch
          %550 = sbr.rel (%p548) target = $region92
        $region91: #{cab_forward.4} parent=67 // pred_region
          %551 = dma.done [#allocation13], 64
        $region92: #{cab_forward.4} parent=67 // pred_fallthru
          _
        // Predicated region
        $region93: #{cab_forward.4} parent=67 // pred_check
          %p552 = pneg %p194
        $region94: #{cab_forward.4} parent=67 // pred_check_branch
          %554 = sbr.rel (%p552) target = $region96
        $region95: #{cab_forward.4} parent=67 // pred_region
          %555 = dma.done [#allocation13], 64
        $region96: #{cab_forward.4} parent=67 // pred_fallthru
          _
        // Predicated region
        $region97: #{cab_forward.4} parent=67 // pred_check
          %p556 = pneg %p215
        $region98: #{cab_forward.4} parent=67 // pred_check_branch
          %558 = sbr.rel (%p556) target = $region100
        $region99: #{cab_forward.4} parent=67 // pred_region
          %559 = dma.done [#allocation16], 64
        $region100: #{cab_forward.4} parent=67 // pred_fallthru
          _
        // Predicated region
        $region101: #{cab_forward.4} parent=67 // pred_check
          %p560 = pneg %p236
        $region102: #{cab_forward.4} parent=67 // pred_check_branch
          %562 = sbr.rel (%p560) target = $region104
        $region103: #{cab_forward.4} parent=67 // pred_region
          %563 = dma.done [#allocation16], 288
        $region104: #{cab_forward.4} parent=67 // pred_fallthru
          _
        // Predicated region
        $region105: #{cab_forward.4} parent=67 // pred_check
          %p564 = pneg %p257
        $region106: #{cab_forward.4} parent=67 // pred_check_branch
          %566 = sbr.rel (%p564) target = $region108
        $region107: #{cab_forward.4} parent=67 // pred_region
          %567 = dma.done [#allocation19], 64
        $region108: #{cab_forward.4} parent=67 // pred_fallthru
          _
        // Predicated region
        $region109: #{cab_forward.4} parent=67 // pred_check
          %p568 = pneg %p278
        $region110: #{cab_forward.4} parent=67 // pred_check_branch
          %570 = sbr.rel (%p568) target = $region112
        $region111: #{cab_forward.4} parent=67 // pred_region
          %571 = dma.done [#allocation19], 64
        $region112: #{cab_forward.4} parent=67 // pred_fallthru
          _
        // Predicated region
        $region113: #{cab_forward.4} parent=67 // pred_check
          %p572 = pneg %p299
        $region114: #{cab_forward.4} parent=67 // pred_check_branch
          %574 = sbr.rel (%p572) target = $region116
        $region115: #{cab_forward.4} parent=67 // pred_region
          %575 = dma.done [#allocation22], 64
        $region116: #{cab_forward.4} parent=67 // pred_fallthru
          _
        %s576 = sand.u32 %s45, 1
        %s577 = scalar_lea.sflag [#allocation4], %s576
        %s578 = sand.u32 %s45, 1
        %s579 = smul.addr %s578, 6
        %s580 = scalar_lea.vmem [#allocation3], %s579
        %p581 = pneg %p58
        %p582 = pneg %p55
        %s583 = sand.u32 %s37, 1
        %s584 = scalar_lea.sflag [#allocation7], %s583
        %s585 = sand.u32 %s71, 1
        %s586 = smul.addr %s585, 8
        %s587 = scalar_lea.vmem [#allocation6], %s586
        %p588 = pneg %p84
        %p589 = pneg %p81
        %s590 = sand.u32 %s37, 1
        %s591 = scalar_lea.sflag [#allocation7], %s590
        %s592 = sand.u32 %s97, 1
        %s593 = smul.addr %s592, 4
        %s594 = scalar_lea.vmem [#allocation8], %s593
        %p595 = pneg %p110
        %p596 = pneg %p107
        %p597 = pneg %p131
        %p598 = pneg %p128
        %p599 = pneg %p152
        %p600 = pneg %p149
        %p601 = pneg %p173
        %p602 = pneg %p170
        %p603 = pneg %p194
        %p604 = pneg %p191
        %p605 = pneg %p215
        %p606 = pneg %p212
        %p607 = pneg %p236
        %p608 = pneg %p233
        %p609 = pneg %p257
        %p610 = pneg %p254
        %p611 = pneg %p278
        %p612 = pneg %p275
        %p613 = pneg %p299
        %p614 = pneg %p296
        %p615 = pneg %p325
        %p616 = pneg %p322
        %s617 = sand.u32 %s312, 1
        %s618 = scalar_lea.sflag [#allocation5], %s617
        %s619 = sand.u32 %s312, 1
        %s620 = smul.addr %s619, 8
        %s621 = scalar_lea.vmem [#allocation23], %s620
        %v623 = vld [vmem:[#allocation9] sm:$0x3]
        %v624 = vld [vmem:[%s517] sm:$0x3f]
        %v625 = vld [vmem:[#allocation12] sm:$0xf]
        %v628 = vunpack.c.l.s4 1966171168
        %v629 = vunpack.c.0.s8 %v628
        %v630 = vlaneseq
        %v631 = vshrl.u32 %v630, 7
        %v632 = vsub.s32 %v629, %v631
        %v633 = vrot.slane %v623, %v632
        %v634 = vcombine.high %v633, %v633
        %v636 = vunpack.c.l.s4 1966171168
        %v637 = vunpack.c.0.s8 %v636
        %v638 = vlaneseq
        %v639 = vshrl.u32 %v638, 7
        %v640 = vsub.s32 %v637, %v639
        %v641 = vrot.slane %v633, %v640
        %v643 = vunpack.c.l.s4 1966171168
        %v644 = vunpack.c.0.s8 %v643
        %v645 = vlaneseq
        %v646 = vshrl.u32 %v645, 7
        %v647 = vsub.s32 %v644, %v646
        %v648 = vrot.slane %v634, %v647
        %v650 = vpack.i.b16 %v641, %v641
        %v652 = vlaneseq
        %v653 = vshrl.u32 %v652, 7
        %v654 = vsub.s32 0, %v653
        %v655 = vrot.slane %v650, %v654
        %v657 = vpack.i.b16 %v648, %v648
        %v659 = vlaneseq
        %v660 = vshrl.u32 %v659, 7
        %v661 = vsub.s32 0, %v660
        %v662 = vrot.slane %v657, %v661
        %v665 = vcombine.low %v655, %v662
        %v667 = vunpack.c.l.s4 1983009808
        %v668 = vunpack.c.0.s8 %v667
        %v669 = vlaneseq
        %v670 = vshrl.u32 %v669, 7
        %v671 = vsub.s32 %v668, %v670
        %v672 = vrot.slane %v665, %v671
        %v674 = vmul.bf16 %v624, %v672
        %v675 = vld [vmem:[#allocation11] sm:$0x3]
        %s676 = scalar_lea.vmem [#allocation11], 2
        %v677 = vld [vmem:[%s676] sm:$0x3]
        %v679 = vcombine.high %v624, %v624
        %v681 = vunpack.c.l.s4 1983009808
        %v682 = vunpack.c.0.s8 %v681
        %v683 = vlaneseq
        %v684 = vshrl.u32 %v683, 7
        %v685 = vsub.s32 %v682, %v684
        %v686 = vrot.slane %v624, %v685
        %v688 = vunpack.c.l.s4 1983009808
        %v689 = vunpack.c.0.s8 %v688
        %v690 = vlaneseq
        %v691 = vshrl.u32 %v690, 7
        %v692 = vsub.s32 %v689, %v691
        %v693 = vrot.slane %v679, %v692
        %v694 = vcombine.high %v686, %v686
        %695 = vrot.lane.b32.xlu0 %v686, 127
        %v696 = vpop.permute.xlu0 %695
        %697 = vrot.lane.b32.xlu0 %v694, 127
        %v698 = vpop.permute.xlu0 %697
        %699 = vrot.lane.b32.xlu0 %v693, 127
        %v700 = vpop.permute.xlu0 %699
        %vm701 = vcmask 1039360
        %v702 = vsel %vm701, %v696, %v698
        %v703 = vsel %vm701, %v698, %v700
        %vm704 = vcmask 31744
        %v706 = vsel %vm704, %v677, 0
        %vm708 = vcmask 1041408
        %v710 = vsel %vm708, %v702, 0
        %v713 = vsel %vm708, %v703, 0
        %715 = vmatprep.subr.bf16.mxu0 %v713
        %716 = vmatpush1.bf16.msra.mxu0 %v710
        %717 = vmatprep.subr.bf16.mxu0 0
        %718 = vmatpush1.bf16.msra.mxu0 0
        %719 = vmatprep.subr.bf16.mxu0 0
        %720 = vmatpush1.bf16.msra.mxu0 0
        %721 = vmatprep.subr.bf16.mxu0 0
        %722 = vmatpush1.bf16.msra.mxu0 0
        %723 = vmatprep.subr.bf16.mxu0 0
        %724 = vmatpush1.bf16.msra.mxu0 0
        %725 = vmatprep.subr.bf16.mxu0 0
        %726 = vmatpush1.bf16.msra.mxu0 0
        %727 = vmatprep.subr.bf16.mxu0 0
        %728 = vmatpush1.bf16.msra.mxu0 0
        %729 = vmatprep.subr.bf16.mxu0 0
        %730 = vmatpush1.bf16.msra.mxu0 0
        %731 = vmatprep.subr.bf16.mxu0 0
        %732 = vmatpush1.bf16.msra.mxu0 0
        %733 = vmatprep.subr.bf16.mxu0 0
        %734 = vmatpush1.bf16.msra.mxu0 0
        %735 = vmatprep.subr.bf16.mxu0 0
        %736 = vmatpush1.bf16.msra.mxu0 0
        %737 = vmatprep.subr.bf16.mxu0 0
        %738 = vmatpush1.bf16.msra.mxu0 0
        %739 = vmatprep.subr.bf16.mxu0 0
        %740 = vmatpush1.bf16.msra.mxu0 0
        %741 = vmatprep.subr.bf16.mxu0 0
        %742 = vmatpush1.bf16.msra.mxu0 0
        %743 = vmatprep.subr.bf16.mxu0 0
        %744 = vmatpush1.bf16.msra.mxu0 0
        %745 = vmatprep.subr.bf16.mxu0 0
        %746 = vmatpush1.bf16.msra.mxu0 0
        %747 = vmatprep.mubr.bf16.mxu0 0
        %748 = vmatmul.mubr.bf16.gmra.mrb[0].mxu0 %v706
        %v749 = vpop.f32.mrb[0].mxu0
        %v750 = vadd.f32 0.0, %v749
        %v751 = vpop.f32.mrb[0].mxu0
        %v752 = vadd.f32 0.0, %v751
        %v753 = vpop.f32.mrb[0].mxu0
        %v754 = vpop.f32.mrb[0].mxu0
        %755 = vdwg.mxu0
        %v758 = vunpack.c.l.s4 1983009808
        %v759 = vunpack.c.0.s8 %v758
        %v760 = vlaneseq
        %v761 = vshrl.u32 %v760, 7
        %v762 = vsub.s32 %v759, %v761
        %v763 = vrot.slane %v674, %v762
        %v764 = vcombine.high %v763, %v763
        %v766 = vsel %vm704, %v675, 0
        %v769 = vsel %vm708, %v763, 0
        %v772 = vsel %vm708, %v764, 0
        %774 = vmatprep.subr.bf16.mxu0 %v772
        %775 = vmatpush1.bf16.msra.mxu0 %v769
        %776 = vmatprep.subr.bf16.mxu0 0
        %777 = vmatpush1.bf16.msra.mxu0 0
        %778 = vmatprep.subr.bf16.mxu0 0
        %779 = vmatpush1.bf16.msra.mxu0 0
        %780 = vmatprep.subr.bf16.mxu0 0
        %781 = vmatpush1.bf16.msra.mxu0 0
        %782 = vmatprep.subr.bf16.mxu0 0
        %783 = vmatpush1.bf16.msra.mxu0 0
        %784 = vmatprep.subr.bf16.mxu0 0
        %785 = vmatpush1.bf16.msra.mxu0 0
        %786 = vmatprep.subr.bf16.mxu0 0
        %787 = vmatpush1.bf16.msra.mxu0 0
        %788 = vmatprep.subr.bf16.mxu0 0
        %789 = vmatpush1.bf16.msra.mxu0 0
        %790 = vmatprep.subr.bf16.mxu0 0
        %791 = vmatpush1.bf16.msra.mxu0 0
        %792 = vmatprep.subr.bf16.mxu0 0
        %793 = vmatpush1.bf16.msra.mxu0 0
        %794 = vmatprep.subr.bf16.mxu0 0
        %795 = vmatpush1.bf16.msra.mxu0 0
        %796 = vmatprep.subr.bf16.mxu0 0
        %797 = vmatpush1.bf16.msra.mxu0 0
        %798 = vmatprep.subr.bf16.mxu0 0
        %799 = vmatpush1.bf16.msra.mxu0 0
        %800 = vmatprep.subr.bf16.mxu0 0
        %801 = vmatpush1.bf16.msra.mxu0 0
        %802 = vmatprep.subr.bf16.mxu0 0
        %803 = vmatpush1.bf16.msra.mxu0 0
        %804 = vmatprep.subr.bf16.mxu0 0
        %805 = vmatpush1.bf16.msra.mxu0 0
        %806 = vmatprep.mubr.bf16.mxu0 0
        %807 = vmatmul.mubr.bf16.gmra.mrb[0].mxu0 %v766
        %v808 = vpop.f32.mrb[0].mxu0
        %v809 = vadd.f32 %v750, %v808
        %v810 = vpop.f32.mrb[0].mxu0
        %v811 = vadd.f32 %v752, %v810
        %v812 = vpop.f32.mrb[0].mxu0
        %v813 = vpop.f32.mrb[0].mxu0
        %814 = vdwg.mxu0
        %v815 = vshrl.u32 %v641, 16
        %v816 = vpack.i.b16 %v815, %v815
        %v818 = vlaneseq
        %v819 = vshrl.u32 %v818, 7
        %v820 = vsub.s32 0, %v819
        %v821 = vrot.slane %v816, %v820
        %v822 = vshrl.u32 %v648, 16
        %v823 = vpack.i.b16 %v822, %v822
        %v825 = vlaneseq
        %v826 = vshrl.u32 %v825, 7
        %v827 = vsub.s32 0, %v826
        %v828 = vrot.slane %v823, %v827
        %v831 = vcombine.low %v821, %v828
        %v833 = vunpack.c.l.s4 1983009808
        %v834 = vunpack.c.0.s8 %v833
        %v835 = vlaneseq
        %v836 = vshrl.u32 %v835, 7
        %v837 = vsub.s32 %v834, %v836
        %v838 = vrot.slane %v831, %v837
        %839 = vrot.lane.b32.xlu0 %v838, 2
        %v840 = vpop.permute.xlu0 %839
        %v841 = vrot.slane %v840, 6
        %vm842 = vcmask 15360
        %v843 = vsel %vm842, %v841, %v840
        %v845 = vmul.bf16 %v624, %v843
        %s846 = scalar_lea.vmem [#allocation11], 4
        %v847 = vld [vmem:[%s846] sm:$0x3]
        %v849 = vcombine.high %v845, %v845
        %v851 = vunpack.c.l.s4 1983009808
        %v852 = vunpack.c.0.s8 %v851
        %v853 = vlaneseq
        %v854 = vshrl.u32 %v853, 7
        %v855 = vsub.s32 %v852, %v854
        %v856 = vrot.slane %v845, %v855
        %v858 = vunpack.c.l.s4 1983009808
        %v859 = vunpack.c.0.s8 %v858
        %v860 = vlaneseq
        %v861 = vshrl.u32 %v860, 7
        %v862 = vsub.s32 %v859, %v861
        %v863 = vrot.slane %v849, %v862
        %v864 = vcombine.high %v856, %v856
        %865 = vrot.lane.b32.xlu0 %v856, 126
        %v866 = vpop.permute.xlu0 %865
        %867 = vrot.lane.b32.xlu0 %v864, 126
        %v868 = vpop.permute.xlu0 %867
        %869 = vrot.lane.b32.xlu0 %v863, 126
        %v870 = vpop.permute.xlu0 %869
        %vm871 = vcmask 1031168
        %v872 = vsel %vm871, %v866, %v868
        %v873 = vsel %vm871, %v868, %v870
        %v875 = vsel %vm704, %v847, 0
        %v878 = vsel %vm708, %v872, 0
        %v881 = vsel %vm708, %v873, 0
        %883 = vmatprep.subr.bf16.mxu0 %v881
        %884 = vmatpush1.bf16.msra.mxu0 %v878
        %885 = vmatprep.subr.bf16.mxu0 0
        %886 = vmatpush1.bf16.msra.mxu0 0
        %887 = vmatprep.subr.bf16.mxu0 0
        %888 = vmatpush1.bf16.msra.mxu0 0
        %889 = vmatprep.subr.bf16.mxu0 0
        %890 = vmatpush1.bf16.msra.mxu0 0
        %891 = vmatprep.subr.bf16.mxu0 0
        %892 = vmatpush1.bf16.msra.mxu0 0
        %893 = vmatprep.subr.bf16.mxu0 0
        %894 = vmatpush1.bf16.msra.mxu0 0
        %895 = vmatprep.subr.bf16.mxu0 0
        %896 = vmatpush1.bf16.msra.mxu0 0
        %897 = vmatprep.subr.bf16.mxu0 0
        %898 = vmatpush1.bf16.msra.mxu0 0
        %899 = vmatprep.subr.bf16.mxu0 0
        %900 = vmatpush1.bf16.msra.mxu0 0
        %901 = vmatprep.subr.bf16.mxu0 0
        %902 = vmatpush1.bf16.msra.mxu0 0
        %903 = vmatprep.subr.bf16.mxu0 0
        %904 = vmatpush1.bf16.msra.mxu0 0
        %905 = vmatprep.subr.bf16.mxu0 0
        %906 = vmatpush1.bf16.msra.mxu0 0
        %907 = vmatprep.subr.bf16.mxu0 0
        %908 = vmatpush1.bf16.msra.mxu0 0
        %909 = vmatprep.subr.bf16.mxu0 0
        %910 = vmatpush1.bf16.msra.mxu0 0
        %911 = vmatprep.subr.bf16.mxu0 0
        %912 = vmatpush1.bf16.msra.mxu0 0
        %913 = vmatprep.subr.bf16.mxu0 0
        %914 = vmatpush1.bf16.msra.mxu0 0
        %915 = vmatprep.mubr.bf16.mxu0 0
        %916 = vmatmul.mubr.bf16.gmra.mrb[0].mxu0 %v875
        %v917 = vpop.f32.mrb[0].mxu0
        %v918 = vadd.f32 0.0, %v917
        %v919 = vpop.f32.mrb[0].mxu0
        %v920 = vadd.f32 0.0, %v919
        %v921 = vpop.f32.mrb[0].mxu0
        %v922 = vpop.f32.mrb[0].mxu0
        %923 = vdwg.mxu0
        %v924 = vadd.f32 %v809, %v918
        %v925 = vadd.f32 %v811, %v920
        %926 = vrot.lane.b32.xlu0 %v672, 16
        %v927 = vpop.permute.xlu0 %926
        %v928 = vrot.slane %v927, 6
        %vm929 = vcmask 130048
        %v930 = vsel %vm929, %v928, %v927
        %v932 = vmul.bf16 %v624, %v930
        %s933 = scalar_lea.vmem [#allocation11], 6
        %v934 = vld [vmem:[%s933] sm:$0x3]
        %v936 = vcombine.high %v932, %v932
        %v938 = vunpack.c.l.s4 1983009808
        %v939 = vunpack.c.0.s8 %v938
        %v940 = vlaneseq
        %v941 = vshrl.u32 %v940, 7
        %v942 = vsub.s32 %v939, %v941
        %v943 = vrot.slane %v932, %v942
        %v945 = vunpack.c.l.s4 1983009808
        %v946 = vunpack.c.0.s8 %v945
        %v947 = vlaneseq
        %v948 = vshrl.u32 %v947, 7
        %v949 = vsub.s32 %v946, %v948
        %v950 = vrot.slane %v936, %v949
        %v951 = vcombine.high %v943, %v943
        %952 = vrot.lane.b32.xlu0 %v943, 112
        %v953 = vpop.permute.xlu0 %952
        %954 = vrot.lane.b32.xlu0 %v951, 112
        %v955 = vpop.permute.xlu0 %954
        %956 = vrot.lane.b32.xlu0 %v950, 112
        %v957 = vpop.permute.xlu0 %956
        %vm958 = vcmask 916480
        %v959 = vsel %vm958, %v953, %v955
        %v960 = vsel %vm958, %v955, %v957
        %v962 = vsel %vm704, %v934, 0
        %v965 = vsel %vm708, %v959, 0
        %v968 = vsel %vm708, %v960, 0
        %970 = vmatprep.subr.bf16.mxu0 %v968
        %971 = vmatpush1.bf16.msra.mxu0 %v965
        %972 = vmatprep.subr.bf16.mxu0 0
        %973 = vmatpush1.bf16.msra.mxu0 0
        %974 = vmatprep.subr.bf16.mxu0 0
        %975 = vmatpush1.bf16.msra.mxu0 0
        %976 = vmatprep.subr.bf16.mxu0 0
        %977 = vmatpush1.bf16.msra.mxu0 0
        %978 = vmatprep.subr.bf16.mxu0 0
        %979 = vmatpush1.bf16.msra.mxu0 0
        %980 = vmatprep.subr.bf16.mxu0 0
        %981 = vmatpush1.bf16.msra.mxu0 0
        %982 = vmatprep.subr.bf16.mxu0 0
        %983 = vmatpush1.bf16.msra.mxu0 0
        %984 = vmatprep.subr.bf16.mxu0 0
        %985 = vmatpush1.bf16.msra.mxu0 0
        %986 = vmatprep.subr.bf16.mxu0 0
        %987 = vmatpush1.bf16.msra.mxu0 0
        %988 = vmatprep.subr.bf16.mxu0 0
        %989 = vmatpush1.bf16.msra.mxu0 0
        %990 = vmatprep.subr.bf16.mxu0 0
        %991 = vmatpush1.bf16.msra.mxu0 0
        %992 = vmatprep.subr.bf16.mxu0 0
        %993 = vmatpush1.bf16.msra.mxu0 0
        %994 = vmatprep.subr.bf16.mxu0 0
        %995 = vmatpush1.bf16.msra.mxu0 0
        %996 = vmatprep.subr.bf16.mxu0 0
        %997 = vmatpush1.bf16.msra.mxu0 0
        %998 = vmatprep.subr.bf16.mxu0 0
        %999 = vmatpush1.bf16.msra.mxu0 0
        %1000 = vmatprep.subr.bf16.mxu0 0
        %1001 = vmatpush1.bf16.msra.mxu0 0
        %1002 = vmatprep.mubr.bf16.mxu0 0
        %1003 = vmatmul.mubr.bf16.gmra.mrb[0].mxu0 %v962
        %v1004 = vpop.f32.mrb[0].mxu0
        %v1005 = vadd.f32 0.0, %v1004
        %v1006 = vpop.f32.mrb[0].mxu0
        %v1007 = vadd.f32 0.0, %v1006
        %v1008 = vpop.f32.mrb[0].mxu0
        %v1009 = vpop.f32.mrb[0].mxu0
        %1010 = vdwg.mxu0
        %v1011 = vadd.f32 %v924, %v1005
        %v1012 = vadd.f32 %v925, %v1007
        %s1013 = scalar_lea.vmem [#allocation11], 8
        %v1014 = vld [vmem:[%s1013] sm:$0x3]
        %1015 = vrot.lane.b32.xlu0 %v686, 111
        %v1016 = vpop.permute.xlu0 %1015
        %1017 = vrot.lane.b32.xlu0 %v694, 111
        %v1018 = vpop.permute.xlu0 %1017
        %1019 = vrot.lane.b32.xlu0 %v693, 111
        %v1020 = vpop.permute.xlu0 %1019
        %vm1021 = vcmask 908288
        %v1022 = vsel %vm1021, %v1016, %v1018
        %v1023 = vsel %vm1021, %v1018, %v1020
        %v1025 = vsel %vm704, %v1014, 0
        %v1028 = vsel %vm708, %v1022, 0
        %v1031 = vsel %vm708, %v1023, 0
        %1033 = vmatprep.subr.bf16.mxu0 %v1031
        %1034 = vmatpush1.bf16.msra.mxu0 %v1028
        %1035 = vmatprep.subr.bf16.mxu0 0
        %1036 = vmatpush1.bf16.msra.mxu0 0
        %1037 = vmatprep.subr.bf16.mxu0 0
        %1038 = vmatpush1.bf16.msra.mxu0 0
        %1039 = vmatprep.subr.bf16.mxu0 0
        %1040 = vmatpush1.bf16.msra.mxu0 0
        %1041 = vmatprep.subr.bf16.mxu0 0
        %1042 = vmatpush1.bf16.msra.mxu0 0
        %1043 = vmatprep.subr.bf16.mxu0 0
        %1044 = vmatpush1.bf16.msra.mxu0 0
        %1045 = vmatprep.subr.bf16.mxu0 0
        %1046 = vmatpush1.bf16.msra.mxu0 0
        %1047 = vmatprep.subr.bf16.mxu0 0
        %1048 = vmatpush1.bf16.msra.mxu0 0
        %1049 = vmatprep.subr.bf16.mxu0 0
        %1050 = vmatpush1.bf16.msra.mxu0 0
        %1051 = vmatprep.subr.bf16.mxu0 0
        %1052 = vmatpush1.bf16.msra.mxu0 0
        %1053 = vmatprep.subr.bf16.mxu0 0
        %1054 = vmatpush1.bf16.msra.mxu0 0
        %1055 = vmatprep.subr.bf16.mxu0 0
        %1056 = vmatpush1.bf16.msra.mxu0 0
        %1057 = vmatprep.subr.bf16.mxu0 0
        %1058 = vmatpush1.bf16.msra.mxu0 0
        %1059 = vmatprep.subr.bf16.mxu0 0
        %1060 = vmatpush1.bf16.msra.mxu0 0
        %1061 = vmatprep.subr.bf16.mxu0 0
        %1062 = vmatpush1.bf16.msra.mxu0 0
        %1063 = vmatprep.subr.bf16.mxu0 0
        %1064 = vmatpush1.bf16.msra.mxu0 0
        %1065 = vmatprep.mubr.bf16.mxu0 0
        %1066 = vmatmul.mubr.bf16.gmra.mrb[0].mxu0 %v1025
        %v1067 = vpop.f32.mrb[0].mxu0
        %v1068 = vadd.f32 0.0, %v1067
        %v1069 = vpop.f32.mrb[0].mxu0
        %v1070 = vadd.f32 0.0, %v1069
        %v1071 = vpop.f32.mrb[0].mxu0
        %v1072 = vpop.f32.mrb[0].mxu0
        %1073 = vdwg.mxu0
        %v1074 = vadd.f32 %v1011, %v1068
        %v1075 = vadd.f32 %v1012, %v1070
        %1076 = vrot.lane.b32.xlu0 %v838, 18
        %v1077 = vpop.permute.xlu0 %1076
        %v1078 = vrot.slane %v1077, 6
        %vm1079 = vcmask 146432
        %v1080 = vsel %vm1079, %v1078, %v1077
        %v1082 = vmul.bf16 %v624, %v1080
        %s1083 = scalar_lea.vmem [#allocation11], 10
        %v1084 = vld [vmem:[%s1083] sm:$0x3]
        %v1086 = vcombine.high %v1082, %v1082
        %v1088 = vunpack.c.l.s4 1983009808
        %v1089 = vunpack.c.0.s8 %v1088
        %v1090 = vlaneseq
        %v1091 = vshrl.u32 %v1090, 7
        %v1092 = vsub.s32 %v1089, %v1091
        %v1093 = vrot.slane %v1082, %v1092
        %v1095 = vunpack.c.l.s4 1983009808
        %v1096 = vunpack.c.0.s8 %v1095
        %v1097 = vlaneseq
        %v1098 = vshrl.u32 %v1097, 7
        %v1099 = vsub.s32 %v1096, %v1098
        %v1100 = vrot.slane %v1086, %v1099
        %v1101 = vcombine.high %v1093, %v1093
        %1102 = vrot.lane.b32.xlu0 %v1093, 110
        %v1103 = vpop.permute.xlu0 %1102
        %1104 = vrot.lane.b32.xlu0 %v1101, 110
        %v1105 = vpop.permute.xlu0 %1104
        %1106 = vrot.lane.b32.xlu0 %v1100, 110
        %v1107 = vpop.permute.xlu0 %1106
        %vm1108 = vcmask 900096
        %v1109 = vsel %vm1108, %v1103, %v1105
        %v1110 = vsel %vm1108, %v1105, %v1107
        %v1112 = vsel %vm704, %v1084, 0
        %v1115 = vsel %vm708, %v1109, 0
        %v1118 = vsel %vm708, %v1110, 0
        %1120 = vmatprep.subr.bf16.mxu0 %v1118
        %1121 = vmatpush1.bf16.msra.mxu0 %v1115
        %1122 = vmatprep.subr.bf16.mxu0 0
        %1123 = vmatpush1.bf16.msra.mxu0 0
        %1124 = vmatprep.subr.bf16.mxu0 0
        %1125 = vmatpush1.bf16.msra.mxu0 0
        %1126 = vmatprep.subr.bf16.mxu0 0
        %1127 = vmatpush1.bf16.msra.mxu0 0
        %1128 = vmatprep.subr.bf16.mxu0 0
        %1129 = vmatpush1.bf16.msra.mxu0 0
        %1130 = vmatprep.subr.bf16.mxu0 0
        %1131 = vmatpush1.bf16.msra.mxu0 0
        %1132 = vmatprep.subr.bf16.mxu0 0
        %1133 = vmatpush1.bf16.msra.mxu0 0
        %1134 = vmatprep.subr.bf16.mxu0 0
        %1135 = vmatpush1.bf16.msra.mxu0 0
        %1136 = vmatprep.subr.bf16.mxu0 0
        %1137 = vmatpush1.bf16.msra.mxu0 0
        %1138 = vmatprep.subr.bf16.mxu0 0
        %1139 = vmatpush1.bf16.msra.mxu0 0
        %1140 = vmatprep.subr.bf16.mxu0 0
        %1141 = vmatpush1.bf16.msra.mxu0 0
        %1142 = vmatprep.subr.bf16.mxu0 0
        %1143 = vmatpush1.bf16.msra.mxu0 0
        %1144 = vmatprep.subr.bf16.mxu0 0
        %1145 = vmatpush1.bf16.msra.mxu0 0
        %1146 = vmatprep.subr.bf16.mxu0 0
        %1147 = vmatpush1.bf16.msra.mxu0 0
        %1148 = vmatprep.subr.bf16.mxu0 0
        %1149 = vmatpush1.bf16.msra.mxu0 0
        %1150 = vmatprep.subr.bf16.mxu0 0
        %1151 = vmatpush1.bf16.msra.mxu0 0
        %1152 = vmatprep.mubr.bf16.mxu0 0
        %1153 = vmatmul.mubr.bf16.gmra.mrb[0].mxu0 %v1112
        %v1154 = vpop.f32.mrb[0].mxu0
        %v1155 = vadd.f32 0.0, %v1154
        %v1156 = vpop.f32.mrb[0].mxu0
        %v1157 = vadd.f32 0.0, %v1156
        %v1158 = vpop.f32.mrb[0].mxu0
        %v1159 = vpop.f32.mrb[0].mxu0
        %1160 = vdwg.mxu0
        %v1161 = vadd.f32 %v1074, %v1155
        %v1162 = vadd.f32 %v1075, %v1157
        %1163 = vrot.lane.b32.xlu0 %v672, 32
        %v1164 = vpop.permute.xlu0 %1163
        %v1165 = vrot.slane %v1164, 6
        %vm1166 = vcmask 261120
        %v1167 = vsel %vm1166, %v1165, %v1164
        %v1169 = vmul.bf16 %v624, %v1167
        %s1170 = scalar_lea.vmem [#allocation11], 12
        %v1171 = vld [vmem:[%s1170] sm:$0x3]
        %v1173 = vcombine.high %v1169, %v1169
        %v1175 = vunpack.c.l.s4 1983009808
        %v1176 = vunpack.c.0.s8 %v1175
        %v1177 = vlaneseq
        %v1178 = vshrl.u32 %v1177, 7
        %v1179 = vsub.s32 %v1176, %v1178
        %v1180 = vrot.slane %v1169, %v1179
        %v1182 = vunpack.c.l.s4 1983009808
        %v1183 = vunpack.c.0.s8 %v1182
        %v1184 = vlaneseq
        %v1185 = vshrl.u32 %v1184, 7
        %v1186 = vsub.s32 %v1183, %v1185
        %v1187 = vrot.slane %v1173, %v1186
        %v1188 = vcombine.high %v1180, %v1180
        %1189 = vrot.lane.b32.xlu0 %v1180, 96
        %v1190 = vpop.permute.xlu0 %1189
        %1191 = vrot.lane.b32.xlu0 %v1188, 96
        %v1192 = vpop.permute.xlu0 %1191
        %1193 = vrot.lane.b32.xlu0 %v1187, 96
        %v1194 = vpop.permute.xlu0 %1193
        %vm1195 = vcmask 785408
        %v1196 = vsel %vm1195, %v1190, %v1192
        %v1197 = vsel %vm1195, %v1192, %v1194
        %v1199 = vsel %vm704, %v1171, 0
        %v1202 = vsel %vm708, %v1196, 0
        %v1205 = vsel %vm708, %v1197, 0
        %1207 = vmatprep.subr.bf16.mxu0 %v1205
        %1208 = vmatpush1.bf16.msra.mxu0 %v1202
        %1209 = vmatprep.subr.bf16.mxu0 0
        %1210 = vmatpush1.bf16.msra.mxu0 0
        %1211 = vmatprep.subr.bf16.mxu0 0
        %1212 = vmatpush1.bf16.msra.mxu0 0
        %1213 = vmatprep.subr.bf16.mxu0 0
        %1214 = vmatpush1.bf16.msra.mxu0 0
        %1215 = vmatprep.subr.bf16.mxu0 0
        %1216 = vmatpush1.bf16.msra.mxu0 0
        %1217 = vmatprep.subr.bf16.mxu0 0
        %1218 = vmatpush1.bf16.msra.mxu0 0
        %1219 = vmatprep.subr.bf16.mxu0 0
        %1220 = vmatpush1.bf16.msra.mxu0 0
        %1221 = vmatprep.subr.bf16.mxu0 0
        %1222 = vmatpush1.bf16.msra.mxu0 0
        %1223 = vmatprep.subr.bf16.mxu0 0
        %1224 = vmatpush1.bf16.msra.mxu0 0
        %1225 = vmatprep.subr.bf16.mxu0 0
        %1226 = vmatpush1.bf16.msra.mxu0 0
        %1227 = vmatprep.subr.bf16.mxu0 0
        %1228 = vmatpush1.bf16.msra.mxu0 0
        %1229 = vmatprep.subr.bf16.mxu0 0
        %1230 = vmatpush1.bf16.msra.mxu0 0
        %1231 = vmatprep.subr.bf16.mxu0 0
        %1232 = vmatpush1.bf16.msra.mxu0 0
        %1233 = vmatprep.subr.bf16.mxu0 0
        %1234 = vmatpush1.bf16.msra.mxu0 0
        %1235 = vmatprep.subr.bf16.mxu0 0
        %1236 = vmatpush1.bf16.msra.mxu0 0
        %1237 = vmatprep.subr.bf16.mxu0 0
        %1238 = vmatpush1.bf16.msra.mxu0 0
        %1239 = vmatprep.mubr.bf16.mxu0 0
        %1240 = vmatmul.mubr.bf16.gmra.mrb[0].mxu0 %v1199
        %v1241 = vpop.f32.mrb[0].mxu0
        %v1242 = vadd.f32 0.0, %v1241
        %v1243 = vpop.f32.mrb[0].mxu0
        %v1244 = vadd.f32 0.0, %v1243
        %v1245 = vpop.f32.mrb[0].mxu0
        %v1246 = vpop.f32.mrb[0].mxu0
        %1247 = vdwg.mxu0
        %v1248 = vadd.f32 %v1161, %v1242
        %v1249 = vadd.f32 %v1162, %v1244
        %s1250 = scalar_lea.vmem [#allocation11], 14
        %v1251 = vld [vmem:[%s1250] sm:$0x3]
        %1252 = vrot.lane.b32.xlu0 %v686, 95
        %v1253 = vpop.permute.xlu0 %1252
        %1254 = vrot.lane.b32.xlu0 %v694, 95
        %v1255 = vpop.permute.xlu0 %1254
        %1256 = vrot.lane.b32.xlu0 %v693, 95
        %v1257 = vpop.permute.xlu0 %1256
        %vm1258 = vcmask 777216
        %v1259 = vsel %vm1258, %v1253, %v1255
        %v1260 = vsel %vm1258, %v1255, %v1257
        %v1262 = vsel %vm704, %v1251, 0
        %v1265 = vsel %vm708, %v1259, 0
        %v1268 = vsel %vm708, %v1260, 0
        %1270 = vmatprep.subr.bf16.mxu0 %v1268
        %1271 = vmatpush1.bf16.msra.mxu0 %v1265
        %1272 = vmatprep.subr.bf16.mxu0 0
        %1273 = vmatpush1.bf16.msra.mxu0 0
        %1274 = vmatprep.subr.bf16.mxu0 0
        %1275 = vmatpush1.bf16.msra.mxu0 0
        %1276 = vmatprep.subr.bf16.mxu0 0
        %1277 = vmatpush1.bf16.msra.mxu0 0
        %1278 = vmatprep.subr.bf16.mxu0 0
        %1279 = vmatpush1.bf16.msra.mxu0 0
        %1280 = vmatprep.subr.bf16.mxu0 0
        %1281 = vmatpush1.bf16.msra.mxu0 0
        %1282 = vmatprep.subr.bf16.mxu0 0
        %1283 = vmatpush1.bf16.msra.mxu0 0
        %1284 = vmatprep.subr.bf16.mxu0 0
        %1285 = vmatpush1.bf16.msra.mxu0 0
        %1286 = vmatprep.subr.bf16.mxu0 0
        %1287 = vmatpush1.bf16.msra.mxu0 0
        %1288 = vmatprep.subr.bf16.mxu0 0
        %1289 = vmatpush1.bf16.msra.mxu0 0
        %1290 = vmatprep.subr.bf16.mxu0 0
        %1291 = vmatpush1.bf16.msra.mxu0 0
        %1292 = vmatprep.subr.bf16.mxu0 0
        %1293 = vmatpush1.bf16.msra.mxu0 0
        %1294 = vmatprep.subr.bf16.mxu0 0
        %1295 = vmatpush1.bf16.msra.mxu0 0
        %1296 = vmatprep.subr.bf16.mxu0 0
        %1297 = vmatpush1.bf16.msra.mxu0 0
        %1298 = vmatprep.subr.bf16.mxu0 0
        %1299 = vmatpush1.bf16.msra.mxu0 0
        %1300 = vmatprep.subr.bf16.mxu0 0
        %1301 = vmatpush1.bf16.msra.mxu0 0
        %1302 = vmatprep.mubr.bf16.mxu0 0
        %1303 = vmatmul.mubr.bf16.gmra.mrb[0].mxu0 %v1262
        %v1304 = vpop.f32.mrb[0].mxu0
        %v1305 = vadd.f32 0.0, %v1304
        %v1306 = vpop.f32.mrb[0].mxu0
        %v1307 = vadd.f32 0.0, %v1306
        %v1308 = vpop.f32.mrb[0].mxu0
        %v1309 = vpop.f32.mrb[0].mxu0
        %1310 = vdwg.mxu0
        %v1311 = vadd.f32 %v1248, %v1305
        %v1312 = vadd.f32 %v1249, %v1307
        %1313 = vrot.lane.b32.xlu0 %v838, 34
        %v1314 = vpop.permute.xlu0 %1313
        %v1315 = vrot.slane %v1314, 6
        %vm1316 = vcmask 277504
        %v1317 = vsel %vm1316, %v1315, %v1314
        %v1319 = vmul.bf16 %v624, %v1317
        %s1320 = scalar_lea.vmem [#allocation11], 16
        %v1321 = vld [vmem:[%s1320] sm:$0x3]
        %v1323 = vcombine.high %v1319, %v1319
        %v1325 = vunpack.c.l.s4 1983009808
        %v1326 = vunpack.c.0.s8 %v1325
        %v1327 = vlaneseq
        %v1328 = vshrl.u32 %v1327, 7
        %v1329 = vsub.s32 %v1326, %v1328
        %v1330 = vrot.slane %v1319, %v1329
        %v1332 = vunpack.c.l.s4 1983009808
        %v1333 = vunpack.c.0.s8 %v1332
        %v1334 = vlaneseq
        %v1335 = vshrl.u32 %v1334, 7
        %v1336 = vsub.s32 %v1333, %v1335
        %v1337 = vrot.slane %v1323, %v1336
        %v1338 = vcombine.high %v1330, %v1330
        %1339 = vrot.lane.b32.xlu0 %v1330, 94
        %v1340 = vpop.permute.xlu0 %1339
        %1341 = vrot.lane.b32.xlu0 %v1338, 94
        %v1342 = vpop.permute.xlu0 %1341
        %1343 = vrot.lane.b32.xlu0 %v1337, 94
        %v1344 = vpop.permute.xlu0 %1343
        %vm1345 = vcmask 769024
        %v1346 = vsel %vm1345, %v1340, %v1342
        %v1347 = vsel %vm1345, %v1342, %v1344
        %v1349 = vsel %vm704, %v1321, 0
        %v1352 = vsel %vm708, %v1346, 0
        %v1355 = vsel %vm708, %v1347, 0
        %1357 = vmatprep.subr.bf16.mxu0 %v1355
        %1358 = vmatpush1.bf16.msra.mxu0 %v1352
        %1359 = vmatprep.subr.bf16.mxu0 0
        %1360 = vmatpush1.bf16.msra.mxu0 0
        %1361 = vmatprep.subr.bf16.mxu0 0
        %1362 = vmatpush1.bf16.msra.mxu0 0
        %1363 = vmatprep.subr.bf16.mxu0 0
        %1364 = vmatpush1.bf16.msra.mxu0 0
        %1365 = vmatprep.subr.bf16.mxu0 0
        %1366 = vmatpush1.bf16.msra.mxu0 0
        %1367 = vmatprep.subr.bf16.mxu0 0
        %1368 = vmatpush1.bf16.msra.mxu0 0
        %1369 = vmatprep.subr.bf16.mxu0 0
        %1370 = vmatpush1.bf16.msra.mxu0 0
        %1371 = vmatprep.subr.bf16.mxu0 0
        %1372 = vmatpush1.bf16.msra.mxu0 0
        %1373 = vmatprep.subr.bf16.mxu0 0
        %1374 = vmatpush1.bf16.msra.mxu0 0
        %1375 = vmatprep.subr.bf16.mxu0 0
        %1376 = vmatpush1.bf16.msra.mxu0 0
        %1377 = vmatprep.subr.bf16.mxu0 0
        %1378 = vmatpush1.bf16.msra.mxu0 0
        %1379 = vmatprep.subr.bf16.mxu0 0
        %1380 = vmatpush1.bf16.msra.mxu0 0
        %1381 = vmatprep.subr.bf16.mxu0 0
        %1382 = vmatpush1.bf16.msra.mxu0 0
        %1383 = vmatprep.subr.bf16.mxu0 0
        %1384 = vmatpush1.bf16.msra.mxu0 0
        %1385 = vmatprep.subr.bf16.mxu0 0
        %1386 = vmatpush1.bf16.msra.mxu0 0
        %1387 = vmatprep.subr.bf16.mxu0 0
        %1388 = vmatpush1.bf16.msra.mxu0 0
        %1389 = vmatprep.mubr.bf16.mxu0 0
        %1390 = vmatmul.mubr.bf16.gmra.mrb[0].mxu0 %v1349
        %v1391 = vpop.f32.mrb[0].mxu0
        %v1392 = vadd.f32 0.0, %v1391
        %v1393 = vpop.f32.mrb[0].mxu0
        %v1394 = vadd.f32 0.0, %v1393
        %v1395 = vpop.f32.mrb[0].mxu0
        %v1396 = vpop.f32.mrb[0].mxu0
        %1397 = vdwg.mxu0
        %v1398 = vadd.f32 %v1311, %v1392
        %v1399 = vadd.f32 %v1312, %v1394
        %1401 = vset.pattern.permute.xlu0 0
        %1402 = vperm.xlu0 %1401, %v625
        %v1403 = vpop.permute.xlu0 %1402
        %v1405 = vadd.f32 %v1398, %v1403
        %v1406 = vadd.f32 %v1399, %v1403
        %vm1407 = vcmp.ge.f32.partialorder %v1405, 0.0
        %vm1408 = vcmp.ge.f32.partialorder %v1406, 0.0
        %v1409 = vmul.f32 %v1405, 0.2
        %v1410 = vmul.f32 %v1406, 0.2
        %v1411 = vsel %vm1407, %v1405, %v1409
        %v1412 = vsel %vm1408, %v1406, %v1410
        %vm1413 = vcmask 1043456
        %v1414 = vsel %vm1413, %v1411, 0.0
        %v1415 = vsel %vm1413, %v1412, 0.0
        %v1416 = vadd.f32 %v1414, %v1415
        %1417 = vadd.xlane.f32.xlu0 %v1416
        %v1418 = vpop.xlane.xlu0 %1417
        %v1419 = vrcp.pop 256.0
        %v1420 = vmul.f32 %v1418, %v1419
        %v1421 = vsub.f32 %v1411, %v1420
        %v1422 = vsub.f32 %v1412, %v1420
        %v1423 = vmul.f32 %v1421, %v1421
        %v1424 = vmul.f32 %v1422, %v1422
        %v1425 = vsel %vm1413, %v1423, 0.0
        %v1426 = vsel %vm1413, %v1424, 0.0
        %v1427 = vadd.f32 %v1425, %v1426
        %1428 = vadd.xlane.f32.xlu0 %v1427
        %v1429 = vpop.xlane.xlu0 %1428
        %v1430 = vmul.f32 %v1429, %v1419
        %v1431 = vadd.f32 %v1430, 1e-05
        %v1432 = vrsqrt.pop %v1431
        %v1433 = vmul.f32 %v1421, %v1432
        %v1434 = vmul.f32 %v1422, %v1432
        %v1435 = vld [vmem:[#allocation14] sm:$0xf]
        %1437 = vset.pattern.permute.xlu0 0
        %1438 = vperm.xlu0 %1437, %v1435
        %v1439 = vpop.permute.xlu0 %1438
        %v1441 = vmul.f32 %v1433, %v1439
        %v1442 = vmul.f32 %v1434, %v1439
        %v1443 = vld [vmem:[#allocation15] sm:$0xf]
        %1445 = vset.pattern.permute.xlu0 0
        %1446 = vperm.xlu0 %1445, %v1443
        %v1447 = vpop.permute.xlu0 %1446
        %v1449 = vadd.f32 %v1441, %v1447
        %v1450 = vadd.f32 %v1442, %v1447
        %v1451 = vlaneseq
        %v1452 = vshrl.u32 %v1451, 7
        %vm1453 = vcmp.lt.s32.totalorder %v1452, 2
        %v1454 = vsel %vm1453, %v1449, %v1411
        %v1455 = vsel %vm1453, %v1450, %v1412
        %vm1456 = vcmask 1043458
        %vm1457 = vmor %vm1456, %vm708
        %vm1458 = vcmask 275460
        %vm1459 = vmor %vm1458, %vm1457
        %1460 = vst.msk [vmem:[#allocation2] sm:$0x3f] %vm1459, 0
        %v1461 = vpack.c.bf16 %v1454, %v1454
        %v1462 = vpack.c.bf16 %v1455, %v1455
        %v1465 = vcombine.low %v1461, %v1462
        %v1467 = vunpack.c.l.s4 1983009808
        %v1468 = vunpack.c.0.s8 %v1467
        %v1469 = vlaneseq
        %v1470 = vshrl.u32 %v1469, 7
        %v1471 = vsub.s32 %v1468, %v1470
        %v1472 = vrot.slane %v1465, %v1471
        %1473 = vrot.lane.b32.xlu0 %v1472, 17
        %v1474 = vpop.permute.xlu0 %1473
        %v1475 = vrot.slane %v1474, 6
        %vm1476 = vcmask 138240
        %v1477 = vsel %vm1476, %v1475, %v1474
        %vm1479 = vcmask 1041544
        %vm1480 = vmor %vm1456, %vm1479
        %vm1481 = vcmask 136196
        %vm1482 = vmor %vm1481, %vm1480
        %1483 = vst.msk [vmem:[#allocation2] sm:$0x3f] %vm1482, %v1477
        %v1484 = vld [vmem:[#allocation2] sm:$0x3f]
        %v1485 = vld [vmem:[#allocation18] sm:$0xf]
        %v1486 = vmul.bf16 %v1484, %v672
        %v1487 = vld [vmem:[#allocation17] sm:$0x3]
        %s1488 = scalar_lea.vmem [#allocation17], 2
        %v1489 = vld [vmem:[%s1488] sm:$0x3]
        %v1491 = vcombine.high %v1484, %v1484
        %v1493 = vunpack.c.l.s4 1983009808
        %v1494 = vunpack.c.0.s8 %v1493
        %v1495 = vlaneseq
        %v1496 = vshrl.u32 %v1495, 7
        %v1497 = vsub.s32 %v1494, %v1496
        %v1498 = vrot.slane %v1484, %v1497
        %v1500 = vunpack.c.l.s4 1983009808
        %v1501 = vunpack.c.0.s8 %v1500
        %v1502 = vlaneseq
        %v1503 = vshrl.u32 %v1502, 7
        %v1504 = vsub.s32 %v1501, %v1503
        %v1505 = vrot.slane %v1491, %v1504
        %v1506 = vcombine.high %v1498, %v1498
        %1507 = vrot.lane.b32.xlu0 %v1498, 127
        %v1508 = vpop.permute.xlu0 %1507
        %1509 = vrot.lane.b32.xlu0 %v1506, 127
        %v1510 = vpop.permute.xlu0 %1509
        %1511 = vrot.lane.b32.xlu0 %v1505, 127
        %v1512 = vpop.permute.xlu0 %1511
        %v1513 = vsel %vm701, %v1508, %v1510
        %v1514 = vsel %vm701, %v1510, %v1512
        %v1516 = vsel %vm704, %v1489, 0
        %v1519 = vsel %vm708, %v1513, 0
        %v1522 = vsel %vm708, %v1514, 0
        %1524 = vmatprep.subr.bf16.mxu0 %v1522
        %1525 = vmatpush1.bf16.msra.mxu0 %v1519
        %1526 = vmatprep.subr.bf16.mxu0 0
        %1527 = vmatpush1.bf16.msra.mxu0 0
        %1528 = vmatprep.subr.bf16.mxu0 0
        %1529 = vmatpush1.bf16.msra.mxu0 0
        %1530 = vmatprep.subr.bf16.mxu0 0
        %1531 = vmatpush1.bf16.msra.mxu0 0
        %1532 = vmatprep.subr.bf16.mxu0 0
        %1533 = vmatpush1.bf16.msra.mxu0 0
        %1534 = vmatprep.subr.bf16.mxu0 0
        %1535 = vmatpush1.bf16.msra.mxu0 0
        %1536 = vmatprep.subr.bf16.mxu0 0
        %1537 = vmatpush1.bf16.msra.mxu0 0
        %1538 = vmatprep.subr.bf16.mxu0 0
        %1539 = vmatpush1.bf16.msra.mxu0 0
        %1540 = vmatprep.subr.bf16.mxu0 0
        %1541 = vmatpush1.bf16.msra.mxu0 0
        %1542 = vmatprep.subr.bf16.mxu0 0
        %1543 = vmatpush1.bf16.msra.mxu0 0
        %1544 = vmatprep.subr.bf16.mxu0 0
        %1545 = vmatpush1.bf16.msra.mxu0 0
        %1546 = vmatprep.subr.bf16.mxu0 0
        %1547 = vmatpush1.bf16.msra.mxu0 0
        %1548 = vmatprep.subr.bf16.mxu0 0
        %1549 = vmatpush1.bf16.msra.mxu0 0
        %1550 = vmatprep.subr.bf16.mxu0 0
        %1551 = vmatpush1.bf16.msra.mxu0 0
        %1552 = vmatprep.subr.bf16.mxu0 0
        %1553 = vmatpush1.bf16.msra.mxu0 0
        %1554 = vmatprep.subr.bf16.mxu0 0
        %1555 = vmatpush1.bf16.msra.mxu0 0
        %1556 = vmatprep.mubr.bf16.mxu0 0
        %1557 = vmatmul.mubr.bf16.gmra.mrb[0].mxu0 %v1516
        %v1558 = vpop.f32.mrb[0].mxu0
        %v1559 = vadd.f32 0.0, %v1558
        %v1560 = vpop.f32.mrb[0].mxu0
        %v1561 = vadd.f32 0.0, %v1560
        %v1562 = vpop.f32.mrb[0].mxu0
        %v1563 = vpop.f32.mrb[0].mxu0
        %1564 = vdwg.mxu0
        %v1567 = vunpack.c.l.s4 1983009808
        %v1568 = vunpack.c.0.s8 %v1567
        %v1569 = vlaneseq
        %v1570 = vshrl.u32 %v1569, 7
        %v1571 = vsub.s32 %v1568, %v1570
        %v1572 = vrot.slane %v1486, %v1571
        %v1573 = vcombine.high %v1572, %v1572
        %v1575 = vsel %vm704, %v1487, 0
        %v1578 = vsel %vm708, %v1572, 0
        %v1581 = vsel %vm708, %v1573, 0
        %1583 = vmatprep.subr.bf16.mxu0 %v1581
        %1584 = vmatpush1.bf16.msra.mxu0 %v1578
        %1585 = vmatprep.subr.bf16.mxu0 0
        %1586 = vmatpush1.bf16.msra.mxu0 0
        %1587 = vmatprep.subr.bf16.mxu0 0
        %1588 = vmatpush1.bf16.msra.mxu0 0
        %1589 = vmatprep.subr.bf16.mxu0 0
        %1590 = vmatpush1.bf16.msra.mxu0 0
        %1591 = vmatprep.subr.bf16.mxu0 0
        %1592 = vmatpush1.bf16.msra.mxu0 0
        %1593 = vmatprep.subr.bf16.mxu0 0
        %1594 = vmatpush1.bf16.msra.mxu0 0
        %1595 = vmatprep.subr.bf16.mxu0 0
        %1596 = vmatpush1.bf16.msra.mxu0 0
        %1597 = vmatprep.subr.bf16.mxu0 0
        %1598 = vmatpush1.bf16.msra.mxu0 0
        %1599 = vmatprep.subr.bf16.mxu0 0
        %1600 = vmatpush1.bf16.msra.mxu0 0
        %1601 = vmatprep.subr.bf16.mxu0 0
        %1602 = vmatpush1.bf16.msra.mxu0 0
        %1603 = vmatprep.subr.bf16.mxu0 0
        %1604 = vmatpush1.bf16.msra.mxu0 0
        %1605 = vmatprep.subr.bf16.mxu0 0
        %1606 = vmatpush1.bf16.msra.mxu0 0
        %1607 = vmatprep.subr.bf16.mxu0 0
        %1608 = vmatpush1.bf16.msra.mxu0 0
        %1609 = vmatprep.subr.bf16.mxu0 0
        %1610 = vmatpush1.bf16.msra.mxu0 0
        %1611 = vmatprep.subr.bf16.mxu0 0
        %1612 = vmatpush1.bf16.msra.mxu0 0
        %1613 = vmatprep.subr.bf16.mxu0 0
        %1614 = vmatpush1.bf16.msra.mxu0 0
        %1615 = vmatprep.mubr.bf16.mxu0 0
        %1616 = vmatmul.mubr.bf16.gmra.mrb[0].mxu0 %v1575
        %v1617 = vpop.f32.mrb[0].mxu0
        %v1618 = vadd.f32 %v1559, %v1617
        %v1619 = vpop.f32.mrb[0].mxu0
        %v1620 = vadd.f32 %v1561, %v1619
        %v1621 = vpop.f32.mrb[0].mxu0
        %v1622 = vpop.f32.mrb[0].mxu0
        %1623 = vdwg.mxu0
        %v1624 = vmul.bf16 %v1484, %v843
        %s1625 = scalar_lea.vmem [#allocation17], 4
        %v1626 = vld [vmem:[%s1625] sm:$0x3]
        %v1628 = vcombine.high %v1624, %v1624
        %v1630 = vunpack.c.l.s4 1983009808
        %v1631 = vunpack.c.0.s8 %v1630
        %v1632 = vlaneseq
        %v1633 = vshrl.u32 %v1632, 7
        %v1634 = vsub.s32 %v1631, %v1633
        %v1635 = vrot.slane %v1624, %v1634
        %v1637 = vunpack.c.l.s4 1983009808
        %v1638 = vunpack.c.0.s8 %v1637
        %v1639 = vlaneseq
        %v1640 = vshrl.u32 %v1639, 7
        %v1641 = vsub.s32 %v1638, %v1640
        %v1642 = vrot.slane %v1628, %v1641
        %v1643 = vcombine.high %v1635, %v1635
        %1644 = vrot.lane.b32.xlu0 %v1635, 126
        %v1645 = vpop.permute.xlu0 %1644
        %1646 = vrot.lane.b32.xlu0 %v1643, 126
        %v1647 = vpop.permute.xlu0 %1646
        %1648 = vrot.lane.b32.xlu0 %v1642, 126
        %v1649 = vpop.permute.xlu0 %1648
        %v1650 = vsel %vm871, %v1645, %v1647
        %v1651 = vsel %vm871, %v1647, %v1649
        %v1653 = vsel %vm704, %v1626, 0
        %v1656 = vsel %vm708, %v1650, 0
        %v1659 = vsel %vm708, %v1651, 0
        %1661 = vmatprep.subr.bf16.mxu0 %v1659
        %1662 = vmatpush1.bf16.msra.mxu0 %v1656
        %1663 = vmatprep.subr.bf16.mxu0 0
        %1664 = vmatpush1.bf16.msra.mxu0 0
        %1665 = vmatprep.subr.bf16.mxu0 0
        %1666 = vmatpush1.bf16.msra.mxu0 0
        %1667 = vmatprep.subr.bf16.mxu0 0
        %1668 = vmatpush1.bf16.msra.mxu0 0
        %1669 = vmatprep.subr.bf16.mxu0 0
        %1670 = vmatpush1.bf16.msra.mxu0 0
        %1671 = vmatprep.subr.bf16.mxu0 0
        %1672 = vmatpush1.bf16.msra.mxu0 0
        %1673 = vmatprep.subr.bf16.mxu0 0
        %1674 = vmatpush1.bf16.msra.mxu0 0
        %1675 = vmatprep.subr.bf16.mxu0 0
        %1676 = vmatpush1.bf16.msra.mxu0 0
        %1677 = vmatprep.subr.bf16.mxu0 0
        %1678 = vmatpush1.bf16.msra.mxu0 0
        %1679 = vmatprep.subr.bf16.mxu0 0
        %1680 = vmatpush1.bf16.msra.mxu0 0
        %1681 = vmatprep.subr.bf16.mxu0 0
        %1682 = vmatpush1.bf16.msra.mxu0 0
        %1683 = vmatprep.subr.bf16.mxu0 0
        %1684 = vmatpush1.bf16.msra.mxu0 0
        %1685 = vmatprep.subr.bf16.mxu0 0
        %1686 = vmatpush1.bf16.msra.mxu0 0
        %1687 = vmatprep.subr.bf16.mxu0 0
        %1688 = vmatpush1.bf16.msra.mxu0 0
        %1689 = vmatprep.subr.bf16.mxu0 0
        %1690 = vmatpush1.bf16.msra.mxu0 0
        %1691 = vmatprep.subr.bf16.mxu0 0
        %1692 = vmatpush1.bf16.msra.mxu0 0
        %1693 = vmatprep.mubr.bf16.mxu0 0
        %1694 = vmatmul.mubr.bf16.gmra.mrb[0].mxu0 %v1653
        %v1695 = vpop.f32.mrb[0].mxu0
        %v1696 = vadd.f32 0.0, %v1695
        %v1697 = vpop.f32.mrb[0].mxu0
        %v1698 = vadd.f32 0.0, %v1697
        %v1699 = vpop.f32.mrb[0].mxu0
        %v1700 = vpop.f32.mrb[0].mxu0
        %1701 = vdwg.mxu0
        %v1702 = vadd.f32 %v1618, %v1696
        %v1703 = vadd.f32 %v1620, %v1698
        %v1704 = vmul.bf16 %v1484, %v930
        %s1705 = scalar_lea.vmem [#allocation17], 6
        %v1706 = vld [vmem:[%s1705] sm:$0x3]
        %v1708 = vcombine.high %v1704, %v1704
        %v1710 = vunpack.c.l.s4 1983009808
        %v1711 = vunpack.c.0.s8 %v1710
        %v1712 = vlaneseq
        %v1713 = vshrl.u32 %v1712, 7
        %v1714 = vsub.s32 %v1711, %v1713
        %v1715 = vrot.slane %v1704, %v1714
        %v1717 = vunpack.c.l.s4 1983009808
        %v1718 = vunpack.c.0.s8 %v1717
        %v1719 = vlaneseq
        %v1720 = vshrl.u32 %v1719, 7
        %v1721 = vsub.s32 %v1718, %v1720
        %v1722 = vrot.slane %v1708, %v1721
        %v1723 = vcombine.high %v1715, %v1715
        %1724 = vrot.lane.b32.xlu0 %v1715, 112
        %v1725 = vpop.permute.xlu0 %1724
        %1726 = vrot.lane.b32.xlu0 %v1723, 112
        %v1727 = vpop.permute.xlu0 %1726
        %1728 = vrot.lane.b32.xlu0 %v1722, 112
        %v1729 = vpop.permute.xlu0 %1728
        %v1730 = vsel %vm958, %v1725, %v1727
        %v1731 = vsel %vm958, %v1727, %v1729
        %v1733 = vsel %vm704, %v1706, 0
        %v1736 = vsel %vm708, %v1730, 0
        %v1739 = vsel %vm708, %v1731, 0
        %1741 = vmatprep.subr.bf16.mxu0 %v1739
        %1742 = vmatpush1.bf16.msra.mxu0 %v1736
        %1743 = vmatprep.subr.bf16.mxu0 0
        %1744 = vmatpush1.bf16.msra.mxu0 0
        %1745 = vmatprep.subr.bf16.mxu0 0
        %1746 = vmatpush1.bf16.msra.mxu0 0
        %1747 = vmatprep.subr.bf16.mxu0 0
        %1748 = vmatpush1.bf16.msra.mxu0 0
        %1749 = vmatprep.subr.bf16.mxu0 0
        %1750 = vmatpush1.bf16.msra.mxu0 0
        %1751 = vmatprep.subr.bf16.mxu0 0
        %1752 = vmatpush1.bf16.msra.mxu0 0
        %1753 = vmatprep.subr.bf16.mxu0 0
        %1754 = vmatpush1.bf16.msra.mxu0 0
        %1755 = vmatprep.subr.bf16.mxu0 0
        %1756 = vmatpush1.bf16.msra.mxu0 0
        %1757 = vmatprep.subr.bf16.mxu0 0
        %1758 = vmatpush1.bf16.msra.mxu0 0
        %1759 = vmatprep.subr.bf16.mxu0 0
        %1760 = vmatpush1.bf16.msra.mxu0 0
        %1761 = vmatprep.subr.bf16.mxu0 0
        %1762 = vmatpush1.bf16.msra.mxu0 0
        %1763 = vmatprep.subr.bf16.mxu0 0
        %1764 = vmatpush1.bf16.msra.mxu0 0
        %1765 = vmatprep.subr.bf16.mxu0 0
        %1766 = vmatpush1.bf16.msra.mxu0 0
        %1767 = vmatprep.subr.bf16.mxu0 0
        %1768 = vmatpush1.bf16.msra.mxu0 0
        %1769 = vmatprep.subr.bf16.mxu0 0
        %1770 = vmatpush1.bf16.msra.mxu0 0
        %1771 = vmatprep.subr.bf16.mxu0 0
        %1772 = vmatpush1.bf16.msra.mxu0 0
        %1773 = vmatprep.mubr.bf16.mxu0 0
        %1774 = vmatmul.mubr.bf16.gmra.mrb[0].mxu0 %v1733
        %v1775 = vpop.f32.mrb[0].mxu0
        %v1776 = vadd.f32 0.0, %v1775
        %v1777 = vpop.f32.mrb[0].mxu0
        %v1778 = vadd.f32 0.0, %v1777
        %v1779 = vpop.f32.mrb[0].mxu0
        %v1780 = vpop.f32.mrb[0].mxu0
        %1781 = vdwg.mxu0
        %v1782 = vadd.f32 %v1702, %v1776
        %v1783 = vadd.f32 %v1703, %v1778
        %s1784 = scalar_lea.vmem [#allocation17], 8
        %v1785 = vld [vmem:[%s1784] sm:$0x3]
        %1786 = vrot.lane.b32.xlu0 %v1498, 111
        %v1787 = vpop.permute.xlu0 %1786
        %1788 = vrot.lane.b32.xlu0 %v1506, 111
        %v1789 = vpop.permute.xlu0 %1788
        %1790 = vrot.lane.b32.xlu0 %v1505, 111
        %v1791 = vpop.permute.xlu0 %1790
        %v1792 = vsel %vm1021, %v1787, %v1789
        %v1793 = vsel %vm1021, %v1789, %v1791
        %v1795 = vsel %vm704, %v1785, 0
        %v1798 = vsel %vm708, %v1792, 0
        %v1801 = vsel %vm708, %v1793, 0
        %1803 = vmatprep.subr.bf16.mxu0 %v1801
        %1804 = vmatpush1.bf16.msra.mxu0 %v1798
        %1805 = vmatprep.subr.bf16.mxu0 0
        %1806 = vmatpush1.bf16.msra.mxu0 0
        %1807 = vmatprep.subr.bf16.mxu0 0
        %1808 = vmatpush1.bf16.msra.mxu0 0
        %1809 = vmatprep.subr.bf16.mxu0 0
        %1810 = vmatpush1.bf16.msra.mxu0 0
        %1811 = vmatprep.subr.bf16.mxu0 0
        %1812 = vmatpush1.bf16.msra.mxu0 0
        %1813 = vmatprep.subr.bf16.mxu0 0
        %1814 = vmatpush1.bf16.msra.mxu0 0
        %1815 = vmatprep.subr.bf16.mxu0 0
        %1816 = vmatpush1.bf16.msra.mxu0 0
        %1817 = vmatprep.subr.bf16.mxu0 0
        %1818 = vmatpush1.bf16.msra.mxu0 0
        %1819 = vmatprep.subr.bf16.mxu0 0
        %1820 = vmatpush1.bf16.msra.mxu0 0
        %1821 = vmatprep.subr.bf16.mxu0 0
        %1822 = vmatpush1.bf16.msra.mxu0 0
        %1823 = vmatprep.subr.bf16.mxu0 0
        %1824 = vmatpush1.bf16.msra.mxu0 0
        %1825 = vmatprep.subr.bf16.mxu0 0
        %1826 = vmatpush1.bf16.msra.mxu0 0
        %1827 = vmatprep.subr.bf16.mxu0 0
        %1828 = vmatpush1.bf16.msra.mxu0 0
        %1829 = vmatprep.subr.bf16.mxu0 0
        %1830 = vmatpush1.bf16.msra.mxu0 0
        %1831 = vmatprep.subr.bf16.mxu0 0
        %1832 = vmatpush1.bf16.msra.mxu0 0
        %1833 = vmatprep.subr.bf16.mxu0 0
        %1834 = vmatpush1.bf16.msra.mxu0 0
        %1835 = vmatprep.mubr.bf16.mxu0 0
        %1836 = vmatmul.mubr.bf16.gmra.mrb[0].mxu0 %v1795
        %v1837 = vpop.f32.mrb[0].mxu0
        %v1838 = vadd.f32 0.0, %v1837
        %v1839 = vpop.f32.mrb[0].mxu0
        %v1840 = vadd.f32 0.0, %v1839
        %v1841 = vpop.f32.mrb[0].mxu0
        %v1842 = vpop.f32.mrb[0].mxu0
        %1843 = vdwg.mxu0
        %v1844 = vadd.f32 %v1782, %v1838
        %v1845 = vadd.f32 %v1783, %v1840
        %v1846 = vmul.bf16 %v1484, %v1080
        %s1847 = scalar_lea.vmem [#allocation17], 10
        %v1848 = vld [vmem:[%s1847] sm:$0x3]
        %v1850 = vcombine.high %v1846, %v1846
        %v1852 = vunpack.c.l.s4 1983009808
        %v1853 = vunpack.c.0.s8 %v1852
        %v1854 = vlaneseq
        %v1855 = vshrl.u32 %v1854, 7
        %v1856 = vsub.s32 %v1853, %v1855
        %v1857 = vrot.slane %v1846, %v1856
        %v1859 = vunpack.c.l.s4 1983009808
        %v1860 = vunpack.c.0.s8 %v1859
        %v1861 = vlaneseq
        %v1862 = vshrl.u32 %v1861, 7
        %v1863 = vsub.s32 %v1860, %v1862
        %v1864 = vrot.slane %v1850, %v1863
        %v1865 = vcombine.high %v1857, %v1857
        %1866 = vrot.lane.b32.xlu0 %v1857, 110
        %v1867 = vpop.permute.xlu0 %1866
        %1868 = vrot.lane.b32.xlu0 %v1865, 110
        %v1869 = vpop.permute.xlu0 %1868
        %1870 = vrot.lane.b32.xlu0 %v1864, 110
        %v1871 = vpop.permute.xlu0 %1870
        %v1872 = vsel %vm1108, %v1867, %v1869
        %v1873 = vsel %vm1108, %v1869, %v1871
        %v1875 = vsel %vm704, %v1848, 0
        %v1878 = vsel %vm708, %v1872, 0
        %v1881 = vsel %vm708, %v1873, 0
        %1883 = vmatprep.subr.bf16.mxu0 %v1881
        %1884 = vmatpush1.bf16.msra.mxu0 %v1878
        %1885 = vmatprep.subr.bf16.mxu0 0
        %1886 = vmatpush1.bf16.msra.mxu0 0
        %1887 = vmatprep.subr.bf16.mxu0 0
        %1888 = vmatpush1.bf16.msra.mxu0 0
        %1889 = vmatprep.subr.bf16.mxu0 0
        %1890 = vmatpush1.bf16.msra.mxu0 0
        %1891 = vmatprep.subr.bf16.mxu0 0
        %1892 = vmatpush1.bf16.msra.mxu0 0
        %1893 = vmatprep.subr.bf16.mxu0 0
        %1894 = vmatpush1.bf16.msra.mxu0 0
        %1895 = vmatprep.subr.bf16.mxu0 0
        %1896 = vmatpush1.bf16.msra.mxu0 0
        %1897 = vmatprep.subr.bf16.mxu0 0
        %1898 = vmatpush1.bf16.msra.mxu0 0
        %1899 = vmatprep.subr.bf16.mxu0 0
        %1900 = vmatpush1.bf16.msra.mxu0 0
        %1901 = vmatprep.subr.bf16.mxu0 0
        %1902 = vmatpush1.bf16.msra.mxu0 0
        %1903 = vmatprep.subr.bf16.mxu0 0
        %1904 = vmatpush1.bf16.msra.mxu0 0
        %1905 = vmatprep.subr.bf16.mxu0 0
        %1906 = vmatpush1.bf16.msra.mxu0 0
        %1907 = vmatprep.subr.bf16.mxu0 0
        %1908 = vmatpush1.bf16.msra.mxu0 0
        %1909 = vmatprep.subr.bf16.mxu0 0
        %1910 = vmatpush1.bf16.msra.mxu0 0
        %1911 = vmatprep.subr.bf16.mxu0 0
        %1912 = vmatpush1.bf16.msra.mxu0 0
        %1913 = vmatprep.subr.bf16.mxu0 0
        %1914 = vmatpush1.bf16.msra.mxu0 0
        %1915 = vmatprep.mubr.bf16.mxu0 0
        %1916 = vmatmul.mubr.bf16.gmra.mrb[0].mxu0 %v1875
        %v1917 = vpop.f32.mrb[0].mxu0
        %v1918 = vadd.f32 0.0, %v1917
        %v1919 = vpop.f32.mrb[0].mxu0
        %v1920 = vadd.f32 0.0, %v1919
        %v1921 = vpop.f32.mrb[0].mxu0
        %v1922 = vpop.f32.mrb[0].mxu0
        %1923 = vdwg.mxu0
        %v1924 = vadd.f32 %v1844, %v1918
        %v1925 = vadd.f32 %v1845, %v1920
        %v1926 = vmul.bf16 %v1484, %v1167
        %s1927 = scalar_lea.vmem [#allocation17], 12
        %v1928 = vld [vmem:[%s1927] sm:$0x3]
        %v1930 = vcombine.high %v1926, %v1926
        %v1932 = vunpack.c.l.s4 1983009808
        %v1933 = vunpack.c.0.s8 %v1932
        %v1934 = vlaneseq
        %v1935 = vshrl.u32 %v1934, 7
        %v1936 = vsub.s32 %v1933, %v1935
        %v1937 = vrot.slane %v1926, %v1936
        %v1939 = vunpack.c.l.s4 1983009808
        %v1940 = vunpack.c.0.s8 %v1939
        %v1941 = vlaneseq
        %v1942 = vshrl.u32 %v1941, 7
        %v1943 = vsub.s32 %v1940, %v1942
        %v1944 = vrot.slane %v1930, %v1943
        %v1945 = vcombine.high %v1937, %v1937
        %1946 = vrot.lane.b32.xlu0 %v1937, 96
        %v1947 = vpop.permute.xlu0 %1946
        %1948 = vrot.lane.b32.xlu0 %v1945, 96
        %v1949 = vpop.permute.xlu0 %1948
        %1950 = vrot.lane.b32.xlu0 %v1944, 96
        %v1951 = vpop.permute.xlu0 %1950
        %v1952 = vsel %vm1195, %v1947, %v1949
        %v1953 = vsel %vm1195, %v1949, %v1951
        %v1955 = vsel %vm704, %v1928, 0
        %v1958 = vsel %vm708, %v1952, 0
        %v1961 = vsel %vm708, %v1953, 0
        %1963 = vmatprep.subr.bf16.mxu0 %v1961
        %1964 = vmatpush1.bf16.msra.mxu0 %v1958
        %1965 = vmatprep.subr.bf16.mxu0 0
        %1966 = vmatpush1.bf16.msra.mxu0 0
        %1967 = vmatprep.subr.bf16.mxu0 0
        %1968 = vmatpush1.bf16.msra.mxu0 0
        %1969 = vmatprep.subr.bf16.mxu0 0
        %1970 = vmatpush1.bf16.msra.mxu0 0
        %1971 = vmatprep.subr.bf16.mxu0 0
        %1972 = vmatpush1.bf16.msra.mxu0 0
        %1973 = vmatprep.subr.bf16.mxu0 0
        %1974 = vmatpush1.bf16.msra.mxu0 0
        %1975 = vmatprep.subr.bf16.mxu0 0
        %1976 = vmatpush1.bf16.msra.mxu0 0
        %1977 = vmatprep.subr.bf16.mxu0 0
        %1978 = vmatpush1.bf16.msra.mxu0 0
        %1979 = vmatprep.subr.bf16.mxu0 0
        %1980 = vmatpush1.bf16.msra.mxu0 0
        %1981 = vmatprep.subr.bf16.mxu0 0
        %1982 = vmatpush1.bf16.msra.mxu0 0
        %1983 = vmatprep.subr.bf16.mxu0 0
        %1984 = vmatpush1.bf16.msra.mxu0 0
        %1985 = vmatprep.subr.bf16.mxu0 0
        %1986 = vmatpush1.bf16.msra.mxu0 0
        %1987 = vmatprep.subr.bf16.mxu0 0
        %1988 = vmatpush1.bf16.msra.mxu0 0
        %1989 = vmatprep.subr.bf16.mxu0 0
        %1990 = vmatpush1.bf16.msra.mxu0 0
        %1991 = vmatprep.subr.bf16.mxu0 0
        %1992 = vmatpush1.bf16.msra.mxu0 0
        %1993 = vmatprep.subr.bf16.mxu0 0
        %1994 = vmatpush1.bf16.msra.mxu0 0
        %1995 = vmatprep.mubr.bf16.mxu0 0
        %1996 = vmatmul.mubr.bf16.gmra.mrb[0].mxu0 %v1955
        %v1997 = vpop.f32.mrb[0].mxu0
        %v1998 = vadd.f32 0.0, %v1997
        %v1999 = vpop.f32.mrb[0].mxu0
        %v2000 = vadd.f32 0.0, %v1999
        %v2001 = vpop.f32.mrb[0].mxu0
        %v2002 = vpop.f32.mrb[0].mxu0
        %2003 = vdwg.mxu0
        %v2004 = vadd.f32 %v1924, %v1998
        %v2005 = vadd.f32 %v1925, %v2000
        %s2006 = scalar_lea.vmem [#allocation17], 14
        %v2007 = vld [vmem:[%s2006] sm:$0x3]
        %2008 = vrot.lane.b32.xlu0 %v1498, 95
        %v2009 = vpop.permute.xlu0 %2008
        %2010 = vrot.lane.b32.xlu0 %v1506, 95
        %v2011 = vpop.permute.xlu0 %2010
        %2012 = vrot.lane.b32.xlu0 %v1505, 95
        %v2013 = vpop.permute.xlu0 %2012
        %v2014 = vsel %vm1258, %v2009, %v2011
        %v2015 = vsel %vm1258, %v2011, %v2013
        %v2017 = vsel %vm704, %v2007, 0
        %v2020 = vsel %vm708, %v2014, 0
        %v2023 = vsel %vm708, %v2015, 0
        %2025 = vmatprep.subr.bf16.mxu0 %v2023
        %2026 = vmatpush1.bf16.msra.mxu0 %v2020
        %2027 = vmatprep.subr.bf16.mxu0 0
        %2028 = vmatpush1.bf16.msra.mxu0 0
        %2029 = vmatprep.subr.bf16.mxu0 0
        %2030 = vmatpush1.bf16.msra.mxu0 0
        %2031 = vmatprep.subr.bf16.mxu0 0
        %2032 = vmatpush1.bf16.msra.mxu0 0
        %2033 = vmatprep.subr.bf16.mxu0 0
        %2034 = vmatpush1.bf16.msra.mxu0 0
        %2035 = vmatprep.subr.bf16.mxu0 0
        %2036 = vmatpush1.bf16.msra.mxu0 0
        %2037 = vmatprep.subr.bf16.mxu0 0
        %2038 = vmatpush1.bf16.msra.mxu0 0
        %2039 = vmatprep.subr.bf16.mxu0 0
        %2040 = vmatpush1.bf16.msra.mxu0 0
        %2041 = vmatprep.subr.bf16.mxu0 0
        %2042 = vmatpush1.bf16.msra.mxu0 0
        %2043 = vmatprep.subr.bf16.mxu0 0
        %2044 = vmatpush1.bf16.msra.mxu0 0
        %2045 = vmatprep.subr.bf16.mxu0 0
        %2046 = vmatpush1.bf16.msra.mxu0 0
        %2047 = vmatprep.subr.bf16.mxu0 0
        %2048 = vmatpush1.bf16.msra.mxu0 0
        %2049 = vmatprep.subr.bf16.mxu0 0
        %2050 = vmatpush1.bf16.msra.mxu0 0
        %2051 = vmatprep.subr.bf16.mxu0 0
        %2052 = vmatpush1.bf16.msra.mxu0 0
        %2053 = vmatprep.subr.bf16.mxu0 0
        %2054 = vmatpush1.bf16.msra.mxu0 0
        %2055 = vmatprep.subr.bf16.mxu0 0
        %2056 = vmatpush1.bf16.msra.mxu0 0
        %2057 = vmatprep.mubr.bf16.mxu0 0
        %2058 = vmatmul.mubr.bf16.gmra.mrb[0].mxu0 %v2017
        %v2059 = vpop.f32.mrb[0].mxu0
        %v2060 = vadd.f32 0.0, %v2059
        %v2061 = vpop.f32.mrb[0].mxu0
        %v2062 = vadd.f32 0.0, %v2061
        %v2063 = vpop.f32.mrb[0].mxu0
        %v2064 = vpop.f32.mrb[0].mxu0
        %2065 = vdwg.mxu0
        %v2066 = vadd.f32 %v2004, %v2060
        %v2067 = vadd.f32 %v2005, %v2062
        %v2068 = vmul.bf16 %v1484, %v1317
        %s2069 = scalar_lea.vmem [#allocation17], 16
        %v2070 = vld [vmem:[%s2069] sm:$0x3]
        %v2072 = vcombine.high %v2068, %v2068
        %v2074 = vunpack.c.l.s4 1983009808
        %v2075 = vunpack.c.0.s8 %v2074
        %v2076 = vlaneseq
        %v2077 = vshrl.u32 %v2076, 7
        %v2078 = vsub.s32 %v2075, %v2077
        %v2079 = vrot.slane %v2068, %v2078
        %v2081 = vunpack.c.l.s4 1983009808
        %v2082 = vunpack.c.0.s8 %v2081
        %v2083 = vlaneseq
        %v2084 = vshrl.u32 %v2083, 7
        %v2085 = vsub.s32 %v2082, %v2084
        %v2086 = vrot.slane %v2072, %v2085
        %v2087 = vcombine.high %v2079, %v2079
        %2088 = vrot.lane.b32.xlu0 %v2079, 94
        %v2089 = vpop.permute.xlu0 %2088
        %2090 = vrot.lane.b32.xlu0 %v2087, 94
        %v2091 = vpop.permute.xlu0 %2090
        %2092 = vrot.lane.b32.xlu0 %v2086, 94
        %v2093 = vpop.permute.xlu0 %2092
        %v2094 = vsel %vm1345, %v2089, %v2091
        %v2095 = vsel %vm1345, %v2091, %v2093
        %v2097 = vsel %vm704, %v2070, 0
        %v2100 = vsel %vm708, %v2094, 0
        %v2103 = vsel %vm708, %v2095, 0
        %2105 = vmatprep.subr.bf16.mxu0 %v2103
        %2106 = vmatpush1.bf16.msra.mxu0 %v2100
        %2107 = vmatprep.subr.bf16.mxu0 0
        %2108 = vmatpush1.bf16.msra.mxu0 0
        %2109 = vmatprep.subr.bf16.mxu0 0
        %2110 = vmatpush1.bf16.msra.mxu0 0
        %2111 = vmatprep.subr.bf16.mxu0 0
        %2112 = vmatpush1.bf16.msra.mxu0 0
        %2113 = vmatprep.subr.bf16.mxu0 0
        %2114 = vmatpush1.bf16.msra.mxu0 0
        %2115 = vmatprep.subr.bf16.mxu0 0
        %2116 = vmatpush1.bf16.msra.mxu0 0
        %2117 = vmatprep.subr.bf16.mxu0 0
        %2118 = vmatpush1.bf16.msra.mxu0 0
        %2119 = vmatprep.subr.bf16.mxu0 0
        %2120 = vmatpush1.bf16.msra.mxu0 0
        %2121 = vmatprep.subr.bf16.mxu0 0
        %2122 = vmatpush1.bf16.msra.mxu0 0
        %2123 = vmatprep.subr.bf16.mxu0 0
        %2124 = vmatpush1.bf16.msra.mxu0 0
        %2125 = vmatprep.subr.bf16.mxu0 0
        %2126 = vmatpush1.bf16.msra.mxu0 0
        %2127 = vmatprep.subr.bf16.mxu0 0
        %2128 = vmatpush1.bf16.msra.mxu0 0
        %2129 = vmatprep.subr.bf16.mxu0 0
        %2130 = vmatpush1.bf16.msra.mxu0 0
        %2131 = vmatprep.subr.bf16.mxu0 0
        %2132 = vmatpush1.bf16.msra.mxu0 0
        %2133 = vmatprep.subr.bf16.mxu0 0
        %2134 = vmatpush1.bf16.msra.mxu0 0
        %2135 = vmatprep.subr.bf16.mxu0 0
        %2136 = vmatpush1.bf16.msra.mxu0 0
        %2137 = vmatprep.mubr.bf16.mxu0 0
        %2138 = vmatmul.mubr.bf16.gmra.mrb[0].mxu0 %v2097
        %v2139 = vpop.f32.mrb[0].mxu0
        %v2140 = vadd.f32 0.0, %v2139
        %v2141 = vpop.f32.mrb[0].mxu0
        %v2142 = vadd.f32 0.0, %v2141
        %v2143 = vpop.f32.mrb[0].mxu0
        %v2144 = vpop.f32.mrb[0].mxu0
        %2145 = vdwg.mxu0
        %v2146 = vadd.f32 %v2066, %v2140
        %v2147 = vadd.f32 %v2067, %v2142
        %2149 = vset.pattern.permute.xlu0 0
        %2150 = vperm.xlu0 %2149, %v1485
        %v2151 = vpop.permute.xlu0 %2150
        %v2153 = vadd.f32 %v2146, %v2151
        %v2154 = vadd.f32 %v2147, %v2151
        %vm2155 = vcmp.ge.f32.partialorder %v2153, 0.0
        %vm2156 = vcmp.ge.f32.partialorder %v2154, 0.0
        %v2157 = vmul.f32 %v2153, 0.2
        %v2158 = vmul.f32 %v2154, 0.2
        %v2159 = vsel %vm2155, %v2153, %v2157
        %v2160 = vsel %vm2156, %v2154, %v2158
        %v2161 = vld [vmem:[%s526] sm:$0xff]
        %v2164 = vcombine.low %v2159, %v2160
        %v2166 = vadd.f32 %v2161, %v2164
        %v2167 = vld [vmem:[#allocation20] sm:$0x3]
        %v2169 = vcombine.high %v2166, %v2166
        %v2171 = vpack.c.bf16 %v2166, %v2166
        %v2172 = vpack.c.bf16 %v2169, %v2169
        %s2173 = scalar_lea.vmem [#allocation20], 2
        %v2174 = vld [vmem:[%s2173] sm:$0x3]
        %v2175 = vld [vmem:[%s535] sm:$0xf]
        %v2178 = vunpack.c.l.s4 1983009808
        %v2179 = vunpack.c.0.s8 %v2178
        %v2180 = vlaneseq
        %v2181 = vshrl.u32 %v2180, 7
        %v2182 = vsub.s32 %v2179, %v2181
        %v2183 = vrot.slane %v2175, %v2182
        %v2184 = vcombine.high %v2183, %v2183
        %v2186 = vsel %vm704, %v2174, 0
        %v2189 = vsel %vm708, %v2183, 0
        %v2192 = vsel %vm708, %v2184, 0
        %2194 = vmatprep.subr.bf16.mxu0 %v2192
        %2195 = vmatpush1.bf16.msra.mxu0 %v2189
        %2196 = vmatprep.subr.bf16.mxu0 0
        %2197 = vmatpush1.bf16.msra.mxu0 0
        %2198 = vmatprep.subr.bf16.mxu0 0
        %2199 = vmatpush1.bf16.msra.mxu0 0
        %2200 = vmatprep.subr.bf16.mxu0 0
        %2201 = vmatpush1.bf16.msra.mxu0 0
        %2202 = vmatprep.subr.bf16.mxu0 0
        %2203 = vmatpush1.bf16.msra.mxu0 0
        %2204 = vmatprep.subr.bf16.mxu0 0
        %2205 = vmatpush1.bf16.msra.mxu0 0
        %2206 = vmatprep.subr.bf16.mxu0 0
        %2207 = vmatpush1.bf16.msra.mxu0 0
        %2208 = vmatprep.subr.bf16.mxu0 0
        %2209 = vmatpush1.bf16.msra.mxu0 0
        %2210 = vmatprep.subr.bf16.mxu0 0
        %2211 = vmatpush1.bf16.msra.mxu0 0
        %2212 = vmatprep.subr.bf16.mxu0 0
        %2213 = vmatpush1.bf16.msra.mxu0 0
        %2214 = vmatprep.subr.bf16.mxu0 0
        %2215 = vmatpush1.bf16.msra.mxu0 0
        %2216 = vmatprep.subr.bf16.mxu0 0
        %2217 = vmatpush1.bf16.msra.mxu0 0
        %2218 = vmatprep.subr.bf16.mxu0 0
        %2219 = vmatpush1.bf16.msra.mxu0 0
        %2220 = vmatprep.subr.bf16.mxu0 0
        %2221 = vmatpush1.bf16.msra.mxu0 0
        %2222 = vmatprep.subr.bf16.mxu0 0
        %2223 = vmatpush1.bf16.msra.mxu0 0
        %2224 = vmatprep.subr.bf16.mxu0 0
        %2225 = vmatpush1.bf16.msra.mxu0 0
        %2226 = vmatprep.mubr.bf16.mxu0 0
        %2227 = vmatmul.mubr.bf16.gmra.mrb[0].mxu0 %v2186
        %v2228 = vpop.f32.mrb[0].mxu0
        %v2229 = vadd.f32 0.0, %v2228
        %v2230 = vpop.f32.mrb[0].mxu0
        %v2231 = vadd.f32 0.0, %v2230
        %v2232 = vpop.f32.mrb[0].mxu0
        %v2233 = vpop.f32.mrb[0].mxu0
        %2234 = vdwg.mxu0
        %v2236 = vsel %vm704, %v2167, 0
        %v2239 = vsel %vm708, %v2171, 0
        %v2242 = vsel %vm708, %v2172, 0
        %2244 = vmatprep.subr.bf16.mxu0 %v2242
        %2245 = vmatpush1.bf16.msra.mxu0 %v2239
        %2246 = vmatprep.subr.bf16.mxu0 0
        %2247 = vmatpush1.bf16.msra.mxu0 0
        %2248 = vmatprep.subr.bf16.mxu0 0
        %2249 = vmatpush1.bf16.msra.mxu0 0
        %2250 = vmatprep.subr.bf16.mxu0 0
        %2251 = vmatpush1.bf16.msra.mxu0 0
        %2252 = vmatprep.subr.bf16.mxu0 0
        %2253 = vmatpush1.bf16.msra.mxu0 0
        %2254 = vmatprep.subr.bf16.mxu0 0
        %2255 = vmatpush1.bf16.msra.mxu0 0
        %2256 = vmatprep.subr.bf16.mxu0 0
        %2257 = vmatpush1.bf16.msra.mxu0 0
        %2258 = vmatprep.subr.bf16.mxu0 0
        %2259 = vmatpush1.bf16.msra.mxu0 0
        %2260 = vmatprep.subr.bf16.mxu0 0
        %2261 = vmatpush1.bf16.msra.mxu0 0
        %2262 = vmatprep.subr.bf16.mxu0 0
        %2263 = vmatpush1.bf16.msra.mxu0 0
        %2264 = vmatprep.subr.bf16.mxu0 0
        %2265 = vmatpush1.bf16.msra.mxu0 0
        %2266 = vmatprep.subr.bf16.mxu0 0
        %2267 = vmatpush1.bf16.msra.mxu0 0
        %2268 = vmatprep.subr.bf16.mxu0 0
        %2269 = vmatpush1.bf16.msra.mxu0 0
        %2270 = vmatprep.subr.bf16.mxu0 0
        %2271 = vmatpush1.bf16.msra.mxu0 0
        %2272 = vmatprep.subr.bf16.mxu0 0
        %2273 = vmatpush1.bf16.msra.mxu0 0
        %2274 = vmatprep.subr.bf16.mxu0 0
        %2275 = vmatpush1.bf16.msra.mxu0 0
        %2276 = vmatprep.mubr.bf16.mxu0 0
        %2277 = vmatmul.mubr.bf16.gmra.mrb[0].mxu0 %v2236
        %v2278 = vpop.f32.mrb[0].mxu0
        %v2279 = vadd.f32 %v2229, %v2278
        %v2280 = vpop.f32.mrb[0].mxu0
        %v2281 = vadd.f32 %v2231, %v2280
        %v2282 = vpop.f32.mrb[0].mxu0
        %v2283 = vpop.f32.mrb[0].mxu0
        %2284 = vdwg.mxu0
        %v2285 = vld [vmem:[#allocation21] sm:$0xf]
        %2287 = vset.pattern.permute.xlu0 0
        %2288 = vperm.xlu0 %2287, %v2285
        %v2289 = vpop.permute.xlu0 %2288
        %v2291 = vadd.f32 %v2279, %v2289
        %v2292 = vadd.f32 %v2281, %v2289
        %v2294 = vcombine.high %v2161, %v2161
        %v2296 = vadd.f32 %v2291, %v2161
        %v2297 = vadd.f32 %v2292, %v2294
        %v2300 = vcombine.low %v2296, %v2297
        %2302 = vst [vmem:[%s621] sm:$0xff] %v2300
        %s2303 = sand.u32 %s312, 1
        %s2304 = scalar_lea.sflag [#allocation5], %s2303
        %s2305 = sand.u32 %s312, 1
        %s2306 = smul.addr %s2305, 8
        %s2307 = scalar_lea.vmem [#allocation23], %s2306
        // Predicated region
        $region117: #{cab_forward.4} parent=67 // pred_check
          %p2308 = pneg %p322
        $region118: #{cab_forward.4} parent=67 // pred_check_branch
          %2310 = sbr.rel (%p2308) target = $region120
        $region119: #{cab_forward.4} parent=67 // pred_region
          %s2312 = ssub.s32 128, 128
          %2313 = vsyncadd %s2304, %s2312
          %s2314 = smul.addr %s37, 2
          %s2315 = smul.addr %s2314, 64
          %s2316 = scalar_lea.hbm %s12, %s2315
          %s2318 = sshll.u32 %s2307, 4
          %s2319 = int_to_ptr.vmem [resolvable:$true] %s2318
          %2321 = dma.vmem_to_hbm [thread:$0]  %s2319, 128, %s2316, %s2304
        $region120: #{cab_forward.4} parent=67 // pred_fallthru
          _
      $region68: #{cab_forward.4} parent=5 // pred_fallthru
        _
      %p2322 = scmp.le.s32.totalorder 2, %s32
      // Predicated region
      $region121: #{cab_forward.4} parent=5 // pred_check
        %p2323 = pneg %p2322
      $region122: #{cab_forward.4} parent=5 // pred_check_branch
        %2325 = sbr.rel (%p2323) target = $region124
      $region123: #{cab_forward.4} parent=5 // pred_region
        %s2326 = ssub.s32 %s32, 2
        // Predicated region
        $region125: #{cab_forward.4} parent=123 // pred_check
          %p2327 = pneg %p328
        $region126: #{cab_forward.4} parent=123 // pred_check_branch
          %2329 = sbr.rel (%p2327) target = $region128
        $region127: #{cab_forward.4} parent=123 // pred_region
          %s2330 = sand.u32 %s313, 1
          %s2331 = scalar_lea.sflag [#allocation5], %s2330
          %s2332 = sand.u32 %s313, 1
          %s2333 = smul.addr %s2332, 8
          %s2334 = scalar_lea.vmem [#allocation23], %s2333
          %2335 = dma.done %s2331, 128
        $region128: #{cab_forward.4} parent=123 // pred_fallthru
          _
      $region124: #{cab_forward.4} parent=5 // pred_fallthru
        _
    $region6: #{cab_forward.4} parent=1 // loop_footer
      %s36 = sadd.s32 1, %s32
    $region7: #{cab_forward.4} parent=1 // loop_footer_branch
      %31 = sbr.rel target = $region3
    $region8: #{cab_forward.4} parent=1 // loop_exit
      _
    %2336 = vsyncpa [#allocation4], 1
    %s2337 = scalar_lea.sflag [#allocation4], 1
    %2338 = vsyncpa %s2337, 1
    %2339 = vsyncpa [#allocation7], 1
    %s2340 = scalar_lea.sflag [#allocation7], 1
    %2341 = vsyncpa %s2340, 1
    %2342 = vsyncpa [#allocation10], 1
    %2343 = vsyncpa [#allocation13], 1
    %2344 = vsyncpa [#allocation16], 1
    %2345 = vsyncpa [#allocation19], 1
    %2346 = vsyncpa [#allocation22], 1
    %2347 = vsyncpa [#allocation5], 1
    %s2348 = scalar_lea.sflag [#allocation5], 1
    %2349 = vsyncpa %s2348, 1

</llo_original>
